<compile_context>
chip_gen: v7x
topology: tpu7x:2x2x1
jax: 0.10.0
libtpu: 0.0.40
codegen_flags: <defaults>
</compile_context>

<pallas_src>
import jax
import jax.numpy as jnp
from jax.experimental import pallas as pl
from jax.experimental.pallas import tpu as pltpu


def jungmin3_kernel(x_ref,
                    wdw_ref, bdw_ref, wpw_ref, bpw_ref, gamma_ref, beta_ref,
                    w1t_ref, b1_ref, w2t_ref, b2_ref,
                    o_ref, xpad_ref):
    B, T, C = x_ref.shape
    n = B * T
    inv_n = 1.0 / n
    eps = 1e-5

    # Zero the padded scratch once; only rows [2, T+2) are rewritten each layer,
    # so the 2-row halo on each side stays zero ("same" padding for k=5).
    xpad_ref[...] = jnp.zeros_like(xpad_ref)

    cur = x_ref[...]                                      # (B, T, C) f32

    # ---- 3x [depthwise conv(k=5) -> pointwise 1x1 -> BatchNorm -> ReLU] ----
    for l in range(3):
        xpad_ref[:, 2:T + 2, :] = cur
        xp = xpad_ref[...]                                # (B, T+4, C)

        # Depthwise FIR: 5 shifted multiply-adds along T (sublanes),
        # per-channel taps broadcast along lanes.
        wdw_l = wdw_ref[l]                                # (5, C)
        acc = xp[:, 0:T, :] * wdw_l[0:1, :]
        for k in range(1, 5):
            acc = acc + xp[:, k:k + T, :] * wdw_l[k:k + 1, :]
        acc = acc + bdw_ref[l]                            # (1, C) broadcast

        # Pointwise 1x1 conv: one MXU matmul (B*T, C) @ (C, C), bf16 in / f32 acc.
        pw = jnp.dot(acc.reshape(n, C).astype(jnp.bfloat16), wpw_ref[l],
                     preferred_element_type=jnp.float32) + bpw_ref[l]

        # BatchNorm1d with training-mode batch statistics over (B*T),
        # single-pass (sum / sum-of-squares), biased variance, per-channel lanes.
        s = jnp.sum(pw, axis=0, keepdims=True)            # (1, C)
        ss = jnp.sum(pw * pw, axis=0, keepdims=True)      # (1, C)
        mean = s * inv_n
        var = ss * inv_n - mean * mean
        scale = jax.lax.rsqrt(var + eps) * gamma_ref[l]   # (1, C)
        shift = beta_ref[l] - mean * scale                # (1, C)
        cur = jnp.maximum(pw * scale + shift, 0.0).reshape(B, T, C)   # ReLU

    # ---- FC head: Linear(514, 256) -> ReLU -> Linear(256, 10) ----
    h = cur.reshape(n, C)
    h1 = jnp.dot(h.astype(jnp.bfloat16), w1t_ref[...],
                 preferred_element_type=jnp.float32) + b1_ref[...]
    h1 = jnp.maximum(h1, 0.0)
    out = jnp.dot(h1.astype(jnp.bfloat16), w2t_ref[...],
                  preferred_element_type=jnp.float32) + b2_ref[...]
    o_ref[...] = out.reshape(B, T, -1)


def jungmin3_forward(x, params):
    B, M, T, Fm = x.shape
    C = M * Fm
    O = params["w2t"].shape[1]
    # (B, M, T, F) -> (B, T, M, F) -> (B, T, M*F): channels-last with channel
    # index m*F + f (same ordering as PyTorch permute(0,1,3,2).reshape(B,-1,T)).
    xc = jnp.transpose(x, (0, 2, 1, 3)).reshape(B, T, C)
    vmem = pl.BlockSpec(memory_space=pltpu.MemorySpace.VMEM)
    # No grid: the whole problem fits comfortably in VMEM on v5e/v6e/v7x.
    # TODO(synk): for realistic T (thousands of frames) tile T with a 2-frame
    # halo and a "parallel" grid axis (v7x dual-TC); BN stats would then need a
    # cross-tile reduction to stay correct.
    return pl.pallas_call(
        jungmin3_kernel,
        out_shape=jax.ShapeDtypeStruct((B, T, O), jnp.float32),
        in_specs=[vmem] * 11,
        out_specs=vmem,
        scratch_shapes=[pltpu.VMEM((B, T + 4, C), jnp.float32)],
    )(xc,
      params["wdw"], params["bdw"], params["wpw_t"], params["bpw"],
      params["gamma"], params["beta"],
      params["w1t"], params["b1"], params["w2t"], params["b2"])


def init_params(C=514, H=256, O=10):
    keys = jax.random.split(jax.random.PRNGKey(0), 4)
    # Per-layer weights stacked along a leading "layer" axis of size 3.
    wdw = jax.random.normal(keys[0], (3, 5, C), jnp.float32) * 0.05   # depthwise (C,1,5) taps
    bdw = jnp.zeros((3, 1, C), jnp.float32)
    # Pointwise Conv1d weight (C_out, C_in, 1) stored pre-transposed as
    # (C_in, C_out), bf16 for the MXU.
    wpw_t = (jax.random.normal(keys[1], (3, C, C), jnp.float32) * 0.05).astype(jnp.bfloat16)
    bpw = jnp.zeros((3, 1, C), jnp.float32)
    gamma = jnp.ones((3, 1, C), jnp.float32)                          # BN weight
    beta = jnp.zeros((3, 1, C), jnp.float32)                          # BN bias
    w1t = (jax.random.normal(keys[2], (C, H), jnp.float32) * 0.05).astype(jnp.bfloat16)
    b1 = jnp.zeros((1, H), jnp.float32)
    w2t = (jax.random.normal(keys[3], (H, O), jnp.float32) * 0.05).astype(jnp.bfloat16)
    b2 = jnp.zeros((1, O), jnp.float32)
    return dict(wdw=wdw, bdw=bdw, wpw_t=wpw_t, bpw=bpw, gamma=gamma, beta=beta,
                w1t=w1t, b1=b1, w2t=w2t, b2=b2)


if __name__ == "__main__":
    # input: (batch_size, mic_channels, time_steps, mel_bins); M * F must be 514
    B, M, T, Fm = 2, 2, 8, 257
    x = jax.random.normal(jax.random.PRNGKey(0), (B, M, T, Fm), jnp.float32)
    params = init_params()
    out = jax.jit(jungmin3_forward)(x, params)
    jax.block_until_ready(out)
    assert out.shape == (B, T, 10), out.shape
    assert out.dtype == jnp.float32
    print("KERNEL_OK")
</pallas_src>

<mosaic_0001>
module attributes {stable_mosaic.version = 11 : i64} {
  func.func @jungmin3_kernel(%arg0: memref<2x8x514xf32, #tpu.memory_space<vmem>>, %arg1: memref<3x5x514xf32, #tpu.memory_space<vmem>>, %arg2: memref<3x1x514xf32, #tpu.memory_space<vmem>>, %arg3: memref<3x514x514xbf16, #tpu.memory_space<vmem>>, %arg4: memref<3x1x514xf32, #tpu.memory_space<vmem>>, %arg5: memref<3x1x514xf32, #tpu.memory_space<vmem>>, %arg6: memref<3x1x514xf32, #tpu.memory_space<vmem>>, %arg7: memref<514x256xbf16, #tpu.memory_space<vmem>>, %arg8: memref<1x256xf32, #tpu.memory_space<vmem>>, %arg9: memref<256x10xbf16, #tpu.memory_space<vmem>>, %arg10: memref<1x10xf32, #tpu.memory_space<vmem>>, %arg11: memref<2x8x10xf32, #tpu.memory_space<vmem>>, %arg12: memref<2x12x514xf32, #tpu.memory_space<vmem>>) attributes {dimension_semantics = [], scalar_prefetch = 0 : i64, scratch_operands = 1 : i64, tpu.core_type = #tpu.core_type<tc>} {
    %cst = arith.constant 0.000000e+00 : f32
    %0 = vector.broadcast %cst : f32 to vector<2x12x514xf32>
    %c0 = arith.constant 0 : index
    %c0_0 = arith.constant 0 : index
    %c0_1 = arith.constant 0 : index
    %1 = vector.load %arg12[%c0, %c0_0, %c0_1] : memref<2x12x514xf32, #tpu.memory_space<vmem>>, vector<2x12x514xf32>
    tpu.vector_store %arg12[%c0, %c0_0, %c0_1], %0 {strides = array<i32>} : memref<2x12x514xf32, #tpu.memory_space<vmem>>, vector<2x12x514xf32>,
    %c0_2 = arith.constant 0 : index
    %c0_3 = arith.constant 0 : index
    %c0_4 = arith.constant 0 : index
    %2 = vector.load %arg0[%c0_2, %c0_3, %c0_4] : memref<2x8x514xf32, #tpu.memory_space<vmem>>, vector<2x8x514xf32>
    %c0_5 = arith.constant 0 : index
    %c2 = arith.constant 2 : index
    %c0_6 = arith.constant 0 : index
    %3 = vector.load %arg12[%c0_5, %c2, %c0_6] : memref<2x12x514xf32, #tpu.memory_space<vmem>>, vector<2x8x514xf32>
    tpu.vector_store %arg12[%c0_5, %c2, %c0_6], %2 {strides = array<i32>} : memref<2x12x514xf32, #tpu.memory_space<vmem>>, vector<2x8x514xf32>,
    %c0_7 = arith.constant 0 : index
    %c0_8 = arith.constant 0 : index
    %c0_9 = arith.constant 0 : index
    %4 = vector.load %arg12[%c0_7, %c0_8, %c0_9] : memref<2x12x514xf32, #tpu.memory_space<vmem>>, vector<2x12x514xf32>
    %c0_10 = arith.constant 0 : index
    %c0_11 = arith.constant 0 : index
    %c0_12 = arith.constant 0 : index
    %5 = vector.load %arg1[%c0_10, %c0_11, %c0_12] : memref<3x5x514xf32, #tpu.memory_space<vmem>>, vector<1x5x514xf32>
    %6 = vector.shape_cast %5 : vector<1x5x514xf32> to vector<5x514xf32>
    %7 = vector.extract_strided_slice %4 {offsets = [0, 0, 0], sizes = [2, 8, 514], strides = [1, 1, 1]} : vector<2x12x514xf32> to vector<2x8x514xf32>
    %8 = vector.extract_strided_slice %6 {offsets = [0, 0], sizes = [1, 514], strides = [1, 1]} : vector<5x514xf32> to vector<1x514xf32>
    %9 = vector.shape_cast %8 : vector<1x514xf32> to vector<1x1x514xf32>
    %10 = vector.broadcast %9 : vector<1x1x514xf32> to vector<2x8x514xf32>
    %11 = arith.mulf %7, %10 : vector<2x8x514xf32>
    %12 = vector.extract_strided_slice %4 {offsets = [0, 1, 0], sizes = [2, 8, 514], strides = [1, 1, 1]} : vector<2x12x514xf32> to vector<2x8x514xf32>
    %13 = vector.extract_strided_slice %6 {offsets = [1, 0], sizes = [1, 514], strides = [1, 1]} : vector<5x514xf32> to vector<1x514xf32>
    %14 = vector.shape_cast %13 : vector<1x514xf32> to vector<1x1x514xf32>
    %15 = vector.broadcast %14 : vector<1x1x514xf32> to vector<2x8x514xf32>
    %16 = arith.mulf %12, %15 : vector<2x8x514xf32>
    %17 = arith.addf %11, %16 : vector<2x8x514xf32>
    %18 = vector.extract_strided_slice %4 {offsets = [0, 2, 0], sizes = [2, 8, 514], strides = [1, 1, 1]} : vector<2x12x514xf32> to vector<2x8x514xf32>
    %19 = vector.extract_strided_slice %6 {offsets = [2, 0], sizes = [1, 514], strides = [1, 1]} : vector<5x514xf32> to vector<1x514xf32>
    %20 = vector.shape_cast %19 : vector<1x514xf32> to vector<1x1x514xf32>
    %21 = vector.broadcast %20 : vector<1x1x514xf32> to vector<2x8x514xf32>
    %22 = arith.mulf %18, %21 : vector<2x8x514xf32>
    %23 = arith.addf %17, %22 : vector<2x8x514xf32>
    %24 = vector.extract_strided_slice %4 {offsets = [0, 3, 0], sizes = [2, 8, 514], strides = [1, 1, 1]} : vector<2x12x514xf32> to vector<2x8x514xf32>
    %25 = vector.extract_strided_slice %6 {offsets = [3, 0], sizes = [1, 514], strides = [1, 1]} : vector<5x514xf32> to vector<1x514xf32>
    %26 = vector.shape_cast %25 : vector<1x514xf32> to vector<1x1x514xf32>
    %27 = vector.broadcast %26 : vector<1x1x514xf32> to vector<2x8x514xf32>
    %28 = arith.mulf %24, %27 : vector<2x8x514xf32>
    %29 = arith.addf %23, %28 : vector<2x8x514xf32>
    %30 = vector.extract_strided_slice %4 {offsets = [0, 4, 0], sizes = [2, 8, 514], strides = [1, 1, 1]} : vector<2x12x514xf32> to vector<2x8x514xf32>
    %31 = vector.extract_strided_slice %6 {offsets = [4, 0], sizes = [1, 514], strides = [1, 1]} : vector<5x514xf32> to vector<1x514xf32>
    %32 = vector.shape_cast %31 : vector<1x514xf32> to vector<1x1x514xf32>
    %33 = vector.broadcast %32 : vector<1x1x514xf32> to vector<2x8x514xf32>
    %34 = arith.mulf %30, %33 : vector<2x8x514xf32>
    %35 = arith.addf %29, %34 : vector<2x8x514xf32>
    %c0_13 = arith.constant 0 : index
    %c0_14 = arith.constant 0 : index
    %c0_15 = arith.constant 0 : index
    %36 = vector.load %arg2[%c0_13, %c0_14, %c0_15] : memref<3x1x514xf32, #tpu.memory_space<vmem>>, vector<1x1x514xf32>
    %37 = vector.shape_cast %36 : vector<1x1x514xf32> to vector<1x514xf32>
    %38 = vector.shape_cast %37 : vector<1x514xf32> to vector<1x1x514xf32>
    %39 = vector.broadcast %38 : vector<1x1x514xf32> to vector<2x8x514xf32>
    %40 = arith.addf %35, %39 : vector<2x8x514xf32>
    %41 = vector.shape_cast %40 : vector<2x8x514xf32> to vector<16x514xf32>
    %42 = arith.truncf %41 : vector<16x514xf32> to vector<16x514xbf16>
    %c0_16 = arith.constant 0 : index
    %c0_17 = arith.constant 0 : index
    %c0_18 = arith.constant 0 : index
    %43 = vector.load %arg3[%c0_16, %c0_17, %c0_18] : memref<3x514x514xbf16, #tpu.memory_space<vmem>>, vector<1x514x514xbf16>
    %44 = vector.shape_cast %43 : vector<1x514x514xbf16> to vector<514x514xbf16>
    %cst_19 = arith.constant dense<0.000000e+00> : vector<16x514xf32>
    %45 = tpu.matmul %42, %44, %cst_19 {dimension_numbers = #tpu.dot_dimension_numbers<[1], [0], [0], [1], [0, 0, 1, 1], [], []>} : vector<16x514xbf16>, vector<514x514xbf16>, vector<16x514xf32> -> vector<16x514xf32>
    %c0_20 = arith.constant 0 : index
    %c0_21 = arith.constant 0 : index
    %c0_22 = arith.constant 0 : index
    %46 = vector.load %arg4[%c0_20, %c0_21, %c0_22] : memref<3x1x514xf32, #tpu.memory_space<vmem>>, vector<1x1x514xf32>
    %47 = vector.shape_cast %46 : vector<1x1x514xf32> to vector<1x514xf32>
    %48 = vector.broadcast %47 : vector<1x514xf32> to vector<16x514xf32>
    %49 = arith.addf %45, %48 : vector<16x514xf32>
    %cst_23 = arith.constant dense<0.000000e+00> : vector<514xf32>
    %50 = vector.multi_reduction <add>, %49, %cst_23 [0] : vector<16x514xf32> to vector<514xf32>
    %51 = vector.shape_cast %50 : vector<514xf32> to vector<1x514xf32>
    %52 = arith.mulf %49, %49 : vector<16x514xf32>
    %cst_24 = arith.constant dense<0.000000e+00> : vector<514xf32>
    %53 = vector.multi_reduction <add>, %52, %cst_24 [0] : vector<16x514xf32> to vector<514xf32>
    %54 = vector.shape_cast %53 : vector<514xf32> to vector<1x514xf32>
    %cst_25 = arith.constant 6.250000e-02 : f32
    %55 = vector.broadcast %cst_25 : f32 to vector<1x514xf32>
    %56 = arith.mulf %51, %55 : vector<1x514xf32>
    %cst_26 = arith.constant 6.250000e-02 : f32
    %57 = vector.broadcast %cst_26 : f32 to vector<1x514xf32>
    %58 = arith.mulf %54, %57 : vector<1x514xf32>
    %59 = arith.mulf %56, %56 : vector<1x514xf32>
    %60 = arith.subf %58, %59 : vector<1x514xf32>
    %cst_27 = arith.constant 9.99999974E-6 : f32
    %61 = vector.broadcast %cst_27 : f32 to vector<1x514xf32>
    %62 = arith.addf %60, %61 : vector<1x514xf32>
    %63 = math.rsqrt %62 : vector<1x514xf32>
    %c0_28 = arith.constant 0 : index
    %c0_29 = arith.constant 0 : index
    %c0_30 = arith.constant 0 : index
    %64 = vector.load %arg5[%c0_28, %c0_29, %c0_30] : memref<3x1x514xf32, #tpu.memory_space<vmem>>, vector<1x1x514xf32>
    %65 = vector.shape_cast %64 : vector<1x1x514xf32> to vector<1x514xf32>
    %66 = arith.mulf %63, %65 : vector<1x514xf32>
    %c0_31 = arith.constant 0 : index
    %c0_32 = arith.constant 0 : index
    %c0_33 = arith.constant 0 : index
    %67 = vector.load %arg6[%c0_31, %c0_32, %c0_33] : memref<3x1x514xf32, #tpu.memory_space<vmem>>, vector<1x1x514xf32>
    %68 = vector.shape_cast %67 : vector<1x1x514xf32> to vector<1x514xf32>
    %69 = arith.mulf %56, %66 : vector<1x514xf32>
    %70 = arith.subf %68, %69 : vector<1x514xf32>
    %71 = vector.broadcast %66 : vector<1x514xf32> to vector<16x514xf32>
    %72 = arith.mulf %49, %71 : vector<16x514xf32>
    %73 = vector.broadcast %70 : vector<1x514xf32> to vector<16x514xf32>
    %74 = arith.addf %72, %73 : vector<16x514xf32>
    %cst_34 = arith.constant 0.000000e+00 : f32
    %75 = vector.broadcast %cst_34 : f32 to vector<16x514xf32>
    %76 = arith.maximumf %74, %75 : vector<16x514xf32>
    %77 = vector.shape_cast %76 : vector<16x514xf32> to vector<2x8x514xf32>
    %c0_35 = arith.constant 0 : index
    %c2_36 = arith.constant 2 : index
    %c0_37 = arith.constant 0 : index
    %78 = vector.load %arg12[%c0_35, %c2_36, %c0_37] : memref<2x12x514xf32, #tpu.memory_space<vmem>>, vector<2x8x514xf32>
    tpu.vector_store %arg12[%c0_35, %c2_36, %c0_37], %77 {strides = array<i32>} : memref<2x12x514xf32, #tpu.memory_space<vmem>>, vector<2x8x514xf32>,
    %c0_38 = arith.constant 0 : index
    %c0_39 = arith.constant 0 : index
    %c0_40 = arith.constant 0 : index
    %79 = vector.load %arg12[%c0_38, %c0_39, %c0_40] : memref<2x12x514xf32, #tpu.memory_space<vmem>>, vector<2x12x514xf32>
    %c1 = arith.constant 1 : index
    %c0_41 = arith.constant 0 : index
    %c0_42 = arith.constant 0 : index
    %80 = vector.load %arg1[%c1, %c0_41, %c0_42] : memref<3x5x514xf32, #tpu.memory_space<vmem>>, vector<1x5x514xf32>
    %81 = vector.shape_cast %80 : vector<1x5x514xf32> to vector<5x514xf32>
    %82 = vector.extract_strided_slice %79 {offsets = [0, 0, 0], sizes = [2, 8, 514], strides = [1, 1, 1]} : vector<2x12x514xf32> to vector<2x8x514xf32>
    %83 = vector.extract_strided_slice %81 {offsets = [0, 0], sizes = [1, 514], strides = [1, 1]} : vector<5x514xf32> to vector<1x514xf32>
    %84 = vector.shape_cast %83 : vector<1x514xf32> to vector<1x1x514xf32>
    %85 = vector.broadcast %84 : vector<1x1x514xf32> to vector<2x8x514xf32>
    %86 = arith.mulf %82, %85 : vector<2x8x514xf32>
    %87 = vector.extract_strided_slice %79 {offsets = [0, 1, 0], sizes = [2, 8, 514], strides = [1, 1, 1]} : vector<2x12x514xf32> to vector<2x8x514xf32>
    %88 = vector.extract_strided_slice %81 {offsets = [1, 0], sizes = [1, 514], strides = [1, 1]} : vector<5x514xf32> to vector<1x514xf32>
    %89 = vector.shape_cast %88 : vector<1x514xf32> to vector<1x1x514xf32>
    %90 = vector.broadcast %89 : vector<1x1x514xf32> to vector<2x8x514xf32>
    %91 = arith.mulf %87, %90 : vector<2x8x514xf32>
    %92 = arith.addf %86, %91 : vector<2x8x514xf32>
    %93 = vector.extract_strided_slice %79 {offsets = [0, 2, 0], sizes = [2, 8, 514], strides = [1, 1, 1]} : vector<2x12x514xf32> to vector<2x8x514xf32>
    %94 = vector.extract_strided_slice %81 {offsets = [2, 0], sizes = [1, 514], strides = [1, 1]} : vector<5x514xf32> to vector<1x514xf32>
    %95 = vector.shape_cast %94 : vector<1x514xf32> to vector<1x1x514xf32>
    %96 = vector.broadcast %95 : vector<1x1x514xf32> to vector<2x8x514xf32>
    %97 = arith.mulf %93, %96 : vector<2x8x514xf32>
    %98 = arith.addf %92, %97 : vector<2x8x514xf32>
    %99 = vector.extract_strided_slice %79 {offsets = [0, 3, 0], sizes = [2, 8, 514], strides = [1, 1, 1]} : vector<2x12x514xf32> to vector<2x8x514xf32>
    %100 = vector.extract_strided_slice %81 {offsets = [3, 0], sizes = [1, 514], strides = [1, 1]} : vector<5x514xf32> to vector<1x514xf32>
    %101 = vector.shape_cast %100 : vector<1x514xf32> to vector<1x1x514xf32>
    %102 = vector.broadcast %101 : vector<1x1x514xf32> to vector<2x8x514xf32>
    %103 = arith.mulf %99, %102 : vector<2x8x514xf32>
    %104 = arith.addf %98, %103 : vector<2x8x514xf32>
    %105 = vector.extract_strided_slice %79 {offsets = [0, 4, 0], sizes = [2, 8, 514], strides = [1, 1, 1]} : vector<2x12x514xf32> to vector<2x8x514xf32>
    %106 = vector.extract_strided_slice %81 {offsets = [4, 0], sizes = [1, 514], strides = [1, 1]} : vector<5x514xf32> to vector<1x514xf32>
    %107 = vector.shape_cast %106 : vector<1x514xf32> to vector<1x1x514xf32>
    %108 = vector.broadcast %107 : vector<1x1x514xf32> to vector<2x8x514xf32>
    %109 = arith.mulf %105, %108 : vector<2x8x514xf32>
    %110 = arith.addf %104, %109 : vector<2x8x514xf32>
    %c1_43 = arith.constant 1 : index
    %c0_44 = arith.constant 0 : index
    %c0_45 = arith.constant 0 : index
    %111 = vector.load %arg2[%c1_43, %c0_44, %c0_45] : memref<3x1x514xf32, #tpu.memory_space<vmem>>, vector<1x1x514xf32>
    %112 = vector.shape_cast %111 : vector<1x1x514xf32> to vector<1x514xf32>
    %113 = vector.shape_cast %112 : vector<1x514xf32> to vector<1x1x514xf32>
    %114 = vector.broadcast %113 : vector<1x1x514xf32> to vector<2x8x514xf32>
    %115 = arith.addf %110, %114 : vector<2x8x514xf32>
    %116 = vector.shape_cast %115 : vector<2x8x514xf32> to vector<16x514xf32>
    %117 = arith.truncf %116 : vector<16x514xf32> to vector<16x514xbf16>
    %c1_46 = arith.constant 1 : index
    %c0_47 = arith.constant 0 : index
    %c0_48 = arith.constant 0 : index
    %118 = vector.load %arg3[%c1_46, %c0_47, %c0_48] : memref<3x514x514xbf16, #tpu.memory_space<vmem>>, vector<1x514x514xbf16>
    %119 = vector.shape_cast %118 : vector<1x514x514xbf16> to vector<514x514xbf16>
    %cst_49 = arith.constant dense<0.000000e+00> : vector<16x514xf32>
    %120 = tpu.matmul %117, %119, %cst_49 {dimension_numbers = #tpu.dot_dimension_numbers<[1], [0], [0], [1], [0, 0, 1, 1], [], []>} : vector<16x514xbf16>, vector<514x514xbf16>, vector<16x514xf32> -> vector<16x514xf32>
    %c1_50 = arith.constant 1 : index
    %c0_51 = arith.constant 0 : index
    %c0_52 = arith.constant 0 : index
    %121 = vector.load %arg4[%c1_50, %c0_51, %c0_52] : memref<3x1x514xf32, #tpu.memory_space<vmem>>, vector<1x1x514xf32>
    %122 = vector.shape_cast %121 : vector<1x1x514xf32> to vector<1x514xf32>
    %123 = vector.broadcast %122 : vector<1x514xf32> to vector<16x514xf32>
    %124 = arith.addf %120, %123 : vector<16x514xf32>
    %cst_53 = arith.constant dense<0.000000e+00> : vector<514xf32>
    %125 = vector.multi_reduction <add>, %124, %cst_53 [0] : vector<16x514xf32> to vector<514xf32>
    %126 = vector.shape_cast %125 : vector<514xf32> to vector<1x514xf32>
    %127 = arith.mulf %124, %124 : vector<16x514xf32>
    %cst_54 = arith.constant dense<0.000000e+00> : vector<514xf32>
    %128 = vector.multi_reduction <add>, %127, %cst_54 [0] : vector<16x514xf32> to vector<514xf32>
    %129 = vector.shape_cast %128 : vector<514xf32> to vector<1x514xf32>
    %cst_55 = arith.constant 6.250000e-02 : f32
    %130 = vector.broadcast %cst_55 : f32 to vector<1x514xf32>
    %131 = arith.mulf %126, %130 : vector<1x514xf32>
    %cst_56 = arith.constant 6.250000e-02 : f32
    %132 = vector.broadcast %cst_56 : f32 to vector<1x514xf32>
    %133 = arith.mulf %129, %132 : vector<1x514xf32>
    %134 = arith.mulf %131, %131 : vector<1x514xf32>
    %135 = arith.subf %133, %134 : vector<1x514xf32>
    %cst_57 = arith.constant 9.99999974E-6 : f32
    %136 = vector.broadcast %cst_57 : f32 to vector<1x514xf32>
    %137 = arith.addf %135, %136 : vector<1x514xf32>
    %138 = math.rsqrt %137 : vector<1x514xf32>
    %c1_58 = arith.constant 1 : index
    %c0_59 = arith.constant 0 : index
    %c0_60 = arith.constant 0 : index
    %139 = vector.load %arg5[%c1_58, %c0_59, %c0_60] : memref<3x1x514xf32, #tpu.memory_space<vmem>>, vector<1x1x514xf32>
    %140 = vector.shape_cast %139 : vector<1x1x514xf32> to vector<1x514xf32>
    %141 = arith.mulf %138, %140 : vector<1x514xf32>
    %c1_61 = arith.constant 1 : index
    %c0_62 = arith.constant 0 : index
    %c0_63 = arith.constant 0 : index
    %142 = vector.load %arg6[%c1_61, %c0_62, %c0_63] : memref<3x1x514xf32, #tpu.memory_space<vmem>>, vector<1x1x514xf32>
    %143 = vector.shape_cast %142 : vector<1x1x514xf32> to vector<1x514xf32>
    %144 = arith.mulf %131, %141 : vector<1x514xf32>
    %145 = arith.subf %143, %144 : vector<1x514xf32>
    %146 = vector.broadcast %141 : vector<1x514xf32> to vector<16x514xf32>
    %147 = arith.mulf %124, %146 : vector<16x514xf32>
    %148 = vector.broadcast %145 : vector<1x514xf32> to vector<16x514xf32>
    %149 = arith.addf %147, %148 : vector<16x514xf32>
    %cst_64 = arith.constant 0.000000e+00 : f32
    %150 = vector.broadcast %cst_64 : f32 to vector<16x514xf32>
    %151 = arith.maximumf %149, %150 : vector<16x514xf32>
    %152 = vector.shape_cast %151 : vector<16x514xf32> to vector<2x8x514xf32>
    %c0_65 = arith.constant 0 : index
    %c2_66 = arith.constant 2 : index
    %c0_67 = arith.constant 0 : index
    %153 = vector.load %arg12[%c0_65, %c2_66, %c0_67] : memref<2x12x514xf32, #tpu.memory_space<vmem>>, vector<2x8x514xf32>
    tpu.vector_store %arg12[%c0_65, %c2_66, %c0_67], %152 {strides = array<i32>} : memref<2x12x514xf32, #tpu.memory_space<vmem>>, vector<2x8x514xf32>,
    %c0_68 = arith.constant 0 : index
    %c0_69 = arith.constant 0 : index
    %c0_70 = arith.constant 0 : index
    %154 = vector.load %arg12[%c0_68, %c0_69, %c0_70] : memref<2x12x514xf32, #tpu.memory_space<vmem>>, vector<2x12x514xf32>
    %c2_71 = arith.constant 2 : index
    %c0_72 = arith.constant 0 : index
    %c0_73 = arith.constant 0 : index
    %155 = vector.load %arg1[%c2_71, %c0_72, %c0_73] : memref<3x5x514xf32, #tpu.memory_space<vmem>>, vector<1x5x514xf32>
    %156 = vector.shape_cast %155 : vector<1x5x514xf32> to vector<5x514xf32>
    %157 = vector.extract_strided_slice %154 {offsets = [0, 0, 0], sizes = [2, 8, 514], strides = [1, 1, 1]} : vector<2x12x514xf32> to vector<2x8x514xf32>
    %158 = vector.extract_strided_slice %156 {offsets = [0, 0], sizes = [1, 514], strides = [1, 1]} : vector<5x514xf32> to vector<1x514xf32>
    %159 = vector.shape_cast %158 : vector<1x514xf32> to vector<1x1x514xf32>
    %160 = vector.broadcast %159 : vector<1x1x514xf32> to vector<2x8x514xf32>
    %161 = arith.mulf %157, %160 : vector<2x8x514xf32>
    %162 = vector.extract_strided_slice %154 {offsets = [0, 1, 0], sizes = [2, 8, 514], strides = [1, 1, 1]} : vector<2x12x514xf32> to vector<2x8x514xf32>
    %163 = vector.extract_strided_slice %156 {offsets = [1, 0], sizes = [1, 514], strides = [1, 1]} : vector<5x514xf32> to vector<1x514xf32>
    %164 = vector.shape_cast %163 : vector<1x514xf32> to vector<1x1x514xf32>
    %165 = vector.broadcast %164 : vector<1x1x514xf32> to vector<2x8x514xf32>
    %166 = arith.mulf %162, %165 : vector<2x8x514xf32>
    %167 = arith.addf %161, %166 : vector<2x8x514xf32>
    %168 = vector.extract_strided_slice %154 {offsets = [0, 2, 0], sizes = [2, 8, 514], strides = [1, 1, 1]} : vector<2x12x514xf32> to vector<2x8x514xf32>
    %169 = vector.extract_strided_slice %156 {offsets = [2, 0], sizes = [1, 514], strides = [1, 1]} : vector<5x514xf32> to vector<1x514xf32>
    %170 = vector.shape_cast %169 : vector<1x514xf32> to vector<1x1x514xf32>
    %171 = vector.broadcast %170 : vector<1x1x514xf32> to vector<2x8x514xf32>
    %172 = arith.mulf %168, %171 : vector<2x8x514xf32>
    %173 = arith.addf %167, %172 : vector<2x8x514xf32>
    %174 = vector.extract_strided_slice %154 {offsets = [0, 3, 0], sizes = [2, 8, 514], strides = [1, 1, 1]} : vector<2x12x514xf32> to vector<2x8x514xf32>
    %175 = vector.extract_strided_slice %156 {offsets = [3, 0], sizes = [1, 514], strides = [1, 1]} : vector<5x514xf32> to vector<1x514xf32>
    %176 = vector.shape_cast %175 : vector<1x514xf32> to vector<1x1x514xf32>
    %177 = vector.broadcast %176 : vector<1x1x514xf32> to vector<2x8x514xf32>
    %178 = arith.mulf %174, %177 : vector<2x8x514xf32>
    %179 = arith.addf %173, %178 : vector<2x8x514xf32>
    %180 = vector.extract_strided_slice %154 {offsets = [0, 4, 0], sizes = [2, 8, 514], strides = [1, 1, 1]} : vector<2x12x514xf32> to vector<2x8x514xf32>
    %181 = vector.extract_strided_slice %156 {offsets = [4, 0], sizes = [1, 514], strides = [1, 1]} : vector<5x514xf32> to vector<1x514xf32>
    %182 = vector.shape_cast %181 : vector<1x514xf32> to vector<1x1x514xf32>
    %183 = vector.broadcast %182 : vector<1x1x514xf32> to vector<2x8x514xf32>
    %184 = arith.mulf %180, %183 : vector<2x8x514xf32>
    %185 = arith.addf %179, %184 : vector<2x8x514xf32>
    %c2_74 = arith.constant 2 : index
    %c0_75 = arith.constant 0 : index
    %c0_76 = arith.constant 0 : index
    %186 = vector.load %arg2[%c2_74, %c0_75, %c0_76] : memref<3x1x514xf32, #tpu.memory_space<vmem>>, vector<1x1x514xf32>
    %187 = vector.shape_cast %186 : vector<1x1x514xf32> to vector<1x514xf32>
    %188 = vector.shape_cast %187 : vector<1x514xf32> to vector<1x1x514xf32>
    %189 = vector.broadcast %188 : vector<1x1x514xf32> to vector<2x8x514xf32>
    %190 = arith.addf %185, %189 : vector<2x8x514xf32>
    %191 = vector.shape_cast %190 : vector<2x8x514xf32> to vector<16x514xf32>
    %192 = arith.truncf %191 : vector<16x514xf32> to vector<16x514xbf16>
    %c2_77 = arith.constant 2 : index
    %c0_78 = arith.constant 0 : index
    %c0_79 = arith.constant 0 : index
    %193 = vector.load %arg3[%c2_77, %c0_78, %c0_79] : memref<3x514x514xbf16, #tpu.memory_space<vmem>>, vector<1x514x514xbf16>
    %194 = vector.shape_cast %193 : vector<1x514x514xbf16> to vector<514x514xbf16>
    %cst_80 = arith.constant dense<0.000000e+00> : vector<16x514xf32>
    %195 = tpu.matmul %192, %194, %cst_80 {dimension_numbers = #tpu.dot_dimension_numbers<[1], [0], [0], [1], [0, 0, 1, 1], [], []>} : vector<16x514xbf16>, vector<514x514xbf16>, vector<16x514xf32> -> vector<16x514xf32>
    %c2_81 = arith.constant 2 : index
    %c0_82 = arith.constant 0 : index
    %c0_83 = arith.constant 0 : index
    %196 = vector.load %arg4[%c2_81, %c0_82, %c0_83] : memref<3x1x514xf32, #tpu.memory_space<vmem>>, vector<1x1x514xf32>
    %197 = vector.shape_cast %196 : vector<1x1x514xf32> to vector<1x514xf32>
    %198 = vector.broadcast %197 : vector<1x514xf32> to vector<16x514xf32>
    %199 = arith.addf %195, %198 : vector<16x514xf32>
    %cst_84 = arith.constant dense<0.000000e+00> : vector<514xf32>
    %200 = vector.multi_reduction <add>, %199, %cst_84 [0] : vector<16x514xf32> to vector<514xf32>
    %201 = vector.shape_cast %200 : vector<514xf32> to vector<1x514xf32>
    %202 = arith.mulf %199, %199 : vector<16x514xf32>
    %cst_85 = arith.constant dense<0.000000e+00> : vector<514xf32>
    %203 = vector.multi_reduction <add>, %202, %cst_85 [0] : vector<16x514xf32> to vector<514xf32>
    %204 = vector.shape_cast %203 : vector<514xf32> to vector<1x514xf32>
    %cst_86 = arith.constant 6.250000e-02 : f32
    %205 = vector.broadcast %cst_86 : f32 to vector<1x514xf32>
    %206 = arith.mulf %201, %205 : vector<1x514xf32>
    %cst_87 = arith.constant 6.250000e-02 : f32
    %207 = vector.broadcast %cst_87 : f32 to vector<1x514xf32>
    %208 = arith.mulf %204, %207 : vector<1x514xf32>
    %209 = arith.mulf %206, %206 : vector<1x514xf32>
    %210 = arith.subf %208, %209 : vector<1x514xf32>
    %cst_88 = arith.constant 9.99999974E-6 : f32
    %211 = vector.broadcast %cst_88 : f32 to vector<1x514xf32>
    %212 = arith.addf %210, %211 : vector<1x514xf32>
    %213 = math.rsqrt %212 : vector<1x514xf32>
    %c2_89 = arith.constant 2 : index
    %c0_90 = arith.constant 0 : index
    %c0_91 = arith.constant 0 : index
    %214 = vector.load %arg5[%c2_89, %c0_90, %c0_91] : memref<3x1x514xf32, #tpu.memory_space<vmem>>, vector<1x1x514xf32>
    %215 = vector.shape_cast %214 : vector<1x1x514xf32> to vector<1x514xf32>
    %216 = arith.mulf %213, %215 : vector<1x514xf32>
    %c2_92 = arith.constant 2 : index
    %c0_93 = arith.constant 0 : index
    %c0_94 = arith.constant 0 : index
    %217 = vector.load %arg6[%c2_92, %c0_93, %c0_94] : memref<3x1x514xf32, #tpu.memory_space<vmem>>, vector<1x1x514xf32>
    %218 = vector.shape_cast %217 : vector<1x1x514xf32> to vector<1x514xf32>
    %219 = arith.mulf %206, %216 : vector<1x514xf32>
    %220 = arith.subf %218, %219 : vector<1x514xf32>
    %221 = vector.broadcast %216 : vector<1x514xf32> to vector<16x514xf32>
    %222 = arith.mulf %199, %221 : vector<16x514xf32>
    %223 = vector.broadcast %220 : vector<1x514xf32> to vector<16x514xf32>
    %224 = arith.addf %222, %223 : vector<16x514xf32>
    %cst_95 = arith.constant 0.000000e+00 : f32
    %225 = vector.broadcast %cst_95 : f32 to vector<16x514xf32>
    %226 = arith.maximumf %224, %225 : vector<16x514xf32>
    %227 = vector.shape_cast %226 : vector<16x514xf32> to vector<2x8x514xf32>
    %228 = vector.shape_cast %227 : vector<2x8x514xf32> to vector<16x514xf32>
    %229 = arith.truncf %228 : vector<16x514xf32> to vector<16x514xbf16>
    %c0_96 = arith.constant 0 : index
    %c0_97 = arith.constant 0 : index
    %230 = vector.load %arg7[%c0_96, %c0_97] : memref<514x256xbf16, #tpu.memory_space<vmem>>, vector<514x256xbf16>
    %cst_98 = arith.constant dense<0.000000e+00> : vector<16x256xf32>
    %231 = tpu.matmul %229, %230, %cst_98 {dimension_numbers = #tpu.dot_dimension_numbers<[1], [0], [0], [1], [0, 0, 1, 1], [], []>} : vector<16x514xbf16>, vector<514x256xbf16>, vector<16x256xf32> -> vector<16x256xf32>
    %c0_99 = arith.constant 0 : index
    %c0_100 = arith.constant 0 : index
    %232 = vector.load %arg8[%c0_99, %c0_100] : memref<1x256xf32, #tpu.memory_space<vmem>>, vector<1x256xf32>
    %233 = vector.broadcast %232 : vector<1x256xf32> to vector<16x256xf32>
    %234 = arith.addf %231, %233 : vector<16x256xf32>
    %cst_101 = arith.constant 0.000000e+00 : f32
    %235 = vector.broadcast %cst_101 : f32 to vector<16x256xf32>
    %236 = arith.maximumf %234, %235 : vector<16x256xf32>
    %237 = arith.truncf %236 : vector<16x256xf32> to vector<16x256xbf16>
    %c0_102 = arith.constant 0 : index
    %c0_103 = arith.constant 0 : index
    %238 = vector.load %arg9[%c0_102, %c0_103] : memref<256x10xbf16, #tpu.memory_space<vmem>>, vector<256x10xbf16>
    %cst_104 = arith.constant dense<0.000000e+00> : vector<16x10xf32>
    %239 = tpu.matmul %237, %238, %cst_104 {dimension_numbers = #tpu.dot_dimension_numbers<[1], [0], [0], [1], [0, 0, 1, 1], [], []>} : vector<16x256xbf16>, vector<256x10xbf16>, vector<16x10xf32> -> vector<16x10xf32>
    %c0_105 = arith.constant 0 : index
    %c0_106 = arith.constant 0 : index
    %240 = vector.load %arg10[%c0_105, %c0_106] : memref<1x10xf32, #tpu.memory_space<vmem>>, vector<1x10xf32>
    %241 = vector.broadcast %240 : vector<1x10xf32> to vector<16x10xf32>
    %242 = arith.addf %239, %241 : vector<16x10xf32>
    %243 = vector.shape_cast %242 : vector<16x10xf32> to vector<2x8x10xf32>
    %c0_107 = arith.constant 0 : index
    %c0_108 = arith.constant 0 : index
    %c0_109 = arith.constant 0 : index
    %244 = vector.load %arg11[%c0_107, %c0_108, %c0_109] : memref<2x8x10xf32, #tpu.memory_space<vmem>>, vector<2x8x10xf32>
    tpu.vector_store %arg11[%c0_107, %c0_108, %c0_109], %243 {strides = array<i32>} : memref<2x8x10xf32, #tpu.memory_space<vmem>>, vector<2x8x10xf32>,
    return
  }
}

</mosaic_0001>

<llo_original>
// kernel: jungmin3_forward.1
$region0: #{jungmin3_forward.1}
  #allocation0 [shape = 'u32[]', space=smem, size = 0x4, offset = 0x4, fixed_abs, tag = 'smem constant byte address 0x4 - core index']
  #allocation1 [shape = 'u32[144,128]{1,0:T(1,128)}', space=vmem, size = 0x12000, scoped, tag = 'internal scratch']
  #allocation2 [shape = 'f32[2,12,514]{2,1,0:T(8,128)}', space=vmem, size = 0x14000, scoped, tag = 'scratch operand']
  %s0 = inlined_call_operand.vmem [shape: f32[2,8,514], index: 0, kind: input, shape index: {}]
  %s1 = inlined_call_operand.vmem [shape: f32[3,5,514], index: 1, kind: input, shape index: {}]
  %s2 = inlined_call_operand.hbm [shape: f32[3,1,514], index: 2, kind: input, shape index: {}]
  %s3 = inlined_call_operand.hbm [shape: bf16[3,514,514], index: 3, kind: input, shape index: {}]
  %s4 = inlined_call_operand.hbm [shape: f32[3,1,514], index: 4, kind: input, shape index: {}]
  %s5 = inlined_call_operand.hbm [shape: f32[3,1,514], index: 5, kind: input, shape index: {}]
  %s6 = inlined_call_operand.hbm [shape: f32[3,1,514], index: 6, kind: input, shape index: {}]
  %s7 = inlined_call_operand.hbm [shape: bf16[514,256], index: 7, kind: input, shape index: {}]
  %s8 = inlined_call_operand.hbm [shape: f32[1,256], index: 8, kind: input, shape index: {}]
  %s9 = inlined_call_operand.vmem [shape: bf16[256,10], index: 9, kind: input, shape index: {}]
  %s10 = inlined_call_operand.hbm [shape: f32[1,10], index: 10, kind: input, shape index: {}]
  %s11 = inlined_call_operand.hbm [shape: f32[2,8,10], index: 11, kind: output, shape index: {}]
  %s12 = sld [smem:[#allocation0]]
  $region86: #{jungmin3_forward.1} parent=0
    _
  %s14 = ssub.s32 1, %s12
  %s15 = scalar_select 0, %s14, %s12
  $region1: #{jungmin3_forward.1} parent=0
    #allocation3 [shape = 'u8[7680]{0}', space=vmem, size = 0x2000, scoped, tag = 'input window, operand 2, single buffered']
    #allocation4 [shape = 's32[1]{0}', space=sflag, size = 0x4, scoped, tag = 'scoped memory for jungmin3_forward.1']
    #allocation5 [shape = 's32[1]{0}', space=sflag, size = 0x4, scoped, tag = 'scoped memory for jungmin3_forward.1']
    #allocation6 [shape = 'u8[1996800]{0}', space=vmem, size = 0x1e7800, scoped, tag = 'input window, operand 3, single buffered']
    #allocation7 [shape = 's32[1]{0}', space=sflag, size = 0x4, scoped, tag = 'scoped memory for jungmin3_forward.1']
    #allocation8 [shape = 'u8[7680]{0}', space=vmem, size = 0x2000, scoped, tag = 'input window, operand 4, single buffered']
    #allocation9 [shape = 'u8[7680]{0}', space=vmem, size = 0x2000, scoped, tag = 'input window, operand 5, single buffered']
    #allocation10 [shape = 's32[1]{0}', space=sflag, size = 0x4, scoped, tag = 'scoped memory for jungmin3_forward.1']
    #allocation11 [shape = 'u8[7680]{0}', space=vmem, size = 0x2000, scoped, tag = 'input window, operand 6, single buffered']
    #allocation12 [shape = 'u8[266240]{0}', space=vmem, size = 0x41000, scoped, tag = 'input window, operand 7, single buffered']
    #allocation13 [shape = 's32[1]{0}', space=sflag, size = 0x4, scoped, tag = 'scoped memory for jungmin3_forward.1']
    #allocation14 [shape = 'u8[1024]{0}', space=vmem, size = 0x400, scoped, tag = 'input window, operand 8, single buffered']
    #allocation15 [shape = 'u8[512]{0}', space=vmem, size = 0x400, scoped, tag = 'input window, operand 10, single buffered']
    #allocation16 [shape = 's32[1]{0}', space=sflag, size = 0x4, scoped, tag = 'scoped memory for jungmin3_forward.1']
    #allocation17 [shape = 'u8[8192]{0}', space=vmem, size = 0x2000, scoped, tag = 'output window, operand 0, single buffered']
    %16 = vsyncpa [#allocation4], 0
    %17 = vsyncpa [#allocation7], 0
    %18 = vsyncpa [#allocation10], 0
    %19 = vsyncpa [#allocation13], 0
    %20 = vsyncpa [#allocation16], 0
    %21 = vsyncpa [#allocation5], 0
    // Predicated region
    $region2: #{jungmin3_forward.1} parent=1 // pred_check
      _
    $region3: #{jungmin3_forward.1} parent=1 // pred_check_branch
      %23 = sbr.rel (0) target = $region5
    $region4: #{jungmin3_forward.1} parent=1 // pred_region
      _
    $region5: #{jungmin3_forward.1} parent=1 // pred_fallthru
      _
    // Predicated region
    $region6: #{jungmin3_forward.1} parent=1 // pred_check
      _
    $region7: #{jungmin3_forward.1} parent=1 // pred_check_branch
      %25 = sbr.rel (0) target = $region9
    $region8: #{jungmin3_forward.1} parent=1 // pred_region
      _
    $region9: #{jungmin3_forward.1} parent=1 // pred_fallthru
      _
    // Predicated region
    $region10: #{jungmin3_forward.1} parent=1 // pred_check
      _
    $region11: #{jungmin3_forward.1} parent=1 // pred_check_branch
      %27 = sbr.rel (0) target = $region13
    $region12: #{jungmin3_forward.1} parent=1 // pred_region
      %s29 = ssub.s32 240, 240
      %30 = vsyncadd [#allocation4], %s29
      %s31 = sshll.u32 [#allocation3], 4
      %s32 = int_to_ptr.vmem [resolvable:$true] %s31
      %37 = dma.hbm_to_vmem [thread:$0]  %s2, 240, %s32, [#allocation4], 80, 80, 5
    $region13: #{jungmin3_forward.1} parent=1 // pred_fallthru
      _
    // Predicated region
    $region14: #{jungmin3_forward.1} parent=1 // pred_check
      _
    $region15: #{jungmin3_forward.1} parent=1 // pred_check_branch
      %39 = sbr.rel (0) target = $region17
    $region16: #{jungmin3_forward.1} parent=1 // pred_region
      %s41 = ssub.s32 62400, 62400
      %42 = vsyncadd [#allocation7], %s41
      %s43 = sshll.u32 [#allocation6], 4
      %s44 = int_to_ptr.vmem [resolvable:$true] %s43
      %49 = dma.hbm_to_vmem [thread:$0]  %s3, 62400, %s44, [#allocation7], 320, 320, 20
    $region17: #{jungmin3_forward.1} parent=1 // pred_fallthru
      _
    // Predicated region
    $region18: #{jungmin3_forward.1} parent=1 // pred_check
      _
    $region19: #{jungmin3_forward.1} parent=1 // pred_check_branch
      %51 = sbr.rel (0) target = $region21
    $region20: #{jungmin3_forward.1} parent=1 // pred_region
      %s53 = ssub.s32 240, 240
      %54 = vsyncadd [#allocation7], %s53
      %s55 = sshll.u32 [#allocation8], 4
      %s56 = int_to_ptr.vmem [resolvable:$true] %s55
      %61 = dma.hbm_to_vmem [thread:$0]  %s4, 240, %s56, [#allocation7], 80, 80, 5
    $region21: #{jungmin3_forward.1} parent=1 // pred_fallthru
      _
    // Predicated region
    $region22: #{jungmin3_forward.1} parent=1 // pred_check
      _
    $region23: #{jungmin3_forward.1} parent=1 // pred_check_branch
      %63 = sbr.rel (0) target = $region25
    $region24: #{jungmin3_forward.1} parent=1 // pred_region
      %s65 = ssub.s32 240, 240
      %66 = vsyncadd [#allocation10], %s65
      %s67 = sshll.u32 [#allocation9], 4
      %s68 = int_to_ptr.vmem [resolvable:$true] %s67
      %73 = dma.hbm_to_vmem [thread:$0]  %s5, 240, %s68, [#allocation10], 80, 80, 5
    $region25: #{jungmin3_forward.1} parent=1 // pred_fallthru
      _
    // Predicated region
    $region26: #{jungmin3_forward.1} parent=1 // pred_check
      _
    $region27: #{jungmin3_forward.1} parent=1 // pred_check_branch
      %75 = sbr.rel (0) target = $region29
    $region28: #{jungmin3_forward.1} parent=1 // pred_region
      %s77 = ssub.s32 240, 240
      %78 = vsyncadd [#allocation10], %s77
      %s79 = sshll.u32 [#allocation11], 4
      %s80 = int_to_ptr.vmem [resolvable:$true] %s79
      %85 = dma.hbm_to_vmem [thread:$0]  %s6, 240, %s80, [#allocation10], 80, 80, 5
    $region29: #{jungmin3_forward.1} parent=1 // pred_fallthru
      _
    // Predicated region
    $region30: #{jungmin3_forward.1} parent=1 // pred_check
      _
    $region31: #{jungmin3_forward.1} parent=1 // pred_check_branch
      %87 = sbr.rel (0) target = $region33
    $region32: #{jungmin3_forward.1} parent=1 // pred_region
      %s89 = ssub.s32 8320, 8320
      %90 = vsyncadd [#allocation13], %s89
      %s91 = sshll.u32 [#allocation12], 4
      %s92 = int_to_ptr.vmem [resolvable:$true] %s91
      %97 = dma.hbm_to_vmem [thread:$0]  %s7, 8320, %s92, [#allocation13], 128, 128, 8
    $region33: #{jungmin3_forward.1} parent=1 // pred_fallthru
      _
    // Predicated region
    $region34: #{jungmin3_forward.1} parent=1 // pred_check
      _
    $region35: #{jungmin3_forward.1} parent=1 // pred_check_branch
      %99 = sbr.rel (0) target = $region37
    $region36: #{jungmin3_forward.1} parent=1 // pred_region
      %s101 = ssub.s32 32, 32
      %102 = vsyncadd [#allocation13], %s101
      %s104 = sshll.u32 [#allocation14], 4
      %s105 = int_to_ptr.vmem [resolvable:$true] %s104
      %107 = dma.hbm_to_vmem [thread:$0]  %s8, 32, %s105, [#allocation13]
    $region37: #{jungmin3_forward.1} parent=1 // pred_fallthru
      _
    // Predicated region
    $region38: #{jungmin3_forward.1} parent=1 // pred_check
      _
    $region39: #{jungmin3_forward.1} parent=1 // pred_check_branch
      %109 = sbr.rel (0) target = $region41
    $region40: #{jungmin3_forward.1} parent=1 // pred_region
      _
    $region41: #{jungmin3_forward.1} parent=1 // pred_fallthru
      _
    // Predicated region
    $region42: #{jungmin3_forward.1} parent=1 // pred_check
      _
    $region43: #{jungmin3_forward.1} parent=1 // pred_check_branch
      %111 = sbr.rel (0) target = $region45
    $region44: #{jungmin3_forward.1} parent=1 // pred_region
      %s113 = ssub.s32 16, 16
      %114 = vsyncadd [#allocation16], %s113
      %s116 = sshll.u32 [#allocation15], 4
      %s117 = int_to_ptr.vmem [resolvable:$true] %s116
      %119 = dma.hbm_to_vmem [thread:$0]  %s10, 16, %s117, [#allocation16]
    $region45: #{jungmin3_forward.1} parent=1 // pred_fallthru
      _
    // Predicated region
    $region46: #{jungmin3_forward.1} parent=1 // pred_check
      _
    $region47: #{jungmin3_forward.1} parent=1 // pred_check_branch
      %121 = sbr.rel (0) target = $region49
    $region48: #{jungmin3_forward.1} parent=1 // pred_region
      %122 = dma.done [#allocation4], 240
    $region49: #{jungmin3_forward.1} parent=1 // pred_fallthru
      _
    // Predicated region
    $region50: #{jungmin3_forward.1} parent=1 // pred_check
      _
    $region51: #{jungmin3_forward.1} parent=1 // pred_check_branch
      %124 = sbr.rel (0) target = $region53
    $region52: #{jungmin3_forward.1} parent=1 // pred_region
      %125 = dma.done [#allocation7], 62400
    $region53: #{jungmin3_forward.1} parent=1 // pred_fallthru
      _
    // Predicated region
    $region54: #{jungmin3_forward.1} parent=1 // pred_check
      _
    $region55: #{jungmin3_forward.1} parent=1 // pred_check_branch
      %127 = sbr.rel (0) target = $region57
    $region56: #{jungmin3_forward.1} parent=1 // pred_region
      %128 = dma.done [#allocation7], 240
    $region57: #{jungmin3_forward.1} parent=1 // pred_fallthru
      _
    // Predicated region
    $region58: #{jungmin3_forward.1} parent=1 // pred_check
      _
    $region59: #{jungmin3_forward.1} parent=1 // pred_check_branch
      %130 = sbr.rel (0) target = $region61
    $region60: #{jungmin3_forward.1} parent=1 // pred_region
      %131 = dma.done [#allocation10], 240
    $region61: #{jungmin3_forward.1} parent=1 // pred_fallthru
      _
    // Predicated region
    $region62: #{jungmin3_forward.1} parent=1 // pred_check
      _
    $region63: #{jungmin3_forward.1} parent=1 // pred_check_branch
      %133 = sbr.rel (0) target = $region65
    $region64: #{jungmin3_forward.1} parent=1 // pred_region
      %134 = dma.done [#allocation10], 240
    $region65: #{jungmin3_forward.1} parent=1 // pred_fallthru
      _
    // Predicated region
    $region66: #{jungmin3_forward.1} parent=1 // pred_check
      _
    $region67: #{jungmin3_forward.1} parent=1 // pred_check_branch
      %136 = sbr.rel (0) target = $region69
    $region68: #{jungmin3_forward.1} parent=1 // pred_region
      %137 = dma.done [#allocation13], 8320
    $region69: #{jungmin3_forward.1} parent=1 // pred_fallthru
      _
    // Predicated region
    $region70: #{jungmin3_forward.1} parent=1 // pred_check
      _
    $region71: #{jungmin3_forward.1} parent=1 // pred_check_branch
      %139 = sbr.rel (0) target = $region73
    $region72: #{jungmin3_forward.1} parent=1 // pred_region
      %140 = dma.done [#allocation13], 32
    $region73: #{jungmin3_forward.1} parent=1 // pred_fallthru
      _
    // Predicated region
    $region74: #{jungmin3_forward.1} parent=1 // pred_check
      _
    $region75: #{jungmin3_forward.1} parent=1 // pred_check_branch
      %142 = sbr.rel (0) target = $region77
    $region76: #{jungmin3_forward.1} parent=1 // pred_region
      %143 = dma.done [#allocation16], 16
    $region77: #{jungmin3_forward.1} parent=1 // pred_fallthru
      _
    %145 = vst [vmem:[#allocation2] sm:$0xff] 0.0
    %146 = vst [vmem:[#allocation2 + $0x8] sm:$0xff] 0.0
    %147 = vst [vmem:[#allocation2 + $0x10] sm:$0xff] 0.0
    %148 = vst [vmem:[#allocation2 + $0x18] sm:$0xff] 0.0
    %vm149 = vcmask 15360
    %150 = vst.msk [vmem:[#allocation2 + $0x20] sm:$0xff] %vm149, 0.0
    %151 = vst [vmem:[#allocation2 + $0x28] sm:$0xf] 0.0
    %152 = vst [vmem:[#allocation2 + $0x30] sm:$0xf] 0.0
    %153 = vst [vmem:[#allocation2 + $0x38] sm:$0xf] 0.0
    %154 = vst [vmem:[#allocation2 + $0x40] sm:$0xf] 0.0
    %vm155 = vcmask 11264
    %156 = vst.msk [vmem:[#allocation2 + $0x48] sm:$0xf] %vm155, 0.0
    %157 = vst [vmem:[#allocation2 + $0x50] sm:$0xff] 0.0
    %158 = vst [vmem:[#allocation2 + $0x58] sm:$0xff] 0.0
    %159 = vst [vmem:[#allocation2 + $0x60] sm:$0xff] 0.0
    %160 = vst [vmem:[#allocation2 + $0x68] sm:$0xff] 0.0
    %161 = vst.msk [vmem:[#allocation2 + $0x70] sm:$0xff] %vm149, 0.0
    %162 = vst [vmem:[#allocation2 + $0x78] sm:$0xf] 0.0
    %163 = vst [vmem:[#allocation2 + $0x80] sm:$0xf] 0.0
    %164 = vst [vmem:[#allocation2 + $0x88] sm:$0xf] 0.0
    %165 = vst [vmem:[#allocation2 + $0x90] sm:$0xf] 0.0
    %166 = vst.msk [vmem:[#allocation2 + $0x98] sm:$0xf] %vm155, 0.0
    %v167 = vld [vmem:[%s0] sm:$0xff]
    %v168 = vld [vmem:[%s0 + $0x8] sm:$0xff]
    %v169 = vld [vmem:[%s0 + $0x10] sm:$0xff]
    %v170 = vld [vmem:[%s0 + $0x18] sm:$0xff]
    %v171 = vld [vmem:[%s0 + $0x20] sm:$0xff]
    %v172 = vld [vmem:[%s0 + $0x28] sm:$0xff]
    %v173 = vld [vmem:[%s0 + $0x30] sm:$0xff]
    %v174 = vld [vmem:[%s0 + $0x38] sm:$0xff]
    %v175 = vld [vmem:[%s0 + $0x40] sm:$0xff]
    %v176 = vld [vmem:[%s0 + $0x48] sm:$0xff]
    %v187 = vrot.slane %v167, 6
    %v188 = vrot.slane %v168, 6
    %v189 = vrot.slane %v169, 6
    %v190 = vrot.slane %v170, 6
    %v191 = vrot.slane %v171, 6
    %v192 = vrot.slane %v172, 6
    %v193 = vrot.slane %v173, 6
    %v194 = vrot.slane %v174, 6
    %v195 = vrot.slane %v175, 6
    %v196 = vrot.slane %v176, 6
    %207 = vst [vmem:[#allocation2] sm:$0xfc] %v187
    %208 = vst [vmem:[#allocation2 + $0x8] sm:$0xfc] %v188
    %209 = vst [vmem:[#allocation2 + $0x10] sm:$0xfc] %v189
    %210 = vst [vmem:[#allocation2 + $0x18] sm:$0xfc] %v190
    %vm211 = vcmask 15362
    %212 = vst.msk [vmem:[#allocation2 + $0x20] sm:$0xfc] %vm211, %v191
    %213 = vst [vmem:[#allocation2 + $0x28] sm:$0x3] %v187
    %214 = vst [vmem:[#allocation2 + $0x30] sm:$0x3] %v188
    %215 = vst [vmem:[#allocation2 + $0x38] sm:$0x3] %v189
    %216 = vst [vmem:[#allocation2 + $0x40] sm:$0x3] %v190
    %vm217 = vcmask 9216
    %218 = vst.msk [vmem:[#allocation2 + $0x48] sm:$0x3] %vm217, %v191
    %219 = vst [vmem:[#allocation2 + $0x50] sm:$0xfc] %v192
    %220 = vst [vmem:[#allocation2 + $0x58] sm:$0xfc] %v193
    %221 = vst [vmem:[#allocation2 + $0x60] sm:$0xfc] %v194
    %222 = vst [vmem:[#allocation2 + $0x68] sm:$0xfc] %v195
    %223 = vst.msk [vmem:[#allocation2 + $0x70] sm:$0xfc] %vm211, %v196
    %224 = vst [vmem:[#allocation2 + $0x78] sm:$0x3] %v192
    %225 = vst [vmem:[#allocation2 + $0x80] sm:$0x3] %v193
    %226 = vst [vmem:[#allocation2 + $0x88] sm:$0x3] %v194
    %227 = vst [vmem:[#allocation2 + $0x90] sm:$0x3] %v195
    %228 = vst.msk [vmem:[#allocation2 + $0x98] sm:$0x3] %vm217, %v196
    %v229 = vld [vmem:[#allocation2] sm:$0xff]
    %v230 = vld [vmem:[#allocation2 + $0x8] sm:$0xff]
    %v231 = vld [vmem:[#allocation2 + $0x10] sm:$0xff]
    %v232 = vld [vmem:[#allocation2 + $0x18] sm:$0xff]
    %v233 = vld [vmem:[#allocation2 + $0x20] sm:$0xff]
    %v234 = vld [vmem:[#allocation2 + $0x28] sm:$0xf]
    %v235 = vld [vmem:[#allocation2 + $0x30] sm:$0xf]
    %v236 = vld [vmem:[#allocation2 + $0x38] sm:$0xf]
    %v237 = vld [vmem:[#allocation2 + $0x40] sm:$0xf]
    %v238 = vld [vmem:[#allocation2 + $0x48] sm:$0xf]
    %v239 = vld [vmem:[#allocation2 + $0x50] sm:$0xff]
    %v240 = vld [vmem:[#allocation2 + $0x58] sm:$0xff]
    %v241 = vld [vmem:[#allocation2 + $0x60] sm:$0xff]
    %v242 = vld [vmem:[#allocation2 + $0x68] sm:$0xff]
    %v243 = vld [vmem:[#allocation2 + $0x70] sm:$0xff]
    %v244 = vld [vmem:[#allocation2 + $0x78] sm:$0xf]
    %v245 = vld [vmem:[#allocation2 + $0x80] sm:$0xf]
    %v246 = vld [vmem:[#allocation2 + $0x88] sm:$0xf]
    %v247 = vld [vmem:[#allocation2 + $0x90] sm:$0xf]
    %v248 = vld [vmem:[#allocation2 + $0x98] sm:$0xf]
    %v249 = vld [vmem:[%s1] sm:$0x1f]
    %v250 = vld [vmem:[%s1 + $0x8] sm:$0x1f]
    %v251 = vld [vmem:[%s1 + $0x10] sm:$0x1f]
    %v252 = vld [vmem:[%s1 + $0x18] sm:$0x1f]
    %v253 = vld [vmem:[%s1 + $0x20] sm:$0x1f]
    %v254 = vlaneseq
    %v255 = vshrl.u32 %v254, 7
    %v256 = vsub.s32 0, %v255
    %v257 = vrot.slane %v249, %v256
    %v258 = vlaneseq
    %v259 = vshrl.u32 %v258, 7
    %v260 = vsub.s32 0, %v259
    %v261 = vrot.slane %v250, %v260
    %v262 = vlaneseq
    %v263 = vshrl.u32 %v262, 7
    %v264 = vsub.s32 0, %v263
    %v265 = vrot.slane %v251, %v264
    %v266 = vlaneseq
    %v267 = vshrl.u32 %v266, 7
    %v268 = vsub.s32 0, %v267
    %v269 = vrot.slane %v252, %v268
    %v270 = vlaneseq
    %v271 = vshrl.u32 %v270, 7
    %v272 = vsub.s32 0, %v271
    %v273 = vrot.slane %v253, %v272
    %v274 = vmul.f32 %v229, %v257
    %v275 = vmul.f32 %v230, %v261
    %v276 = vmul.f32 %v231, %v265
    %v277 = vmul.f32 %v232, %v269
    %v278 = vmul.f32 %v233, %v273
    %v279 = vmul.f32 %v239, %v257
    %v280 = vmul.f32 %v240, %v261
    %v281 = vmul.f32 %v241, %v265
    %v282 = vmul.f32 %v242, %v269
    %v283 = vmul.f32 %v243, %v273
    %v284 = vlaneseq
    %v285 = vshrl.u32 %v284, 7
    %v286 = vsub.s32 1, %v285
    %v287 = vrot.slane %v249, %v286
    %v288 = vlaneseq
    %v289 = vshrl.u32 %v288, 7
    %v290 = vsub.s32 1, %v289
    %v291 = vrot.slane %v250, %v290
    %v292 = vlaneseq
    %v293 = vshrl.u32 %v292, 7
    %v294 = vsub.s32 1, %v293
    %v295 = vrot.slane %v251, %v294
    %v296 = vlaneseq
    %v297 = vshrl.u32 %v296, 7
    %v298 = vsub.s32 1, %v297
    %v299 = vrot.slane %v252, %v298
    %v300 = vlaneseq
    %v301 = vshrl.u32 %v300, 7
    %v302 = vsub.s32 1, %v301
    %v303 = vrot.slane %v253, %v302
    %v304 = vmul.f32 %v229, %v287
    %v305 = vmul.f32 %v230, %v291
    %v306 = vmul.f32 %v231, %v295
    %v307 = vmul.f32 %v232, %v299
    %v308 = vmul.f32 %v233, %v303
    %v309 = vmul.f32 %v234, %v287
    %v310 = vmul.f32 %v235, %v291
    %v311 = vmul.f32 %v236, %v295
    %v312 = vmul.f32 %v237, %v299
    %v313 = vmul.f32 %v238, %v303
    %v314 = vmul.f32 %v239, %v287
    %v315 = vmul.f32 %v240, %v291
    %v316 = vmul.f32 %v241, %v295
    %v317 = vmul.f32 %v242, %v299
    %v318 = vmul.f32 %v243, %v303
    %v319 = vmul.f32 %v244, %v287
    %v320 = vmul.f32 %v245, %v291
    %v321 = vmul.f32 %v246, %v295
    %v322 = vmul.f32 %v247, %v299
    %v323 = vmul.f32 %v248, %v303
    %vm344 = vcmask 1046528
    %v345 = vrot.slane %v304, 1
    %v346 = vrot.slane %v309, 1
    %v347 = vsel %vm344, %v345, %v346
    %v348 = vrot.slane %v305, 1
    %v349 = vrot.slane %v310, 1
    %v350 = vsel %vm344, %v348, %v349
    %v351 = vrot.slane %v306, 1
    %v352 = vrot.slane %v311, 1
    %v353 = vsel %vm344, %v351, %v352
    %v354 = vrot.slane %v307, 1
    %v355 = vrot.slane %v312, 1
    %v356 = vsel %vm344, %v354, %v355
    %v357 = vrot.slane %v308, 1
    %v358 = vrot.slane %v313, 1
    %v359 = vsel %vm344, %v357, %v358
    %v360 = vrot.slane %v314, 1
    %v361 = vrot.slane %v319, 1
    %v362 = vsel %vm344, %v360, %v361
    %v363 = vrot.slane %v315, 1
    %v364 = vrot.slane %v320, 1
    %v365 = vsel %vm344, %v363, %v364
    %v366 = vrot.slane %v316, 1
    %v367 = vrot.slane %v321, 1
    %v368 = vsel %vm344, %v366, %v367
    %v369 = vrot.slane %v317, 1
    %v370 = vrot.slane %v322, 1
    %v371 = vsel %vm344, %v369, %v370
    %v372 = vrot.slane %v318, 1
    %v373 = vrot.slane %v323, 1
    %v374 = vsel %vm344, %v372, %v373
    %v385 = vadd.f32 %v274, %v347
    %v386 = vadd.f32 %v275, %v350
    %v387 = vadd.f32 %v276, %v353
    %v388 = vadd.f32 %v277, %v356
    %v389 = vadd.f32 %v278, %v359
    %v390 = vadd.f32 %v279, %v362
    %v391 = vadd.f32 %v280, %v365
    %v392 = vadd.f32 %v281, %v368
    %v393 = vadd.f32 %v282, %v371
    %v394 = vadd.f32 %v283, %v374
    %v395 = vlaneseq
    %v396 = vshrl.u32 %v395, 7
    %v397 = vsub.s32 2, %v396
    %v398 = vrot.slane %v249, %v397
    %v399 = vlaneseq
    %v400 = vshrl.u32 %v399, 7
    %v401 = vsub.s32 2, %v400
    %v402 = vrot.slane %v250, %v401
    %v403 = vlaneseq
    %v404 = vshrl.u32 %v403, 7
    %v405 = vsub.s32 2, %v404
    %v406 = vrot.slane %v251, %v405
    %v407 = vlaneseq
    %v408 = vshrl.u32 %v407, 7
    %v409 = vsub.s32 2, %v408
    %v410 = vrot.slane %v252, %v409
    %v411 = vlaneseq
    %v412 = vshrl.u32 %v411, 7
    %v413 = vsub.s32 2, %v412
    %v414 = vrot.slane %v253, %v413
    %v415 = vmul.f32 %v229, %v398
    %v416 = vmul.f32 %v230, %v402
    %v417 = vmul.f32 %v231, %v406
    %v418 = vmul.f32 %v232, %v410
    %v419 = vmul.f32 %v233, %v414
    %v420 = vmul.f32 %v234, %v398
    %v421 = vmul.f32 %v235, %v402
    %v422 = vmul.f32 %v236, %v406
    %v423 = vmul.f32 %v237, %v410
    %v424 = vmul.f32 %v238, %v414
    %v425 = vmul.f32 %v239, %v398
    %v426 = vmul.f32 %v240, %v402
    %v427 = vmul.f32 %v241, %v406
    %v428 = vmul.f32 %v242, %v410
    %v429 = vmul.f32 %v243, %v414
    %v430 = vmul.f32 %v244, %v398
    %v431 = vmul.f32 %v245, %v402
    %v432 = vmul.f32 %v246, %v406
    %v433 = vmul.f32 %v247, %v410
    %v434 = vmul.f32 %v248, %v414
    %vm455 = vcmask 1045504
    %v456 = vrot.slane %v415, 2
    %v457 = vrot.slane %v420, 2
    %v458 = vsel %vm455, %v456, %v457
    %v459 = vrot.slane %v416, 2
    %v460 = vrot.slane %v421, 2
    %v461 = vsel %vm455, %v459, %v460
    %v462 = vrot.slane %v417, 2
    %v463 = vrot.slane %v422, 2
    %v464 = vsel %vm455, %v462, %v463
    %v465 = vrot.slane %v418, 2
    %v466 = vrot.slane %v423, 2
    %v467 = vsel %vm455, %v465, %v466
    %v468 = vrot.slane %v419, 2
    %v469 = vrot.slane %v424, 2
    %v470 = vsel %vm455, %v468, %v469
    %v471 = vrot.slane %v425, 2
    %v472 = vrot.slane %v430, 2
    %v473 = vsel %vm455, %v471, %v472
    %v474 = vrot.slane %v426, 2
    %v475 = vrot.slane %v431, 2
    %v476 = vsel %vm455, %v474, %v475
    %v477 = vrot.slane %v427, 2
    %v478 = vrot.slane %v432, 2
    %v479 = vsel %vm455, %v477, %v478
    %v480 = vrot.slane %v428, 2
    %v481 = vrot.slane %v433, 2
    %v482 = vsel %vm455, %v480, %v481
    %v483 = vrot.slane %v429, 2
    %v484 = vrot.slane %v434, 2
    %v485 = vsel %vm455, %v483, %v484
    %v496 = vadd.f32 %v385, %v458
    %v497 = vadd.f32 %v386, %v461
    %v498 = vadd.f32 %v387, %v464
    %v499 = vadd.f32 %v388, %v467
    %v500 = vadd.f32 %v389, %v470
    %v501 = vadd.f32 %v390, %v473
    %v502 = vadd.f32 %v391, %v476
    %v503 = vadd.f32 %v392, %v479
    %v504 = vadd.f32 %v393, %v482
    %v505 = vadd.f32 %v394, %v485
    %v506 = vlaneseq
    %v507 = vshrl.u32 %v506, 7
    %v508 = vsub.s32 3, %v507
    %v509 = vrot.slane %v249, %v508
    %v510 = vlaneseq
    %v511 = vshrl.u32 %v510, 7
    %v512 = vsub.s32 3, %v511
    %v513 = vrot.slane %v250, %v512
    %v514 = vlaneseq
    %v515 = vshrl.u32 %v514, 7
    %v516 = vsub.s32 3, %v515
    %v517 = vrot.slane %v251, %v516
    %v518 = vlaneseq
    %v519 = vshrl.u32 %v518, 7
    %v520 = vsub.s32 3, %v519
    %v521 = vrot.slane %v252, %v520
    %v522 = vlaneseq
    %v523 = vshrl.u32 %v522, 7
    %v524 = vsub.s32 3, %v523
    %v525 = vrot.slane %v253, %v524
    %v526 = vmul.f32 %v229, %v509
    %v527 = vmul.f32 %v230, %v513
    %v528 = vmul.f32 %v231, %v517
    %v529 = vmul.f32 %v232, %v521
    %v530 = vmul.f32 %v233, %v525
    %v531 = vmul.f32 %v234, %v509
    %v532 = vmul.f32 %v235, %v513
    %v533 = vmul.f32 %v236, %v517
    %v534 = vmul.f32 %v237, %v521
    %v535 = vmul.f32 %v238, %v525
    %v536 = vmul.f32 %v239, %v509
    %v537 = vmul.f32 %v240, %v513
    %v538 = vmul.f32 %v241, %v517
    %v539 = vmul.f32 %v242, %v521
    %v540 = vmul.f32 %v243, %v525
    %v541 = vmul.f32 %v244, %v509
    %v542 = vmul.f32 %v245, %v513
    %v543 = vmul.f32 %v246, %v517
    %v544 = vmul.f32 %v247, %v521
    %v545 = vmul.f32 %v248, %v525
    %vm566 = vcmask 1044480
    %v567 = vrot.slane %v526, 3
    %v568 = vrot.slane %v531, 3
    %v569 = vsel %vm566, %v567, %v568
    %v570 = vrot.slane %v527, 3
    %v571 = vrot.slane %v532, 3
    %v572 = vsel %vm566, %v570, %v571
    %v573 = vrot.slane %v528, 3
    %v574 = vrot.slane %v533, 3
    %v575 = vsel %vm566, %v573, %v574
    %v576 = vrot.slane %v529, 3
    %v577 = vrot.slane %v534, 3
    %v578 = vsel %vm566, %v576, %v577
    %v579 = vrot.slane %v530, 3
    %v580 = vrot.slane %v535, 3
    %v581 = vsel %vm566, %v579, %v580
    %v582 = vrot.slane %v536, 3
    %v583 = vrot.slane %v541, 3
    %v584 = vsel %vm566, %v582, %v583
    %v585 = vrot.slane %v537, 3
    %v586 = vrot.slane %v542, 3
    %v587 = vsel %vm566, %v585, %v586
    %v588 = vrot.slane %v538, 3
    %v589 = vrot.slane %v543, 3
    %v590 = vsel %vm566, %v588, %v589
    %v591 = vrot.slane %v539, 3
    %v592 = vrot.slane %v544, 3
    %v593 = vsel %vm566, %v591, %v592
    %v594 = vrot.slane %v540, 3
    %v595 = vrot.slane %v545, 3
    %v596 = vsel %vm566, %v594, %v595
    %v607 = vadd.f32 %v496, %v569
    %v608 = vadd.f32 %v497, %v572
    %v609 = vadd.f32 %v498, %v575
    %v610 = vadd.f32 %v499, %v578
    %v611 = vadd.f32 %v500, %v581
    %v612 = vadd.f32 %v501, %v584
    %v613 = vadd.f32 %v502, %v587
    %v614 = vadd.f32 %v503, %v590
    %v615 = vadd.f32 %v504, %v593
    %v616 = vadd.f32 %v505, %v596
    %v617 = vlaneseq
    %v618 = vshrl.u32 %v617, 7
    %v619 = vsub.s32 4, %v618
    %v620 = vrot.slane %v249, %v619
    %v621 = vlaneseq
    %v622 = vshrl.u32 %v621, 7
    %v623 = vsub.s32 4, %v622
    %v624 = vrot.slane %v250, %v623
    %v625 = vlaneseq
    %v626 = vshrl.u32 %v625, 7
    %v627 = vsub.s32 4, %v626
    %v628 = vrot.slane %v251, %v627
    %v629 = vlaneseq
    %v630 = vshrl.u32 %v629, 7
    %v631 = vsub.s32 4, %v630
    %v632 = vrot.slane %v252, %v631
    %v633 = vlaneseq
    %v634 = vshrl.u32 %v633, 7
    %v635 = vsub.s32 4, %v634
    %v636 = vrot.slane %v253, %v635
    %v637 = vmul.f32 %v229, %v620
    %v638 = vmul.f32 %v230, %v624
    %v639 = vmul.f32 %v231, %v628
    %v640 = vmul.f32 %v232, %v632
    %v641 = vmul.f32 %v233, %v636
    %v642 = vmul.f32 %v234, %v620
    %v643 = vmul.f32 %v235, %v624
    %v644 = vmul.f32 %v236, %v628
    %v645 = vmul.f32 %v237, %v632
    %v646 = vmul.f32 %v238, %v636
    %v647 = vmul.f32 %v239, %v620
    %v648 = vmul.f32 %v240, %v624
    %v649 = vmul.f32 %v241, %v628
    %v650 = vmul.f32 %v242, %v632
    %v651 = vmul.f32 %v243, %v636
    %v652 = vmul.f32 %v244, %v620
    %v653 = vmul.f32 %v245, %v624
    %v654 = vmul.f32 %v246, %v628
    %v655 = vmul.f32 %v247, %v632
    %v656 = vmul.f32 %v248, %v636
    %vm677 = vcmask 1043456
    %v678 = vrot.slane %v637, 4
    %v679 = vrot.slane %v642, 4
    %v680 = vsel %vm677, %v678, %v679
    %v681 = vrot.slane %v638, 4
    %v682 = vrot.slane %v643, 4
    %v683 = vsel %vm677, %v681, %v682
    %v684 = vrot.slane %v639, 4
    %v685 = vrot.slane %v644, 4
    %v686 = vsel %vm677, %v684, %v685
    %v687 = vrot.slane %v640, 4
    %v688 = vrot.slane %v645, 4
    %v689 = vsel %vm677, %v687, %v688
    %v690 = vrot.slane %v641, 4
    %v691 = vrot.slane %v646, 4
    %v692 = vsel %vm677, %v690, %v691
    %v693 = vrot.slane %v647, 4
    %v694 = vrot.slane %v652, 4
    %v695 = vsel %vm677, %v693, %v694
    %v696 = vrot.slane %v648, 4
    %v697 = vrot.slane %v653, 4
    %v698 = vsel %vm677, %v696, %v697
    %v699 = vrot.slane %v649, 4
    %v700 = vrot.slane %v654, 4
    %v701 = vsel %vm677, %v699, %v700
    %v702 = vrot.slane %v650, 4
    %v703 = vrot.slane %v655, 4
    %v704 = vsel %vm677, %v702, %v703
    %v705 = vrot.slane %v651, 4
    %v706 = vrot.slane %v656, 4
    %v707 = vsel %vm677, %v705, %v706
    %v718 = vadd.f32 %v607, %v680
    %v719 = vadd.f32 %v608, %v683
    %v720 = vadd.f32 %v609, %v686
    %v721 = vadd.f32 %v610, %v689
    %v722 = vadd.f32 %v611, %v692
    %v723 = vadd.f32 %v612, %v695
    %v724 = vadd.f32 %v613, %v698
    %v725 = vadd.f32 %v614, %v701
    %v726 = vadd.f32 %v615, %v704
    %v727 = vadd.f32 %v616, %v707
    %v728 = vld [vmem:[#allocation3] sm:$0x1f]
    %v730 = vlaneseq
    %v731 = vshrl.u32 %v730, 7
    %v732 = vsub.s32 0, %v731
    %v733 = vrot.slane %v728, %v732
    %v734 = vlaneseq
    %v735 = vshrl.u32 %v734, 7
    %v736 = vsub.s32 1, %v735
    %v737 = vrot.slane %v728, %v736
    %v738 = vlaneseq
    %v739 = vshrl.u32 %v738, 7
    %v740 = vsub.s32 2, %v739
    %v741 = vrot.slane %v728, %v740
    %v742 = vlaneseq
    %v743 = vshrl.u32 %v742, 7
    %v744 = vsub.s32 3, %v743
    %v745 = vrot.slane %v728, %v744
    %v746 = vlaneseq
    %v747 = vshrl.u32 %v746, 7
    %v748 = vsub.s32 4, %v747
    %v749 = vrot.slane %v728, %v748
    %v755 = vadd.f32 %v718, %v733
    %v756 = vadd.f32 %v719, %v737
    %v757 = vadd.f32 %v720, %v741
    %v758 = vadd.f32 %v721, %v745
    %v759 = vadd.f32 %v722, %v749
    %v760 = vadd.f32 %v723, %v733
    %v761 = vadd.f32 %v724, %v737
    %v762 = vadd.f32 %v725, %v741
    %v763 = vadd.f32 %v726, %v745
    %v764 = vadd.f32 %v727, %v749
    %v765 = vpack.c.bf16 %v760, %v755
    %v766 = vpack.c.bf16 %v761, %v756
    %v767 = vpack.c.bf16 %v762, %v757
    %v768 = vpack.c.bf16 %v763, %v758
    %v769 = vpack.c.bf16 %v764, %v759
    %v770 = vld [vmem:[#allocation6] sm:$0xff]
    %v771 = vld [vmem:[#allocation6 + $0x8] sm:$0xff]
    %v772 = vld [vmem:[#allocation6 + $0x10] sm:$0xf]
    %v773 = vld [vmem:[#allocation6 + $0x14] sm:$0xff]
    %v774 = vld [vmem:[#allocation6 + $0x1c] sm:$0xff]
    %v775 = vld [vmem:[#allocation6 + $0x24] sm:$0xf]
    %v776 = vld [vmem:[#allocation6 + $0x28] sm:$0xff]
    %v777 = vld [vmem:[#allocation6 + $0x30] sm:$0xff]
    %v778 = vld [vmem:[#allocation6 + $0x38] sm:$0xf]
    %v779 = vld [vmem:[#allocation6 + $0x3c] sm:$0xff]
    %v780 = vld [vmem:[#allocation6 + $0x44] sm:$0xff]
    %v781 = vld [vmem:[#allocation6 + $0x4c] sm:$0xf]
    %v782 = vld [vmem:[#allocation6 + $0x50] sm:$0xff]
    %v783 = vld [vmem:[#allocation6 + $0x58] sm:$0xff]
    %v784 = vld [vmem:[#allocation6 + $0x60] sm:$0xf]
    %v785 = vld [vmem:[#allocation6 + $0x64] sm:$0xff]
    %v786 = vld [vmem:[#allocation6 + $0x6c] sm:$0xff]
    %v787 = vld [vmem:[#allocation6 + $0x74] sm:$0xf]
    %v788 = vld [vmem:[#allocation6 + $0x78] sm:$0xff]
    %v789 = vld [vmem:[#allocation6 + $0x80] sm:$0xff]
    %v790 = vld [vmem:[#allocation6 + $0x88] sm:$0xf]
    %v791 = vld [vmem:[#allocation6 + $0x8c] sm:$0xff]
    %v792 = vld [vmem:[#allocation6 + $0x94] sm:$0xff]
    %v793 = vld [vmem:[#allocation6 + $0x9c] sm:$0xf]
    %v794 = vld [vmem:[#allocation6 + $0xa0] sm:$0xff]
    %v795 = vld [vmem:[#allocation6 + $0xa8] sm:$0xff]
    %v796 = vld [vmem:[#allocation6 + $0xb0] sm:$0xf]
    %v797 = vld [vmem:[#allocation6 + $0xb4] sm:$0xff]
    %v798 = vld [vmem:[#allocation6 + $0xbc] sm:$0xff]
    %v799 = vld [vmem:[#allocation6 + $0xc4] sm:$0xf]
    %v800 = vld [vmem:[#allocation6 + $0xc8] sm:$0xff]
    %v801 = vld [vmem:[#allocation6 + $0xd0] sm:$0xff]
    %v802 = vld [vmem:[#allocation6 + $0xd8] sm:$0xf]
    %v803 = vld [vmem:[#allocation6 + $0xdc] sm:$0xff]
    %v804 = vld [vmem:[#allocation6 + $0xe4] sm:$0xff]
    %v805 = vld [vmem:[#allocation6 + $0xec] sm:$0xf]
    %v806 = vld [vmem:[#allocation6 + $0xf0] sm:$0xff]
    %v807 = vld [vmem:[#allocation6 + $0xf8] sm:$0xff]
    %v808 = vld [vmem:[#allocation6 + $0x100] sm:$0xf]
    %v809 = vld [vmem:[#allocation6 + $0x104] sm:$0xff]
    %v810 = vld [vmem:[#allocation6 + $0x10c] sm:$0xff]
    %v811 = vld [vmem:[#allocation6 + $0x114] sm:$0xf]
    %v812 = vld [vmem:[#allocation6 + $0x118] sm:$0xff]
    %v813 = vld [vmem:[#allocation6 + $0x120] sm:$0xff]
    %v814 = vld [vmem:[#allocation6 + $0x128] sm:$0xf]
    %v815 = vld [vmem:[#allocation6 + $0x12c] sm:$0xff]
    %v816 = vld [vmem:[#allocation6 + $0x134] sm:$0xff]
    %v817 = vld [vmem:[#allocation6 + $0x13c] sm:$0xf]
    %v818 = vld [vmem:[#allocation6 + $0x140] sm:$0xff]
    %v819 = vld [vmem:[#allocation6 + $0x148] sm:$0xff]
    %v820 = vld [vmem:[#allocation6 + $0x150] sm:$0xf]
    %v821 = vld [vmem:[#allocation6 + $0x154] sm:$0xff]
    %v822 = vld [vmem:[#allocation6 + $0x15c] sm:$0xff]
    %v823 = vld [vmem:[#allocation6 + $0x164] sm:$0xf]
    %v824 = vld [vmem:[#allocation6 + $0x168] sm:$0xff]
    %v825 = vld [vmem:[#allocation6 + $0x170] sm:$0xff]
    %v826 = vld [vmem:[#allocation6 + $0x178] sm:$0xf]
    %v827 = vld [vmem:[#allocation6 + $0x17c] sm:$0xff]
    %v828 = vld [vmem:[#allocation6 + $0x184] sm:$0xff]
    %v829 = vld [vmem:[#allocation6 + $0x18c] sm:$0xf]
    %v830 = vld [vmem:[#allocation6 + $0x190] sm:$0xff]
    %v831 = vld [vmem:[#allocation6 + $0x198] sm:$0xff]
    %v832 = vld [vmem:[#allocation6 + $0x1a0] sm:$0xf]
    %v833 = vld [vmem:[#allocation6 + $0x1a4] sm:$0xff]
    %v834 = vld [vmem:[#allocation6 + $0x1ac] sm:$0xff]
    %v835 = vld [vmem:[#allocation6 + $0x1b4] sm:$0xf]
    %v836 = vld [vmem:[#allocation6 + $0x1b8] sm:$0xff]
    %v837 = vld [vmem:[#allocation6 + $0x1c0] sm:$0xff]
    %v838 = vld [vmem:[#allocation6 + $0x1c8] sm:$0xf]
    %v839 = vld [vmem:[#allocation6 + $0x1cc] sm:$0xff]
    %v840 = vld [vmem:[#allocation6 + $0x1d4] sm:$0xff]
    %v841 = vld [vmem:[#allocation6 + $0x1dc] sm:$0xf]
    %v842 = vld [vmem:[#allocation6 + $0x1e0] sm:$0xff]
    %v843 = vld [vmem:[#allocation6 + $0x1e8] sm:$0xff]
    %v844 = vld [vmem:[#allocation6 + $0x1f0] sm:$0xf]
    %v845 = vld [vmem:[#allocation6 + $0x1f4] sm:$0xff]
    %v846 = vld [vmem:[#allocation6 + $0x1fc] sm:$0xff]
    %v847 = vld [vmem:[#allocation6 + $0x204] sm:$0xf]
    %v848 = vld [vmem:[#allocation6 + $0x208] sm:$0xff]
    %v849 = vld [vmem:[#allocation6 + $0x210] sm:$0xff]
    %v850 = vld [vmem:[#allocation6 + $0x218] sm:$0xf]
    %v851 = vld [vmem:[#allocation6 + $0x21c] sm:$0xff]
    %v852 = vld [vmem:[#allocation6 + $0x224] sm:$0xff]
    %v853 = vld [vmem:[#allocation6 + $0x22c] sm:$0xf]
    %v854 = vld [vmem:[#allocation6 + $0x230] sm:$0xff]
    %v855 = vld [vmem:[#allocation6 + $0x238] sm:$0xff]
    %v856 = vld [vmem:[#allocation6 + $0x240] sm:$0xf]
    %v857 = vld [vmem:[#allocation6 + $0x244] sm:$0xff]
    %v858 = vld [vmem:[#allocation6 + $0x24c] sm:$0xff]
    %v859 = vld [vmem:[#allocation6 + $0x254] sm:$0xf]
    %v860 = vld [vmem:[#allocation6 + $0x258] sm:$0xff]
    %v861 = vld [vmem:[#allocation6 + $0x260] sm:$0xff]
    %v862 = vld [vmem:[#allocation6 + $0x268] sm:$0xf]
    %v863 = vld [vmem:[#allocation6 + $0x26c] sm:$0xff]
    %v864 = vld [vmem:[#allocation6 + $0x274] sm:$0xff]
    %v865 = vld [vmem:[#allocation6 + $0x27c] sm:$0xf]
    %v866 = vld [vmem:[#allocation6 + $0x280] sm:$0xff]
    %v867 = vld [vmem:[#allocation6 + $0x288] sm:$0xff]
    %v868 = vld [vmem:[#allocation6 + $0x290] sm:$0xf]
    %v869 = vld [vmem:[#allocation6 + $0x294] sm:$0xff]
    %v870 = vld [vmem:[#allocation6 + $0x29c] sm:$0xff]
    %v871 = vld [vmem:[#allocation6 + $0x2a4] sm:$0xf]
    %v872 = vld [vmem:[#allocation6 + $0x2a8] sm:$0xff]
    %v873 = vld [vmem:[#allocation6 + $0x2b0] sm:$0xff]
    %v874 = vld [vmem:[#allocation6 + $0x2b8] sm:$0xf]
    %v875 = vld [vmem:[#allocation6 + $0x2bc] sm:$0xff]
    %v876 = vld [vmem:[#allocation6 + $0x2c4] sm:$0xff]
    %v877 = vld [vmem:[#allocation6 + $0x2cc] sm:$0xf]
    %v878 = vld [vmem:[#allocation6 + $0x2d0] sm:$0xff]
    %v879 = vld [vmem:[#allocation6 + $0x2d8] sm:$0xff]
    %v880 = vld [vmem:[#allocation6 + $0x2e0] sm:$0xf]
    %v881 = vld [vmem:[#allocation6 + $0x2e4] sm:$0xff]
    %v882 = vld [vmem:[#allocation6 + $0x2ec] sm:$0xff]
    %v883 = vld [vmem:[#allocation6 + $0x2f4] sm:$0xf]
    %v884 = vld [vmem:[#allocation6 + $0x2f8] sm:$0xff]
    %v885 = vld [vmem:[#allocation6 + $0x300] sm:$0xff]
    %v886 = vld [vmem:[#allocation6 + $0x308] sm:$0xf]
    %v887 = vld [vmem:[#allocation6 + $0x30c] sm:$0xff]
    %v888 = vld [vmem:[#allocation6 + $0x314] sm:$0xff]
    %v889 = vld [vmem:[#allocation6 + $0x31c] sm:$0xf]
    %v890 = vld [vmem:[#allocation6 + $0x320] sm:$0xff]
    %v891 = vld [vmem:[#allocation6 + $0x328] sm:$0xff]
    %v892 = vld [vmem:[#allocation6 + $0x330] sm:$0xf]
    %v893 = vld [vmem:[#allocation6 + $0x334] sm:$0xff]
    %v894 = vld [vmem:[#allocation6 + $0x33c] sm:$0xff]
    %v895 = vld [vmem:[#allocation6 + $0x344] sm:$0xf]
    %v896 = vld [vmem:[#allocation6 + $0x348] sm:$0xff]
    %v897 = vld [vmem:[#allocation6 + $0x350] sm:$0xff]
    %v898 = vld [vmem:[#allocation6 + $0x358] sm:$0xf]
    %v899 = vld [vmem:[#allocation6 + $0x35c] sm:$0xff]
    %v900 = vld [vmem:[#allocation6 + $0x364] sm:$0xff]
    %v901 = vld [vmem:[#allocation6 + $0x36c] sm:$0xf]
    %v902 = vld [vmem:[#allocation6 + $0x370] sm:$0xff]
    %v903 = vld [vmem:[#allocation6 + $0x378] sm:$0xff]
    %v904 = vld [vmem:[#allocation6 + $0x380] sm:$0xf]
    %v905 = vld [vmem:[#allocation6 + $0x384] sm:$0xff]
    %v906 = vld [vmem:[#allocation6 + $0x38c] sm:$0xff]
    %v907 = vld [vmem:[#allocation6 + $0x394] sm:$0xf]
    %v908 = vld [vmem:[#allocation6 + $0x398] sm:$0xff]
    %v909 = vld [vmem:[#allocation6 + $0x3a0] sm:$0xff]
    %v910 = vld [vmem:[#allocation6 + $0x3a8] sm:$0xf]
    %v911 = vld [vmem:[#allocation6 + $0x3ac] sm:$0xff]
    %v912 = vld [vmem:[#allocation6 + $0x3b4] sm:$0xff]
    %v913 = vld [vmem:[#allocation6 + $0x3bc] sm:$0xf]
    %v914 = vld [vmem:[#allocation6 + $0x3c0] sm:$0xff]
    %v915 = vld [vmem:[#allocation6 + $0x3c8] sm:$0xff]
    %v916 = vld [vmem:[#allocation6 + $0x3d0] sm:$0xf]
    %v917 = vld [vmem:[#allocation6 + $0x3d4] sm:$0xff]
    %v918 = vld [vmem:[#allocation6 + $0x3dc] sm:$0xff]
    %v919 = vld [vmem:[#allocation6 + $0x3e4] sm:$0xf]
    %v920 = vld [vmem:[#allocation6 + $0x3e8] sm:$0xff]
    %v921 = vld [vmem:[#allocation6 + $0x3f0] sm:$0xff]
    %v922 = vld [vmem:[#allocation6 + $0x3f8] sm:$0xf]
    %v923 = vld [vmem:[#allocation6 + $0x3fc] sm:$0xff]
    %v924 = vld [vmem:[#allocation6 + $0x404] sm:$0xff]
    %v925 = vld [vmem:[#allocation6 + $0x40c] sm:$0xf]
    %v926 = vld [vmem:[#allocation6 + $0x410] sm:$0xff]
    %v927 = vld [vmem:[#allocation6 + $0x418] sm:$0xff]
    %v928 = vld [vmem:[#allocation6 + $0x420] sm:$0xf]
    %v929 = vld [vmem:[#allocation6 + $0x424] sm:$0xff]
    %v930 = vld [vmem:[#allocation6 + $0x42c] sm:$0xff]
    %v931 = vld [vmem:[#allocation6 + $0x434] sm:$0xf]
    %v932 = vld [vmem:[#allocation6 + $0x438] sm:$0xff]
    %v933 = vld [vmem:[#allocation6 + $0x440] sm:$0xff]
    %v934 = vld [vmem:[#allocation6 + $0x448] sm:$0xf]
    %v935 = vld [vmem:[#allocation6 + $0x44c] sm:$0xff]
    %v936 = vld [vmem:[#allocation6 + $0x454] sm:$0xff]
    %v937 = vld [vmem:[#allocation6 + $0x45c] sm:$0xf]
    %v938 = vld [vmem:[#allocation6 + $0x460] sm:$0xff]
    %v939 = vld [vmem:[#allocation6 + $0x468] sm:$0xff]
    %v940 = vld [vmem:[#allocation6 + $0x470] sm:$0xf]
    %v941 = vld [vmem:[#allocation6 + $0x474] sm:$0xff]
    %v942 = vld [vmem:[#allocation6 + $0x47c] sm:$0xff]
    %v943 = vld [vmem:[#allocation6 + $0x484] sm:$0xf]
    %v944 = vld [vmem:[#allocation6 + $0x488] sm:$0xff]
    %v945 = vld [vmem:[#allocation6 + $0x490] sm:$0xff]
    %v946 = vld [vmem:[#allocation6 + $0x498] sm:$0xf]
    %v947 = vld [vmem:[#allocation6 + $0x49c] sm:$0xff]
    %v948 = vld [vmem:[#allocation6 + $0x4a4] sm:$0xff]
    %v949 = vld [vmem:[#allocation6 + $0x4ac] sm:$0xf]
    %v950 = vld [vmem:[#allocation6 + $0x4b0] sm:$0xff]
    %v951 = vld [vmem:[#allocation6 + $0x4b8] sm:$0xff]
    %v952 = vld [vmem:[#allocation6 + $0x4c0] sm:$0xf]
    %v953 = vld [vmem:[#allocation6 + $0x4c4] sm:$0xff]
    %v954 = vld [vmem:[#allocation6 + $0x4cc] sm:$0xff]
    %v955 = vld [vmem:[#allocation6 + $0x4d4] sm:$0xf]
    %v956 = vld [vmem:[#allocation6 + $0x4d8] sm:$0xff]
    %v957 = vld [vmem:[#allocation6 + $0x4e0] sm:$0xff]
    %v958 = vld [vmem:[#allocation6 + $0x4e8] sm:$0xf]
    %v959 = vld [vmem:[#allocation6 + $0x4ec] sm:$0xff]
    %v960 = vld [vmem:[#allocation6 + $0x4f4] sm:$0xff]
    %v961 = vld [vmem:[#allocation6 + $0x4fc] sm:$0xf]
    %v962 = vld [vmem:[#allocation6 + $0x500] sm:$0x11]
    %v963 = vld [vmem:[#allocation6 + $0x508] sm:$0x11]
    %v964 = vld [vmem:[#allocation6 + $0x510] sm:$0x1]
    %v965 = vld [vmem:[#allocation8] sm:$0x1f]
    %v967 = vlaneseq
    %v968 = vshrl.u32 %v967, 7
    %v969 = vsub.s32 0, %v968
    %v970 = vrot.slane %v965, %v969
    %v971 = vlaneseq
    %v972 = vshrl.u32 %v971, 7
    %v973 = vsub.s32 1, %v972
    %v974 = vrot.slane %v965, %v973
    %v975 = vlaneseq
    %v976 = vshrl.u32 %v975, 7
    %v977 = vsub.s32 2, %v976
    %v978 = vrot.slane %v965, %v977
    %v979 = vlaneseq
    %v980 = vshrl.u32 %v979, 7
    %v981 = vsub.s32 3, %v980
    %v982 = vrot.slane %v965, %v981
    %v983 = vlaneseq
    %v984 = vshrl.u32 %v983, 7
    %v985 = vsub.s32 4, %v984
    %v986 = vrot.slane %v965, %v985
    %v1187 = vunpack.c.l.b16 %v770
    %v1188 = vunpack.c.h.b16 %v770
    %v1189 = vunpack.c.l.b16 %v771
    %v1190 = vunpack.c.h.b16 %v771
    %v1191 = vunpack.c.l.b16 %v772
    %v1192 = vunpack.c.l.b16 %v773
    %v1193 = vunpack.c.h.b16 %v773
    %v1194 = vunpack.c.l.b16 %v774
    %v1195 = vunpack.c.h.b16 %v774
    %v1196 = vunpack.c.l.b16 %v775
    %v1197 = vunpack.c.l.b16 %v776
    %v1198 = vunpack.c.h.b16 %v776
    %v1199 = vunpack.c.l.b16 %v777
    %v1200 = vunpack.c.h.b16 %v777
    %v1201 = vunpack.c.l.b16 %v778
    %v1202 = vunpack.c.l.b16 %v779
    %v1203 = vunpack.c.h.b16 %v779
    %v1204 = vunpack.c.l.b16 %v780
    %v1205 = vunpack.c.h.b16 %v780
    %v1206 = vunpack.c.l.b16 %v781
    %v1207 = vunpack.c.l.b16 %v782
    %v1208 = vunpack.c.h.b16 %v782
    %v1209 = vunpack.c.l.b16 %v783
    %v1210 = vunpack.c.h.b16 %v783
    %v1211 = vunpack.c.l.b16 %v784
    %v1212 = vunpack.c.l.b16 %v785
    %v1213 = vunpack.c.h.b16 %v785
    %v1214 = vunpack.c.l.b16 %v786
    %v1215 = vunpack.c.h.b16 %v786
    %v1216 = vunpack.c.l.b16 %v787
    %v1217 = vunpack.c.l.b16 %v788
    %v1218 = vunpack.c.h.b16 %v788
    %v1219 = vunpack.c.l.b16 %v789
    %v1220 = vunpack.c.h.b16 %v789
    %v1221 = vunpack.c.l.b16 %v790
    %v1222 = vunpack.c.l.b16 %v791
    %v1223 = vunpack.c.h.b16 %v791
    %v1224 = vunpack.c.l.b16 %v792
    %v1225 = vunpack.c.h.b16 %v792
    %v1226 = vunpack.c.l.b16 %v793
    %v1227 = vunpack.c.l.b16 %v794
    %v1228 = vunpack.c.h.b16 %v794
    %v1229 = vunpack.c.l.b16 %v795
    %v1230 = vunpack.c.h.b16 %v795
    %v1231 = vunpack.c.l.b16 %v796
    %v1232 = vunpack.c.l.b16 %v797
    %v1233 = vunpack.c.h.b16 %v797
    %v1234 = vunpack.c.l.b16 %v798
    %v1235 = vunpack.c.h.b16 %v798
    %v1236 = vunpack.c.l.b16 %v799
    %v1237 = vunpack.c.l.b16 %v800
    %v1238 = vunpack.c.h.b16 %v800
    %v1239 = vunpack.c.l.b16 %v801
    %v1240 = vunpack.c.h.b16 %v801
    %v1241 = vunpack.c.l.b16 %v802
    %v1242 = vunpack.c.l.b16 %v803
    %v1243 = vunpack.c.h.b16 %v803
    %v1244 = vunpack.c.l.b16 %v804
    %v1245 = vunpack.c.h.b16 %v804
    %v1246 = vunpack.c.l.b16 %v805
    %v1247 = vunpack.c.l.b16 %v806
    %v1248 = vunpack.c.h.b16 %v806
    %v1249 = vunpack.c.l.b16 %v807
    %v1250 = vunpack.c.h.b16 %v807
    %v1251 = vunpack.c.l.b16 %v808
    %v1252 = vunpack.c.l.b16 %v809
    %v1253 = vunpack.c.h.b16 %v809
    %v1254 = vunpack.c.l.b16 %v810
    %v1255 = vunpack.c.h.b16 %v810
    %v1256 = vunpack.c.l.b16 %v811
    %v1257 = vunpack.c.l.b16 %v812
    %v1258 = vunpack.c.h.b16 %v812
    %v1259 = vunpack.c.l.b16 %v813
    %v1260 = vunpack.c.h.b16 %v813
    %v1261 = vunpack.c.l.b16 %v814
    %v1262 = vunpack.c.l.b16 %v815
    %v1263 = vunpack.c.h.b16 %v815
    %v1264 = vunpack.c.l.b16 %v816
    %v1265 = vunpack.c.h.b16 %v816
    %v1266 = vunpack.c.l.b16 %v817
    %v1267 = vunpack.c.l.b16 %v818
    %v1268 = vunpack.c.h.b16 %v818
    %v1269 = vunpack.c.l.b16 %v819
    %v1270 = vunpack.c.h.b16 %v819
    %v1271 = vunpack.c.l.b16 %v820
    %v1272 = vunpack.c.l.b16 %v821
    %v1273 = vunpack.c.h.b16 %v821
    %v1274 = vunpack.c.l.b16 %v822
    %v1275 = vunpack.c.h.b16 %v822
    %v1276 = vunpack.c.l.b16 %v823
    %v1277 = vunpack.c.l.b16 %v824
    %v1278 = vunpack.c.h.b16 %v824
    %v1279 = vunpack.c.l.b16 %v825
    %v1280 = vunpack.c.h.b16 %v825
    %v1281 = vunpack.c.l.b16 %v826
    %v1282 = vunpack.c.l.b16 %v827
    %v1283 = vunpack.c.h.b16 %v827
    %v1284 = vunpack.c.l.b16 %v828
    %v1285 = vunpack.c.h.b16 %v828
    %v1286 = vunpack.c.l.b16 %v829
    %v1287 = vunpack.c.l.b16 %v830
    %v1288 = vunpack.c.h.b16 %v830
    %v1289 = vunpack.c.l.b16 %v831
    %v1290 = vunpack.c.h.b16 %v831
    %v1291 = vunpack.c.l.b16 %v832
    %v1292 = vunpack.c.l.b16 %v833
    %v1293 = vunpack.c.h.b16 %v833
    %v1294 = vunpack.c.l.b16 %v834
    %v1295 = vunpack.c.h.b16 %v834
    %v1296 = vunpack.c.l.b16 %v835
    %v1297 = vunpack.c.l.b16 %v836
    %v1298 = vunpack.c.h.b16 %v836
    %v1299 = vunpack.c.l.b16 %v837
    %v1300 = vunpack.c.h.b16 %v837
    %v1301 = vunpack.c.l.b16 %v838
    %v1302 = vunpack.c.l.b16 %v839
    %v1303 = vunpack.c.h.b16 %v839
    %v1304 = vunpack.c.l.b16 %v840
    %v1305 = vunpack.c.h.b16 %v840
    %v1306 = vunpack.c.l.b16 %v841
    %v1307 = vunpack.c.l.b16 %v842
    %v1308 = vunpack.c.h.b16 %v842
    %v1309 = vunpack.c.l.b16 %v843
    %v1310 = vunpack.c.h.b16 %v843
    %v1311 = vunpack.c.l.b16 %v844
    %v1312 = vunpack.c.l.b16 %v845
    %v1313 = vunpack.c.h.b16 %v845
    %v1314 = vunpack.c.l.b16 %v846
    %v1315 = vunpack.c.h.b16 %v846
    %v1316 = vunpack.c.l.b16 %v847
    %v1317 = vunpack.c.l.b16 %v848
    %v1318 = vunpack.c.h.b16 %v848
    %v1319 = vunpack.c.l.b16 %v849
    %v1320 = vunpack.c.h.b16 %v849
    %v1321 = vunpack.c.l.b16 %v850
    %v1322 = vunpack.c.l.b16 %v851
    %v1323 = vunpack.c.h.b16 %v851
    %v1324 = vunpack.c.l.b16 %v852
    %v1325 = vunpack.c.h.b16 %v852
    %v1326 = vunpack.c.l.b16 %v853
    %v1327 = vunpack.c.l.b16 %v854
    %v1328 = vunpack.c.h.b16 %v854
    %v1329 = vunpack.c.l.b16 %v855
    %v1330 = vunpack.c.h.b16 %v855
    %v1331 = vunpack.c.l.b16 %v856
    %v1332 = vunpack.c.l.b16 %v857
    %v1333 = vunpack.c.h.b16 %v857
    %v1334 = vunpack.c.l.b16 %v858
    %v1335 = vunpack.c.h.b16 %v858
    %v1336 = vunpack.c.l.b16 %v859
    %v1337 = vunpack.c.l.b16 %v860
    %v1338 = vunpack.c.h.b16 %v860
    %v1339 = vunpack.c.l.b16 %v861
    %v1340 = vunpack.c.h.b16 %v861
    %v1341 = vunpack.c.l.b16 %v862
    %v1342 = vunpack.c.l.b16 %v863
    %v1343 = vunpack.c.h.b16 %v863
    %v1344 = vunpack.c.l.b16 %v864
    %v1345 = vunpack.c.h.b16 %v864
    %v1346 = vunpack.c.l.b16 %v865
    %v1347 = vunpack.c.l.b16 %v866
    %v1348 = vunpack.c.h.b16 %v866
    %v1349 = vunpack.c.l.b16 %v867
    %v1350 = vunpack.c.h.b16 %v867
    %v1351 = vunpack.c.l.b16 %v868
    %v1352 = vunpack.c.l.b16 %v869
    %v1353 = vunpack.c.h.b16 %v869
    %v1354 = vunpack.c.l.b16 %v870
    %v1355 = vunpack.c.h.b16 %v870
    %v1356 = vunpack.c.l.b16 %v871
    %v1357 = vunpack.c.l.b16 %v872
    %v1358 = vunpack.c.h.b16 %v872
    %v1359 = vunpack.c.l.b16 %v873
    %v1360 = vunpack.c.h.b16 %v873
    %v1361 = vunpack.c.l.b16 %v874
    %v1362 = vunpack.c.l.b16 %v875
    %v1363 = vunpack.c.h.b16 %v875
    %v1364 = vunpack.c.l.b16 %v876
    %v1365 = vunpack.c.h.b16 %v876
    %v1366 = vunpack.c.l.b16 %v877
    %v1367 = vunpack.c.l.b16 %v878
    %v1368 = vunpack.c.h.b16 %v878
    %v1369 = vunpack.c.l.b16 %v879
    %v1370 = vunpack.c.h.b16 %v879
    %v1371 = vunpack.c.l.b16 %v880
    %v1372 = vunpack.c.l.b16 %v881
    %v1373 = vunpack.c.h.b16 %v881
    %v1374 = vunpack.c.l.b16 %v882
    %v1375 = vunpack.c.h.b16 %v882
    %v1376 = vunpack.c.l.b16 %v883
    %v1377 = vunpack.c.l.b16 %v884
    %v1378 = vunpack.c.h.b16 %v884
    %v1379 = vunpack.c.l.b16 %v885
    %v1380 = vunpack.c.h.b16 %v885
    %v1381 = vunpack.c.l.b16 %v886
    %v1382 = vunpack.c.l.b16 %v887
    %v1383 = vunpack.c.h.b16 %v887
    %v1384 = vunpack.c.l.b16 %v888
    %v1385 = vunpack.c.h.b16 %v888
    %v1386 = vunpack.c.l.b16 %v889
    %v1387 = vunpack.c.l.b16 %v890
    %v1388 = vunpack.c.h.b16 %v890
    %v1389 = vunpack.c.l.b16 %v891
    %v1390 = vunpack.c.h.b16 %v891
    %v1391 = vunpack.c.l.b16 %v892
    %v1392 = vunpack.c.l.b16 %v893
    %v1393 = vunpack.c.h.b16 %v893
    %v1394 = vunpack.c.l.b16 %v894
    %v1395 = vunpack.c.h.b16 %v894
    %v1396 = vunpack.c.l.b16 %v895
    %v1397 = vunpack.c.l.b16 %v896
    %v1398 = vunpack.c.h.b16 %v896
    %v1399 = vunpack.c.l.b16 %v897
    %v1400 = vunpack.c.h.b16 %v897
    %v1401 = vunpack.c.l.b16 %v898
    %v1402 = vunpack.c.l.b16 %v899
    %v1403 = vunpack.c.h.b16 %v899
    %v1404 = vunpack.c.l.b16 %v900
    %v1405 = vunpack.c.h.b16 %v900
    %v1406 = vunpack.c.l.b16 %v901
    %v1407 = vunpack.c.l.b16 %v902
    %v1408 = vunpack.c.h.b16 %v902
    %v1409 = vunpack.c.l.b16 %v903
    %v1410 = vunpack.c.h.b16 %v903
    %v1411 = vunpack.c.l.b16 %v904
    %v1412 = vunpack.c.l.b16 %v905
    %v1413 = vunpack.c.h.b16 %v905
    %v1414 = vunpack.c.l.b16 %v906
    %v1415 = vunpack.c.h.b16 %v906
    %v1416 = vunpack.c.l.b16 %v907
    %v1417 = vunpack.c.l.b16 %v908
    %v1418 = vunpack.c.h.b16 %v908
    %v1419 = vunpack.c.l.b16 %v909
    %v1420 = vunpack.c.h.b16 %v909
    %v1421 = vunpack.c.l.b16 %v910
    %v1422 = vunpack.c.l.b16 %v911
    %v1423 = vunpack.c.h.b16 %v911
    %v1424 = vunpack.c.l.b16 %v912
    %v1425 = vunpack.c.h.b16 %v912
    %v1426 = vunpack.c.l.b16 %v913
    %v1427 = vunpack.c.l.b16 %v914
    %v1428 = vunpack.c.h.b16 %v914
    %v1429 = vunpack.c.l.b16 %v915
    %v1430 = vunpack.c.h.b16 %v915
    %v1431 = vunpack.c.l.b16 %v916
    %v1432 = vunpack.c.l.b16 %v917
    %v1433 = vunpack.c.h.b16 %v917
    %v1434 = vunpack.c.l.b16 %v918
    %v1435 = vunpack.c.h.b16 %v918
    %v1436 = vunpack.c.l.b16 %v919
    %v1437 = vunpack.c.l.b16 %v920
    %v1438 = vunpack.c.h.b16 %v920
    %v1439 = vunpack.c.l.b16 %v921
    %v1440 = vunpack.c.h.b16 %v921
    %v1441 = vunpack.c.l.b16 %v922
    %v1442 = vunpack.c.l.b16 %v923
    %v1443 = vunpack.c.h.b16 %v923
    %v1444 = vunpack.c.l.b16 %v924
    %v1445 = vunpack.c.h.b16 %v924
    %v1446 = vunpack.c.l.b16 %v925
    %v1447 = vunpack.c.l.b16 %v926
    %v1448 = vunpack.c.h.b16 %v926
    %v1449 = vunpack.c.l.b16 %v927
    %v1450 = vunpack.c.h.b16 %v927
    %v1451 = vunpack.c.l.b16 %v928
    %v1452 = vunpack.c.l.b16 %v929
    %v1453 = vunpack.c.h.b16 %v929
    %v1454 = vunpack.c.l.b16 %v930
    %v1455 = vunpack.c.h.b16 %v930
    %v1456 = vunpack.c.l.b16 %v931
    %v1457 = vunpack.c.l.b16 %v932
    %v1458 = vunpack.c.h.b16 %v932
    %v1459 = vunpack.c.l.b16 %v933
    %v1460 = vunpack.c.h.b16 %v933
    %v1461 = vunpack.c.l.b16 %v934
    %v1462 = vunpack.c.l.b16 %v935
    %v1463 = vunpack.c.h.b16 %v935
    %v1464 = vunpack.c.l.b16 %v936
    %v1465 = vunpack.c.h.b16 %v936
    %v1466 = vunpack.c.l.b16 %v937
    %v1467 = vunpack.c.l.b16 %v938
    %v1468 = vunpack.c.h.b16 %v938
    %v1469 = vunpack.c.l.b16 %v939
    %v1470 = vunpack.c.h.b16 %v939
    %v1471 = vunpack.c.l.b16 %v940
    %v1472 = vunpack.c.l.b16 %v941
    %v1473 = vunpack.c.h.b16 %v941
    %v1474 = vunpack.c.l.b16 %v942
    %v1475 = vunpack.c.h.b16 %v942
    %v1476 = vunpack.c.l.b16 %v943
    %v1477 = vunpack.c.l.b16 %v944
    %v1478 = vunpack.c.h.b16 %v944
    %v1479 = vunpack.c.l.b16 %v945
    %v1480 = vunpack.c.h.b16 %v945
    %v1481 = vunpack.c.l.b16 %v946
    %v1482 = vunpack.c.l.b16 %v947
    %v1483 = vunpack.c.h.b16 %v947
    %v1484 = vunpack.c.l.b16 %v948
    %v1485 = vunpack.c.h.b16 %v948
    %v1486 = vunpack.c.l.b16 %v949
    %v1487 = vunpack.c.l.b16 %v950
    %v1488 = vunpack.c.h.b16 %v950
    %v1489 = vunpack.c.l.b16 %v951
    %v1490 = vunpack.c.h.b16 %v951
    %v1491 = vunpack.c.l.b16 %v952
    %v1492 = vunpack.c.l.b16 %v953
    %v1493 = vunpack.c.h.b16 %v953
    %v1494 = vunpack.c.l.b16 %v954
    %v1495 = vunpack.c.h.b16 %v954
    %v1496 = vunpack.c.l.b16 %v955
    %v1497 = vunpack.c.l.b16 %v956
    %v1498 = vunpack.c.h.b16 %v956
    %v1499 = vunpack.c.l.b16 %v957
    %v1500 = vunpack.c.h.b16 %v957
    %v1501 = vunpack.c.l.b16 %v958
    %v1502 = vunpack.c.l.b16 %v959
    %v1503 = vunpack.c.h.b16 %v959
    %v1504 = vunpack.c.l.b16 %v960
    %v1505 = vunpack.c.h.b16 %v960
    %v1506 = vunpack.c.l.b16 %v961
    %v1507 = vunpack.c.l.b16 %v962
    %v1508 = vunpack.c.h.b16 %v962
    %v1509 = vunpack.c.l.b16 %v963
    %v1510 = vunpack.c.h.b16 %v963
    %v1511 = vunpack.c.l.b16 %v964
    %v1512 = vpack.c.b16 %v1192, %v1187
    %v1513 = vpack.c.b16 %v1193, %v1188
    %v1514 = vpack.c.b16 %v1194, %v1189
    %v1515 = vpack.c.b16 %v1195, %v1190
    %v1516 = vpack.c.b16 %v1196, %v1191
    %v1517 = vpack.c.b16 %v1202, %v1197
    %v1518 = vpack.c.b16 %v1203, %v1198
    %v1519 = vpack.c.b16 %v1204, %v1199
    %v1520 = vpack.c.b16 %v1205, %v1200
    %v1521 = vpack.c.b16 %v1206, %v1201
    %v1522 = vpack.c.b16 %v1212, %v1207
    %v1523 = vpack.c.b16 %v1213, %v1208
    %v1524 = vpack.c.b16 %v1214, %v1209
    %v1525 = vpack.c.b16 %v1215, %v1210
    %v1526 = vpack.c.b16 %v1216, %v1211
    %v1527 = vpack.c.b16 %v1222, %v1217
    %v1528 = vpack.c.b16 %v1223, %v1218
    %v1529 = vpack.c.b16 %v1224, %v1219
    %v1530 = vpack.c.b16 %v1225, %v1220
    %v1531 = vpack.c.b16 %v1226, %v1221
    %v1532 = vpack.c.b16 %v1232, %v1227
    %v1533 = vpack.c.b16 %v1233, %v1228
    %v1534 = vpack.c.b16 %v1234, %v1229
    %v1535 = vpack.c.b16 %v1235, %v1230
    %v1536 = vpack.c.b16 %v1236, %v1231
    %v1537 = vpack.c.b16 %v1242, %v1237
    %v1538 = vpack.c.b16 %v1243, %v1238
    %v1539 = vpack.c.b16 %v1244, %v1239
    %v1540 = vpack.c.b16 %v1245, %v1240
    %v1541 = vpack.c.b16 %v1246, %v1241
    %v1542 = vpack.c.b16 %v1252, %v1247
    %v1543 = vpack.c.b16 %v1253, %v1248
    %v1544 = vpack.c.b16 %v1254, %v1249
    %v1545 = vpack.c.b16 %v1255, %v1250
    %v1546 = vpack.c.b16 %v1256, %v1251
    %v1547 = vpack.c.b16 %v1262, %v1257
    %v1548 = vpack.c.b16 %v1263, %v1258
    %v1549 = vpack.c.b16 %v1264, %v1259
    %v1550 = vpack.c.b16 %v1265, %v1260
    %v1551 = vpack.c.b16 %v1266, %v1261
    %v1552 = vpack.c.b16 %v1272, %v1267
    %v1553 = vpack.c.b16 %v1273, %v1268
    %v1554 = vpack.c.b16 %v1274, %v1269
    %v1555 = vpack.c.b16 %v1275, %v1270
    %v1556 = vpack.c.b16 %v1276, %v1271
    %v1557 = vpack.c.b16 %v1282, %v1277
    %v1558 = vpack.c.b16 %v1283, %v1278
    %v1559 = vpack.c.b16 %v1284, %v1279
    %v1560 = vpack.c.b16 %v1285, %v1280
    %v1561 = vpack.c.b16 %v1286, %v1281
    %v1562 = vpack.c.b16 %v1292, %v1287
    %v1563 = vpack.c.b16 %v1293, %v1288
    %v1564 = vpack.c.b16 %v1294, %v1289
    %v1565 = vpack.c.b16 %v1295, %v1290
    %v1566 = vpack.c.b16 %v1296, %v1291
    %v1567 = vpack.c.b16 %v1302, %v1297
    %v1568 = vpack.c.b16 %v1303, %v1298
    %v1569 = vpack.c.b16 %v1304, %v1299
    %v1570 = vpack.c.b16 %v1305, %v1300
    %v1571 = vpack.c.b16 %v1306, %v1301
    %v1572 = vpack.c.b16 %v1312, %v1307
    %v1573 = vpack.c.b16 %v1313, %v1308
    %v1574 = vpack.c.b16 %v1314, %v1309
    %v1575 = vpack.c.b16 %v1315, %v1310
    %v1576 = vpack.c.b16 %v1316, %v1311
    %v1577 = vpack.c.b16 %v1322, %v1317
    %v1578 = vpack.c.b16 %v1323, %v1318
    %v1579 = vpack.c.b16 %v1324, %v1319
    %v1580 = vpack.c.b16 %v1325, %v1320
    %v1581 = vpack.c.b16 %v1326, %v1321
    %v1582 = vpack.c.b16 %v1332, %v1327
    %v1583 = vpack.c.b16 %v1333, %v1328
    %v1584 = vpack.c.b16 %v1334, %v1329
    %v1585 = vpack.c.b16 %v1335, %v1330
    %v1586 = vpack.c.b16 %v1336, %v1331
    %v1587 = vpack.c.b16 %v1342, %v1337
    %v1588 = vpack.c.b16 %v1343, %v1338
    %v1589 = vpack.c.b16 %v1344, %v1339
    %v1590 = vpack.c.b16 %v1345, %v1340
    %v1591 = vpack.c.b16 %v1346, %v1341
    %v1592 = vpack.c.b16 %v1352, %v1347
    %v1593 = vpack.c.b16 %v1353, %v1348
    %v1594 = vpack.c.b16 %v1354, %v1349
    %v1595 = vpack.c.b16 %v1355, %v1350
    %v1596 = vpack.c.b16 %v1356, %v1351
    %v1597 = vpack.c.b16 %v1362, %v1357
    %v1598 = vpack.c.b16 %v1363, %v1358
    %v1599 = vpack.c.b16 %v1364, %v1359
    %v1600 = vpack.c.b16 %v1365, %v1360
    %v1601 = vpack.c.b16 %v1366, %v1361
    %v1602 = vpack.c.b16 %v1372, %v1367
    %v1603 = vpack.c.b16 %v1373, %v1368
    %v1604 = vpack.c.b16 %v1374, %v1369
    %v1605 = vpack.c.b16 %v1375, %v1370
    %v1606 = vpack.c.b16 %v1376, %v1371
    %v1607 = vpack.c.b16 %v1382, %v1377
    %v1608 = vpack.c.b16 %v1383, %v1378
    %v1609 = vpack.c.b16 %v1384, %v1379
    %v1610 = vpack.c.b16 %v1385, %v1380
    %v1611 = vpack.c.b16 %v1386, %v1381
    %v1612 = vpack.c.b16 %v1392, %v1387
    %v1613 = vpack.c.b16 %v1393, %v1388
    %v1614 = vpack.c.b16 %v1394, %v1389
    %v1615 = vpack.c.b16 %v1395, %v1390
    %v1616 = vpack.c.b16 %v1396, %v1391
    %v1617 = vpack.c.b16 %v1402, %v1397
    %v1618 = vpack.c.b16 %v1403, %v1398
    %v1619 = vpack.c.b16 %v1404, %v1399
    %v1620 = vpack.c.b16 %v1405, %v1400
    %v1621 = vpack.c.b16 %v1406, %v1401
    %v1622 = vpack.c.b16 %v1412, %v1407
    %v1623 = vpack.c.b16 %v1413, %v1408
    %v1624 = vpack.c.b16 %v1414, %v1409
    %v1625 = vpack.c.b16 %v1415, %v1410
    %v1626 = vpack.c.b16 %v1416, %v1411
    %v1627 = vpack.c.b16 %v1422, %v1417
    %v1628 = vpack.c.b16 %v1423, %v1418
    %v1629 = vpack.c.b16 %v1424, %v1419
    %v1630 = vpack.c.b16 %v1425, %v1420
    %v1631 = vpack.c.b16 %v1426, %v1421
    %v1632 = vpack.c.b16 %v1432, %v1427
    %v1633 = vpack.c.b16 %v1433, %v1428
    %v1634 = vpack.c.b16 %v1434, %v1429
    %v1635 = vpack.c.b16 %v1435, %v1430
    %v1636 = vpack.c.b16 %v1436, %v1431
    %v1637 = vpack.c.b16 %v1442, %v1437
    %v1638 = vpack.c.b16 %v1443, %v1438
    %v1639 = vpack.c.b16 %v1444, %v1439
    %v1640 = vpack.c.b16 %v1445, %v1440
    %v1641 = vpack.c.b16 %v1446, %v1441
    %v1642 = vpack.c.b16 %v1452, %v1447
    %v1643 = vpack.c.b16 %v1453, %v1448
    %v1644 = vpack.c.b16 %v1454, %v1449
    %v1645 = vpack.c.b16 %v1455, %v1450
    %v1646 = vpack.c.b16 %v1456, %v1451
    %v1647 = vpack.c.b16 %v1462, %v1457
    %v1648 = vpack.c.b16 %v1463, %v1458
    %v1649 = vpack.c.b16 %v1464, %v1459
    %v1650 = vpack.c.b16 %v1465, %v1460
    %v1651 = vpack.c.b16 %v1466, %v1461
    %v1652 = vpack.c.b16 %v1472, %v1467
    %v1653 = vpack.c.b16 %v1473, %v1468
    %v1654 = vpack.c.b16 %v1474, %v1469
    %v1655 = vpack.c.b16 %v1475, %v1470
    %v1656 = vpack.c.b16 %v1476, %v1471
    %v1657 = vpack.c.b16 %v1482, %v1477
    %v1658 = vpack.c.b16 %v1483, %v1478
    %v1659 = vpack.c.b16 %v1484, %v1479
    %v1660 = vpack.c.b16 %v1485, %v1480
    %v1661 = vpack.c.b16 %v1486, %v1481
    %v1662 = vpack.c.b16 %v1492, %v1487
    %v1663 = vpack.c.b16 %v1493, %v1488
    %v1664 = vpack.c.b16 %v1494, %v1489
    %v1665 = vpack.c.b16 %v1495, %v1490
    %v1666 = vpack.c.b16 %v1496, %v1491
    %v1667 = vpack.c.b16 %v1502, %v1497
    %v1668 = vpack.c.b16 %v1503, %v1498
    %v1669 = vpack.c.b16 %v1504, %v1499
    %v1670 = vpack.c.b16 %v1505, %v1500
    %v1671 = vpack.c.b16 %v1506, %v1501
    %v1672 = vpack.c.b16 %v1507, %v1507
    %v1673 = vpack.c.b16 %v1508, %v1508
    %v1674 = vpack.c.b16 %v1509, %v1509
    %v1675 = vpack.c.b16 %v1510, %v1510
    %v1676 = vpack.c.b16 %v1511, %v1511
    %v1838 = vsel %vm149, %v769, 0
    %vm1840 = vcmask 1040384
    %v1842 = vsel %vm1840, %v1672, 0
    %v1845 = vsel %vm1840, %v1673, 0
    %v1848 = vsel %vm1840, %v1674, 0
    %v1851 = vsel %vm1840, %v1675, 0
    %v1854 = vsel %vm1840, %v1676, 0
    %1856 = vmatprep.subr.bf16.mxu0 %v1513
    %1857 = vmatpush1.bf16.msra.mxu0 %v1512
    %1858 = vmatprep.subr.bf16.mxu0 %v1518
    %1859 = vmatpush1.bf16.msra.mxu0 %v1517
    %1860 = vmatprep.subr.bf16.mxu0 %v1523
    %1861 = vmatpush1.bf16.msra.mxu0 %v1522
    %1862 = vmatprep.subr.bf16.mxu0 %v1528
    %1863 = vmatpush1.bf16.msra.mxu0 %v1527
    %1864 = vmatprep.subr.bf16.mxu0 %v1533
    %1865 = vmatpush1.bf16.msra.mxu0 %v1532
    %1866 = vmatprep.subr.bf16.mxu0 %v1538
    %1867 = vmatpush1.bf16.msra.mxu0 %v1537
    %1868 = vmatprep.subr.bf16.mxu0 %v1543
    %1869 = vmatpush1.bf16.msra.mxu0 %v1542
    %1870 = vmatprep.subr.bf16.mxu0 %v1548
    %1871 = vmatpush1.bf16.msra.mxu0 %v1547
    %1872 = vmatprep.subr.bf16.mxu0 %v1553
    %1873 = vmatpush1.bf16.msra.mxu0 %v1552
    %1874 = vmatprep.subr.bf16.mxu0 %v1558
    %1875 = vmatpush1.bf16.msra.mxu0 %v1557
    %1876 = vmatprep.subr.bf16.mxu0 %v1563
    %1877 = vmatpush1.bf16.msra.mxu0 %v1562
    %1878 = vmatprep.subr.bf16.mxu0 %v1568
    %1879 = vmatpush1.bf16.msra.mxu0 %v1567
    %1880 = vmatprep.subr.bf16.mxu0 %v1573
    %1881 = vmatpush1.bf16.msra.mxu0 %v1572
    %1882 = vmatprep.subr.bf16.mxu0 %v1578
    %1883 = vmatpush1.bf16.msra.mxu0 %v1577
    %1884 = vmatprep.subr.bf16.mxu0 %v1583
    %1885 = vmatpush1.bf16.msra.mxu0 %v1582
    %1886 = vmatprep.subr.bf16.mxu0 %v1588
    %1887 = vmatpush1.bf16.msra.mxu0 %v1587
    %1888 = vmatprep.mubr.bf16.mxu0 %v766
    %1889 = vmatmul.mubr.bf16.gmra.mrb[0].mxu0 %v765
    %v1890 = vpop.f32.mrb[0].mxu0
    %v1891 = vadd.f32 %v970, %v1890
    %v1892 = vpop.f32.mrb[0].mxu0
    %v1893 = vadd.f32 %v974, %v1892
    %v1894 = vpop.f32.mrb[0].mxu0
    %v1895 = vadd.f32 %v970, %v1894
    %v1896 = vpop.f32.mrb[0].mxu0
    %v1897 = vadd.f32 %v974, %v1896
    %1898 = vdwg.mxu0
    %1899 = vmatprep.subr.bf16.mxu0 %v1593
    %1900 = vmatpush1.bf16.msra.mxu0 %v1592
    %1901 = vmatprep.subr.bf16.mxu0 %v1598
    %1902 = vmatpush1.bf16.msra.mxu0 %v1597
    %1903 = vmatprep.subr.bf16.mxu0 %v1603
    %1904 = vmatpush1.bf16.msra.mxu0 %v1602
    %1905 = vmatprep.subr.bf16.mxu0 %v1608
    %1906 = vmatpush1.bf16.msra.mxu0 %v1607
    %1907 = vmatprep.subr.bf16.mxu0 %v1613
    %1908 = vmatpush1.bf16.msra.mxu0 %v1612
    %1909 = vmatprep.subr.bf16.mxu0 %v1618
    %1910 = vmatpush1.bf16.msra.mxu0 %v1617
    %1911 = vmatprep.subr.bf16.mxu0 %v1623
    %1912 = vmatpush1.bf16.msra.mxu0 %v1622
    %1913 = vmatprep.subr.bf16.mxu0 %v1628
    %1914 = vmatpush1.bf16.msra.mxu0 %v1627
    %1915 = vmatprep.subr.bf16.mxu0 %v1633
    %1916 = vmatpush1.bf16.msra.mxu0 %v1632
    %1917 = vmatprep.subr.bf16.mxu0 %v1638
    %1918 = vmatpush1.bf16.msra.mxu0 %v1637
    %1919 = vmatprep.subr.bf16.mxu0 %v1643
    %1920 = vmatpush1.bf16.msra.mxu0 %v1642
    %1921 = vmatprep.subr.bf16.mxu0 %v1648
    %1922 = vmatpush1.bf16.msra.mxu0 %v1647
    %1923 = vmatprep.subr.bf16.mxu0 %v1653
    %1924 = vmatpush1.bf16.msra.mxu0 %v1652
    %1925 = vmatprep.subr.bf16.mxu0 %v1658
    %1926 = vmatpush1.bf16.msra.mxu0 %v1657
    %1927 = vmatprep.subr.bf16.mxu0 %v1663
    %1928 = vmatpush1.bf16.msra.mxu0 %v1662
    %1929 = vmatprep.subr.bf16.mxu0 %v1668
    %1930 = vmatpush1.bf16.msra.mxu0 %v1667
    %1931 = vmatprep.mubr.bf16.mxu0 %v768
    %1932 = vmatmul.mubr.bf16.gmra.mrb[0].mxu0 %v767
    %v1933 = vpop.f32.mrb[0].mxu0
    %v1934 = vadd.f32 %v1891, %v1933
    %v1935 = vpop.f32.mrb[0].mxu0
    %v1936 = vadd.f32 %v1893, %v1935
    %v1937 = vpop.f32.mrb[0].mxu0
    %v1938 = vadd.f32 %v1895, %v1937
    %v1939 = vpop.f32.mrb[0].mxu0
    %v1940 = vadd.f32 %v1897, %v1939
    %1941 = vdwg.mxu0
    %1942 = vmatprep.subr.bf16.mxu0 %v1845
    %1943 = vmatpush1.bf16.msra.mxu0 %v1842
    %1944 = vmatprep.subr.bf16.mxu0 0
    %1945 = vmatpush1.bf16.msra.mxu0 0
    %1946 = vmatprep.subr.bf16.mxu0 0
    %1947 = vmatpush1.bf16.msra.mxu0 0
    %1948 = vmatprep.subr.bf16.mxu0 0
    %1949 = vmatpush1.bf16.msra.mxu0 0
    %1950 = vmatprep.subr.bf16.mxu0 0
    %1951 = vmatpush1.bf16.msra.mxu0 0
    %1952 = vmatprep.subr.bf16.mxu0 0
    %1953 = vmatpush1.bf16.msra.mxu0 0
    %1954 = vmatprep.subr.bf16.mxu0 0
    %1955 = vmatpush1.bf16.msra.mxu0 0
    %1956 = vmatprep.subr.bf16.mxu0 0
    %1957 = vmatpush1.bf16.msra.mxu0 0
    %1958 = vmatprep.subr.bf16.mxu0 0
    %1959 = vmatpush1.bf16.msra.mxu0 0
    %1960 = vmatprep.subr.bf16.mxu0 0
    %1961 = vmatpush1.bf16.msra.mxu0 0
    %1962 = vmatprep.subr.bf16.mxu0 0
    %1963 = vmatpush1.bf16.msra.mxu0 0
    %1964 = vmatprep.subr.bf16.mxu0 0
    %1965 = vmatpush1.bf16.msra.mxu0 0
    %1966 = vmatprep.subr.bf16.mxu0 0
    %1967 = vmatpush1.bf16.msra.mxu0 0
    %1968 = vmatprep.subr.bf16.mxu0 0
    %1969 = vmatpush1.bf16.msra.mxu0 0
    %1970 = vmatprep.subr.bf16.mxu0 0
    %1971 = vmatpush1.bf16.msra.mxu0 0
    %1972 = vmatprep.subr.bf16.mxu0 0
    %1973 = vmatpush1.bf16.msra.mxu0 0
    %1974 = vmatprep.mubr.bf16.mxu0 0
    %1975 = vmatmul.mubr.bf16.gmra.mrb[0].mxu0 %v1838
    %v1976 = vpop.f32.mrb[0].mxu0
    %v1977 = vadd.f32 %v1934, %v1976
    %v1978 = vpop.f32.mrb[0].mxu0
    %v1979 = vadd.f32 %v1936, %v1978
    %v1980 = vpop.f32.mrb[0].mxu0
    %v1981 = vadd.f32 %v1938, %v1980
    %v1982 = vpop.f32.mrb[0].mxu0
    %v1983 = vadd.f32 %v1940, %v1982
    %1984 = vdwg.mxu0
    %1985 = vmatprep.subr.bf16.mxu0 %v1515
    %1986 = vmatpush1.bf16.msra.mxu0 %v1514
    %1987 = vmatprep.subr.bf16.mxu0 %v1520
    %1988 = vmatpush1.bf16.msra.mxu0 %v1519
    %1989 = vmatprep.subr.bf16.mxu0 %v1525
    %1990 = vmatpush1.bf16.msra.mxu0 %v1524
    %1991 = vmatprep.subr.bf16.mxu0 %v1530
    %1992 = vmatpush1.bf16.msra.mxu0 %v1529
    %1993 = vmatprep.subr.bf16.mxu0 %v1535
    %1994 = vmatpush1.bf16.msra.mxu0 %v1534
    %1995 = vmatprep.subr.bf16.mxu0 %v1540
    %1996 = vmatpush1.bf16.msra.mxu0 %v1539
    %1997 = vmatprep.subr.bf16.mxu0 %v1545
    %1998 = vmatpush1.bf16.msra.mxu0 %v1544
    %1999 = vmatprep.subr.bf16.mxu0 %v1550
    %2000 = vmatpush1.bf16.msra.mxu0 %v1549
    %2001 = vmatprep.subr.bf16.mxu0 %v1555
    %2002 = vmatpush1.bf16.msra.mxu0 %v1554
    %2003 = vmatprep.subr.bf16.mxu0 %v1560
    %2004 = vmatpush1.bf16.msra.mxu0 %v1559
    %2005 = vmatprep.subr.bf16.mxu0 %v1565
    %2006 = vmatpush1.bf16.msra.mxu0 %v1564
    %2007 = vmatprep.subr.bf16.mxu0 %v1570
    %2008 = vmatpush1.bf16.msra.mxu0 %v1569
    %2009 = vmatprep.subr.bf16.mxu0 %v1575
    %2010 = vmatpush1.bf16.msra.mxu0 %v1574
    %2011 = vmatprep.subr.bf16.mxu0 %v1580
    %2012 = vmatpush1.bf16.msra.mxu0 %v1579
    %2013 = vmatprep.subr.bf16.mxu0 %v1585
    %2014 = vmatpush1.bf16.msra.mxu0 %v1584
    %2015 = vmatprep.subr.bf16.mxu0 %v1590
    %2016 = vmatpush1.bf16.msra.mxu0 %v1589
    %2017 = vmatprep.mubr.bf16.mxu0 %v766
    %2018 = vmatmul.mubr.bf16.gmra.mrb[0].mxu0 %v765
    %v2019 = vpop.f32.mrb[0].mxu0
    %v2020 = vadd.f32 %v978, %v2019
    %v2021 = vpop.f32.mrb[0].mxu0
    %v2022 = vadd.f32 %v982, %v2021
    %v2023 = vpop.f32.mrb[0].mxu0
    %v2024 = vadd.f32 %v978, %v2023
    %v2025 = vpop.f32.mrb[0].mxu0
    %v2026 = vadd.f32 %v982, %v2025
    %2027 = vdwg.mxu0
    %2028 = vmatprep.subr.bf16.mxu0 %v1595
    %2029 = vmatpush1.bf16.msra.mxu0 %v1594
    %2030 = vmatprep.subr.bf16.mxu0 %v1600
    %2031 = vmatpush1.bf16.msra.mxu0 %v1599
    %2032 = vmatprep.subr.bf16.mxu0 %v1605
    %2033 = vmatpush1.bf16.msra.mxu0 %v1604
    %2034 = vmatprep.subr.bf16.mxu0 %v1610
    %2035 = vmatpush1.bf16.msra.mxu0 %v1609
    %2036 = vmatprep.subr.bf16.mxu0 %v1615
    %2037 = vmatpush1.bf16.msra.mxu0 %v1614
    %2038 = vmatprep.subr.bf16.mxu0 %v1620
    %2039 = vmatpush1.bf16.msra.mxu0 %v1619
    %2040 = vmatprep.subr.bf16.mxu0 %v1625
    %2041 = vmatpush1.bf16.msra.mxu0 %v1624
    %2042 = vmatprep.subr.bf16.mxu0 %v1630
    %2043 = vmatpush1.bf16.msra.mxu0 %v1629
    %2044 = vmatprep.subr.bf16.mxu0 %v1635
    %2045 = vmatpush1.bf16.msra.mxu0 %v1634
    %2046 = vmatprep.subr.bf16.mxu0 %v1640
    %2047 = vmatpush1.bf16.msra.mxu0 %v1639
    %2048 = vmatprep.subr.bf16.mxu0 %v1645
    %2049 = vmatpush1.bf16.msra.mxu0 %v1644
    %2050 = vmatprep.subr.bf16.mxu0 %v1650
    %2051 = vmatpush1.bf16.msra.mxu0 %v1649
    %2052 = vmatprep.subr.bf16.mxu0 %v1655
    %2053 = vmatpush1.bf16.msra.mxu0 %v1654
    %2054 = vmatprep.subr.bf16.mxu0 %v1660
    %2055 = vmatpush1.bf16.msra.mxu0 %v1659
    %2056 = vmatprep.subr.bf16.mxu0 %v1665
    %2057 = vmatpush1.bf16.msra.mxu0 %v1664
    %2058 = vmatprep.subr.bf16.mxu0 %v1670
    %2059 = vmatpush1.bf16.msra.mxu0 %v1669
    %2060 = vmatprep.mubr.bf16.mxu0 %v768
    %2061 = vmatmul.mubr.bf16.gmra.mrb[0].mxu0 %v767
    %v2062 = vpop.f32.mrb[0].mxu0
    %v2063 = vadd.f32 %v2020, %v2062
    %v2064 = vpop.f32.mrb[0].mxu0
    %v2065 = vadd.f32 %v2022, %v2064
    %v2066 = vpop.f32.mrb[0].mxu0
    %v2067 = vadd.f32 %v2024, %v2066
    %v2068 = vpop.f32.mrb[0].mxu0
    %v2069 = vadd.f32 %v2026, %v2068
    %2070 = vdwg.mxu0
    %2071 = vmatprep.subr.bf16.mxu0 %v1851
    %2072 = vmatpush1.bf16.msra.mxu0 %v1848
    %2073 = vmatprep.subr.bf16.mxu0 0
    %2074 = vmatpush1.bf16.msra.mxu0 0
    %2075 = vmatprep.subr.bf16.mxu0 0
    %2076 = vmatpush1.bf16.msra.mxu0 0
    %2077 = vmatprep.subr.bf16.mxu0 0
    %2078 = vmatpush1.bf16.msra.mxu0 0
    %2079 = vmatprep.subr.bf16.mxu0 0
    %2080 = vmatpush1.bf16.msra.mxu0 0
    %2081 = vmatprep.subr.bf16.mxu0 0
    %2082 = vmatpush1.bf16.msra.mxu0 0
    %2083 = vmatprep.subr.bf16.mxu0 0
    %2084 = vmatpush1.bf16.msra.mxu0 0
    %2085 = vmatprep.subr.bf16.mxu0 0
    %2086 = vmatpush1.bf16.msra.mxu0 0
    %2087 = vmatprep.subr.bf16.mxu0 0
    %2088 = vmatpush1.bf16.msra.mxu0 0
    %2089 = vmatprep.subr.bf16.mxu0 0
    %2090 = vmatpush1.bf16.msra.mxu0 0
    %2091 = vmatprep.subr.bf16.mxu0 0
    %2092 = vmatpush1.bf16.msra.mxu0 0
    %2093 = vmatprep.subr.bf16.mxu0 0
    %2094 = vmatpush1.bf16.msra.mxu0 0
    %2095 = vmatprep.subr.bf16.mxu0 0
    %2096 = vmatpush1.bf16.msra.mxu0 0
    %2097 = vmatprep.subr.bf16.mxu0 0
    %2098 = vmatpush1.bf16.msra.mxu0 0
    %2099 = vmatprep.subr.bf16.mxu0 0
    %2100 = vmatpush1.bf16.msra.mxu0 0
    %2101 = vmatprep.subr.bf16.mxu0 0
    %2102 = vmatpush1.bf16.msra.mxu0 0
    %2103 = vmatprep.mubr.bf16.mxu0 0
    %2104 = vmatmul.mubr.bf16.gmra.mrb[0].mxu0 %v1838
    %v2105 = vpop.f32.mrb[0].mxu0
    %v2106 = vadd.f32 %v2063, %v2105
    %v2107 = vpop.f32.mrb[0].mxu0
    %v2108 = vadd.f32 %v2065, %v2107
    %v2109 = vpop.f32.mrb[0].mxu0
    %v2110 = vadd.f32 %v2067, %v2109
    %v2111 = vpop.f32.mrb[0].mxu0
    %v2112 = vadd.f32 %v2069, %v2111
    %2113 = vdwg.mxu0
    %2114 = vmatprep.subr.bf16.mxu0 0
    %2115 = vmatpush1.bf16.msra.mxu0 %v1516
    %2116 = vmatprep.subr.bf16.mxu0 0
    %2117 = vmatpush1.bf16.msra.mxu0 %v1521
    %2118 = vmatprep.subr.bf16.mxu0 0
    %2119 = vmatpush1.bf16.msra.mxu0 %v1526
    %2120 = vmatprep.subr.bf16.mxu0 0
    %2121 = vmatpush1.bf16.msra.mxu0 %v1531
    %2122 = vmatprep.subr.bf16.mxu0 0
    %2123 = vmatpush1.bf16.msra.mxu0 %v1536
    %2124 = vmatprep.subr.bf16.mxu0 0
    %2125 = vmatpush1.bf16.msra.mxu0 %v1541
    %2126 = vmatprep.subr.bf16.mxu0 0
    %2127 = vmatpush1.bf16.msra.mxu0 %v1546
    %2128 = vmatprep.subr.bf16.mxu0 0
    %2129 = vmatpush1.bf16.msra.mxu0 %v1551
    %2130 = vmatprep.subr.bf16.mxu0 0
    %2131 = vmatpush1.bf16.msra.mxu0 %v1556
    %2132 = vmatprep.subr.bf16.mxu0 0
    %2133 = vmatpush1.bf16.msra.mxu0 %v1561
    %2134 = vmatprep.subr.bf16.mxu0 0
    %2135 = vmatpush1.bf16.msra.mxu0 %v1566
    %2136 = vmatprep.subr.bf16.mxu0 0
    %2137 = vmatpush1.bf16.msra.mxu0 %v1571
    %2138 = vmatprep.subr.bf16.mxu0 0
    %2139 = vmatpush1.bf16.msra.mxu0 %v1576
    %2140 = vmatprep.subr.bf16.mxu0 0
    %2141 = vmatpush1.bf16.msra.mxu0 %v1581
    %2142 = vmatprep.subr.bf16.mxu0 0
    %2143 = vmatpush1.bf16.msra.mxu0 %v1586
    %2144 = vmatprep.subr.bf16.mxu0 0
    %2145 = vmatpush1.bf16.msra.mxu0 %v1591
    %2146 = vmatprep.mubr.bf16.mxu0 %v766
    %2147 = vmatmul.mubr.bf16.gmra.mrb[0].mxu0 %v765
    %v2148 = vpop.f32.mrb[0].mxu0
    %v2149 = vadd.f32 %v986, %v2148
    %v2150 = vpop.f32.mrb[0].mxu0
    %v2151 = vpop.f32.mrb[0].mxu0
    %v2152 = vadd.f32 %v986, %v2151
    %v2153 = vpop.f32.mrb[0].mxu0
    %2154 = vdwg.mxu0
    %2155 = vmatprep.subr.bf16.mxu0 0
    %2156 = vmatpush1.bf16.msra.mxu0 %v1596
    %2157 = vmatprep.subr.bf16.mxu0 0
    %2158 = vmatpush1.bf16.msra.mxu0 %v1601
    %2159 = vmatprep.subr.bf16.mxu0 0
    %2160 = vmatpush1.bf16.msra.mxu0 %v1606
    %2161 = vmatprep.subr.bf16.mxu0 0
    %2162 = vmatpush1.bf16.msra.mxu0 %v1611
    %2163 = vmatprep.subr.bf16.mxu0 0
    %2164 = vmatpush1.bf16.msra.mxu0 %v1616
    %2165 = vmatprep.subr.bf16.mxu0 0
    %2166 = vmatpush1.bf16.msra.mxu0 %v1621
    %2167 = vmatprep.subr.bf16.mxu0 0
    %2168 = vmatpush1.bf16.msra.mxu0 %v1626
    %2169 = vmatprep.subr.bf16.mxu0 0
    %2170 = vmatpush1.bf16.msra.mxu0 %v1631
    %2171 = vmatprep.subr.bf16.mxu0 0
    %2172 = vmatpush1.bf16.msra.mxu0 %v1636
    %2173 = vmatprep.subr.bf16.mxu0 0
    %2174 = vmatpush1.bf16.msra.mxu0 %v1641
    %2175 = vmatprep.subr.bf16.mxu0 0
    %2176 = vmatpush1.bf16.msra.mxu0 %v1646
    %2177 = vmatprep.subr.bf16.mxu0 0
    %2178 = vmatpush1.bf16.msra.mxu0 %v1651
    %2179 = vmatprep.subr.bf16.mxu0 0
    %2180 = vmatpush1.bf16.msra.mxu0 %v1656
    %2181 = vmatprep.subr.bf16.mxu0 0
    %2182 = vmatpush1.bf16.msra.mxu0 %v1661
    %2183 = vmatprep.subr.bf16.mxu0 0
    %2184 = vmatpush1.bf16.msra.mxu0 %v1666
    %2185 = vmatprep.subr.bf16.mxu0 0
    %2186 = vmatpush1.bf16.msra.mxu0 %v1671
    %2187 = vmatprep.mubr.bf16.mxu0 %v768
    %2188 = vmatmul.mubr.bf16.gmra.mrb[0].mxu0 %v767
    %v2189 = vpop.f32.mrb[0].mxu0
    %v2190 = vadd.f32 %v2149, %v2189
    %v2191 = vpop.f32.mrb[0].mxu0
    %v2192 = vpop.f32.mrb[0].mxu0
    %v2193 = vadd.f32 %v2152, %v2192
    %v2194 = vpop.f32.mrb[0].mxu0
    %2195 = vdwg.mxu0
    %2196 = vmatprep.subr.bf16.mxu0 0
    %2197 = vmatpush1.bf16.msra.mxu0 %v1854
    %2198 = vmatprep.subr.bf16.mxu0 0
    %2199 = vmatpush1.bf16.msra.mxu0 0
    %2200 = vmatprep.subr.bf16.mxu0 0
    %2201 = vmatpush1.bf16.msra.mxu0 0
    %2202 = vmatprep.subr.bf16.mxu0 0
    %2203 = vmatpush1.bf16.msra.mxu0 0
    %2204 = vmatprep.subr.bf16.mxu0 0
    %2205 = vmatpush1.bf16.msra.mxu0 0
    %2206 = vmatprep.subr.bf16.mxu0 0
    %2207 = vmatpush1.bf16.msra.mxu0 0
    %2208 = vmatprep.subr.bf16.mxu0 0
    %2209 = vmatpush1.bf16.msra.mxu0 0
    %2210 = vmatprep.subr.bf16.mxu0 0
    %2211 = vmatpush1.bf16.msra.mxu0 0
    %2212 = vmatprep.subr.bf16.mxu0 0
    %2213 = vmatpush1.bf16.msra.mxu0 0
    %2214 = vmatprep.subr.bf16.mxu0 0
    %2215 = vmatpush1.bf16.msra.mxu0 0
    %2216 = vmatprep.subr.bf16.mxu0 0
    %2217 = vmatpush1.bf16.msra.mxu0 0
    %2218 = vmatprep.subr.bf16.mxu0 0
    %2219 = vmatpush1.bf16.msra.mxu0 0
    %2220 = vmatprep.subr.bf16.mxu0 0
    %2221 = vmatpush1.bf16.msra.mxu0 0
    %2222 = vmatprep.subr.bf16.mxu0 0
    %2223 = vmatpush1.bf16.msra.mxu0 0
    %2224 = vmatprep.subr.bf16.mxu0 0
    %2225 = vmatpush1.bf16.msra.mxu0 0
    %2226 = vmatprep.subr.bf16.mxu0 0
    %2227 = vmatpush1.bf16.msra.mxu0 0
    %2228 = vmatprep.mubr.bf16.mxu0 0
    %2229 = vmatmul.mubr.bf16.gmra.mrb[0].mxu0 %v1838
    %v2230 = vpop.f32.mrb[0].mxu0
    %v2231 = vadd.f32 %v2190, %v2230
    %v2232 = vpop.f32.mrb[0].mxu0
    %v2233 = vpop.f32.mrb[0].mxu0
    %v2234 = vadd.f32 %v2193, %v2233
    %v2235 = vpop.f32.mrb[0].mxu0
    %2236 = vdwg.mxu0
    %v2237 = vadd.f32 %v1977, %v1981
    %v2238 = vrot.slane %v2237, 4
    %v2239 = vadd.f32 %v2237, %v2238
    %v2240 = vrot.slane %v2239, 2
    %v2241 = vadd.f32 %v2239, %v2240
    %v2242 = vrot.slane %v2241, 1
    %v2243 = vadd.f32 %v2241, %v2242
    %v2244 = vadd.f32 %v1979, %v1983
    %v2245 = vrot.slane %v2244, 4
    %v2246 = vadd.f32 %v2244, %v2245
    %v2247 = vrot.slane %v2246, 2
    %v2248 = vadd.f32 %v2246, %v2247
    %v2249 = vrot.slane %v2248, 1
    %v2250 = vadd.f32 %v2248, %v2249
    %v2251 = vadd.f32 %v2106, %v2110
    %v2252 = vrot.slane %v2251, 4
    %v2253 = vadd.f32 %v2251, %v2252
    %v2254 = vrot.slane %v2253, 2
    %v2255 = vadd.f32 %v2253, %v2254
    %v2256 = vrot.slane %v2255, 1
    %v2257 = vadd.f32 %v2255, %v2256
    %v2258 = vadd.f32 %v2108, %v2112
    %v2259 = vrot.slane %v2258, 4
    %v2260 = vadd.f32 %v2258, %v2259
    %v2261 = vrot.slane %v2260, 2
    %v2262 = vadd.f32 %v2260, %v2261
    %v2263 = vrot.slane %v2262, 1
    %v2264 = vadd.f32 %v2262, %v2263
    %v2265 = vsel %vm149, %v2231, 0.0
    %v2266 = vsel %vm149, %v2234, 0.0
    %v2267 = vadd.f32 %v2265, %v2266
    %v2268 = vrot.slane %v2267, 4
    %v2269 = vadd.f32 %v2267, %v2268
    %v2270 = vrot.slane %v2269, 2
    %v2271 = vadd.f32 %v2269, %v2270
    %v2272 = vrot.slane %v2271, 1
    %v2273 = vadd.f32 %v2271, %v2272
    %v2274 = vmul.f32 %v1977, %v1977
    %v2275 = vmul.f32 %v1979, %v1979
    %v2276 = vmul.f32 %v2106, %v2106
    %v2277 = vmul.f32 %v2108, %v2108
    %v2278 = vmul.f32 %v2231, %v2231
    %v2279 = vmul.f32 %v1981, %v1981
    %v2280 = vmul.f32 %v1983, %v1983
    %v2281 = vmul.f32 %v2110, %v2110
    %v2282 = vmul.f32 %v2112, %v2112
    %v2283 = vmul.f32 %v2234, %v2234
    %v2284 = vadd.f32 %v2274, %v2279
    %v2285 = vrot.slane %v2284, 4
    %v2286 = vadd.f32 %v2284, %v2285
    %v2287 = vrot.slane %v2286, 2
    %v2288 = vadd.f32 %v2286, %v2287
    %v2289 = vrot.slane %v2288, 1
    %v2290 = vadd.f32 %v2288, %v2289
    %v2291 = vadd.f32 %v2275, %v2280
    %v2292 = vrot.slane %v2291, 4
    %v2293 = vadd.f32 %v2291, %v2292
    %v2294 = vrot.slane %v2293, 2
    %v2295 = vadd.f32 %v2293, %v2294
    %v2296 = vrot.slane %v2295, 1
    %v2297 = vadd.f32 %v2295, %v2296
    %v2298 = vadd.f32 %v2276, %v2281
    %v2299 = vrot.slane %v2298, 4
    %v2300 = vadd.f32 %v2298, %v2299
    %v2301 = vrot.slane %v2300, 2
    %v2302 = vadd.f32 %v2300, %v2301
    %v2303 = vrot.slane %v2302, 1
    %v2304 = vadd.f32 %v2302, %v2303
    %v2305 = vadd.f32 %v2277, %v2282
    %v2306 = vrot.slane %v2305, 4
    %v2307 = vadd.f32 %v2305, %v2306
    %v2308 = vrot.slane %v2307, 2
    %v2309 = vadd.f32 %v2307, %v2308
    %v2310 = vrot.slane %v2309, 1
    %v2311 = vadd.f32 %v2309, %v2310
    %v2312 = vsel %vm149, %v2278, 0.0
    %v2313 = vsel %vm149, %v2283, 0.0
    %v2314 = vadd.f32 %v2312, %v2313
    %v2315 = vrot.slane %v2314, 4
    %v2316 = vadd.f32 %v2314, %v2315
    %v2317 = vrot.slane %v2316, 2
    %v2318 = vadd.f32 %v2316, %v2317
    %v2319 = vrot.slane %v2318, 1
    %v2320 = vadd.f32 %v2318, %v2319
    %v2321 = vmul.f32 %v2243, 0.0625
    %v2322 = vmul.f32 %v2250, 0.0625
    %v2323 = vmul.f32 %v2257, 0.0625
    %v2324 = vmul.f32 %v2264, 0.0625
    %v2325 = vmul.f32 %v2273, 0.0625
    %v2326 = vmul.f32 %v2290, 0.0625
    %v2327 = vmul.f32 %v2297, 0.0625
    %v2328 = vmul.f32 %v2304, 0.0625
    %v2329 = vmul.f32 %v2311, 0.0625
    %v2330 = vmul.f32 %v2320, 0.0625
    %v2331 = vmul.f32 %v2321, %v2321
    %v2332 = vmul.f32 %v2322, %v2322
    %v2333 = vmul.f32 %v2323, %v2323
    %v2334 = vmul.f32 %v2324, %v2324
    %v2335 = vmul.f32 %v2325, %v2325
    %v2336 = vsub.f32 %v2326, %v2331
    %v2337 = vsub.f32 %v2327, %v2332
    %v2338 = vsub.f32 %v2328, %v2333
    %v2339 = vsub.f32 %v2329, %v2334
    %v2340 = vsub.f32 %v2330, %v2335
    %v2341 = vadd.f32 %v2336, 1e-05
    %v2342 = vadd.f32 %v2337, 1e-05
    %v2343 = vadd.f32 %v2338, 1e-05
    %v2344 = vadd.f32 %v2339, 1e-05
    %v2345 = vadd.f32 %v2340, 1e-05
    %v2346 = vrsqrt.pop %v2341
    %v2347 = vrsqrt.pop %v2342
    %v2348 = vrsqrt.pop %v2343
    %v2349 = vrsqrt.pop %v2344
    %v2350 = vrsqrt.pop %v2345
    %v2351 = vld [vmem:[#allocation9] sm:$0x1f]
    %v2353 = vlaneseq
    %v2354 = vshrl.u32 %v2353, 7
    %v2355 = vsub.s32 0, %v2354
    %v2356 = vrot.slane %v2351, %v2355
    %v2357 = vlaneseq
    %v2358 = vshrl.u32 %v2357, 7
    %v2359 = vsub.s32 1, %v2358
    %v2360 = vrot.slane %v2351, %v2359
    %v2361 = vlaneseq
    %v2362 = vshrl.u32 %v2361, 7
    %v2363 = vsub.s32 2, %v2362
    %v2364 = vrot.slane %v2351, %v2363
    %v2365 = vlaneseq
    %v2366 = vshrl.u32 %v2365, 7
    %v2367 = vsub.s32 3, %v2366
    %v2368 = vrot.slane %v2351, %v2367
    %v2369 = vlaneseq
    %v2370 = vshrl.u32 %v2369, 7
    %v2371 = vsub.s32 4, %v2370
    %v2372 = vrot.slane %v2351, %v2371
    %v2378 = vmul.f32 %v2346, %v2356
    %v2379 = vmul.f32 %v2347, %v2360
    %v2380 = vmul.f32 %v2348, %v2364
    %v2381 = vmul.f32 %v2349, %v2368
    %v2382 = vmul.f32 %v2350, %v2372
    %v2383 = vld [vmem:[#allocation11] sm:$0x1f]
    %v2384 = vmul.f32 %v2321, %v2378
    %v2385 = vmul.f32 %v2322, %v2379
    %v2386 = vmul.f32 %v2323, %v2380
    %v2387 = vmul.f32 %v2324, %v2381
    %v2388 = vmul.f32 %v2325, %v2382
    %v2394 = vcombine.low %v2384, %v2385
    %v2395 = vcombine.low %v2386, %v2387
    %v2397 = vunpack.c.l.s4 1966171168
    %v2398 = vunpack.c.0.s8 %v2397
    %v2399 = vlaneseq
    %v2400 = vshrl.u32 %v2399, 7
    %v2401 = vsub.s32 %v2398, %v2400
    %v2402 = vrot.slane %v2394, %v2401
    %v2404 = vunpack.c.l.s4 1966171168
    %v2405 = vunpack.c.0.s8 %v2404
    %v2406 = vlaneseq
    %v2407 = vshrl.u32 %v2406, 7
    %v2408 = vsub.s32 %v2405, %v2407
    %v2409 = vrot.slane %v2395, %v2408
    %v2411 = vunpack.c.l.s4 1966171168
    %v2412 = vunpack.c.0.s8 %v2411
    %v2413 = vlaneseq
    %v2414 = vshrl.u32 %v2413, 7
    %v2415 = vsub.s32 %v2412, %v2414
    %v2416 = vrot.slane %v2388, %v2415
    %v2417 = vcombine.low %v2402, %v2409
    %v2419 = vunpack.c.l.s4 1966171168
    %v2420 = vunpack.c.0.s8 %v2419
    %v2421 = vlaneseq
    %v2422 = vshrl.u32 %v2421, 7
    %v2423 = vsub.s32 %v2420, %v2422
    %v2424 = vrot.slane %v2417, %v2423
    %v2426 = vunpack.c.l.s4 1966171168
    %v2427 = vunpack.c.0.s8 %v2426
    %v2428 = vlaneseq
    %v2429 = vshrl.u32 %v2428, 7
    %v2430 = vsub.s32 %v2427, %v2429
    %v2431 = vrot.slane %v2416, %v2430
    %v2432 = vcombine.low %v2424, %v2431
    %v2434 = vsub.f32 %v2383, %v2432
    %v2435 = vlaneseq
    %v2436 = vshrl.u32 %v2435, 7
    %v2437 = vsub.s32 0, %v2436
    %v2438 = vrot.slane %v2378, %v2437
    %v2439 = vlaneseq
    %v2440 = vshrl.u32 %v2439, 7
    %v2441 = vsub.s32 0, %v2440
    %v2442 = vrot.slane %v2379, %v2441
    %v2443 = vlaneseq
    %v2444 = vshrl.u32 %v2443, 7
    %v2445 = vsub.s32 0, %v2444
    %v2446 = vrot.slane %v2380, %v2445
    %v2447 = vlaneseq
    %v2448 = vshrl.u32 %v2447, 7
    %v2449 = vsub.s32 0, %v2448
    %v2450 = vrot.slane %v2381, %v2449
    %v2451 = vlaneseq
    %v2452 = vshrl.u32 %v2451, 7
    %v2453 = vsub.s32 0, %v2452
    %v2454 = vrot.slane %v2382, %v2453
    %v2455 = vmul.f32 %v1977, %v2438
    %v2456 = vmul.f32 %v1979, %v2442
    %v2457 = vmul.f32 %v2106, %v2446
    %v2458 = vmul.f32 %v2108, %v2450
    %v2459 = vmul.f32 %v2231, %v2454
    %v2460 = vmul.f32 %v1981, %v2438
    %v2461 = vmul.f32 %v1983, %v2442
    %v2462 = vmul.f32 %v2110, %v2446
    %v2463 = vmul.f32 %v2112, %v2450
    %v2464 = vmul.f32 %v2234, %v2454
    %v2466 = vlaneseq
    %v2467 = vshrl.u32 %v2466, 7
    %v2468 = vsub.s32 0, %v2467
    %v2469 = vrot.slane %v2434, %v2468
    %v2470 = vlaneseq
    %v2471 = vshrl.u32 %v2470, 7
    %v2472 = vsub.s32 1, %v2471
    %v2473 = vrot.slane %v2434, %v2472
    %v2474 = vlaneseq
    %v2475 = vshrl.u32 %v2474, 7
    %v2476 = vsub.s32 2, %v2475
    %v2477 = vrot.slane %v2434, %v2476
    %v2478 = vlaneseq
    %v2479 = vshrl.u32 %v2478, 7
    %v2480 = vsub.s32 3, %v2479
    %v2481 = vrot.slane %v2434, %v2480
    %v2482 = vlaneseq
    %v2483 = vshrl.u32 %v2482, 7
    %v2484 = vsub.s32 4, %v2483
    %v2485 = vrot.slane %v2434, %v2484
    %v2491 = vadd.f32 %v2455, %v2469
    %v2492 = vadd.f32 %v2456, %v2473
    %v2493 = vadd.f32 %v2457, %v2477
    %v2494 = vadd.f32 %v2458, %v2481
    %v2495 = vadd.f32 %v2459, %v2485
    %v2496 = vadd.f32 %v2460, %v2469
    %v2497 = vadd.f32 %v2461, %v2473
    %v2498 = vadd.f32 %v2462, %v2477
    %v2499 = vadd.f32 %v2463, %v2481
    %v2500 = vadd.f32 %v2464, %v2485
    %v2501 = vmax.f32 %v2491, 0.0
    %v2502 = vmax.f32 %v2492, 0.0
    %v2503 = vmax.f32 %v2493, 0.0
    %v2504 = vmax.f32 %v2494, 0.0
    %v2505 = vmax.f32 %v2495, 0.0
    %v2506 = vmax.f32 %v2496, 0.0
    %v2507 = vmax.f32 %v2497, 0.0
    %v2508 = vmax.f32 %v2498, 0.0
    %v2509 = vmax.f32 %v2499, 0.0
    %v2510 = vmax.f32 %v2500, 0.0
    %v2521 = vrot.slane %v2501, 6
    %v2522 = vrot.slane %v2502, 6
    %v2523 = vrot.slane %v2503, 6
    %v2524 = vrot.slane %v2504, 6
    %v2525 = vrot.slane %v2505, 6
    %v2526 = vrot.slane %v2506, 6
    %v2527 = vrot.slane %v2507, 6
    %v2528 = vrot.slane %v2508, 6
    %v2529 = vrot.slane %v2509, 6
    %v2530 = vrot.slane %v2510, 6
    %2541 = vst [vmem:[#allocation2] sm:$0xfc] %v2521
    %2542 = vst [vmem:[#allocation2 + $0x8] sm:$0xfc] %v2522
    %2543 = vst [vmem:[#allocation2 + $0x10] sm:$0xfc] %v2523
    %2544 = vst [vmem:[#allocation2 + $0x18] sm:$0xfc] %v2524
    %2545 = vst.msk [vmem:[#allocation2 + $0x20] sm:$0xfc] %vm211, %v2525
    %2546 = vst [vmem:[#allocation2 + $0x28] sm:$0x3] %v2521
    %2547 = vst [vmem:[#allocation2 + $0x30] sm:$0x3] %v2522
    %2548 = vst [vmem:[#allocation2 + $0x38] sm:$0x3] %v2523
    %2549 = vst [vmem:[#allocation2 + $0x40] sm:$0x3] %v2524
    %2550 = vst.msk [vmem:[#allocation2 + $0x48] sm:$0x3] %vm217, %v2525
    %2551 = vst [vmem:[#allocation2 + $0x50] sm:$0xfc] %v2526
    %2552 = vst [vmem:[#allocation2 + $0x58] sm:$0xfc] %v2527
    %2553 = vst [vmem:[#allocation2 + $0x60] sm:$0xfc] %v2528
    %2554 = vst [vmem:[#allocation2 + $0x68] sm:$0xfc] %v2529
    %2555 = vst.msk [vmem:[#allocation2 + $0x70] sm:$0xfc] %vm211, %v2530
    %2556 = vst [vmem:[#allocation2 + $0x78] sm:$0x3] %v2526
    %2557 = vst [vmem:[#allocation2 + $0x80] sm:$0x3] %v2527
    %2558 = vst [vmem:[#allocation2 + $0x88] sm:$0x3] %v2528
    %2559 = vst [vmem:[#allocation2 + $0x90] sm:$0x3] %v2529
    %2560 = vst.msk [vmem:[#allocation2 + $0x98] sm:$0x3] %vm217, %v2530
    %v2561 = vld [vmem:[#allocation2] sm:$0xff]
    %v2562 = vld [vmem:[#allocation2 + $0x8] sm:$0xff]
    %v2563 = vld [vmem:[#allocation2 + $0x10] sm:$0xff]
    %v2564 = vld [vmem:[#allocation2 + $0x18] sm:$0xff]
    %v2565 = vld [vmem:[#allocation2 + $0x20] sm:$0xff]
    %v2566 = vld [vmem:[#allocation2 + $0x28] sm:$0xf]
    %v2567 = vld [vmem:[#allocation2 + $0x30] sm:$0xf]
    %v2568 = vld [vmem:[#allocation2 + $0x38] sm:$0xf]
    %v2569 = vld [vmem:[#allocation2 + $0x40] sm:$0xf]
    %v2570 = vld [vmem:[#allocation2 + $0x48] sm:$0xf]
    %v2571 = vld [vmem:[#allocation2 + $0x50] sm:$0xff]
    %v2572 = vld [vmem:[#allocation2 + $0x58] sm:$0xff]
    %v2573 = vld [vmem:[#allocation2 + $0x60] sm:$0xff]
    %v2574 = vld [vmem:[#allocation2 + $0x68] sm:$0xff]
    %v2575 = vld [vmem:[#allocation2 + $0x70] sm:$0xff]
    %v2576 = vld [vmem:[#allocation2 + $0x78] sm:$0xf]
    %v2577 = vld [vmem:[#allocation2 + $0x80] sm:$0xf]
    %v2578 = vld [vmem:[#allocation2 + $0x88] sm:$0xf]
    %v2579 = vld [vmem:[#allocation2 + $0x90] sm:$0xf]
    %v2580 = vld [vmem:[#allocation2 + $0x98] sm:$0xf]
    %s2581 = scalar_lea.vmem %s1, 40
    %v2582 = vld [vmem:[%s2581] sm:$0x1f]
    %v2583 = vld [vmem:[%s2581 + $0x8] sm:$0x1f]
    %v2584 = vld [vmem:[%s2581 + $0x10] sm:$0x1f]
    %v2585 = vld [vmem:[%s2581 + $0x18] sm:$0x1f]
    %v2586 = vld [vmem:[%s2581 + $0x20] sm:$0x1f]
    %v2587 = vlaneseq
    %v2588 = vshrl.u32 %v2587, 7
    %v2589 = vsub.s32 0, %v2588
    %v2590 = vrot.slane %v2582, %v2589
    %v2591 = vlaneseq
    %v2592 = vshrl.u32 %v2591, 7
    %v2593 = vsub.s32 0, %v2592
    %v2594 = vrot.slane %v2583, %v2593
    %v2595 = vlaneseq
    %v2596 = vshrl.u32 %v2595, 7
    %v2597 = vsub.s32 0, %v2596
    %v2598 = vrot.slane %v2584, %v2597
    %v2599 = vlaneseq
    %v2600 = vshrl.u32 %v2599, 7
    %v2601 = vsub.s32 0, %v2600
    %v2602 = vrot.slane %v2585, %v2601
    %v2603 = vlaneseq
    %v2604 = vshrl.u32 %v2603, 7
    %v2605 = vsub.s32 0, %v2604
    %v2606 = vrot.slane %v2586, %v2605
    %v2607 = vmul.f32 %v2561, %v2590
    %v2608 = vmul.f32 %v2562, %v2594
    %v2609 = vmul.f32 %v2563, %v2598
    %v2610 = vmul.f32 %v2564, %v2602
    %v2611 = vmul.f32 %v2565, %v2606
    %v2612 = vmul.f32 %v2571, %v2590
    %v2613 = vmul.f32 %v2572, %v2594
    %v2614 = vmul.f32 %v2573, %v2598
    %v2615 = vmul.f32 %v2574, %v2602
    %v2616 = vmul.f32 %v2575, %v2606
    %v2617 = vlaneseq
    %v2618 = vshrl.u32 %v2617, 7
    %v2619 = vsub.s32 1, %v2618
    %v2620 = vrot.slane %v2582, %v2619
    %v2621 = vlaneseq
    %v2622 = vshrl.u32 %v2621, 7
    %v2623 = vsub.s32 1, %v2622
    %v2624 = vrot.slane %v2583, %v2623
    %v2625 = vlaneseq
    %v2626 = vshrl.u32 %v2625, 7
    %v2627 = vsub.s32 1, %v2626
    %v2628 = vrot.slane %v2584, %v2627
    %v2629 = vlaneseq
    %v2630 = vshrl.u32 %v2629, 7
    %v2631 = vsub.s32 1, %v2630
    %v2632 = vrot.slane %v2585, %v2631
    %v2633 = vlaneseq
    %v2634 = vshrl.u32 %v2633, 7
    %v2635 = vsub.s32 1, %v2634
    %v2636 = vrot.slane %v2586, %v2635
    %v2637 = vmul.f32 %v2561, %v2620
    %v2638 = vmul.f32 %v2562, %v2624
    %v2639 = vmul.f32 %v2563, %v2628
    %v2640 = vmul.f32 %v2564, %v2632
    %v2641 = vmul.f32 %v2565, %v2636
    %v2642 = vmul.f32 %v2566, %v2620
    %v2643 = vmul.f32 %v2567, %v2624
    %v2644 = vmul.f32 %v2568, %v2628
    %v2645 = vmul.f32 %v2569, %v2632
    %v2646 = vmul.f32 %v2570, %v2636
    %v2647 = vmul.f32 %v2571, %v2620
    %v2648 = vmul.f32 %v2572, %v2624
    %v2649 = vmul.f32 %v2573, %v2628
    %v2650 = vmul.f32 %v2574, %v2632
    %v2651 = vmul.f32 %v2575, %v2636
    %v2652 = vmul.f32 %v2576, %v2620
    %v2653 = vmul.f32 %v2577, %v2624
    %v2654 = vmul.f32 %v2578, %v2628
    %v2655 = vmul.f32 %v2579, %v2632
    %v2656 = vmul.f32 %v2580, %v2636
    %v2677 = vrot.slane %v2637, 1
    %v2678 = vrot.slane %v2642, 1
    %v2679 = vsel %vm344, %v2677, %v2678
    %v2680 = vrot.slane %v2638, 1
    %v2681 = vrot.slane %v2643, 1
    %v2682 = vsel %vm344, %v2680, %v2681
    %v2683 = vrot.slane %v2639, 1
    %v2684 = vrot.slane %v2644, 1
    %v2685 = vsel %vm344, %v2683, %v2684
    %v2686 = vrot.slane %v2640, 1
    %v2687 = vrot.slane %v2645, 1
    %v2688 = vsel %vm344, %v2686, %v2687
    %v2689 = vrot.slane %v2641, 1
    %v2690 = vrot.slane %v2646, 1
    %v2691 = vsel %vm344, %v2689, %v2690
    %v2692 = vrot.slane %v2647, 1
    %v2693 = vrot.slane %v2652, 1
    %v2694 = vsel %vm344, %v2692, %v2693
    %v2695 = vrot.slane %v2648, 1
    %v2696 = vrot.slane %v2653, 1
    %v2697 = vsel %vm344, %v2695, %v2696
    %v2698 = vrot.slane %v2649, 1
    %v2699 = vrot.slane %v2654, 1
    %v2700 = vsel %vm344, %v2698, %v2699
    %v2701 = vrot.slane %v2650, 1
    %v2702 = vrot.slane %v2655, 1
    %v2703 = vsel %vm344, %v2701, %v2702
    %v2704 = vrot.slane %v2651, 1
    %v2705 = vrot.slane %v2656, 1
    %v2706 = vsel %vm344, %v2704, %v2705
    %v2717 = vadd.f32 %v2607, %v2679
    %v2718 = vadd.f32 %v2608, %v2682
    %v2719 = vadd.f32 %v2609, %v2685
    %v2720 = vadd.f32 %v2610, %v2688
    %v2721 = vadd.f32 %v2611, %v2691
    %v2722 = vadd.f32 %v2612, %v2694
    %v2723 = vadd.f32 %v2613, %v2697
    %v2724 = vadd.f32 %v2614, %v2700
    %v2725 = vadd.f32 %v2615, %v2703
    %v2726 = vadd.f32 %v2616, %v2706
    %v2727 = vlaneseq
    %v2728 = vshrl.u32 %v2727, 7
    %v2729 = vsub.s32 2, %v2728
    %v2730 = vrot.slane %v2582, %v2729
    %v2731 = vlaneseq
    %v2732 = vshrl.u32 %v2731, 7
    %v2733 = vsub.s32 2, %v2732
    %v2734 = vrot.slane %v2583, %v2733
    %v2735 = vlaneseq
    %v2736 = vshrl.u32 %v2735, 7
    %v2737 = vsub.s32 2, %v2736
    %v2738 = vrot.slane %v2584, %v2737
    %v2739 = vlaneseq
    %v2740 = vshrl.u32 %v2739, 7
    %v2741 = vsub.s32 2, %v2740
    %v2742 = vrot.slane %v2585, %v2741
    %v2743 = vlaneseq
    %v2744 = vshrl.u32 %v2743, 7
    %v2745 = vsub.s32 2, %v2744
    %v2746 = vrot.slane %v2586, %v2745
    %v2747 = vmul.f32 %v2561, %v2730
    %v2748 = vmul.f32 %v2562, %v2734
    %v2749 = vmul.f32 %v2563, %v2738
    %v2750 = vmul.f32 %v2564, %v2742
    %v2751 = vmul.f32 %v2565, %v2746
    %v2752 = vmul.f32 %v2566, %v2730
    %v2753 = vmul.f32 %v2567, %v2734
    %v2754 = vmul.f32 %v2568, %v2738
    %v2755 = vmul.f32 %v2569, %v2742
    %v2756 = vmul.f32 %v2570, %v2746
    %v2757 = vmul.f32 %v2571, %v2730
    %v2758 = vmul.f32 %v2572, %v2734
    %v2759 = vmul.f32 %v2573, %v2738
    %v2760 = vmul.f32 %v2574, %v2742
    %v2761 = vmul.f32 %v2575, %v2746
    %v2762 = vmul.f32 %v2576, %v2730
    %v2763 = vmul.f32 %v2577, %v2734
    %v2764 = vmul.f32 %v2578, %v2738
    %v2765 = vmul.f32 %v2579, %v2742
    %v2766 = vmul.f32 %v2580, %v2746
    %v2787 = vrot.slane %v2747, 2
    %v2788 = vrot.slane %v2752, 2
    %v2789 = vsel %vm455, %v2787, %v2788
    %v2790 = vrot.slane %v2748, 2
    %v2791 = vrot.slane %v2753, 2
    %v2792 = vsel %vm455, %v2790, %v2791
    %v2793 = vrot.slane %v2749, 2
    %v2794 = vrot.slane %v2754, 2
    %v2795 = vsel %vm455, %v2793, %v2794
    %v2796 = vrot.slane %v2750, 2
    %v2797 = vrot.slane %v2755, 2
    %v2798 = vsel %vm455, %v2796, %v2797
    %v2799 = vrot.slane %v2751, 2
    %v2800 = vrot.slane %v2756, 2
    %v2801 = vsel %vm455, %v2799, %v2800
    %v2802 = vrot.slane %v2757, 2
    %v2803 = vrot.slane %v2762, 2
    %v2804 = vsel %vm455, %v2802, %v2803
    %v2805 = vrot.slane %v2758, 2
    %v2806 = vrot.slane %v2763, 2
    %v2807 = vsel %vm455, %v2805, %v2806
    %v2808 = vrot.slane %v2759, 2
    %v2809 = vrot.slane %v2764, 2
    %v2810 = vsel %vm455, %v2808, %v2809
    %v2811 = vrot.slane %v2760, 2
    %v2812 = vrot.slane %v2765, 2
    %v2813 = vsel %vm455, %v2811, %v2812
    %v2814 = vrot.slane %v2761, 2
    %v2815 = vrot.slane %v2766, 2
    %v2816 = vsel %vm455, %v2814, %v2815
    %v2827 = vadd.f32 %v2717, %v2789
    %v2828 = vadd.f32 %v2718, %v2792
    %v2829 = vadd.f32 %v2719, %v2795
    %v2830 = vadd.f32 %v2720, %v2798
    %v2831 = vadd.f32 %v2721, %v2801
    %v2832 = vadd.f32 %v2722, %v2804
    %v2833 = vadd.f32 %v2723, %v2807
    %v2834 = vadd.f32 %v2724, %v2810
    %v2835 = vadd.f32 %v2725, %v2813
    %v2836 = vadd.f32 %v2726, %v2816
    %v2837 = vlaneseq
    %v2838 = vshrl.u32 %v2837, 7
    %v2839 = vsub.s32 3, %v2838
    %v2840 = vrot.slane %v2582, %v2839
    %v2841 = vlaneseq
    %v2842 = vshrl.u32 %v2841, 7
    %v2843 = vsub.s32 3, %v2842
    %v2844 = vrot.slane %v2583, %v2843
    %v2845 = vlaneseq
    %v2846 = vshrl.u32 %v2845, 7
    %v2847 = vsub.s32 3, %v2846
    %v2848 = vrot.slane %v2584, %v2847
    %v2849 = vlaneseq
    %v2850 = vshrl.u32 %v2849, 7
    %v2851 = vsub.s32 3, %v2850
    %v2852 = vrot.slane %v2585, %v2851
    %v2853 = vlaneseq
    %v2854 = vshrl.u32 %v2853, 7
    %v2855 = vsub.s32 3, %v2854
    %v2856 = vrot.slane %v2586, %v2855
    %v2857 = vmul.f32 %v2561, %v2840
    %v2858 = vmul.f32 %v2562, %v2844
    %v2859 = vmul.f32 %v2563, %v2848
    %v2860 = vmul.f32 %v2564, %v2852
    %v2861 = vmul.f32 %v2565, %v2856
    %v2862 = vmul.f32 %v2566, %v2840
    %v2863 = vmul.f32 %v2567, %v2844
    %v2864 = vmul.f32 %v2568, %v2848
    %v2865 = vmul.f32 %v2569, %v2852
    %v2866 = vmul.f32 %v2570, %v2856
    %v2867 = vmul.f32 %v2571, %v2840
    %v2868 = vmul.f32 %v2572, %v2844
    %v2869 = vmul.f32 %v2573, %v2848
    %v2870 = vmul.f32 %v2574, %v2852
    %v2871 = vmul.f32 %v2575, %v2856
    %v2872 = vmul.f32 %v2576, %v2840
    %v2873 = vmul.f32 %v2577, %v2844
    %v2874 = vmul.f32 %v2578, %v2848
    %v2875 = vmul.f32 %v2579, %v2852
    %v2876 = vmul.f32 %v2580, %v2856
    %v2897 = vrot.slane %v2857, 3
    %v2898 = vrot.slane %v2862, 3
    %v2899 = vsel %vm566, %v2897, %v2898
    %v2900 = vrot.slane %v2858, 3
    %v2901 = vrot.slane %v2863, 3
    %v2902 = vsel %vm566, %v2900, %v2901
    %v2903 = vrot.slane %v2859, 3
    %v2904 = vrot.slane %v2864, 3
    %v2905 = vsel %vm566, %v2903, %v2904
    %v2906 = vrot.slane %v2860, 3
    %v2907 = vrot.slane %v2865, 3
    %v2908 = vsel %vm566, %v2906, %v2907
    %v2909 = vrot.slane %v2861, 3
    %v2910 = vrot.slane %v2866, 3
    %v2911 = vsel %vm566, %v2909, %v2910
    %v2912 = vrot.slane %v2867, 3
    %v2913 = vrot.slane %v2872, 3
    %v2914 = vsel %vm566, %v2912, %v2913
    %v2915 = vrot.slane %v2868, 3
    %v2916 = vrot.slane %v2873, 3
    %v2917 = vsel %vm566, %v2915, %v2916
    %v2918 = vrot.slane %v2869, 3
    %v2919 = vrot.slane %v2874, 3
    %v2920 = vsel %vm566, %v2918, %v2919
    %v2921 = vrot.slane %v2870, 3
    %v2922 = vrot.slane %v2875, 3
    %v2923 = vsel %vm566, %v2921, %v2922
    %v2924 = vrot.slane %v2871, 3
    %v2925 = vrot.slane %v2876, 3
    %v2926 = vsel %vm566, %v2924, %v2925
    %v2937 = vadd.f32 %v2827, %v2899
    %v2938 = vadd.f32 %v2828, %v2902
    %v2939 = vadd.f32 %v2829, %v2905
    %v2940 = vadd.f32 %v2830, %v2908
    %v2941 = vadd.f32 %v2831, %v2911
    %v2942 = vadd.f32 %v2832, %v2914
    %v2943 = vadd.f32 %v2833, %v2917
    %v2944 = vadd.f32 %v2834, %v2920
    %v2945 = vadd.f32 %v2835, %v2923
    %v2946 = vadd.f32 %v2836, %v2926
    %v2947 = vlaneseq
    %v2948 = vshrl.u32 %v2947, 7
    %v2949 = vsub.s32 4, %v2948
    %v2950 = vrot.slane %v2582, %v2949
    %v2951 = vlaneseq
    %v2952 = vshrl.u32 %v2951, 7
    %v2953 = vsub.s32 4, %v2952
    %v2954 = vrot.slane %v2583, %v2953
    %v2955 = vlaneseq
    %v2956 = vshrl.u32 %v2955, 7
    %v2957 = vsub.s32 4, %v2956
    %v2958 = vrot.slane %v2584, %v2957
    %v2959 = vlaneseq
    %v2960 = vshrl.u32 %v2959, 7
    %v2961 = vsub.s32 4, %v2960
    %v2962 = vrot.slane %v2585, %v2961
    %v2963 = vlaneseq
    %v2964 = vshrl.u32 %v2963, 7
    %v2965 = vsub.s32 4, %v2964
    %v2966 = vrot.slane %v2586, %v2965
    %v2967 = vmul.f32 %v2561, %v2950
    %v2968 = vmul.f32 %v2562, %v2954
    %v2969 = vmul.f32 %v2563, %v2958
    %v2970 = vmul.f32 %v2564, %v2962
    %v2971 = vmul.f32 %v2565, %v2966
    %v2972 = vmul.f32 %v2566, %v2950
    %v2973 = vmul.f32 %v2567, %v2954
    %v2974 = vmul.f32 %v2568, %v2958
    %v2975 = vmul.f32 %v2569, %v2962
    %v2976 = vmul.f32 %v2570, %v2966
    %v2977 = vmul.f32 %v2571, %v2950
    %v2978 = vmul.f32 %v2572, %v2954
    %v2979 = vmul.f32 %v2573, %v2958
    %v2980 = vmul.f32 %v2574, %v2962
    %v2981 = vmul.f32 %v2575, %v2966
    %v2982 = vmul.f32 %v2576, %v2950
    %v2983 = vmul.f32 %v2577, %v2954
    %v2984 = vmul.f32 %v2578, %v2958
    %v2985 = vmul.f32 %v2579, %v2962
    %v2986 = vmul.f32 %v2580, %v2966
    %v3007 = vrot.slane %v2967, 4
    %v3008 = vrot.slane %v2972, 4
    %v3009 = vsel %vm677, %v3007, %v3008
    %v3010 = vrot.slane %v2968, 4
    %v3011 = vrot.slane %v2973, 4
    %v3012 = vsel %vm677, %v3010, %v3011
    %v3013 = vrot.slane %v2969, 4
    %v3014 = vrot.slane %v2974, 4
    %v3015 = vsel %vm677, %v3013, %v3014
    %v3016 = vrot.slane %v2970, 4
    %v3017 = vrot.slane %v2975, 4
    %v3018 = vsel %vm677, %v3016, %v3017
    %v3019 = vrot.slane %v2971, 4
    %v3020 = vrot.slane %v2976, 4
    %v3021 = vsel %vm677, %v3019, %v3020
    %v3022 = vrot.slane %v2977, 4
    %v3023 = vrot.slane %v2982, 4
    %v3024 = vsel %vm677, %v3022, %v3023
    %v3025 = vrot.slane %v2978, 4
    %v3026 = vrot.slane %v2983, 4
    %v3027 = vsel %vm677, %v3025, %v3026
    %v3028 = vrot.slane %v2979, 4
    %v3029 = vrot.slane %v2984, 4
    %v3030 = vsel %vm677, %v3028, %v3029
    %v3031 = vrot.slane %v2980, 4
    %v3032 = vrot.slane %v2985, 4
    %v3033 = vsel %vm677, %v3031, %v3032
    %v3034 = vrot.slane %v2981, 4
    %v3035 = vrot.slane %v2986, 4
    %v3036 = vsel %vm677, %v3034, %v3035
    %v3047 = vadd.f32 %v2937, %v3009
    %v3048 = vadd.f32 %v2938, %v3012
    %v3049 = vadd.f32 %v2939, %v3015
    %v3050 = vadd.f32 %v2940, %v3018
    %v3051 = vadd.f32 %v2941, %v3021
    %v3052 = vadd.f32 %v2942, %v3024
    %v3053 = vadd.f32 %v2943, %v3027
    %v3054 = vadd.f32 %v2944, %v3030
    %v3055 = vadd.f32 %v2945, %v3033
    %v3056 = vadd.f32 %v2946, %v3036
    %s3057 = scalar_lea.vmem [#allocation3], 5
    %v3058 = vld [vmem:[%s3057] sm:$0x1f]
    %v3060 = vlaneseq
    %v3061 = vshrl.u32 %v3060, 7
    %v3062 = vsub.s32 0, %v3061
    %v3063 = vrot.slane %v3058, %v3062
    %v3064 = vlaneseq
    %v3065 = vshrl.u32 %v3064, 7
    %v3066 = vsub.s32 1, %v3065
    %v3067 = vrot.slane %v3058, %v3066
    %v3068 = vlaneseq
    %v3069 = vshrl.u32 %v3068, 7
    %v3070 = vsub.s32 2, %v3069
    %v3071 = vrot.slane %v3058, %v3070
    %v3072 = vlaneseq
    %v3073 = vshrl.u32 %v3072, 7
    %v3074 = vsub.s32 3, %v3073
    %v3075 = vrot.slane %v3058, %v3074
    %v3076 = vlaneseq
    %v3077 = vshrl.u32 %v3076, 7
    %v3078 = vsub.s32 4, %v3077
    %v3079 = vrot.slane %v3058, %v3078
    %v3085 = vadd.f32 %v3047, %v3063
    %v3086 = vadd.f32 %v3048, %v3067
    %v3087 = vadd.f32 %v3049, %v3071
    %v3088 = vadd.f32 %v3050, %v3075
    %v3089 = vadd.f32 %v3051, %v3079
    %v3090 = vadd.f32 %v3052, %v3063
    %v3091 = vadd.f32 %v3053, %v3067
    %v3092 = vadd.f32 %v3054, %v3071
    %v3093 = vadd.f32 %v3055, %v3075
    %v3094 = vadd.f32 %v3056, %v3079
    %v3095 = vpack.c.bf16 %v3090, %v3085
    %v3096 = vpack.c.bf16 %v3091, %v3086
    %v3097 = vpack.c.bf16 %v3092, %v3087
    %v3098 = vpack.c.bf16 %v3093, %v3088
    %v3099 = vpack.c.bf16 %v3094, %v3089
    %s3100 = scalar_lea.vmem [#allocation6], 1300
    %v3101 = vld [vmem:[%s3100] sm:$0xff]
    %v3102 = vld [vmem:[%s3100 + $0x8] sm:$0xff]
    %v3103 = vld [vmem:[%s3100 + $0x10] sm:$0xf]
    %v3104 = vld [vmem:[%s3100 + $0x14] sm:$0xff]
    %v3105 = vld [vmem:[%s3100 + $0x1c] sm:$0xff]
    %v3106 = vld [vmem:[%s3100 + $0x24] sm:$0xf]
    %v3107 = vld [vmem:[%s3100 + $0x28] sm:$0xff]
    %v3108 = vld [vmem:[%s3100 + $0x30] sm:$0xff]
    %v3109 = vld [vmem:[%s3100 + $0x38] sm:$0xf]
    %v3110 = vld [vmem:[%s3100 + $0x3c] sm:$0xff]
    %v3111 = vld [vmem:[%s3100 + $0x44] sm:$0xff]
    %v3112 = vld [vmem:[%s3100 + $0x4c] sm:$0xf]
    %v3113 = vld [vmem:[%s3100 + $0x50] sm:$0xff]
    %v3114 = vld [vmem:[%s3100 + $0x58] sm:$0xff]
    %v3115 = vld [vmem:[%s3100 + $0x60] sm:$0xf]
    %v3116 = vld [vmem:[%s3100 + $0x64] sm:$0xff]
    %v3117 = vld [vmem:[%s3100 + $0x6c] sm:$0xff]
    %v3118 = vld [vmem:[%s3100 + $0x74] sm:$0xf]
    %v3119 = vld [vmem:[%s3100 + $0x78] sm:$0xff]
    %v3120 = vld [vmem:[%s3100 + $0x80] sm:$0xff]
    %v3121 = vld [vmem:[%s3100 + $0x88] sm:$0xf]
    %v3122 = vld [vmem:[%s3100 + $0x8c] sm:$0xff]
    %v3123 = vld [vmem:[%s3100 + $0x94] sm:$0xff]
    %v3124 = vld [vmem:[%s3100 + $0x9c] sm:$0xf]
    %v3125 = vld [vmem:[%s3100 + $0xa0] sm:$0xff]
    %v3126 = vld [vmem:[%s3100 + $0xa8] sm:$0xff]
    %v3127 = vld [vmem:[%s3100 + $0xb0] sm:$0xf]
    %v3128 = vld [vmem:[%s3100 + $0xb4] sm:$0xff]
    %v3129 = vld [vmem:[%s3100 + $0xbc] sm:$0xff]
    %v3130 = vld [vmem:[%s3100 + $0xc4] sm:$0xf]
    %v3131 = vld [vmem:[%s3100 + $0xc8] sm:$0xff]
    %v3132 = vld [vmem:[%s3100 + $0xd0] sm:$0xff]
    %v3133 = vld [vmem:[%s3100 + $0xd8] sm:$0xf]
    %v3134 = vld [vmem:[%s3100 + $0xdc] sm:$0xff]
    %v3135 = vld [vmem:[%s3100 + $0xe4] sm:$0xff]
    %v3136 = vld [vmem:[%s3100 + $0xec] sm:$0xf]
    %v3137 = vld [vmem:[%s3100 + $0xf0] sm:$0xff]
    %v3138 = vld [vmem:[%s3100 + $0xf8] sm:$0xff]
    %v3139 = vld [vmem:[%s3100 + $0x100] sm:$0xf]
    %v3140 = vld [vmem:[%s3100 + $0x104] sm:$0xff]
    %v3141 = vld [vmem:[%s3100 + $0x10c] sm:$0xff]
    %v3142 = vld [vmem:[%s3100 + $0x114] sm:$0xf]
    %v3143 = vld [vmem:[%s3100 + $0x118] sm:$0xff]
    %v3144 = vld [vmem:[%s3100 + $0x120] sm:$0xff]
    %v3145 = vld [vmem:[%s3100 + $0x128] sm:$0xf]
    %v3146 = vld [vmem:[%s3100 + $0x12c] sm:$0xff]
    %v3147 = vld [vmem:[%s3100 + $0x134] sm:$0xff]
    %v3148 = vld [vmem:[%s3100 + $0x13c] sm:$0xf]
    %v3149 = vld [vmem:[%s3100 + $0x140] sm:$0xff]
    %v3150 = vld [vmem:[%s3100 + $0x148] sm:$0xff]
    %v3151 = vld [vmem:[%s3100 + $0x150] sm:$0xf]
    %v3152 = vld [vmem:[%s3100 + $0x154] sm:$0xff]
    %v3153 = vld [vmem:[%s3100 + $0x15c] sm:$0xff]
    %v3154 = vld [vmem:[%s3100 + $0x164] sm:$0xf]
    %v3155 = vld [vmem:[%s3100 + $0x168] sm:$0xff]
    %v3156 = vld [vmem:[%s3100 + $0x170] sm:$0xff]
    %v3157 = vld [vmem:[%s3100 + $0x178] sm:$0xf]
    %v3158 = vld [vmem:[%s3100 + $0x17c] sm:$0xff]
    %v3159 = vld [vmem:[%s3100 + $0x184] sm:$0xff]
    %v3160 = vld [vmem:[%s3100 + $0x18c] sm:$0xf]
    %v3161 = vld [vmem:[%s3100 + $0x190] sm:$0xff]
    %v3162 = vld [vmem:[%s3100 + $0x198] sm:$0xff]
    %v3163 = vld [vmem:[%s3100 + $0x1a0] sm:$0xf]
    %v3164 = vld [vmem:[%s3100 + $0x1a4] sm:$0xff]
    %v3165 = vld [vmem:[%s3100 + $0x1ac] sm:$0xff]
    %v3166 = vld [vmem:[%s3100 + $0x1b4] sm:$0xf]
    %v3167 = vld [vmem:[%s3100 + $0x1b8] sm:$0xff]
    %v3168 = vld [vmem:[%s3100 + $0x1c0] sm:$0xff]
    %v3169 = vld [vmem:[%s3100 + $0x1c8] sm:$0xf]
    %v3170 = vld [vmem:[%s3100 + $0x1cc] sm:$0xff]
    %v3171 = vld [vmem:[%s3100 + $0x1d4] sm:$0xff]
    %v3172 = vld [vmem:[%s3100 + $0x1dc] sm:$0xf]
    %v3173 = vld [vmem:[%s3100 + $0x1e0] sm:$0xff]
    %v3174 = vld [vmem:[%s3100 + $0x1e8] sm:$0xff]
    %v3175 = vld [vmem:[%s3100 + $0x1f0] sm:$0xf]
    %v3176 = vld [vmem:[%s3100 + $0x1f4] sm:$0xff]
    %v3177 = vld [vmem:[%s3100 + $0x1fc] sm:$0xff]
    %v3178 = vld [vmem:[%s3100 + $0x204] sm:$0xf]
    %v3179 = vld [vmem:[%s3100 + $0x208] sm:$0xff]
    %v3180 = vld [vmem:[%s3100 + $0x210] sm:$0xff]
    %v3181 = vld [vmem:[%s3100 + $0x218] sm:$0xf]
    %v3182 = vld [vmem:[%s3100 + $0x21c] sm:$0xff]
    %v3183 = vld [vmem:[%s3100 + $0x224] sm:$0xff]
    %v3184 = vld [vmem:[%s3100 + $0x22c] sm:$0xf]
    %v3185 = vld [vmem:[%s3100 + $0x230] sm:$0xff]
    %v3186 = vld [vmem:[%s3100 + $0x238] sm:$0xff]
    %v3187 = vld [vmem:[%s3100 + $0x240] sm:$0xf]
    %v3188 = vld [vmem:[%s3100 + $0x244] sm:$0xff]
    %v3189 = vld [vmem:[%s3100 + $0x24c] sm:$0xff]
    %v3190 = vld [vmem:[%s3100 + $0x254] sm:$0xf]
    %v3191 = vld [vmem:[%s3100 + $0x258] sm:$0xff]
    %v3192 = vld [vmem:[%s3100 + $0x260] sm:$0xff]
    %v3193 = vld [vmem:[%s3100 + $0x268] sm:$0xf]
    %v3194 = vld [vmem:[%s3100 + $0x26c] sm:$0xff]
    %v3195 = vld [vmem:[%s3100 + $0x274] sm:$0xff]
    %v3196 = vld [vmem:[%s3100 + $0x27c] sm:$0xf]
    %v3197 = vld [vmem:[%s3100 + $0x280] sm:$0xff]
    %v3198 = vld [vmem:[%s3100 + $0x288] sm:$0xff]
    %v3199 = vld [vmem:[%s3100 + $0x290] sm:$0xf]
    %v3200 = vld [vmem:[%s3100 + $0x294] sm:$0xff]
    %v3201 = vld [vmem:[%s3100 + $0x29c] sm:$0xff]
    %v3202 = vld [vmem:[%s3100 + $0x2a4] sm:$0xf]
    %v3203 = vld [vmem:[%s3100 + $0x2a8] sm:$0xff]
    %v3204 = vld [vmem:[%s3100 + $0x2b0] sm:$0xff]
    %v3205 = vld [vmem:[%s3100 + $0x2b8] sm:$0xf]
    %v3206 = vld [vmem:[%s3100 + $0x2bc] sm:$0xff]
    %v3207 = vld [vmem:[%s3100 + $0x2c4] sm:$0xff]
    %v3208 = vld [vmem:[%s3100 + $0x2cc] sm:$0xf]
    %v3209 = vld [vmem:[%s3100 + $0x2d0] sm:$0xff]
    %v3210 = vld [vmem:[%s3100 + $0x2d8] sm:$0xff]
    %v3211 = vld [vmem:[%s3100 + $0x2e0] sm:$0xf]
    %v3212 = vld [vmem:[%s3100 + $0x2e4] sm:$0xff]
    %v3213 = vld [vmem:[%s3100 + $0x2ec] sm:$0xff]
    %v3214 = vld [vmem:[%s3100 + $0x2f4] sm:$0xf]
    %v3215 = vld [vmem:[%s3100 + $0x2f8] sm:$0xff]
    %v3216 = vld [vmem:[%s3100 + $0x300] sm:$0xff]
    %v3217 = vld [vmem:[%s3100 + $0x308] sm:$0xf]
    %v3218 = vld [vmem:[%s3100 + $0x30c] sm:$0xff]
    %v3219 = vld [vmem:[%s3100 + $0x314] sm:$0xff]
    %v3220 = vld [vmem:[%s3100 + $0x31c] sm:$0xf]
    %v3221 = vld [vmem:[%s3100 + $0x320] sm:$0xff]
    %v3222 = vld [vmem:[%s3100 + $0x328] sm:$0xff]
    %v3223 = vld [vmem:[%s3100 + $0x330] sm:$0xf]
    %v3224 = vld [vmem:[%s3100 + $0x334] sm:$0xff]
    %v3225 = vld [vmem:[%s3100 + $0x33c] sm:$0xff]
    %v3226 = vld [vmem:[%s3100 + $0x344] sm:$0xf]
    %v3227 = vld [vmem:[%s3100 + $0x348] sm:$0xff]
    %v3228 = vld [vmem:[%s3100 + $0x350] sm:$0xff]
    %v3229 = vld [vmem:[%s3100 + $0x358] sm:$0xf]
    %v3230 = vld [vmem:[%s3100 + $0x35c] sm:$0xff]
    %v3231 = vld [vmem:[%s3100 + $0x364] sm:$0xff]
    %v3232 = vld [vmem:[%s3100 + $0x36c] sm:$0xf]
    %v3233 = vld [vmem:[%s3100 + $0x370] sm:$0xff]
    %v3234 = vld [vmem:[%s3100 + $0x378] sm:$0xff]
    %v3235 = vld [vmem:[%s3100 + $0x380] sm:$0xf]
    %v3236 = vld [vmem:[%s3100 + $0x384] sm:$0xff]
    %v3237 = vld [vmem:[%s3100 + $0x38c] sm:$0xff]
    %v3238 = vld [vmem:[%s3100 + $0x394] sm:$0xf]
    %v3239 = vld [vmem:[%s3100 + $0x398] sm:$0xff]
    %v3240 = vld [vmem:[%s3100 + $0x3a0] sm:$0xff]
    %v3241 = vld [vmem:[%s3100 + $0x3a8] sm:$0xf]
    %v3242 = vld [vmem:[%s3100 + $0x3ac] sm:$0xff]
    %v3243 = vld [vmem:[%s3100 + $0x3b4] sm:$0xff]
    %v3244 = vld [vmem:[%s3100 + $0x3bc] sm:$0xf]
    %v3245 = vld [vmem:[%s3100 + $0x3c0] sm:$0xff]
    %v3246 = vld [vmem:[%s3100 + $0x3c8] sm:$0xff]
    %v3247 = vld [vmem:[%s3100 + $0x3d0] sm:$0xf]
    %v3248 = vld [vmem:[%s3100 + $0x3d4] sm:$0xff]
    %v3249 = vld [vmem:[%s3100 + $0x3dc] sm:$0xff]
    %v3250 = vld [vmem:[%s3100 + $0x3e4] sm:$0xf]
    %v3251 = vld [vmem:[%s3100 + $0x3e8] sm:$0xff]
    %v3252 = vld [vmem:[%s3100 + $0x3f0] sm:$0xff]
    %v3253 = vld [vmem:[%s3100 + $0x3f8] sm:$0xf]
    %v3254 = vld [vmem:[%s3100 + $0x3fc] sm:$0xff]
    %v3255 = vld [vmem:[%s3100 + $0x404] sm:$0xff]
    %v3256 = vld [vmem:[%s3100 + $0x40c] sm:$0xf]
    %v3257 = vld [vmem:[%s3100 + $0x410] sm:$0xff]
    %v3258 = vld [vmem:[%s3100 + $0x418] sm:$0xff]
    %v3259 = vld [vmem:[%s3100 + $0x420] sm:$0xf]
    %v3260 = vld [vmem:[%s3100 + $0x424] sm:$0xff]
    %v3261 = vld [vmem:[%s3100 + $0x42c] sm:$0xff]
    %v3262 = vld [vmem:[%s3100 + $0x434] sm:$0xf]
    %v3263 = vld [vmem:[%s3100 + $0x438] sm:$0xff]
    %v3264 = vld [vmem:[%s3100 + $0x440] sm:$0xff]
    %v3265 = vld [vmem:[%s3100 + $0x448] sm:$0xf]
    %v3266 = vld [vmem:[%s3100 + $0x44c] sm:$0xff]
    %v3267 = vld [vmem:[%s3100 + $0x454] sm:$0xff]
    %v3268 = vld [vmem:[%s3100 + $0x45c] sm:$0xf]
    %v3269 = vld [vmem:[%s3100 + $0x460] sm:$0xff]
    %v3270 = vld [vmem:[%s3100 + $0x468] sm:$0xff]
    %v3271 = vld [vmem:[%s3100 + $0x470] sm:$0xf]
    %v3272 = vld [vmem:[%s3100 + $0x474] sm:$0xff]
    %v3273 = vld [vmem:[%s3100 + $0x47c] sm:$0xff]
    %v3274 = vld [vmem:[%s3100 + $0x484] sm:$0xf]
    %v3275 = vld [vmem:[%s3100 + $0x488] sm:$0xff]
    %v3276 = vld [vmem:[%s3100 + $0x490] sm:$0xff]
    %v3277 = vld [vmem:[%s3100 + $0x498] sm:$0xf]
    %v3278 = vld [vmem:[%s3100 + $0x49c] sm:$0xff]
    %v3279 = vld [vmem:[%s3100 + $0x4a4] sm:$0xff]
    %v3280 = vld [vmem:[%s3100 + $0x4ac] sm:$0xf]
    %v3281 = vld [vmem:[%s3100 + $0x4b0] sm:$0xff]
    %v3282 = vld [vmem:[%s3100 + $0x4b8] sm:$0xff]
    %v3283 = vld [vmem:[%s3100 + $0x4c0] sm:$0xf]
    %v3284 = vld [vmem:[%s3100 + $0x4c4] sm:$0xff]
    %v3285 = vld [vmem:[%s3100 + $0x4cc] sm:$0xff]
    %v3286 = vld [vmem:[%s3100 + $0x4d4] sm:$0xf]
    %v3287 = vld [vmem:[%s3100 + $0x4d8] sm:$0xff]
    %v3288 = vld [vmem:[%s3100 + $0x4e0] sm:$0xff]
    %v3289 = vld [vmem:[%s3100 + $0x4e8] sm:$0xf]
    %v3290 = vld [vmem:[%s3100 + $0x4ec] sm:$0xff]
    %v3291 = vld [vmem:[%s3100 + $0x4f4] sm:$0xff]
    %v3292 = vld [vmem:[%s3100 + $0x4fc] sm:$0xf]
    %v3293 = vld [vmem:[%s3100 + $0x500] sm:$0x11]
    %v3294 = vld [vmem:[%s3100 + $0x508] sm:$0x11]
    %v3295 = vld [vmem:[%s3100 + $0x510] sm:$0x1]
    %s3296 = scalar_lea.vmem [#allocation8], 5
    %v3297 = vld [vmem:[%s3296] sm:$0x1f]
    %v3299 = vlaneseq
    %v3300 = vshrl.u32 %v3299, 7
    %v3301 = vsub.s32 0, %v3300
    %v3302 = vrot.slane %v3297, %v3301
    %v3303 = vlaneseq
    %v3304 = vshrl.u32 %v3303, 7
    %v3305 = vsub.s32 1, %v3304
    %v3306 = vrot.slane %v3297, %v3305
    %v3307 = vlaneseq
    %v3308 = vshrl.u32 %v3307, 7
    %v3309 = vsub.s32 2, %v3308
    %v3310 = vrot.slane %v3297, %v3309
    %v3311 = vlaneseq
    %v3312 = vshrl.u32 %v3311, 7
    %v3313 = vsub.s32 3, %v3312
    %v3314 = vrot.slane %v3297, %v3313
    %v3315 = vlaneseq
    %v3316 = vshrl.u32 %v3315, 7
    %v3317 = vsub.s32 4, %v3316
    %v3318 = vrot.slane %v3297, %v3317
    %v3519 = vunpack.c.l.b16 %v3101
    %v3520 = vunpack.c.h.b16 %v3101
    %v3521 = vunpack.c.l.b16 %v3102
    %v3522 = vunpack.c.h.b16 %v3102
    %v3523 = vunpack.c.l.b16 %v3103
    %v3524 = vunpack.c.l.b16 %v3104
    %v3525 = vunpack.c.h.b16 %v3104
    %v3526 = vunpack.c.l.b16 %v3105
    %v3527 = vunpack.c.h.b16 %v3105
    %v3528 = vunpack.c.l.b16 %v3106
    %v3529 = vunpack.c.l.b16 %v3107
    %v3530 = vunpack.c.h.b16 %v3107
    %v3531 = vunpack.c.l.b16 %v3108
    %v3532 = vunpack.c.h.b16 %v3108
    %v3533 = vunpack.c.l.b16 %v3109
    %v3534 = vunpack.c.l.b16 %v3110
    %v3535 = vunpack.c.h.b16 %v3110
    %v3536 = vunpack.c.l.b16 %v3111
    %v3537 = vunpack.c.h.b16 %v3111
    %v3538 = vunpack.c.l.b16 %v3112
    %v3539 = vunpack.c.l.b16 %v3113
    %v3540 = vunpack.c.h.b16 %v3113
    %v3541 = vunpack.c.l.b16 %v3114
    %v3542 = vunpack.c.h.b16 %v3114
    %v3543 = vunpack.c.l.b16 %v3115
    %v3544 = vunpack.c.l.b16 %v3116
    %v3545 = vunpack.c.h.b16 %v3116
    %v3546 = vunpack.c.l.b16 %v3117
    %v3547 = vunpack.c.h.b16 %v3117
    %v3548 = vunpack.c.l.b16 %v3118
    %v3549 = vunpack.c.l.b16 %v3119
    %v3550 = vunpack.c.h.b16 %v3119
    %v3551 = vunpack.c.l.b16 %v3120
    %v3552 = vunpack.c.h.b16 %v3120
    %v3553 = vunpack.c.l.b16 %v3121
    %v3554 = vunpack.c.l.b16 %v3122
    %v3555 = vunpack.c.h.b16 %v3122
    %v3556 = vunpack.c.l.b16 %v3123
    %v3557 = vunpack.c.h.b16 %v3123
    %v3558 = vunpack.c.l.b16 %v3124
    %v3559 = vunpack.c.l.b16 %v3125
    %v3560 = vunpack.c.h.b16 %v3125
    %v3561 = vunpack.c.l.b16 %v3126
    %v3562 = vunpack.c.h.b16 %v3126
    %v3563 = vunpack.c.l.b16 %v3127
    %v3564 = vunpack.c.l.b16 %v3128
    %v3565 = vunpack.c.h.b16 %v3128
    %v3566 = vunpack.c.l.b16 %v3129
    %v3567 = vunpack.c.h.b16 %v3129
    %v3568 = vunpack.c.l.b16 %v3130
    %v3569 = vunpack.c.l.b16 %v3131
    %v3570 = vunpack.c.h.b16 %v3131
    %v3571 = vunpack.c.l.b16 %v3132
    %v3572 = vunpack.c.h.b16 %v3132
    %v3573 = vunpack.c.l.b16 %v3133
    %v3574 = vunpack.c.l.b16 %v3134
    %v3575 = vunpack.c.h.b16 %v3134
    %v3576 = vunpack.c.l.b16 %v3135
    %v3577 = vunpack.c.h.b16 %v3135
    %v3578 = vunpack.c.l.b16 %v3136
    %v3579 = vunpack.c.l.b16 %v3137
    %v3580 = vunpack.c.h.b16 %v3137
    %v3581 = vunpack.c.l.b16 %v3138
    %v3582 = vunpack.c.h.b16 %v3138
    %v3583 = vunpack.c.l.b16 %v3139
    %v3584 = vunpack.c.l.b16 %v3140
    %v3585 = vunpack.c.h.b16 %v3140
    %v3586 = vunpack.c.l.b16 %v3141
    %v3587 = vunpack.c.h.b16 %v3141
    %v3588 = vunpack.c.l.b16 %v3142
    %v3589 = vunpack.c.l.b16 %v3143
    %v3590 = vunpack.c.h.b16 %v3143
    %v3591 = vunpack.c.l.b16 %v3144
    %v3592 = vunpack.c.h.b16 %v3144
    %v3593 = vunpack.c.l.b16 %v3145
    %v3594 = vunpack.c.l.b16 %v3146
    %v3595 = vunpack.c.h.b16 %v3146
    %v3596 = vunpack.c.l.b16 %v3147
    %v3597 = vunpack.c.h.b16 %v3147
    %v3598 = vunpack.c.l.b16 %v3148
    %v3599 = vunpack.c.l.b16 %v3149
    %v3600 = vunpack.c.h.b16 %v3149
    %v3601 = vunpack.c.l.b16 %v3150
    %v3602 = vunpack.c.h.b16 %v3150
    %v3603 = vunpack.c.l.b16 %v3151
    %v3604 = vunpack.c.l.b16 %v3152
    %v3605 = vunpack.c.h.b16 %v3152
    %v3606 = vunpack.c.l.b16 %v3153
    %v3607 = vunpack.c.h.b16 %v3153
    %v3608 = vunpack.c.l.b16 %v3154
    %v3609 = vunpack.c.l.b16 %v3155
    %v3610 = vunpack.c.h.b16 %v3155
    %v3611 = vunpack.c.l.b16 %v3156
    %v3612 = vunpack.c.h.b16 %v3156
    %v3613 = vunpack.c.l.b16 %v3157
    %v3614 = vunpack.c.l.b16 %v3158
    %v3615 = vunpack.c.h.b16 %v3158
    %v3616 = vunpack.c.l.b16 %v3159
    %v3617 = vunpack.c.h.b16 %v3159
    %v3618 = vunpack.c.l.b16 %v3160
    %v3619 = vunpack.c.l.b16 %v3161
    %v3620 = vunpack.c.h.b16 %v3161
    %v3621 = vunpack.c.l.b16 %v3162
    %v3622 = vunpack.c.h.b16 %v3162
    %v3623 = vunpack.c.l.b16 %v3163
    %v3624 = vunpack.c.l.b16 %v3164
    %v3625 = vunpack.c.h.b16 %v3164
    %v3626 = vunpack.c.l.b16 %v3165
    %v3627 = vunpack.c.h.b16 %v3165
    %v3628 = vunpack.c.l.b16 %v3166
    %v3629 = vunpack.c.l.b16 %v3167
    %v3630 = vunpack.c.h.b16 %v3167
    %v3631 = vunpack.c.l.b16 %v3168
    %v3632 = vunpack.c.h.b16 %v3168
    %v3633 = vunpack.c.l.b16 %v3169
    %v3634 = vunpack.c.l.b16 %v3170
    %v3635 = vunpack.c.h.b16 %v3170
    %v3636 = vunpack.c.l.b16 %v3171
    %v3637 = vunpack.c.h.b16 %v3171
    %v3638 = vunpack.c.l.b16 %v3172
    %v3639 = vunpack.c.l.b16 %v3173
    %v3640 = vunpack.c.h.b16 %v3173
    %v3641 = vunpack.c.l.b16 %v3174
    %v3642 = vunpack.c.h.b16 %v3174
    %v3643 = vunpack.c.l.b16 %v3175
    %v3644 = vunpack.c.l.b16 %v3176
    %v3645 = vunpack.c.h.b16 %v3176
    %v3646 = vunpack.c.l.b16 %v3177
    %v3647 = vunpack.c.h.b16 %v3177
    %v3648 = vunpack.c.l.b16 %v3178
    %v3649 = vunpack.c.l.b16 %v3179
    %v3650 = vunpack.c.h.b16 %v3179
    %v3651 = vunpack.c.l.b16 %v3180
    %v3652 = vunpack.c.h.b16 %v3180
    %v3653 = vunpack.c.l.b16 %v3181
    %v3654 = vunpack.c.l.b16 %v3182
    %v3655 = vunpack.c.h.b16 %v3182
    %v3656 = vunpack.c.l.b16 %v3183
    %v3657 = vunpack.c.h.b16 %v3183
    %v3658 = vunpack.c.l.b16 %v3184
    %v3659 = vunpack.c.l.b16 %v3185
    %v3660 = vunpack.c.h.b16 %v3185
    %v3661 = vunpack.c.l.b16 %v3186
    %v3662 = vunpack.c.h.b16 %v3186
    %v3663 = vunpack.c.l.b16 %v3187
    %v3664 = vunpack.c.l.b16 %v3188
    %v3665 = vunpack.c.h.b16 %v3188
    %v3666 = vunpack.c.l.b16 %v3189
    %v3667 = vunpack.c.h.b16 %v3189
    %v3668 = vunpack.c.l.b16 %v3190
    %v3669 = vunpack.c.l.b16 %v3191
    %v3670 = vunpack.c.h.b16 %v3191
    %v3671 = vunpack.c.l.b16 %v3192
    %v3672 = vunpack.c.h.b16 %v3192
    %v3673 = vunpack.c.l.b16 %v3193
    %v3674 = vunpack.c.l.b16 %v3194
    %v3675 = vunpack.c.h.b16 %v3194
    %v3676 = vunpack.c.l.b16 %v3195
    %v3677 = vunpack.c.h.b16 %v3195
    %v3678 = vunpack.c.l.b16 %v3196
    %v3679 = vunpack.c.l.b16 %v3197
    %v3680 = vunpack.c.h.b16 %v3197
    %v3681 = vunpack.c.l.b16 %v3198
    %v3682 = vunpack.c.h.b16 %v3198
    %v3683 = vunpack.c.l.b16 %v3199
    %v3684 = vunpack.c.l.b16 %v3200
    %v3685 = vunpack.c.h.b16 %v3200
    %v3686 = vunpack.c.l.b16 %v3201
    %v3687 = vunpack.c.h.b16 %v3201
    %v3688 = vunpack.c.l.b16 %v3202
    %v3689 = vunpack.c.l.b16 %v3203
    %v3690 = vunpack.c.h.b16 %v3203
    %v3691 = vunpack.c.l.b16 %v3204
    %v3692 = vunpack.c.h.b16 %v3204
    %v3693 = vunpack.c.l.b16 %v3205
    %v3694 = vunpack.c.l.b16 %v3206
    %v3695 = vunpack.c.h.b16 %v3206
    %v3696 = vunpack.c.l.b16 %v3207
    %v3697 = vunpack.c.h.b16 %v3207
    %v3698 = vunpack.c.l.b16 %v3208
    %v3699 = vunpack.c.l.b16 %v3209
    %v3700 = vunpack.c.h.b16 %v3209
    %v3701 = vunpack.c.l.b16 %v3210
    %v3702 = vunpack.c.h.b16 %v3210
    %v3703 = vunpack.c.l.b16 %v3211
    %v3704 = vunpack.c.l.b16 %v3212
    %v3705 = vunpack.c.h.b16 %v3212
    %v3706 = vunpack.c.l.b16 %v3213
    %v3707 = vunpack.c.h.b16 %v3213
    %v3708 = vunpack.c.l.b16 %v3214
    %v3709 = vunpack.c.l.b16 %v3215
    %v3710 = vunpack.c.h.b16 %v3215
    %v3711 = vunpack.c.l.b16 %v3216
    %v3712 = vunpack.c.h.b16 %v3216
    %v3713 = vunpack.c.l.b16 %v3217
    %v3714 = vunpack.c.l.b16 %v3218
    %v3715 = vunpack.c.h.b16 %v3218
    %v3716 = vunpack.c.l.b16 %v3219
    %v3717 = vunpack.c.h.b16 %v3219
    %v3718 = vunpack.c.l.b16 %v3220
    %v3719 = vunpack.c.l.b16 %v3221
    %v3720 = vunpack.c.h.b16 %v3221
    %v3721 = vunpack.c.l.b16 %v3222
    %v3722 = vunpack.c.h.b16 %v3222
    %v3723 = vunpack.c.l.b16 %v3223
    %v3724 = vunpack.c.l.b16 %v3224
    %v3725 = vunpack.c.h.b16 %v3224
    %v3726 = vunpack.c.l.b16 %v3225
    %v3727 = vunpack.c.h.b16 %v3225
    %v3728 = vunpack.c.l.b16 %v3226
    %v3729 = vunpack.c.l.b16 %v3227
    %v3730 = vunpack.c.h.b16 %v3227
    %v3731 = vunpack.c.l.b16 %v3228
    %v3732 = vunpack.c.h.b16 %v3228
    %v3733 = vunpack.c.l.b16 %v3229
    %v3734 = vunpack.c.l.b16 %v3230
    %v3735 = vunpack.c.h.b16 %v3230
    %v3736 = vunpack.c.l.b16 %v3231
    %v3737 = vunpack.c.h.b16 %v3231
    %v3738 = vunpack.c.l.b16 %v3232
    %v3739 = vunpack.c.l.b16 %v3233
    %v3740 = vunpack.c.h.b16 %v3233
    %v3741 = vunpack.c.l.b16 %v3234
    %v3742 = vunpack.c.h.b16 %v3234
    %v3743 = vunpack.c.l.b16 %v3235
    %v3744 = vunpack.c.l.b16 %v3236
    %v3745 = vunpack.c.h.b16 %v3236
    %v3746 = vunpack.c.l.b16 %v3237
    %v3747 = vunpack.c.h.b16 %v3237
    %v3748 = vunpack.c.l.b16 %v3238
    %v3749 = vunpack.c.l.b16 %v3239
    %v3750 = vunpack.c.h.b16 %v3239
    %v3751 = vunpack.c.l.b16 %v3240
    %v3752 = vunpack.c.h.b16 %v3240
    %v3753 = vunpack.c.l.b16 %v3241
    %v3754 = vunpack.c.l.b16 %v3242
    %v3755 = vunpack.c.h.b16 %v3242
    %v3756 = vunpack.c.l.b16 %v3243
    %v3757 = vunpack.c.h.b16 %v3243
    %v3758 = vunpack.c.l.b16 %v3244
    %v3759 = vunpack.c.l.b16 %v3245
    %v3760 = vunpack.c.h.b16 %v3245
    %v3761 = vunpack.c.l.b16 %v3246
    %v3762 = vunpack.c.h.b16 %v3246
    %v3763 = vunpack.c.l.b16 %v3247
    %v3764 = vunpack.c.l.b16 %v3248
    %v3765 = vunpack.c.h.b16 %v3248
    %v3766 = vunpack.c.l.b16 %v3249
    %v3767 = vunpack.c.h.b16 %v3249
    %v3768 = vunpack.c.l.b16 %v3250
    %v3769 = vunpack.c.l.b16 %v3251
    %v3770 = vunpack.c.h.b16 %v3251
    %v3771 = vunpack.c.l.b16 %v3252
    %v3772 = vunpack.c.h.b16 %v3252
    %v3773 = vunpack.c.l.b16 %v3253
    %v3774 = vunpack.c.l.b16 %v3254
    %v3775 = vunpack.c.h.b16 %v3254
    %v3776 = vunpack.c.l.b16 %v3255
    %v3777 = vunpack.c.h.b16 %v3255
    %v3778 = vunpack.c.l.b16 %v3256
    %v3779 = vunpack.c.l.b16 %v3257
    %v3780 = vunpack.c.h.b16 %v3257
    %v3781 = vunpack.c.l.b16 %v3258
    %v3782 = vunpack.c.h.b16 %v3258
    %v3783 = vunpack.c.l.b16 %v3259
    %v3784 = vunpack.c.l.b16 %v3260
    %v3785 = vunpack.c.h.b16 %v3260
    %v3786 = vunpack.c.l.b16 %v3261
    %v3787 = vunpack.c.h.b16 %v3261
    %v3788 = vunpack.c.l.b16 %v3262
    %v3789 = vunpack.c.l.b16 %v3263
    %v3790 = vunpack.c.h.b16 %v3263
    %v3791 = vunpack.c.l.b16 %v3264
    %v3792 = vunpack.c.h.b16 %v3264
    %v3793 = vunpack.c.l.b16 %v3265
    %v3794 = vunpack.c.l.b16 %v3266
    %v3795 = vunpack.c.h.b16 %v3266
    %v3796 = vunpack.c.l.b16 %v3267
    %v3797 = vunpack.c.h.b16 %v3267
    %v3798 = vunpack.c.l.b16 %v3268
    %v3799 = vunpack.c.l.b16 %v3269
    %v3800 = vunpack.c.h.b16 %v3269
    %v3801 = vunpack.c.l.b16 %v3270
    %v3802 = vunpack.c.h.b16 %v3270
    %v3803 = vunpack.c.l.b16 %v3271
    %v3804 = vunpack.c.l.b16 %v3272
    %v3805 = vunpack.c.h.b16 %v3272
    %v3806 = vunpack.c.l.b16 %v3273
    %v3807 = vunpack.c.h.b16 %v3273
    %v3808 = vunpack.c.l.b16 %v3274
    %v3809 = vunpack.c.l.b16 %v3275
    %v3810 = vunpack.c.h.b16 %v3275
    %v3811 = vunpack.c.l.b16 %v3276
    %v3812 = vunpack.c.h.b16 %v3276
    %v3813 = vunpack.c.l.b16 %v3277
    %v3814 = vunpack.c.l.b16 %v3278
    %v3815 = vunpack.c.h.b16 %v3278
    %v3816 = vunpack.c.l.b16 %v3279
    %v3817 = vunpack.c.h.b16 %v3279
    %v3818 = vunpack.c.l.b16 %v3280
    %v3819 = vunpack.c.l.b16 %v3281
    %v3820 = vunpack.c.h.b16 %v3281
    %v3821 = vunpack.c.l.b16 %v3282
    %v3822 = vunpack.c.h.b16 %v3282
    %v3823 = vunpack.c.l.b16 %v3283
    %v3824 = vunpack.c.l.b16 %v3284
    %v3825 = vunpack.c.h.b16 %v3284
    %v3826 = vunpack.c.l.b16 %v3285
    %v3827 = vunpack.c.h.b16 %v3285
    %v3828 = vunpack.c.l.b16 %v3286
    %v3829 = vunpack.c.l.b16 %v3287
    %v3830 = vunpack.c.h.b16 %v3287
    %v3831 = vunpack.c.l.b16 %v3288
    %v3832 = vunpack.c.h.b16 %v3288
    %v3833 = vunpack.c.l.b16 %v3289
    %v3834 = vunpack.c.l.b16 %v3290
    %v3835 = vunpack.c.h.b16 %v3290
    %v3836 = vunpack.c.l.b16 %v3291
    %v3837 = vunpack.c.h.b16 %v3291
    %v3838 = vunpack.c.l.b16 %v3292
    %v3839 = vunpack.c.l.b16 %v3293
    %v3840 = vunpack.c.h.b16 %v3293
    %v3841 = vunpack.c.l.b16 %v3294
    %v3842 = vunpack.c.h.b16 %v3294
    %v3843 = vunpack.c.l.b16 %v3295
    %v3844 = vpack.c.b16 %v3524, %v3519
    %v3845 = vpack.c.b16 %v3525, %v3520
    %v3846 = vpack.c.b16 %v3526, %v3521
    %v3847 = vpack.c.b16 %v3527, %v3522
    %v3848 = vpack.c.b16 %v3528, %v3523
    %v3849 = vpack.c.b16 %v3534, %v3529
    %v3850 = vpack.c.b16 %v3535, %v3530
    %v3851 = vpack.c.b16 %v3536, %v3531
    %v3852 = vpack.c.b16 %v3537, %v3532
    %v3853 = vpack.c.b16 %v3538, %v3533
    %v3854 = vpack.c.b16 %v3544, %v3539
    %v3855 = vpack.c.b16 %v3545, %v3540
    %v3856 = vpack.c.b16 %v3546, %v3541
    %v3857 = vpack.c.b16 %v3547, %v3542
    %v3858 = vpack.c.b16 %v3548, %v3543
    %v3859 = vpack.c.b16 %v3554, %v3549
    %v3860 = vpack.c.b16 %v3555, %v3550
    %v3861 = vpack.c.b16 %v3556, %v3551
    %v3862 = vpack.c.b16 %v3557, %v3552
    %v3863 = vpack.c.b16 %v3558, %v3553
    %v3864 = vpack.c.b16 %v3564, %v3559
    %v3865 = vpack.c.b16 %v3565, %v3560
    %v3866 = vpack.c.b16 %v3566, %v3561
    %v3867 = vpack.c.b16 %v3567, %v3562
    %v3868 = vpack.c.b16 %v3568, %v3563
    %v3869 = vpack.c.b16 %v3574, %v3569
    %v3870 = vpack.c.b16 %v3575, %v3570
    %v3871 = vpack.c.b16 %v3576, %v3571
    %v3872 = vpack.c.b16 %v3577, %v3572
    %v3873 = vpack.c.b16 %v3578, %v3573
    %v3874 = vpack.c.b16 %v3584, %v3579
    %v3875 = vpack.c.b16 %v3585, %v3580
    %v3876 = vpack.c.b16 %v3586, %v3581
    %v3877 = vpack.c.b16 %v3587, %v3582
    %v3878 = vpack.c.b16 %v3588, %v3583
    %v3879 = vpack.c.b16 %v3594, %v3589
    %v3880 = vpack.c.b16 %v3595, %v3590
    %v3881 = vpack.c.b16 %v3596, %v3591
    %v3882 = vpack.c.b16 %v3597, %v3592
    %v3883 = vpack.c.b16 %v3598, %v3593
    %v3884 = vpack.c.b16 %v3604, %v3599
    %v3885 = vpack.c.b16 %v3605, %v3600
    %v3886 = vpack.c.b16 %v3606, %v3601
    %v3887 = vpack.c.b16 %v3607, %v3602
    %v3888 = vpack.c.b16 %v3608, %v3603
    %v3889 = vpack.c.b16 %v3614, %v3609
    %v3890 = vpack.c.b16 %v3615, %v3610
    %v3891 = vpack.c.b16 %v3616, %v3611
    %v3892 = vpack.c.b16 %v3617, %v3612
    %v3893 = vpack.c.b16 %v3618, %v3613
    %v3894 = vpack.c.b16 %v3624, %v3619
    %v3895 = vpack.c.b16 %v3625, %v3620
    %v3896 = vpack.c.b16 %v3626, %v3621
    %v3897 = vpack.c.b16 %v3627, %v3622
    %v3898 = vpack.c.b16 %v3628, %v3623
    %v3899 = vpack.c.b16 %v3634, %v3629
    %v3900 = vpack.c.b16 %v3635, %v3630
    %v3901 = vpack.c.b16 %v3636, %v3631
    %v3902 = vpack.c.b16 %v3637, %v3632
    %v3903 = vpack.c.b16 %v3638, %v3633
    %v3904 = vpack.c.b16 %v3644, %v3639
    %v3905 = vpack.c.b16 %v3645, %v3640
    %v3906 = vpack.c.b16 %v3646, %v3641
    %v3907 = vpack.c.b16 %v3647, %v3642
    %v3908 = vpack.c.b16 %v3648, %v3643
    %v3909 = vpack.c.b16 %v3654, %v3649
    %v3910 = vpack.c.b16 %v3655, %v3650
    %v3911 = vpack.c.b16 %v3656, %v3651
    %v3912 = vpack.c.b16 %v3657, %v3652
    %v3913 = vpack.c.b16 %v3658, %v3653
    %v3914 = vpack.c.b16 %v3664, %v3659
    %v3915 = vpack.c.b16 %v3665, %v3660
    %v3916 = vpack.c.b16 %v3666, %v3661
    %v3917 = vpack.c.b16 %v3667, %v3662
    %v3918 = vpack.c.b16 %v3668, %v3663
    %v3919 = vpack.c.b16 %v3674, %v3669
    %v3920 = vpack.c.b16 %v3675, %v3670
    %v3921 = vpack.c.b16 %v3676, %v3671
    %v3922 = vpack.c.b16 %v3677, %v3672
    %v3923 = vpack.c.b16 %v3678, %v3673
    %v3924 = vpack.c.b16 %v3684, %v3679
    %v3925 = vpack.c.b16 %v3685, %v3680
    %v3926 = vpack.c.b16 %v3686, %v3681
    %v3927 = vpack.c.b16 %v3687, %v3682
    %v3928 = vpack.c.b16 %v3688, %v3683
    %v3929 = vpack.c.b16 %v3694, %v3689
    %v3930 = vpack.c.b16 %v3695, %v3690
    %v3931 = vpack.c.b16 %v3696, %v3691
    %v3932 = vpack.c.b16 %v3697, %v3692
    %v3933 = vpack.c.b16 %v3698, %v3693
    %v3934 = vpack.c.b16 %v3704, %v3699
    %v3935 = vpack.c.b16 %v3705, %v3700
    %v3936 = vpack.c.b16 %v3706, %v3701
    %v3937 = vpack.c.b16 %v3707, %v3702
    %v3938 = vpack.c.b16 %v3708, %v3703
    %v3939 = vpack.c.b16 %v3714, %v3709
    %v3940 = vpack.c.b16 %v3715, %v3710
    %v3941 = vpack.c.b16 %v3716, %v3711
    %v3942 = vpack.c.b16 %v3717, %v3712
    %v3943 = vpack.c.b16 %v3718, %v3713
    %v3944 = vpack.c.b16 %v3724, %v3719
    %v3945 = vpack.c.b16 %v3725, %v3720
    %v3946 = vpack.c.b16 %v3726, %v3721
    %v3947 = vpack.c.b16 %v3727, %v3722
    %v3948 = vpack.c.b16 %v3728, %v3723
    %v3949 = vpack.c.b16 %v3734, %v3729
    %v3950 = vpack.c.b16 %v3735, %v3730
    %v3951 = vpack.c.b16 %v3736, %v3731
    %v3952 = vpack.c.b16 %v3737, %v3732
    %v3953 = vpack.c.b16 %v3738, %v3733
    %v3954 = vpack.c.b16 %v3744, %v3739
    %v3955 = vpack.c.b16 %v3745, %v3740
    %v3956 = vpack.c.b16 %v3746, %v3741
    %v3957 = vpack.c.b16 %v3747, %v3742
    %v3958 = vpack.c.b16 %v3748, %v3743
    %v3959 = vpack.c.b16 %v3754, %v3749
    %v3960 = vpack.c.b16 %v3755, %v3750
    %v3961 = vpack.c.b16 %v3756, %v3751
    %v3962 = vpack.c.b16 %v3757, %v3752
    %v3963 = vpack.c.b16 %v3758, %v3753
    %v3964 = vpack.c.b16 %v3764, %v3759
    %v3965 = vpack.c.b16 %v3765, %v3760
    %v3966 = vpack.c.b16 %v3766, %v3761
    %v3967 = vpack.c.b16 %v3767, %v3762
    %v3968 = vpack.c.b16 %v3768, %v3763
    %v3969 = vpack.c.b16 %v3774, %v3769
    %v3970 = vpack.c.b16 %v3775, %v3770
    %v3971 = vpack.c.b16 %v3776, %v3771
    %v3972 = vpack.c.b16 %v3777, %v3772
    %v3973 = vpack.c.b16 %v3778, %v3773
    %v3974 = vpack.c.b16 %v3784, %v3779
    %v3975 = vpack.c.b16 %v3785, %v3780
    %v3976 = vpack.c.b16 %v3786, %v3781
    %v3977 = vpack.c.b16 %v3787, %v3782
    %v3978 = vpack.c.b16 %v3788, %v3783
    %v3979 = vpack.c.b16 %v3794, %v3789
    %v3980 = vpack.c.b16 %v3795, %v3790
    %v3981 = vpack.c.b16 %v3796, %v3791
    %v3982 = vpack.c.b16 %v3797, %v3792
    %v3983 = vpack.c.b16 %v3798, %v3793
    %v3984 = vpack.c.b16 %v3804, %v3799
    %v3985 = vpack.c.b16 %v3805, %v3800
    %v3986 = vpack.c.b16 %v3806, %v3801
    %v3987 = vpack.c.b16 %v3807, %v3802
    %v3988 = vpack.c.b16 %v3808, %v3803
    %v3989 = vpack.c.b16 %v3814, %v3809
    %v3990 = vpack.c.b16 %v3815, %v3810
    %v3991 = vpack.c.b16 %v3816, %v3811
    %v3992 = vpack.c.b16 %v3817, %v3812
    %v3993 = vpack.c.b16 %v3818, %v3813
    %v3994 = vpack.c.b16 %v3824, %v3819
    %v3995 = vpack.c.b16 %v3825, %v3820
    %v3996 = vpack.c.b16 %v3826, %v3821
    %v3997 = vpack.c.b16 %v3827, %v3822
    %v3998 = vpack.c.b16 %v3828, %v3823
    %v3999 = vpack.c.b16 %v3834, %v3829
    %v4000 = vpack.c.b16 %v3835, %v3830
    %v4001 = vpack.c.b16 %v3836, %v3831
    %v4002 = vpack.c.b16 %v3837, %v3832
    %v4003 = vpack.c.b16 %v3838, %v3833
    %v4004 = vpack.c.b16 %v3839, %v3839
    %v4005 = vpack.c.b16 %v3840, %v3840
    %v4006 = vpack.c.b16 %v3841, %v3841
    %v4007 = vpack.c.b16 %v3842, %v3842
    %v4008 = vpack.c.b16 %v3843, %v3843
    %v4170 = vsel %vm149, %v3099, 0
    %v4173 = vsel %vm1840, %v4004, 0
    %v4176 = vsel %vm1840, %v4005, 0
    %v4179 = vsel %vm1840, %v4006, 0
    %v4182 = vsel %vm1840, %v4007, 0
    %v4185 = vsel %vm1840, %v4008, 0
    %4187 = vmatprep.subr.bf16.mxu0 %v3845
    %4188 = vmatpush1.bf16.msra.mxu0 %v3844
    %4189 = vmatprep.subr.bf16.mxu0 %v3850
    %4190 = vmatpush1.bf16.msra.mxu0 %v3849
    %4191 = vmatprep.subr.bf16.mxu0 %v3855
    %4192 = vmatpush1.bf16.msra.mxu0 %v3854
    %4193 = vmatprep.subr.bf16.mxu0 %v3860
    %4194 = vmatpush1.bf16.msra.mxu0 %v3859
    %4195 = vmatprep.subr.bf16.mxu0 %v3865
    %4196 = vmatpush1.bf16.msra.mxu0 %v3864
    %4197 = vmatprep.subr.bf16.mxu0 %v3870
    %4198 = vmatpush1.bf16.msra.mxu0 %v3869
    %4199 = vmatprep.subr.bf16.mxu0 %v3875
    %4200 = vmatpush1.bf16.msra.mxu0 %v3874
    %4201 = vmatprep.subr.bf16.mxu0 %v3880
    %4202 = vmatpush1.bf16.msra.mxu0 %v3879
    %4203 = vmatprep.subr.bf16.mxu0 %v3885
    %4204 = vmatpush1.bf16.msra.mxu0 %v3884
    %4205 = vmatprep.subr.bf16.mxu0 %v3890
    %4206 = vmatpush1.bf16.msra.mxu0 %v3889
    %4207 = vmatprep.subr.bf16.mxu0 %v3895
    %4208 = vmatpush1.bf16.msra.mxu0 %v3894
    %4209 = vmatprep.subr.bf16.mxu0 %v3900
    %4210 = vmatpush1.bf16.msra.mxu0 %v3899
    %4211 = vmatprep.subr.bf16.mxu0 %v3905
    %4212 = vmatpush1.bf16.msra.mxu0 %v3904
    %4213 = vmatprep.subr.bf16.mxu0 %v3910
    %4214 = vmatpush1.bf16.msra.mxu0 %v3909
    %4215 = vmatprep.subr.bf16.mxu0 %v3915
    %4216 = vmatpush1.bf16.msra.mxu0 %v3914
    %4217 = vmatprep.subr.bf16.mxu0 %v3920
    %4218 = vmatpush1.bf16.msra.mxu0 %v3919
    %4219 = vmatprep.mubr.bf16.mxu0 %v3096
    %4220 = vmatmul.mubr.bf16.gmra.mrb[0].mxu0 %v3095
    %v4221 = vpop.f32.mrb[0].mxu0
    %v4222 = vadd.f32 %v3302, %v4221
    %v4223 = vpop.f32.mrb[0].mxu0
    %v4224 = vadd.f32 %v3306, %v4223
    %v4225 = vpop.f32.mrb[0].mxu0
    %v4226 = vadd.f32 %v3302, %v4225
    %v4227 = vpop.f32.mrb[0].mxu0
    %v4228 = vadd.f32 %v3306, %v4227
    %4229 = vdwg.mxu0
    %4230 = vmatprep.subr.bf16.mxu0 %v3925
    %4231 = vmatpush1.bf16.msra.mxu0 %v3924
    %4232 = vmatprep.subr.bf16.mxu0 %v3930
    %4233 = vmatpush1.bf16.msra.mxu0 %v3929
    %4234 = vmatprep.subr.bf16.mxu0 %v3935
    %4235 = vmatpush1.bf16.msra.mxu0 %v3934
    %4236 = vmatprep.subr.bf16.mxu0 %v3940
    %4237 = vmatpush1.bf16.msra.mxu0 %v3939
    %4238 = vmatprep.subr.bf16.mxu0 %v3945
    %4239 = vmatpush1.bf16.msra.mxu0 %v3944
    %4240 = vmatprep.subr.bf16.mxu0 %v3950
    %4241 = vmatpush1.bf16.msra.mxu0 %v3949
    %4242 = vmatprep.subr.bf16.mxu0 %v3955
    %4243 = vmatpush1.bf16.msra.mxu0 %v3954
    %4244 = vmatprep.subr.bf16.mxu0 %v3960
    %4245 = vmatpush1.bf16.msra.mxu0 %v3959
    %4246 = vmatprep.subr.bf16.mxu0 %v3965
    %4247 = vmatpush1.bf16.msra.mxu0 %v3964
    %4248 = vmatprep.subr.bf16.mxu0 %v3970
    %4249 = vmatpush1.bf16.msra.mxu0 %v3969
    %4250 = vmatprep.subr.bf16.mxu0 %v3975
    %4251 = vmatpush1.bf16.msra.mxu0 %v3974
    %4252 = vmatprep.subr.bf16.mxu0 %v3980
    %4253 = vmatpush1.bf16.msra.mxu0 %v3979
    %4254 = vmatprep.subr.bf16.mxu0 %v3985
    %4255 = vmatpush1.bf16.msra.mxu0 %v3984
    %4256 = vmatprep.subr.bf16.mxu0 %v3990
    %4257 = vmatpush1.bf16.msra.mxu0 %v3989
    %4258 = vmatprep.subr.bf16.mxu0 %v3995
    %4259 = vmatpush1.bf16.msra.mxu0 %v3994
    %4260 = vmatprep.subr.bf16.mxu0 %v4000
    %4261 = vmatpush1.bf16.msra.mxu0 %v3999
    %4262 = vmatprep.mubr.bf16.mxu0 %v3098
    %4263 = vmatmul.mubr.bf16.gmra.mrb[0].mxu0 %v3097
    %v4264 = vpop.f32.mrb[0].mxu0
    %v4265 = vadd.f32 %v4222, %v4264
    %v4266 = vpop.f32.mrb[0].mxu0
    %v4267 = vadd.f32 %v4224, %v4266
    %v4268 = vpop.f32.mrb[0].mxu0
    %v4269 = vadd.f32 %v4226, %v4268
    %v4270 = vpop.f32.mrb[0].mxu0
    %v4271 = vadd.f32 %v4228, %v4270
    %4272 = vdwg.mxu0
    %4273 = vmatprep.subr.bf16.mxu0 %v4176
    %4274 = vmatpush1.bf16.msra.mxu0 %v4173
    %4275 = vmatprep.subr.bf16.mxu0 0
    %4276 = vmatpush1.bf16.msra.mxu0 0
    %4277 = vmatprep.subr.bf16.mxu0 0
    %4278 = vmatpush1.bf16.msra.mxu0 0
    %4279 = vmatprep.subr.bf16.mxu0 0
    %4280 = vmatpush1.bf16.msra.mxu0 0
    %4281 = vmatprep.subr.bf16.mxu0 0
    %4282 = vmatpush1.bf16.msra.mxu0 0
    %4283 = vmatprep.subr.bf16.mxu0 0
    %4284 = vmatpush1.bf16.msra.mxu0 0
    %4285 = vmatprep.subr.bf16.mxu0 0
    %4286 = vmatpush1.bf16.msra.mxu0 0
    %4287 = vmatprep.subr.bf16.mxu0 0
    %4288 = vmatpush1.bf16.msra.mxu0 0
    %4289 = vmatprep.subr.bf16.mxu0 0
    %4290 = vmatpush1.bf16.msra.mxu0 0
    %4291 = vmatprep.subr.bf16.mxu0 0
    %4292 = vmatpush1.bf16.msra.mxu0 0
    %4293 = vmatprep.subr.bf16.mxu0 0
    %4294 = vmatpush1.bf16.msra.mxu0 0
    %4295 = vmatprep.subr.bf16.mxu0 0
    %4296 = vmatpush1.bf16.msra.mxu0 0
    %4297 = vmatprep.subr.bf16.mxu0 0
    %4298 = vmatpush1.bf16.msra.mxu0 0
    %4299 = vmatprep.subr.bf16.mxu0 0
    %4300 = vmatpush1.bf16.msra.mxu0 0
    %4301 = vmatprep.subr.bf16.mxu0 0
    %4302 = vmatpush1.bf16.msra.mxu0 0
    %4303 = vmatprep.subr.bf16.mxu0 0
    %4304 = vmatpush1.bf16.msra.mxu0 0
    %4305 = vmatprep.mubr.bf16.mxu0 0
    %4306 = vmatmul.mubr.bf16.gmra.mrb[0].mxu0 %v4170
    %v4307 = vpop.f32.mrb[0].mxu0
    %v4308 = vadd.f32 %v4265, %v4307
    %v4309 = vpop.f32.mrb[0].mxu0
    %v4310 = vadd.f32 %v4267, %v4309
    %v4311 = vpop.f32.mrb[0].mxu0
    %v4312 = vadd.f32 %v4269, %v4311
    %v4313 = vpop.f32.mrb[0].mxu0
    %v4314 = vadd.f32 %v4271, %v4313
    %4315 = vdwg.mxu0
    %4316 = vmatprep.subr.bf16.mxu0 %v3847
    %4317 = vmatpush1.bf16.msra.mxu0 %v3846
    %4318 = vmatprep.subr.bf16.mxu0 %v3852
    %4319 = vmatpush1.bf16.msra.mxu0 %v3851
    %4320 = vmatprep.subr.bf16.mxu0 %v3857
    %4321 = vmatpush1.bf16.msra.mxu0 %v3856
    %4322 = vmatprep.subr.bf16.mxu0 %v3862
    %4323 = vmatpush1.bf16.msra.mxu0 %v3861
    %4324 = vmatprep.subr.bf16.mxu0 %v3867
    %4325 = vmatpush1.bf16.msra.mxu0 %v3866
    %4326 = vmatprep.subr.bf16.mxu0 %v3872
    %4327 = vmatpush1.bf16.msra.mxu0 %v3871
    %4328 = vmatprep.subr.bf16.mxu0 %v3877
    %4329 = vmatpush1.bf16.msra.mxu0 %v3876
    %4330 = vmatprep.subr.bf16.mxu0 %v3882
    %4331 = vmatpush1.bf16.msra.mxu0 %v3881
    %4332 = vmatprep.subr.bf16.mxu0 %v3887
    %4333 = vmatpush1.bf16.msra.mxu0 %v3886
    %4334 = vmatprep.subr.bf16.mxu0 %v3892
    %4335 = vmatpush1.bf16.msra.mxu0 %v3891
    %4336 = vmatprep.subr.bf16.mxu0 %v3897
    %4337 = vmatpush1.bf16.msra.mxu0 %v3896
    %4338 = vmatprep.subr.bf16.mxu0 %v3902
    %4339 = vmatpush1.bf16.msra.mxu0 %v3901
    %4340 = vmatprep.subr.bf16.mxu0 %v3907
    %4341 = vmatpush1.bf16.msra.mxu0 %v3906
    %4342 = vmatprep.subr.bf16.mxu0 %v3912
    %4343 = vmatpush1.bf16.msra.mxu0 %v3911
    %4344 = vmatprep.subr.bf16.mxu0 %v3917
    %4345 = vmatpush1.bf16.msra.mxu0 %v3916
    %4346 = vmatprep.subr.bf16.mxu0 %v3922
    %4347 = vmatpush1.bf16.msra.mxu0 %v3921
    %4348 = vmatprep.mubr.bf16.mxu0 %v3096
    %4349 = vmatmul.mubr.bf16.gmra.mrb[0].mxu0 %v3095
    %v4350 = vpop.f32.mrb[0].mxu0
    %v4351 = vadd.f32 %v3310, %v4350
    %v4352 = vpop.f32.mrb[0].mxu0
    %v4353 = vadd.f32 %v3314, %v4352
    %v4354 = vpop.f32.mrb[0].mxu0
    %v4355 = vadd.f32 %v3310, %v4354
    %v4356 = vpop.f32.mrb[0].mxu0
    %v4357 = vadd.f32 %v3314, %v4356
    %4358 = vdwg.mxu0
    %4359 = vmatprep.subr.bf16.mxu0 %v3927
    %4360 = vmatpush1.bf16.msra.mxu0 %v3926
    %4361 = vmatprep.subr.bf16.mxu0 %v3932
    %4362 = vmatpush1.bf16.msra.mxu0 %v3931
    %4363 = vmatprep.subr.bf16.mxu0 %v3937
    %4364 = vmatpush1.bf16.msra.mxu0 %v3936
    %4365 = vmatprep.subr.bf16.mxu0 %v3942
    %4366 = vmatpush1.bf16.msra.mxu0 %v3941
    %4367 = vmatprep.subr.bf16.mxu0 %v3947
    %4368 = vmatpush1.bf16.msra.mxu0 %v3946
    %4369 = vmatprep.subr.bf16.mxu0 %v3952
    %4370 = vmatpush1.bf16.msra.mxu0 %v3951
    %4371 = vmatprep.subr.bf16.mxu0 %v3957
    %4372 = vmatpush1.bf16.msra.mxu0 %v3956
    %4373 = vmatprep.subr.bf16.mxu0 %v3962
    %4374 = vmatpush1.bf16.msra.mxu0 %v3961
    %4375 = vmatprep.subr.bf16.mxu0 %v3967
    %4376 = vmatpush1.bf16.msra.mxu0 %v3966
    %4377 = vmatprep.subr.bf16.mxu0 %v3972
    %4378 = vmatpush1.bf16.msra.mxu0 %v3971
    %4379 = vmatprep.subr.bf16.mxu0 %v3977
    %4380 = vmatpush1.bf16.msra.mxu0 %v3976
    %4381 = vmatprep.subr.bf16.mxu0 %v3982
    %4382 = vmatpush1.bf16.msra.mxu0 %v3981
    %4383 = vmatprep.subr.bf16.mxu0 %v3987
    %4384 = vmatpush1.bf16.msra.mxu0 %v3986
    %4385 = vmatprep.subr.bf16.mxu0 %v3992
    %4386 = vmatpush1.bf16.msra.mxu0 %v3991
    %4387 = vmatprep.subr.bf16.mxu0 %v3997
    %4388 = vmatpush1.bf16.msra.mxu0 %v3996
    %4389 = vmatprep.subr.bf16.mxu0 %v4002
    %4390 = vmatpush1.bf16.msra.mxu0 %v4001
    %4391 = vmatprep.mubr.bf16.mxu0 %v3098
    %4392 = vmatmul.mubr.bf16.gmra.mrb[0].mxu0 %v3097
    %v4393 = vpop.f32.mrb[0].mxu0
    %v4394 = vadd.f32 %v4351, %v4393
    %v4395 = vpop.f32.mrb[0].mxu0
    %v4396 = vadd.f32 %v4353, %v4395
    %v4397 = vpop.f32.mrb[0].mxu0
    %v4398 = vadd.f32 %v4355, %v4397
    %v4399 = vpop.f32.mrb[0].mxu0
    %v4400 = vadd.f32 %v4357, %v4399
    %4401 = vdwg.mxu0
    %4402 = vmatprep.subr.bf16.mxu0 %v4182
    %4403 = vmatpush1.bf16.msra.mxu0 %v4179
    %4404 = vmatprep.subr.bf16.mxu0 0
    %4405 = vmatpush1.bf16.msra.mxu0 0
    %4406 = vmatprep.subr.bf16.mxu0 0
    %4407 = vmatpush1.bf16.msra.mxu0 0
    %4408 = vmatprep.subr.bf16.mxu0 0
    %4409 = vmatpush1.bf16.msra.mxu0 0
    %4410 = vmatprep.subr.bf16.mxu0 0
    %4411 = vmatpush1.bf16.msra.mxu0 0
    %4412 = vmatprep.subr.bf16.mxu0 0
    %4413 = vmatpush1.bf16.msra.mxu0 0
    %4414 = vmatprep.subr.bf16.mxu0 0
    %4415 = vmatpush1.bf16.msra.mxu0 0
    %4416 = vmatprep.subr.bf16.mxu0 0
    %4417 = vmatpush1.bf16.msra.mxu0 0
    %4418 = vmatprep.subr.bf16.mxu0 0
    %4419 = vmatpush1.bf16.msra.mxu0 0
    %4420 = vmatprep.subr.bf16.mxu0 0
    %4421 = vmatpush1.bf16.msra.mxu0 0
    %4422 = vmatprep.subr.bf16.mxu0 0
    %4423 = vmatpush1.bf16.msra.mxu0 0
    %4424 = vmatprep.subr.bf16.mxu0 0
    %4425 = vmatpush1.bf16.msra.mxu0 0
    %4426 = vmatprep.subr.bf16.mxu0 0
    %4427 = vmatpush1.bf16.msra.mxu0 0
    %4428 = vmatprep.subr.bf16.mxu0 0
    %4429 = vmatpush1.bf16.msra.mxu0 0
    %4430 = vmatprep.subr.bf16.mxu0 0
    %4431 = vmatpush1.bf16.msra.mxu0 0
    %4432 = vmatprep.subr.bf16.mxu0 0
    %4433 = vmatpush1.bf16.msra.mxu0 0
    %4434 = vmatprep.mubr.bf16.mxu0 0
    %4435 = vmatmul.mubr.bf16.gmra.mrb[0].mxu0 %v4170
    %v4436 = vpop.f32.mrb[0].mxu0
    %v4437 = vadd.f32 %v4394, %v4436
    %v4438 = vpop.f32.mrb[0].mxu0
    %v4439 = vadd.f32 %v4396, %v4438
    %v4440 = vpop.f32.mrb[0].mxu0
    %v4441 = vadd.f32 %v4398, %v4440
    %v4442 = vpop.f32.mrb[0].mxu0
    %v4443 = vadd.f32 %v4400, %v4442
    %4444 = vdwg.mxu0
    %4445 = vmatprep.subr.bf16.mxu0 0
    %4446 = vmatpush1.bf16.msra.mxu0 %v3848
    %4447 = vmatprep.subr.bf16.mxu0 0
    %4448 = vmatpush1.bf16.msra.mxu0 %v3853
    %4449 = vmatprep.subr.bf16.mxu0 0
    %4450 = vmatpush1.bf16.msra.mxu0 %v3858
    %4451 = vmatprep.subr.bf16.mxu0 0
    %4452 = vmatpush1.bf16.msra.mxu0 %v3863
    %4453 = vmatprep.subr.bf16.mxu0 0
    %4454 = vmatpush1.bf16.msra.mxu0 %v3868
    %4455 = vmatprep.subr.bf16.mxu0 0
    %4456 = vmatpush1.bf16.msra.mxu0 %v3873
    %4457 = vmatprep.subr.bf16.mxu0 0
    %4458 = vmatpush1.bf16.msra.mxu0 %v3878
    %4459 = vmatprep.subr.bf16.mxu0 0
    %4460 = vmatpush1.bf16.msra.mxu0 %v3883
    %4461 = vmatprep.subr.bf16.mxu0 0
    %4462 = vmatpush1.bf16.msra.mxu0 %v3888
    %4463 = vmatprep.subr.bf16.mxu0 0
    %4464 = vmatpush1.bf16.msra.mxu0 %v3893
    %4465 = vmatprep.subr.bf16.mxu0 0
    %4466 = vmatpush1.bf16.msra.mxu0 %v3898
    %4467 = vmatprep.subr.bf16.mxu0 0
    %4468 = vmatpush1.bf16.msra.mxu0 %v3903
    %4469 = vmatprep.subr.bf16.mxu0 0
    %4470 = vmatpush1.bf16.msra.mxu0 %v3908
    %4471 = vmatprep.subr.bf16.mxu0 0
    %4472 = vmatpush1.bf16.msra.mxu0 %v3913
    %4473 = vmatprep.subr.bf16.mxu0 0
    %4474 = vmatpush1.bf16.msra.mxu0 %v3918
    %4475 = vmatprep.subr.bf16.mxu0 0
    %4476 = vmatpush1.bf16.msra.mxu0 %v3923
    %4477 = vmatprep.mubr.bf16.mxu0 %v3096
    %4478 = vmatmul.mubr.bf16.gmra.mrb[0].mxu0 %v3095
    %v4479 = vpop.f32.mrb[0].mxu0
    %v4480 = vadd.f32 %v3318, %v4479
    %v4481 = vpop.f32.mrb[0].mxu0
    %v4482 = vpop.f32.mrb[0].mxu0
    %v4483 = vadd.f32 %v3318, %v4482
    %v4484 = vpop.f32.mrb[0].mxu0
    %4485 = vdwg.mxu0
    %4486 = vmatprep.subr.bf16.mxu0 0
    %4487 = vmatpush1.bf16.msra.mxu0 %v3928
    %4488 = vmatprep.subr.bf16.mxu0 0
    %4489 = vmatpush1.bf16.msra.mxu0 %v3933
    %4490 = vmatprep.subr.bf16.mxu0 0
    %4491 = vmatpush1.bf16.msra.mxu0 %v3938
    %4492 = vmatprep.subr.bf16.mxu0 0
    %4493 = vmatpush1.bf16.msra.mxu0 %v3943
    %4494 = vmatprep.subr.bf16.mxu0 0
    %4495 = vmatpush1.bf16.msra.mxu0 %v3948
    %4496 = vmatprep.subr.bf16.mxu0 0
    %4497 = vmatpush1.bf16.msra.mxu0 %v3953
    %4498 = vmatprep.subr.bf16.mxu0 0
    %4499 = vmatpush1.bf16.msra.mxu0 %v3958
    %4500 = vmatprep.subr.bf16.mxu0 0
    %4501 = vmatpush1.bf16.msra.mxu0 %v3963
    %4502 = vmatprep.subr.bf16.mxu0 0
    %4503 = vmatpush1.bf16.msra.mxu0 %v3968
    %4504 = vmatprep.subr.bf16.mxu0 0
    %4505 = vmatpush1.bf16.msra.mxu0 %v3973
    %4506 = vmatprep.subr.bf16.mxu0 0
    %4507 = vmatpush1.bf16.msra.mxu0 %v3978
    %4508 = vmatprep.subr.bf16.mxu0 0
    %4509 = vmatpush1.bf16.msra.mxu0 %v3983
    %4510 = vmatprep.subr.bf16.mxu0 0
    %4511 = vmatpush1.bf16.msra.mxu0 %v3988
    %4512 = vmatprep.subr.bf16.mxu0 0
    %4513 = vmatpush1.bf16.msra.mxu0 %v3993
    %4514 = vmatprep.subr.bf16.mxu0 0
    %4515 = vmatpush1.bf16.msra.mxu0 %v3998
    %4516 = vmatprep.subr.bf16.mxu0 0
    %4517 = vmatpush1.bf16.msra.mxu0 %v4003
    %4518 = vmatprep.mubr.bf16.mxu0 %v3098
    %4519 = vmatmul.mubr.bf16.gmra.mrb[0].mxu0 %v3097
    %v4520 = vpop.f32.mrb[0].mxu0
    %v4521 = vadd.f32 %v4480, %v4520
    %v4522 = vpop.f32.mrb[0].mxu0
    %v4523 = vpop.f32.mrb[0].mxu0
    %v4524 = vadd.f32 %v4483, %v4523
    %v4525 = vpop.f32.mrb[0].mxu0
    %4526 = vdwg.mxu0
    %4527 = vmatprep.subr.bf16.mxu0 0
    %4528 = vmatpush1.bf16.msra.mxu0 %v4185
    %4529 = vmatprep.subr.bf16.mxu0 0
    %4530 = vmatpush1.bf16.msra.mxu0 0
    %4531 = vmatprep.subr.bf16.mxu0 0
    %4532 = vmatpush1.bf16.msra.mxu0 0
    %4533 = vmatprep.subr.bf16.mxu0 0
    %4534 = vmatpush1.bf16.msra.mxu0 0
    %4535 = vmatprep.subr.bf16.mxu0 0
    %4536 = vmatpush1.bf16.msra.mxu0 0
    %4537 = vmatprep.subr.bf16.mxu0 0
    %4538 = vmatpush1.bf16.msra.mxu0 0
    %4539 = vmatprep.subr.bf16.mxu0 0
    %4540 = vmatpush1.bf16.msra.mxu0 0
    %4541 = vmatprep.subr.bf16.mxu0 0
    %4542 = vmatpush1.bf16.msra.mxu0 0
    %4543 = vmatprep.subr.bf16.mxu0 0
    %4544 = vmatpush1.bf16.msra.mxu0 0
    %4545 = vmatprep.subr.bf16.mxu0 0
    %4546 = vmatpush1.bf16.msra.mxu0 0
    %4547 = vmatprep.subr.bf16.mxu0 0
    %4548 = vmatpush1.bf16.msra.mxu0 0
    %4549 = vmatprep.subr.bf16.mxu0 0
    %4550 = vmatpush1.bf16.msra.mxu0 0
    %4551 = vmatprep.subr.bf16.mxu0 0
    %4552 = vmatpush1.bf16.msra.mxu0 0
    %4553 = vmatprep.subr.bf16.mxu0 0
    %4554 = vmatpush1.bf16.msra.mxu0 0
    %4555 = vmatprep.subr.bf16.mxu0 0
    %4556 = vmatpush1.bf16.msra.mxu0 0
    %4557 = vmatprep.subr.bf16.mxu0 0
    %4558 = vmatpush1.bf16.msra.mxu0 0
    %4559 = vmatprep.mubr.bf16.mxu0 0
    %4560 = vmatmul.mubr.bf16.gmra.mrb[0].mxu0 %v4170
    %v4561 = vpop.f32.mrb[0].mxu0
    %v4562 = vadd.f32 %v4521, %v4561
    %v4563 = vpop.f32.mrb[0].mxu0
    %v4564 = vpop.f32.mrb[0].mxu0
    %v4565 = vadd.f32 %v4524, %v4564
    %v4566 = vpop.f32.mrb[0].mxu0
    %4567 = vdwg.mxu0
    %v4568 = vadd.f32 %v4308, %v4312
    %v4569 = vrot.slane %v4568, 4
    %v4570 = vadd.f32 %v4568, %v4569
    %v4571 = vrot.slane %v4570, 2
    %v4572 = vadd.f32 %v4570, %v4571
    %v4573 = vrot.slane %v4572, 1
    %v4574 = vadd.f32 %v4572, %v4573
    %v4575 = vadd.f32 %v4310, %v4314
    %v4576 = vrot.slane %v4575, 4
    %v4577 = vadd.f32 %v4575, %v4576
    %v4578 = vrot.slane %v4577, 2
    %v4579 = vadd.f32 %v4577, %v4578
    %v4580 = vrot.slane %v4579, 1
    %v4581 = vadd.f32 %v4579, %v4580
    %v4582 = vadd.f32 %v4437, %v4441
    %v4583 = vrot.slane %v4582, 4
    %v4584 = vadd.f32 %v4582, %v4583
    %v4585 = vrot.slane %v4584, 2
    %v4586 = vadd.f32 %v4584, %v4585
    %v4587 = vrot.slane %v4586, 1
    %v4588 = vadd.f32 %v4586, %v4587
    %v4589 = vadd.f32 %v4439, %v4443
    %v4590 = vrot.slane %v4589, 4
    %v4591 = vadd.f32 %v4589, %v4590
    %v4592 = vrot.slane %v4591, 2
    %v4593 = vadd.f32 %v4591, %v4592
    %v4594 = vrot.slane %v4593, 1
    %v4595 = vadd.f32 %v4593, %v4594
    %v4596 = vsel %vm149, %v4562, 0.0
    %v4597 = vsel %vm149, %v4565, 0.0
    %v4598 = vadd.f32 %v4596, %v4597
    %v4599 = vrot.slane %v4598, 4
    %v4600 = vadd.f32 %v4598, %v4599
    %v4601 = vrot.slane %v4600, 2
    %v4602 = vadd.f32 %v4600, %v4601
    %v4603 = vrot.slane %v4602, 1
    %v4604 = vadd.f32 %v4602, %v4603
    %v4605 = vmul.f32 %v4308, %v4308
    %v4606 = vmul.f32 %v4310, %v4310
    %v4607 = vmul.f32 %v4437, %v4437
    %v4608 = vmul.f32 %v4439, %v4439
    %v4609 = vmul.f32 %v4562, %v4562
    %v4610 = vmul.f32 %v4312, %v4312
    %v4611 = vmul.f32 %v4314, %v4314
    %v4612 = vmul.f32 %v4441, %v4441
    %v4613 = vmul.f32 %v4443, %v4443
    %v4614 = vmul.f32 %v4565, %v4565
    %v4615 = vadd.f32 %v4605, %v4610
    %v4616 = vrot.slane %v4615, 4
    %v4617 = vadd.f32 %v4615, %v4616
    %v4618 = vrot.slane %v4617, 2
    %v4619 = vadd.f32 %v4617, %v4618
    %v4620 = vrot.slane %v4619, 1
    %v4621 = vadd.f32 %v4619, %v4620
    %v4622 = vadd.f32 %v4606, %v4611
    %v4623 = vrot.slane %v4622, 4
    %v4624 = vadd.f32 %v4622, %v4623
    %v4625 = vrot.slane %v4624, 2
    %v4626 = vadd.f32 %v4624, %v4625
    %v4627 = vrot.slane %v4626, 1
    %v4628 = vadd.f32 %v4626, %v4627
    %v4629 = vadd.f32 %v4607, %v4612
    %v4630 = vrot.slane %v4629, 4
    %v4631 = vadd.f32 %v4629, %v4630
    %v4632 = vrot.slane %v4631, 2
    %v4633 = vadd.f32 %v4631, %v4632
    %v4634 = vrot.slane %v4633, 1
    %v4635 = vadd.f32 %v4633, %v4634
    %v4636 = vadd.f32 %v4608, %v4613
    %v4637 = vrot.slane %v4636, 4
    %v4638 = vadd.f32 %v4636, %v4637
    %v4639 = vrot.slane %v4638, 2
    %v4640 = vadd.f32 %v4638, %v4639
    %v4641 = vrot.slane %v4640, 1
    %v4642 = vadd.f32 %v4640, %v4641
    %v4643 = vsel %vm149, %v4609, 0.0
    %v4644 = vsel %vm149, %v4614, 0.0
    %v4645 = vadd.f32 %v4643, %v4644
    %v4646 = vrot.slane %v4645, 4
    %v4647 = vadd.f32 %v4645, %v4646
    %v4648 = vrot.slane %v4647, 2
    %v4649 = vadd.f32 %v4647, %v4648
    %v4650 = vrot.slane %v4649, 1
    %v4651 = vadd.f32 %v4649, %v4650
    %v4652 = vmul.f32 %v4574, 0.0625
    %v4653 = vmul.f32 %v4581, 0.0625
    %v4654 = vmul.f32 %v4588, 0.0625
    %v4655 = vmul.f32 %v4595, 0.0625
    %v4656 = vmul.f32 %v4604, 0.0625
    %v4657 = vmul.f32 %v4621, 0.0625
    %v4658 = vmul.f32 %v4628, 0.0625
    %v4659 = vmul.f32 %v4635, 0.0625
    %v4660 = vmul.f32 %v4642, 0.0625
    %v4661 = vmul.f32 %v4651, 0.0625
    %v4662 = vmul.f32 %v4652, %v4652
    %v4663 = vmul.f32 %v4653, %v4653
    %v4664 = vmul.f32 %v4654, %v4654
    %v4665 = vmul.f32 %v4655, %v4655
    %v4666 = vmul.f32 %v4656, %v4656
    %v4667 = vsub.f32 %v4657, %v4662
    %v4668 = vsub.f32 %v4658, %v4663
    %v4669 = vsub.f32 %v4659, %v4664
    %v4670 = vsub.f32 %v4660, %v4665
    %v4671 = vsub.f32 %v4661, %v4666
    %v4672 = vadd.f32 %v4667, 1e-05
    %v4673 = vadd.f32 %v4668, 1e-05
    %v4674 = vadd.f32 %v4669, 1e-05
    %v4675 = vadd.f32 %v4670, 1e-05
    %v4676 = vadd.f32 %v4671, 1e-05
    %v4677 = vrsqrt.pop %v4672
    %v4678 = vrsqrt.pop %v4673
    %v4679 = vrsqrt.pop %v4674
    %v4680 = vrsqrt.pop %v4675
    %v4681 = vrsqrt.pop %v4676
    %s4682 = scalar_lea.vmem [#allocation9], 5
    %v4683 = vld [vmem:[%s4682] sm:$0x1f]
    %v4685 = vlaneseq
    %v4686 = vshrl.u32 %v4685, 7
    %v4687 = vsub.s32 0, %v4686
    %v4688 = vrot.slane %v4683, %v4687
    %v4689 = vlaneseq
    %v4690 = vshrl.u32 %v4689, 7
    %v4691 = vsub.s32 1, %v4690
    %v4692 = vrot.slane %v4683, %v4691
    %v4693 = vlaneseq
    %v4694 = vshrl.u32 %v4693, 7
    %v4695 = vsub.s32 2, %v4694
    %v4696 = vrot.slane %v4683, %v4695
    %v4697 = vlaneseq
    %v4698 = vshrl.u32 %v4697, 7
    %v4699 = vsub.s32 3, %v4698
    %v4700 = vrot.slane %v4683, %v4699
    %v4701 = vlaneseq
    %v4702 = vshrl.u32 %v4701, 7
    %v4703 = vsub.s32 4, %v4702
    %v4704 = vrot.slane %v4683, %v4703
    %v4710 = vmul.f32 %v4677, %v4688
    %v4711 = vmul.f32 %v4678, %v4692
    %v4712 = vmul.f32 %v4679, %v4696
    %v4713 = vmul.f32 %v4680, %v4700
    %v4714 = vmul.f32 %v4681, %v4704
    %s4715 = scalar_lea.vmem [#allocation11], 5
    %v4716 = vld [vmem:[%s4715] sm:$0x1f]
    %v4717 = vmul.f32 %v4652, %v4710
    %v4718 = vmul.f32 %v4653, %v4711
    %v4719 = vmul.f32 %v4654, %v4712
    %v4720 = vmul.f32 %v4655, %v4713
    %v4721 = vmul.f32 %v4656, %v4714
    %v4727 = vcombine.low %v4717, %v4718
    %v4728 = vcombine.low %v4719, %v4720
    %v4730 = vunpack.c.l.s4 1966171168
    %v4731 = vunpack.c.0.s8 %v4730
    %v4732 = vlaneseq
    %v4733 = vshrl.u32 %v4732, 7
    %v4734 = vsub.s32 %v4731, %v4733
    %v4735 = vrot.slane %v4727, %v4734
    %v4737 = vunpack.c.l.s4 1966171168
    %v4738 = vunpack.c.0.s8 %v4737
    %v4739 = vlaneseq
    %v4740 = vshrl.u32 %v4739, 7
    %v4741 = vsub.s32 %v4738, %v4740
    %v4742 = vrot.slane %v4728, %v4741
    %v4744 = vunpack.c.l.s4 1966171168
    %v4745 = vunpack.c.0.s8 %v4744
    %v4746 = vlaneseq
    %v4747 = vshrl.u32 %v4746, 7
    %v4748 = vsub.s32 %v4745, %v4747
    %v4749 = vrot.slane %v4721, %v4748
    %v4750 = vcombine.low %v4735, %v4742
    %v4752 = vunpack.c.l.s4 1966171168
    %v4753 = vunpack.c.0.s8 %v4752
    %v4754 = vlaneseq
    %v4755 = vshrl.u32 %v4754, 7
    %v4756 = vsub.s32 %v4753, %v4755
    %v4757 = vrot.slane %v4750, %v4756
    %v4759 = vunpack.c.l.s4 1966171168
    %v4760 = vunpack.c.0.s8 %v4759
    %v4761 = vlaneseq
    %v4762 = vshrl.u32 %v4761, 7
    %v4763 = vsub.s32 %v4760, %v4762
    %v4764 = vrot.slane %v4749, %v4763
    %v4765 = vcombine.low %v4757, %v4764
    %v4767 = vsub.f32 %v4716, %v4765
    %v4768 = vlaneseq
    %v4769 = vshrl.u32 %v4768, 7
    %v4770 = vsub.s32 0, %v4769
    %v4771 = vrot.slane %v4710, %v4770
    %v4772 = vlaneseq
    %v4773 = vshrl.u32 %v4772, 7
    %v4774 = vsub.s32 0, %v4773
    %v4775 = vrot.slane %v4711, %v4774
    %v4776 = vlaneseq
    %v4777 = vshrl.u32 %v4776, 7
    %v4778 = vsub.s32 0, %v4777
    %v4779 = vrot.slane %v4712, %v4778
    %v4780 = vlaneseq
    %v4781 = vshrl.u32 %v4780, 7
    %v4782 = vsub.s32 0, %v4781
    %v4783 = vrot.slane %v4713, %v4782
    %v4784 = vlaneseq
    %v4785 = vshrl.u32 %v4784, 7
    %v4786 = vsub.s32 0, %v4785
    %v4787 = vrot.slane %v4714, %v4786
    %v4788 = vmul.f32 %v4308, %v4771
    %v4789 = vmul.f32 %v4310, %v4775
    %v4790 = vmul.f32 %v4437, %v4779
    %v4791 = vmul.f32 %v4439, %v4783
    %v4792 = vmul.f32 %v4562, %v4787
    %v4793 = vmul.f32 %v4312, %v4771
    %v4794 = vmul.f32 %v4314, %v4775
    %v4795 = vmul.f32 %v4441, %v4779
    %v4796 = vmul.f32 %v4443, %v4783
    %v4797 = vmul.f32 %v4565, %v4787
    %v4799 = vlaneseq
    %v4800 = vshrl.u32 %v4799, 7
    %v4801 = vsub.s32 0, %v4800
    %v4802 = vrot.slane %v4767, %v4801
    %v4803 = vlaneseq
    %v4804 = vshrl.u32 %v4803, 7
    %v4805 = vsub.s32 1, %v4804
    %v4806 = vrot.slane %v4767, %v4805
    %v4807 = vlaneseq
    %v4808 = vshrl.u32 %v4807, 7
    %v4809 = vsub.s32 2, %v4808
    %v4810 = vrot.slane %v4767, %v4809
    %v4811 = vlaneseq
    %v4812 = vshrl.u32 %v4811, 7
    %v4813 = vsub.s32 3, %v4812
    %v4814 = vrot.slane %v4767, %v4813
    %v4815 = vlaneseq
    %v4816 = vshrl.u32 %v4815, 7
    %v4817 = vsub.s32 4, %v4816
    %v4818 = vrot.slane %v4767, %v4817
    %v4824 = vadd.f32 %v4788, %v4802
    %v4825 = vadd.f32 %v4789, %v4806
    %v4826 = vadd.f32 %v4790, %v4810
    %v4827 = vadd.f32 %v4791, %v4814
    %v4828 = vadd.f32 %v4792, %v4818
    %v4829 = vadd.f32 %v4793, %v4802
    %v4830 = vadd.f32 %v4794, %v4806
    %v4831 = vadd.f32 %v4795, %v4810
    %v4832 = vadd.f32 %v4796, %v4814
    %v4833 = vadd.f32 %v4797, %v4818
    %v4834 = vmax.f32 %v4824, 0.0
    %v4835 = vmax.f32 %v4825, 0.0
    %v4836 = vmax.f32 %v4826, 0.0
    %v4837 = vmax.f32 %v4827, 0.0
    %v4838 = vmax.f32 %v4828, 0.0
    %v4839 = vmax.f32 %v4829, 0.0
    %v4840 = vmax.f32 %v4830, 0.0
    %v4841 = vmax.f32 %v4831, 0.0
    %v4842 = vmax.f32 %v4832, 0.0
    %v4843 = vmax.f32 %v4833, 0.0
    %v4854 = vrot.slane %v4834, 6
    %v4855 = vrot.slane %v4835, 6
    %v4856 = vrot.slane %v4836, 6
    %v4857 = vrot.slane %v4837, 6
    %v4858 = vrot.slane %v4838, 6
    %v4859 = vrot.slane %v4839, 6
    %v4860 = vrot.slane %v4840, 6
    %v4861 = vrot.slane %v4841, 6
    %v4862 = vrot.slane %v4842, 6
    %v4863 = vrot.slane %v4843, 6
    %4874 = vst [vmem:[#allocation2] sm:$0xfc] %v4854
    %4875 = vst [vmem:[#allocation2 + $0x8] sm:$0xfc] %v4855
    %4876 = vst [vmem:[#allocation2 + $0x10] sm:$0xfc] %v4856
    %4877 = vst [vmem:[#allocation2 + $0x18] sm:$0xfc] %v4857
    %4878 = vst.msk [vmem:[#allocation2 + $0x20] sm:$0xfc] %vm211, %v4858
    %4879 = vst [vmem:[#allocation2 + $0x28] sm:$0x3] %v4854
    %4880 = vst [vmem:[#allocation2 + $0x30] sm:$0x3] %v4855
    %4881 = vst [vmem:[#allocation2 + $0x38] sm:$0x3] %v4856
    %4882 = vst [vmem:[#allocation2 + $0x40] sm:$0x3] %v4857
    %4883 = vst.msk [vmem:[#allocation2 + $0x48] sm:$0x3] %vm217, %v4858
    %4884 = vst [vmem:[#allocation2 + $0x50] sm:$0xfc] %v4859
    %4885 = vst [vmem:[#allocation2 + $0x58] sm:$0xfc] %v4860
    %4886 = vst [vmem:[#allocation2 + $0x60] sm:$0xfc] %v4861
    %4887 = vst [vmem:[#allocation2 + $0x68] sm:$0xfc] %v4862
    %4888 = vst.msk [vmem:[#allocation2 + $0x70] sm:$0xfc] %vm211, %v4863
    %4889 = vst [vmem:[#allocation2 + $0x78] sm:$0x3] %v4859
    %4890 = vst [vmem:[#allocation2 + $0x80] sm:$0x3] %v4860
    %4891 = vst [vmem:[#allocation2 + $0x88] sm:$0x3] %v4861
    %4892 = vst [vmem:[#allocation2 + $0x90] sm:$0x3] %v4862
    %4893 = vst.msk [vmem:[#allocation2 + $0x98] sm:$0x3] %vm217, %v4863
    %v4894 = vld [vmem:[#allocation2] sm:$0xff]
    %v4895 = vld [vmem:[#allocation2 + $0x8] sm:$0xff]
    %v4896 = vld [vmem:[#allocation2 + $0x10] sm:$0xff]
    %v4897 = vld [vmem:[#allocation2 + $0x18] sm:$0xff]
    %v4898 = vld [vmem:[#allocation2 + $0x20] sm:$0xff]
    %v4899 = vld [vmem:[#allocation2 + $0x28] sm:$0xf]
    %v4900 = vld [vmem:[#allocation2 + $0x30] sm:$0xf]
    %v4901 = vld [vmem:[#allocation2 + $0x38] sm:$0xf]
    %v4902 = vld [vmem:[#allocation2 + $0x40] sm:$0xf]
    %v4903 = vld [vmem:[#allocation2 + $0x48] sm:$0xf]
    %v4904 = vld [vmem:[#allocation2 + $0x50] sm:$0xff]
    %v4905 = vld [vmem:[#allocation2 + $0x58] sm:$0xff]
    %v4906 = vld [vmem:[#allocation2 + $0x60] sm:$0xff]
    %v4907 = vld [vmem:[#allocation2 + $0x68] sm:$0xff]
    %v4908 = vld [vmem:[#allocation2 + $0x70] sm:$0xff]
    %v4909 = vld [vmem:[#allocation2 + $0x78] sm:$0xf]
    %v4910 = vld [vmem:[#allocation2 + $0x80] sm:$0xf]
    %v4911 = vld [vmem:[#allocation2 + $0x88] sm:$0xf]
    %v4912 = vld [vmem:[#allocation2 + $0x90] sm:$0xf]
    %v4913 = vld [vmem:[#allocation2 + $0x98] sm:$0xf]
    %s4914 = scalar_lea.vmem %s1, 80
    %v4915 = vld [vmem:[%s4914] sm:$0x1f]
    %v4916 = vld [vmem:[%s4914 + $0x8] sm:$0x1f]
    %v4917 = vld [vmem:[%s4914 + $0x10] sm:$0x1f]
    %v4918 = vld [vmem:[%s4914 + $0x18] sm:$0x1f]
    %v4919 = vld [vmem:[%s4914 + $0x20] sm:$0x1f]
    %v4920 = vlaneseq
    %v4921 = vshrl.u32 %v4920, 7
    %v4922 = vsub.s32 0, %v4921
    %v4923 = vrot.slane %v4915, %v4922
    %v4924 = vlaneseq
    %v4925 = vshrl.u32 %v4924, 7
    %v4926 = vsub.s32 0, %v4925
    %v4927 = vrot.slane %v4916, %v4926
    %v4928 = vlaneseq
    %v4929 = vshrl.u32 %v4928, 7
    %v4930 = vsub.s32 0, %v4929
    %v4931 = vrot.slane %v4917, %v4930
    %v4932 = vlaneseq
    %v4933 = vshrl.u32 %v4932, 7
    %v4934 = vsub.s32 0, %v4933
    %v4935 = vrot.slane %v4918, %v4934
    %v4936 = vlaneseq
    %v4937 = vshrl.u32 %v4936, 7
    %v4938 = vsub.s32 0, %v4937
    %v4939 = vrot.slane %v4919, %v4938
    %v4940 = vmul.f32 %v4894, %v4923
    %v4941 = vmul.f32 %v4895, %v4927
    %v4942 = vmul.f32 %v4896, %v4931
    %v4943 = vmul.f32 %v4897, %v4935
    %v4944 = vmul.f32 %v4898, %v4939
    %v4945 = vmul.f32 %v4904, %v4923
    %v4946 = vmul.f32 %v4905, %v4927
    %v4947 = vmul.f32 %v4906, %v4931
    %v4948 = vmul.f32 %v4907, %v4935
    %v4949 = vmul.f32 %v4908, %v4939
    %v4950 = vlaneseq
    %v4951 = vshrl.u32 %v4950, 7
    %v4952 = vsub.s32 1, %v4951
    %v4953 = vrot.slane %v4915, %v4952
    %v4954 = vlaneseq
    %v4955 = vshrl.u32 %v4954, 7
    %v4956 = vsub.s32 1, %v4955
    %v4957 = vrot.slane %v4916, %v4956
    %v4958 = vlaneseq
    %v4959 = vshrl.u32 %v4958, 7
    %v4960 = vsub.s32 1, %v4959
    %v4961 = vrot.slane %v4917, %v4960
    %v4962 = vlaneseq
    %v4963 = vshrl.u32 %v4962, 7
    %v4964 = vsub.s32 1, %v4963
    %v4965 = vrot.slane %v4918, %v4964
    %v4966 = vlaneseq
    %v4967 = vshrl.u32 %v4966, 7
    %v4968 = vsub.s32 1, %v4967
    %v4969 = vrot.slane %v4919, %v4968
    %v4970 = vmul.f32 %v4894, %v4953
    %v4971 = vmul.f32 %v4895, %v4957
    %v4972 = vmul.f32 %v4896, %v4961
    %v4973 = vmul.f32 %v4897, %v4965
    %v4974 = vmul.f32 %v4898, %v4969
    %v4975 = vmul.f32 %v4899, %v4953
    %v4976 = vmul.f32 %v4900, %v4957
    %v4977 = vmul.f32 %v4901, %v4961
    %v4978 = vmul.f32 %v4902, %v4965
    %v4979 = vmul.f32 %v4903, %v4969
    %v4980 = vmul.f32 %v4904, %v4953
    %v4981 = vmul.f32 %v4905, %v4957
    %v4982 = vmul.f32 %v4906, %v4961
    %v4983 = vmul.f32 %v4907, %v4965
    %v4984 = vmul.f32 %v4908, %v4969
    %v4985 = vmul.f32 %v4909, %v4953
    %v4986 = vmul.f32 %v4910, %v4957
    %v4987 = vmul.f32 %v4911, %v4961
    %v4988 = vmul.f32 %v4912, %v4965
    %v4989 = vmul.f32 %v4913, %v4969
    %v5010 = vrot.slane %v4970, 1
    %v5011 = vrot.slane %v4975, 1
    %v5012 = vsel %vm344, %v5010, %v5011
    %v5013 = vrot.slane %v4971, 1
    %v5014 = vrot.slane %v4976, 1
    %v5015 = vsel %vm344, %v5013, %v5014
    %v5016 = vrot.slane %v4972, 1
    %v5017 = vrot.slane %v4977, 1
    %v5018 = vsel %vm344, %v5016, %v5017
    %v5019 = vrot.slane %v4973, 1
    %v5020 = vrot.slane %v4978, 1
    %v5021 = vsel %vm344, %v5019, %v5020
    %v5022 = vrot.slane %v4974, 1
    %v5023 = vrot.slane %v4979, 1
    %v5024 = vsel %vm344, %v5022, %v5023
    %v5025 = vrot.slane %v4980, 1
    %v5026 = vrot.slane %v4985, 1
    %v5027 = vsel %vm344, %v5025, %v5026
    %v5028 = vrot.slane %v4981, 1
    %v5029 = vrot.slane %v4986, 1
    %v5030 = vsel %vm344, %v5028, %v5029
    %v5031 = vrot.slane %v4982, 1
    %v5032 = vrot.slane %v4987, 1
    %v5033 = vsel %vm344, %v5031, %v5032
    %v5034 = vrot.slane %v4983, 1
    %v5035 = vrot.slane %v4988, 1
    %v5036 = vsel %vm344, %v5034, %v5035
    %v5037 = vrot.slane %v4984, 1
    %v5038 = vrot.slane %v4989, 1
    %v5039 = vsel %vm344, %v5037, %v5038
    %v5050 = vadd.f32 %v4940, %v5012
    %v5051 = vadd.f32 %v4941, %v5015
    %v5052 = vadd.f32 %v4942, %v5018
    %v5053 = vadd.f32 %v4943, %v5021
    %v5054 = vadd.f32 %v4944, %v5024
    %v5055 = vadd.f32 %v4945, %v5027
    %v5056 = vadd.f32 %v4946, %v5030
    %v5057 = vadd.f32 %v4947, %v5033
    %v5058 = vadd.f32 %v4948, %v5036
    %v5059 = vadd.f32 %v4949, %v5039
    %v5060 = vlaneseq
    %v5061 = vshrl.u32 %v5060, 7
    %v5062 = vsub.s32 2, %v5061
    %v5063 = vrot.slane %v4915, %v5062
    %v5064 = vlaneseq
    %v5065 = vshrl.u32 %v5064, 7
    %v5066 = vsub.s32 2, %v5065
    %v5067 = vrot.slane %v4916, %v5066
    %v5068 = vlaneseq
    %v5069 = vshrl.u32 %v5068, 7
    %v5070 = vsub.s32 2, %v5069
    %v5071 = vrot.slane %v4917, %v5070
    %v5072 = vlaneseq
    %v5073 = vshrl.u32 %v5072, 7
    %v5074 = vsub.s32 2, %v5073
    %v5075 = vrot.slane %v4918, %v5074
    %v5076 = vlaneseq
    %v5077 = vshrl.u32 %v5076, 7
    %v5078 = vsub.s32 2, %v5077
    %v5079 = vrot.slane %v4919, %v5078
    %v5080 = vmul.f32 %v4894, %v5063
    %v5081 = vmul.f32 %v4895, %v5067
    %v5082 = vmul.f32 %v4896, %v5071
    %v5083 = vmul.f32 %v4897, %v5075
    %v5084 = vmul.f32 %v4898, %v5079
    %v5085 = vmul.f32 %v4899, %v5063
    %v5086 = vmul.f32 %v4900, %v5067
    %v5087 = vmul.f32 %v4901, %v5071
    %v5088 = vmul.f32 %v4902, %v5075
    %v5089 = vmul.f32 %v4903, %v5079
    %v5090 = vmul.f32 %v4904, %v5063
    %v5091 = vmul.f32 %v4905, %v5067
    %v5092 = vmul.f32 %v4906, %v5071
    %v5093 = vmul.f32 %v4907, %v5075
    %v5094 = vmul.f32 %v4908, %v5079
    %v5095 = vmul.f32 %v4909, %v5063
    %v5096 = vmul.f32 %v4910, %v5067
    %v5097 = vmul.f32 %v4911, %v5071
    %v5098 = vmul.f32 %v4912, %v5075
    %v5099 = vmul.f32 %v4913, %v5079
    %v5120 = vrot.slane %v5080, 2
    %v5121 = vrot.slane %v5085, 2
    %v5122 = vsel %vm455, %v5120, %v5121
    %v5123 = vrot.slane %v5081, 2
    %v5124 = vrot.slane %v5086, 2
    %v5125 = vsel %vm455, %v5123, %v5124
    %v5126 = vrot.slane %v5082, 2
    %v5127 = vrot.slane %v5087, 2
    %v5128 = vsel %vm455, %v5126, %v5127
    %v5129 = vrot.slane %v5083, 2
    %v5130 = vrot.slane %v5088, 2
    %v5131 = vsel %vm455, %v5129, %v5130
    %v5132 = vrot.slane %v5084, 2
    %v5133 = vrot.slane %v5089, 2
    %v5134 = vsel %vm455, %v5132, %v5133
    %v5135 = vrot.slane %v5090, 2
    %v5136 = vrot.slane %v5095, 2
    %v5137 = vsel %vm455, %v5135, %v5136
    %v5138 = vrot.slane %v5091, 2
    %v5139 = vrot.slane %v5096, 2
    %v5140 = vsel %vm455, %v5138, %v5139
    %v5141 = vrot.slane %v5092, 2
    %v5142 = vrot.slane %v5097, 2
    %v5143 = vsel %vm455, %v5141, %v5142
    %v5144 = vrot.slane %v5093, 2
    %v5145 = vrot.slane %v5098, 2
    %v5146 = vsel %vm455, %v5144, %v5145
    %v5147 = vrot.slane %v5094, 2
    %v5148 = vrot.slane %v5099, 2
    %v5149 = vsel %vm455, %v5147, %v5148
    %v5160 = vadd.f32 %v5050, %v5122
    %v5161 = vadd.f32 %v5051, %v5125
    %v5162 = vadd.f32 %v5052, %v5128
    %v5163 = vadd.f32 %v5053, %v5131
    %v5164 = vadd.f32 %v5054, %v5134
    %v5165 = vadd.f32 %v5055, %v5137
    %v5166 = vadd.f32 %v5056, %v5140
    %v5167 = vadd.f32 %v5057, %v5143
    %v5168 = vadd.f32 %v5058, %v5146
    %v5169 = vadd.f32 %v5059, %v5149
    %v5170 = vlaneseq
    %v5171 = vshrl.u32 %v5170, 7
    %v5172 = vsub.s32 3, %v5171
    %v5173 = vrot.slane %v4915, %v5172
    %v5174 = vlaneseq
    %v5175 = vshrl.u32 %v5174, 7
    %v5176 = vsub.s32 3, %v5175
    %v5177 = vrot.slane %v4916, %v5176
    %v5178 = vlaneseq
    %v5179 = vshrl.u32 %v5178, 7
    %v5180 = vsub.s32 3, %v5179
    %v5181 = vrot.slane %v4917, %v5180
    %v5182 = vlaneseq
    %v5183 = vshrl.u32 %v5182, 7
    %v5184 = vsub.s32 3, %v5183
    %v5185 = vrot.slane %v4918, %v5184
    %v5186 = vlaneseq
    %v5187 = vshrl.u32 %v5186, 7
    %v5188 = vsub.s32 3, %v5187
    %v5189 = vrot.slane %v4919, %v5188
    %v5190 = vmul.f32 %v4894, %v5173
    %v5191 = vmul.f32 %v4895, %v5177
    %v5192 = vmul.f32 %v4896, %v5181
    %v5193 = vmul.f32 %v4897, %v5185
    %v5194 = vmul.f32 %v4898, %v5189
    %v5195 = vmul.f32 %v4899, %v5173
    %v5196 = vmul.f32 %v4900, %v5177
    %v5197 = vmul.f32 %v4901, %v5181
    %v5198 = vmul.f32 %v4902, %v5185
    %v5199 = vmul.f32 %v4903, %v5189
    %v5200 = vmul.f32 %v4904, %v5173
    %v5201 = vmul.f32 %v4905, %v5177
    %v5202 = vmul.f32 %v4906, %v5181
    %v5203 = vmul.f32 %v4907, %v5185
    %v5204 = vmul.f32 %v4908, %v5189
    %v5205 = vmul.f32 %v4909, %v5173
    %v5206 = vmul.f32 %v4910, %v5177
    %v5207 = vmul.f32 %v4911, %v5181
    %v5208 = vmul.f32 %v4912, %v5185
    %v5209 = vmul.f32 %v4913, %v5189
    %v5230 = vrot.slane %v5190, 3
    %v5231 = vrot.slane %v5195, 3
    %v5232 = vsel %vm566, %v5230, %v5231
    %v5233 = vrot.slane %v5191, 3
    %v5234 = vrot.slane %v5196, 3
    %v5235 = vsel %vm566, %v5233, %v5234
    %v5236 = vrot.slane %v5192, 3
    %v5237 = vrot.slane %v5197, 3
    %v5238 = vsel %vm566, %v5236, %v5237
    %v5239 = vrot.slane %v5193, 3
    %v5240 = vrot.slane %v5198, 3
    %v5241 = vsel %vm566, %v5239, %v5240
    %v5242 = vrot.slane %v5194, 3
    %v5243 = vrot.slane %v5199, 3
    %v5244 = vsel %vm566, %v5242, %v5243
    %v5245 = vrot.slane %v5200, 3
    %v5246 = vrot.slane %v5205, 3
    %v5247 = vsel %vm566, %v5245, %v5246
    %v5248 = vrot.slane %v5201, 3
    %v5249 = vrot.slane %v5206, 3
    %v5250 = vsel %vm566, %v5248, %v5249
    %v5251 = vrot.slane %v5202, 3
    %v5252 = vrot.slane %v5207, 3
    %v5253 = vsel %vm566, %v5251, %v5252
    %v5254 = vrot.slane %v5203, 3
    %v5255 = vrot.slane %v5208, 3
    %v5256 = vsel %vm566, %v5254, %v5255
    %v5257 = vrot.slane %v5204, 3
    %v5258 = vrot.slane %v5209, 3
    %v5259 = vsel %vm566, %v5257, %v5258
    %v5270 = vadd.f32 %v5160, %v5232
    %v5271 = vadd.f32 %v5161, %v5235
    %v5272 = vadd.f32 %v5162, %v5238
    %v5273 = vadd.f32 %v5163, %v5241
    %v5274 = vadd.f32 %v5164, %v5244
    %v5275 = vadd.f32 %v5165, %v5247
    %v5276 = vadd.f32 %v5166, %v5250
    %v5277 = vadd.f32 %v5167, %v5253
    %v5278 = vadd.f32 %v5168, %v5256
    %v5279 = vadd.f32 %v5169, %v5259
    %v5280 = vlaneseq
    %v5281 = vshrl.u32 %v5280, 7
    %v5282 = vsub.s32 4, %v5281
    %v5283 = vrot.slane %v4915, %v5282
    %v5284 = vlaneseq
    %v5285 = vshrl.u32 %v5284, 7
    %v5286 = vsub.s32 4, %v5285
    %v5287 = vrot.slane %v4916, %v5286
    %v5288 = vlaneseq
    %v5289 = vshrl.u32 %v5288, 7
    %v5290 = vsub.s32 4, %v5289
    %v5291 = vrot.slane %v4917, %v5290
    %v5292 = vlaneseq
    %v5293 = vshrl.u32 %v5292, 7
    %v5294 = vsub.s32 4, %v5293
    %v5295 = vrot.slane %v4918, %v5294
    %v5296 = vlaneseq
    %v5297 = vshrl.u32 %v5296, 7
    %v5298 = vsub.s32 4, %v5297
    %v5299 = vrot.slane %v4919, %v5298
    %v5300 = vmul.f32 %v4894, %v5283
    %v5301 = vmul.f32 %v4895, %v5287
    %v5302 = vmul.f32 %v4896, %v5291
    %v5303 = vmul.f32 %v4897, %v5295
    %v5304 = vmul.f32 %v4898, %v5299
    %v5305 = vmul.f32 %v4899, %v5283
    %v5306 = vmul.f32 %v4900, %v5287
    %v5307 = vmul.f32 %v4901, %v5291
    %v5308 = vmul.f32 %v4902, %v5295
    %v5309 = vmul.f32 %v4903, %v5299
    %v5310 = vmul.f32 %v4904, %v5283
    %v5311 = vmul.f32 %v4905, %v5287
    %v5312 = vmul.f32 %v4906, %v5291
    %v5313 = vmul.f32 %v4907, %v5295
    %v5314 = vmul.f32 %v4908, %v5299
    %v5315 = vmul.f32 %v4909, %v5283
    %v5316 = vmul.f32 %v4910, %v5287
    %v5317 = vmul.f32 %v4911, %v5291
    %v5318 = vmul.f32 %v4912, %v5295
    %v5319 = vmul.f32 %v4913, %v5299
    %v5340 = vrot.slane %v5300, 4
    %v5341 = vrot.slane %v5305, 4
    %v5342 = vsel %vm677, %v5340, %v5341
    %v5343 = vrot.slane %v5301, 4
    %v5344 = vrot.slane %v5306, 4
    %v5345 = vsel %vm677, %v5343, %v5344
    %v5346 = vrot.slane %v5302, 4
    %v5347 = vrot.slane %v5307, 4
    %v5348 = vsel %vm677, %v5346, %v5347
    %v5349 = vrot.slane %v5303, 4
    %v5350 = vrot.slane %v5308, 4
    %v5351 = vsel %vm677, %v5349, %v5350
    %v5352 = vrot.slane %v5304, 4
    %v5353 = vrot.slane %v5309, 4
    %v5354 = vsel %vm677, %v5352, %v5353
    %v5355 = vrot.slane %v5310, 4
    %v5356 = vrot.slane %v5315, 4
    %v5357 = vsel %vm677, %v5355, %v5356
    %v5358 = vrot.slane %v5311, 4
    %v5359 = vrot.slane %v5316, 4
    %v5360 = vsel %vm677, %v5358, %v5359
    %v5361 = vrot.slane %v5312, 4
    %v5362 = vrot.slane %v5317, 4
    %v5363 = vsel %vm677, %v5361, %v5362
    %v5364 = vrot.slane %v5313, 4
    %v5365 = vrot.slane %v5318, 4
    %v5366 = vsel %vm677, %v5364, %v5365
    %v5367 = vrot.slane %v5314, 4
    %v5368 = vrot.slane %v5319, 4
    %v5369 = vsel %vm677, %v5367, %v5368
    %v5380 = vadd.f32 %v5270, %v5342
    %v5381 = vadd.f32 %v5271, %v5345
    %v5382 = vadd.f32 %v5272, %v5348
    %v5383 = vadd.f32 %v5273, %v5351
    %v5384 = vadd.f32 %v5274, %v5354
    %v5385 = vadd.f32 %v5275, %v5357
    %v5386 = vadd.f32 %v5276, %v5360
    %v5387 = vadd.f32 %v5277, %v5363
    %v5388 = vadd.f32 %v5278, %v5366
    %v5389 = vadd.f32 %v5279, %v5369
    %s5390 = scalar_lea.vmem [#allocation3], 10
    %v5391 = vld [vmem:[%s5390] sm:$0x1f]
    %v5393 = vlaneseq
    %v5394 = vshrl.u32 %v5393, 7
    %v5395 = vsub.s32 0, %v5394
    %v5396 = vrot.slane %v5391, %v5395
    %v5397 = vlaneseq
    %v5398 = vshrl.u32 %v5397, 7
    %v5399 = vsub.s32 1, %v5398
    %v5400 = vrot.slane %v5391, %v5399
    %v5401 = vlaneseq
    %v5402 = vshrl.u32 %v5401, 7
    %v5403 = vsub.s32 2, %v5402
    %v5404 = vrot.slane %v5391, %v5403
    %v5405 = vlaneseq
    %v5406 = vshrl.u32 %v5405, 7
    %v5407 = vsub.s32 3, %v5406
    %v5408 = vrot.slane %v5391, %v5407
    %v5409 = vlaneseq
    %v5410 = vshrl.u32 %v5409, 7
    %v5411 = vsub.s32 4, %v5410
    %v5412 = vrot.slane %v5391, %v5411
    %v5418 = vadd.f32 %v5380, %v5396
    %v5419 = vadd.f32 %v5381, %v5400
    %v5420 = vadd.f32 %v5382, %v5404
    %v5421 = vadd.f32 %v5383, %v5408
    %v5422 = vadd.f32 %v5384, %v5412
    %v5423 = vadd.f32 %v5385, %v5396
    %v5424 = vadd.f32 %v5386, %v5400
    %v5425 = vadd.f32 %v5387, %v5404
    %v5426 = vadd.f32 %v5388, %v5408
    %v5427 = vadd.f32 %v5389, %v5412
    %v5428 = vpack.c.bf16 %v5423, %v5418
    %v5429 = vpack.c.bf16 %v5424, %v5419
    %v5430 = vpack.c.bf16 %v5425, %v5420
    %v5431 = vpack.c.bf16 %v5426, %v5421
    %v5432 = vpack.c.bf16 %v5427, %v5422
    %s5433 = scalar_lea.vmem [#allocation6], 2600
    %v5434 = vld [vmem:[%s5433] sm:$0xff]
    %v5435 = vld [vmem:[%s5433 + $0x8] sm:$0xff]
    %v5436 = vld [vmem:[%s5433 + $0x10] sm:$0xf]
    %v5437 = vld [vmem:[%s5433 + $0x14] sm:$0xff]
    %v5438 = vld [vmem:[%s5433 + $0x1c] sm:$0xff]
    %v5439 = vld [vmem:[%s5433 + $0x24] sm:$0xf]
    %v5440 = vld [vmem:[%s5433 + $0x28] sm:$0xff]
    %v5441 = vld [vmem:[%s5433 + $0x30] sm:$0xff]
    %v5442 = vld [vmem:[%s5433 + $0x38] sm:$0xf]
    %v5443 = vld [vmem:[%s5433 + $0x3c] sm:$0xff]
    %v5444 = vld [vmem:[%s5433 + $0x44] sm:$0xff]
    %v5445 = vld [vmem:[%s5433 + $0x4c] sm:$0xf]
    %v5446 = vld [vmem:[%s5433 + $0x50] sm:$0xff]
    %v5447 = vld [vmem:[%s5433 + $0x58] sm:$0xff]
    %v5448 = vld [vmem:[%s5433 + $0x60] sm:$0xf]
    %v5449 = vld [vmem:[%s5433 + $0x64] sm:$0xff]
    %v5450 = vld [vmem:[%s5433 + $0x6c] sm:$0xff]
    %v5451 = vld [vmem:[%s5433 + $0x74] sm:$0xf]
    %v5452 = vld [vmem:[%s5433 + $0x78] sm:$0xff]
    %v5453 = vld [vmem:[%s5433 + $0x80] sm:$0xff]
    %v5454 = vld [vmem:[%s5433 + $0x88] sm:$0xf]
    %v5455 = vld [vmem:[%s5433 + $0x8c] sm:$0xff]
    %v5456 = vld [vmem:[%s5433 + $0x94] sm:$0xff]
    %v5457 = vld [vmem:[%s5433 + $0x9c] sm:$0xf]
    %v5458 = vld [vmem:[%s5433 + $0xa0] sm:$0xff]
    %v5459 = vld [vmem:[%s5433 + $0xa8] sm:$0xff]
    %v5460 = vld [vmem:[%s5433 + $0xb0] sm:$0xf]
    %v5461 = vld [vmem:[%s5433 + $0xb4] sm:$0xff]
    %v5462 = vld [vmem:[%s5433 + $0xbc] sm:$0xff]
    %v5463 = vld [vmem:[%s5433 + $0xc4] sm:$0xf]
    %v5464 = vld [vmem:[%s5433 + $0xc8] sm:$0xff]
    %v5465 = vld [vmem:[%s5433 + $0xd0] sm:$0xff]
    %v5466 = vld [vmem:[%s5433 + $0xd8] sm:$0xf]
    %v5467 = vld [vmem:[%s5433 + $0xdc] sm:$0xff]
    %v5468 = vld [vmem:[%s5433 + $0xe4] sm:$0xff]
    %v5469 = vld [vmem:[%s5433 + $0xec] sm:$0xf]
    %v5470 = vld [vmem:[%s5433 + $0xf0] sm:$0xff]
    %v5471 = vld [vmem:[%s5433 + $0xf8] sm:$0xff]
    %v5472 = vld [vmem:[%s5433 + $0x100] sm:$0xf]
    %v5473 = vld [vmem:[%s5433 + $0x104] sm:$0xff]
    %v5474 = vld [vmem:[%s5433 + $0x10c] sm:$0xff]
    %v5475 = vld [vmem:[%s5433 + $0x114] sm:$0xf]
    %v5476 = vld [vmem:[%s5433 + $0x118] sm:$0xff]
    %v5477 = vld [vmem:[%s5433 + $0x120] sm:$0xff]
    %v5478 = vld [vmem:[%s5433 + $0x128] sm:$0xf]
    %v5479 = vld [vmem:[%s5433 + $0x12c] sm:$0xff]
    %v5480 = vld [vmem:[%s5433 + $0x134] sm:$0xff]
    %v5481 = vld [vmem:[%s5433 + $0x13c] sm:$0xf]
    %v5482 = vld [vmem:[%s5433 + $0x140] sm:$0xff]
    %v5483 = vld [vmem:[%s5433 + $0x148] sm:$0xff]
    %v5484 = vld [vmem:[%s5433 + $0x150] sm:$0xf]
    %v5485 = vld [vmem:[%s5433 + $0x154] sm:$0xff]
    %v5486 = vld [vmem:[%s5433 + $0x15c] sm:$0xff]
    %v5487 = vld [vmem:[%s5433 + $0x164] sm:$0xf]
    %v5488 = vld [vmem:[%s5433 + $0x168] sm:$0xff]
    %v5489 = vld [vmem:[%s5433 + $0x170] sm:$0xff]
    %v5490 = vld [vmem:[%s5433 + $0x178] sm:$0xf]
    %v5491 = vld [vmem:[%s5433 + $0x17c] sm:$0xff]
    %v5492 = vld [vmem:[%s5433 + $0x184] sm:$0xff]
    %v5493 = vld [vmem:[%s5433 + $0x18c] sm:$0xf]
    %v5494 = vld [vmem:[%s5433 + $0x190] sm:$0xff]
    %v5495 = vld [vmem:[%s5433 + $0x198] sm:$0xff]
    %v5496 = vld [vmem:[%s5433 + $0x1a0] sm:$0xf]
    %v5497 = vld [vmem:[%s5433 + $0x1a4] sm:$0xff]
    %v5498 = vld [vmem:[%s5433 + $0x1ac] sm:$0xff]
    %v5499 = vld [vmem:[%s5433 + $0x1b4] sm:$0xf]
    %v5500 = vld [vmem:[%s5433 + $0x1b8] sm:$0xff]
    %v5501 = vld [vmem:[%s5433 + $0x1c0] sm:$0xff]
    %v5502 = vld [vmem:[%s5433 + $0x1c8] sm:$0xf]
    %v5503 = vld [vmem:[%s5433 + $0x1cc] sm:$0xff]
    %v5504 = vld [vmem:[%s5433 + $0x1d4] sm:$0xff]
    %v5505 = vld [vmem:[%s5433 + $0x1dc] sm:$0xf]
    %v5506 = vld [vmem:[%s5433 + $0x1e0] sm:$0xff]
    %v5507 = vld [vmem:[%s5433 + $0x1e8] sm:$0xff]
    %v5508 = vld [vmem:[%s5433 + $0x1f0] sm:$0xf]
    %v5509 = vld [vmem:[%s5433 + $0x1f4] sm:$0xff]
    %v5510 = vld [vmem:[%s5433 + $0x1fc] sm:$0xff]
    %v5511 = vld [vmem:[%s5433 + $0x204] sm:$0xf]
    %v5512 = vld [vmem:[%s5433 + $0x208] sm:$0xff]
    %v5513 = vld [vmem:[%s5433 + $0x210] sm:$0xff]
    %v5514 = vld [vmem:[%s5433 + $0x218] sm:$0xf]
    %v5515 = vld [vmem:[%s5433 + $0x21c] sm:$0xff]
    %v5516 = vld [vmem:[%s5433 + $0x224] sm:$0xff]
    %v5517 = vld [vmem:[%s5433 + $0x22c] sm:$0xf]
    %v5518 = vld [vmem:[%s5433 + $0x230] sm:$0xff]
    %v5519 = vld [vmem:[%s5433 + $0x238] sm:$0xff]
    %v5520 = vld [vmem:[%s5433 + $0x240] sm:$0xf]
    %v5521 = vld [vmem:[%s5433 + $0x244] sm:$0xff]
    %v5522 = vld [vmem:[%s5433 + $0x24c] sm:$0xff]
    %v5523 = vld [vmem:[%s5433 + $0x254] sm:$0xf]
    %v5524 = vld [vmem:[%s5433 + $0x258] sm:$0xff]
    %v5525 = vld [vmem:[%s5433 + $0x260] sm:$0xff]
    %v5526 = vld [vmem:[%s5433 + $0x268] sm:$0xf]
    %v5527 = vld [vmem:[%s5433 + $0x26c] sm:$0xff]
    %v5528 = vld [vmem:[%s5433 + $0x274] sm:$0xff]
    %v5529 = vld [vmem:[%s5433 + $0x27c] sm:$0xf]
    %v5530 = vld [vmem:[%s5433 + $0x280] sm:$0xff]
    %v5531 = vld [vmem:[%s5433 + $0x288] sm:$0xff]
    %v5532 = vld [vmem:[%s5433 + $0x290] sm:$0xf]
    %v5533 = vld [vmem:[%s5433 + $0x294] sm:$0xff]
    %v5534 = vld [vmem:[%s5433 + $0x29c] sm:$0xff]
    %v5535 = vld [vmem:[%s5433 + $0x2a4] sm:$0xf]
    %v5536 = vld [vmem:[%s5433 + $0x2a8] sm:$0xff]
    %v5537 = vld [vmem:[%s5433 + $0x2b0] sm:$0xff]
    %v5538 = vld [vmem:[%s5433 + $0x2b8] sm:$0xf]
    %v5539 = vld [vmem:[%s5433 + $0x2bc] sm:$0xff]
    %v5540 = vld [vmem:[%s5433 + $0x2c4] sm:$0xff]
    %v5541 = vld [vmem:[%s5433 + $0x2cc] sm:$0xf]
    %v5542 = vld [vmem:[%s5433 + $0x2d0] sm:$0xff]
    %v5543 = vld [vmem:[%s5433 + $0x2d8] sm:$0xff]
    %v5544 = vld [vmem:[%s5433 + $0x2e0] sm:$0xf]
    %v5545 = vld [vmem:[%s5433 + $0x2e4] sm:$0xff]
    %v5546 = vld [vmem:[%s5433 + $0x2ec] sm:$0xff]
    %v5547 = vld [vmem:[%s5433 + $0x2f4] sm:$0xf]
    %v5548 = vld [vmem:[%s5433 + $0x2f8] sm:$0xff]
    %v5549 = vld [vmem:[%s5433 + $0x300] sm:$0xff]
    %v5550 = vld [vmem:[%s5433 + $0x308] sm:$0xf]
    %v5551 = vld [vmem:[%s5433 + $0x30c] sm:$0xff]
    %v5552 = vld [vmem:[%s5433 + $0x314] sm:$0xff]
    %v5553 = vld [vmem:[%s5433 + $0x31c] sm:$0xf]
    %v5554 = vld [vmem:[%s5433 + $0x320] sm:$0xff]
    %v5555 = vld [vmem:[%s5433 + $0x328] sm:$0xff]
    %v5556 = vld [vmem:[%s5433 + $0x330] sm:$0xf]
    %v5557 = vld [vmem:[%s5433 + $0x334] sm:$0xff]
    %v5558 = vld [vmem:[%s5433 + $0x33c] sm:$0xff]
    %v5559 = vld [vmem:[%s5433 + $0x344] sm:$0xf]
    %v5560 = vld [vmem:[%s5433 + $0x348] sm:$0xff]
    %v5561 = vld [vmem:[%s5433 + $0x350] sm:$0xff]
    %v5562 = vld [vmem:[%s5433 + $0x358] sm:$0xf]
    %v5563 = vld [vmem:[%s5433 + $0x35c] sm:$0xff]
    %v5564 = vld [vmem:[%s5433 + $0x364] sm:$0xff]
    %v5565 = vld [vmem:[%s5433 + $0x36c] sm:$0xf]
    %v5566 = vld [vmem:[%s5433 + $0x370] sm:$0xff]
    %v5567 = vld [vmem:[%s5433 + $0x378] sm:$0xff]
    %v5568 = vld [vmem:[%s5433 + $0x380] sm:$0xf]
    %v5569 = vld [vmem:[%s5433 + $0x384] sm:$0xff]
    %v5570 = vld [vmem:[%s5433 + $0x38c] sm:$0xff]
    %v5571 = vld [vmem:[%s5433 + $0x394] sm:$0xf]
    %v5572 = vld [vmem:[%s5433 + $0x398] sm:$0xff]
    %v5573 = vld [vmem:[%s5433 + $0x3a0] sm:$0xff]
    %v5574 = vld [vmem:[%s5433 + $0x3a8] sm:$0xf]
    %v5575 = vld [vmem:[%s5433 + $0x3ac] sm:$0xff]
    %v5576 = vld [vmem:[%s5433 + $0x3b4] sm:$0xff]
    %v5577 = vld [vmem:[%s5433 + $0x3bc] sm:$0xf]
    %v5578 = vld [vmem:[%s5433 + $0x3c0] sm:$0xff]
    %v5579 = vld [vmem:[%s5433 + $0x3c8] sm:$0xff]
    %v5580 = vld [vmem:[%s5433 + $0x3d0] sm:$0xf]
    %v5581 = vld [vmem:[%s5433 + $0x3d4] sm:$0xff]
    %v5582 = vld [vmem:[%s5433 + $0x3dc] sm:$0xff]
    %v5583 = vld [vmem:[%s5433 + $0x3e4] sm:$0xf]
    %v5584 = vld [vmem:[%s5433 + $0x3e8] sm:$0xff]
    %v5585 = vld [vmem:[%s5433 + $0x3f0] sm:$0xff]
    %v5586 = vld [vmem:[%s5433 + $0x3f8] sm:$0xf]
    %v5587 = vld [vmem:[%s5433 + $0x3fc] sm:$0xff]
    %v5588 = vld [vmem:[%s5433 + $0x404] sm:$0xff]
    %v5589 = vld [vmem:[%s5433 + $0x40c] sm:$0xf]
    %v5590 = vld [vmem:[%s5433 + $0x410] sm:$0xff]
    %v5591 = vld [vmem:[%s5433 + $0x418] sm:$0xff]
    %v5592 = vld [vmem:[%s5433 + $0x420] sm:$0xf]
    %v5593 = vld [vmem:[%s5433 + $0x424] sm:$0xff]
    %v5594 = vld [vmem:[%s5433 + $0x42c] sm:$0xff]
    %v5595 = vld [vmem:[%s5433 + $0x434] sm:$0xf]
    %v5596 = vld [vmem:[%s5433 + $0x438] sm:$0xff]
    %v5597 = vld [vmem:[%s5433 + $0x440] sm:$0xff]
    %v5598 = vld [vmem:[%s5433 + $0x448] sm:$0xf]
    %v5599 = vld [vmem:[%s5433 + $0x44c] sm:$0xff]
    %v5600 = vld [vmem:[%s5433 + $0x454] sm:$0xff]
    %v5601 = vld [vmem:[%s5433 + $0x45c] sm:$0xf]
    %v5602 = vld [vmem:[%s5433 + $0x460] sm:$0xff]
    %v5603 = vld [vmem:[%s5433 + $0x468] sm:$0xff]
    %v5604 = vld [vmem:[%s5433 + $0x470] sm:$0xf]
    %v5605 = vld [vmem:[%s5433 + $0x474] sm:$0xff]
    %v5606 = vld [vmem:[%s5433 + $0x47c] sm:$0xff]
    %v5607 = vld [vmem:[%s5433 + $0x484] sm:$0xf]
    %v5608 = vld [vmem:[%s5433 + $0x488] sm:$0xff]
    %v5609 = vld [vmem:[%s5433 + $0x490] sm:$0xff]
    %v5610 = vld [vmem:[%s5433 + $0x498] sm:$0xf]
    %v5611 = vld [vmem:[%s5433 + $0x49c] sm:$0xff]
    %v5612 = vld [vmem:[%s5433 + $0x4a4] sm:$0xff]
    %v5613 = vld [vmem:[%s5433 + $0x4ac] sm:$0xf]
    %v5614 = vld [vmem:[%s5433 + $0x4b0] sm:$0xff]
    %v5615 = vld [vmem:[%s5433 + $0x4b8] sm:$0xff]
    %v5616 = vld [vmem:[%s5433 + $0x4c0] sm:$0xf]
    %v5617 = vld [vmem:[%s5433 + $0x4c4] sm:$0xff]
    %v5618 = vld [vmem:[%s5433 + $0x4cc] sm:$0xff]
    %v5619 = vld [vmem:[%s5433 + $0x4d4] sm:$0xf]
    %v5620 = vld [vmem:[%s5433 + $0x4d8] sm:$0xff]
    %v5621 = vld [vmem:[%s5433 + $0x4e0] sm:$0xff]
    %v5622 = vld [vmem:[%s5433 + $0x4e8] sm:$0xf]
    %v5623 = vld [vmem:[%s5433 + $0x4ec] sm:$0xff]
    %v5624 = vld [vmem:[%s5433 + $0x4f4] sm:$0xff]
    %v5625 = vld [vmem:[%s5433 + $0x4fc] sm:$0xf]
    %v5626 = vld [vmem:[%s5433 + $0x500] sm:$0x11]
    %v5627 = vld [vmem:[%s5433 + $0x508] sm:$0x11]
    %v5628 = vld [vmem:[%s5433 + $0x510] sm:$0x1]
    %s5629 = scalar_lea.vmem [#allocation8], 10
    %v5630 = vld [vmem:[%s5629] sm:$0x1f]
    %v5632 = vlaneseq
    %v5633 = vshrl.u32 %v5632, 7
    %v5634 = vsub.s32 0, %v5633
    %v5635 = vrot.slane %v5630, %v5634
    %v5636 = vlaneseq
    %v5637 = vshrl.u32 %v5636, 7
    %v5638 = vsub.s32 1, %v5637
    %v5639 = vrot.slane %v5630, %v5638
    %v5640 = vlaneseq
    %v5641 = vshrl.u32 %v5640, 7
    %v5642 = vsub.s32 2, %v5641
    %v5643 = vrot.slane %v5630, %v5642
    %v5644 = vlaneseq
    %v5645 = vshrl.u32 %v5644, 7
    %v5646 = vsub.s32 3, %v5645
    %v5647 = vrot.slane %v5630, %v5646
    %v5648 = vlaneseq
    %v5649 = vshrl.u32 %v5648, 7
    %v5650 = vsub.s32 4, %v5649
    %v5651 = vrot.slane %v5630, %v5650
    %v5852 = vunpack.c.l.b16 %v5434
    %v5853 = vunpack.c.h.b16 %v5434
    %v5854 = vunpack.c.l.b16 %v5435
    %v5855 = vunpack.c.h.b16 %v5435
    %v5856 = vunpack.c.l.b16 %v5436
    %v5857 = vunpack.c.l.b16 %v5437
    %v5858 = vunpack.c.h.b16 %v5437
    %v5859 = vunpack.c.l.b16 %v5438
    %v5860 = vunpack.c.h.b16 %v5438
    %v5861 = vunpack.c.l.b16 %v5439
    %v5862 = vunpack.c.l.b16 %v5440
    %v5863 = vunpack.c.h.b16 %v5440
    %v5864 = vunpack.c.l.b16 %v5441
    %v5865 = vunpack.c.h.b16 %v5441
    %v5866 = vunpack.c.l.b16 %v5442
    %v5867 = vunpack.c.l.b16 %v5443
    %v5868 = vunpack.c.h.b16 %v5443
    %v5869 = vunpack.c.l.b16 %v5444
    %v5870 = vunpack.c.h.b16 %v5444
    %v5871 = vunpack.c.l.b16 %v5445
    %v5872 = vunpack.c.l.b16 %v5446
    %v5873 = vunpack.c.h.b16 %v5446
    %v5874 = vunpack.c.l.b16 %v5447
    %v5875 = vunpack.c.h.b16 %v5447
    %v5876 = vunpack.c.l.b16 %v5448
    %v5877 = vunpack.c.l.b16 %v5449
    %v5878 = vunpack.c.h.b16 %v5449
    %v5879 = vunpack.c.l.b16 %v5450
    %v5880 = vunpack.c.h.b16 %v5450
    %v5881 = vunpack.c.l.b16 %v5451
    %v5882 = vunpack.c.l.b16 %v5452
    %v5883 = vunpack.c.h.b16 %v5452
    %v5884 = vunpack.c.l.b16 %v5453
    %v5885 = vunpack.c.h.b16 %v5453
    %v5886 = vunpack.c.l.b16 %v5454
    %v5887 = vunpack.c.l.b16 %v5455
    %v5888 = vunpack.c.h.b16 %v5455
    %v5889 = vunpack.c.l.b16 %v5456
    %v5890 = vunpack.c.h.b16 %v5456
    %v5891 = vunpack.c.l.b16 %v5457
    %v5892 = vunpack.c.l.b16 %v5458
    %v5893 = vunpack.c.h.b16 %v5458
    %v5894 = vunpack.c.l.b16 %v5459
    %v5895 = vunpack.c.h.b16 %v5459
    %v5896 = vunpack.c.l.b16 %v5460
    %v5897 = vunpack.c.l.b16 %v5461
    %v5898 = vunpack.c.h.b16 %v5461
    %v5899 = vunpack.c.l.b16 %v5462
    %v5900 = vunpack.c.h.b16 %v5462
    %v5901 = vunpack.c.l.b16 %v5463
    %v5902 = vunpack.c.l.b16 %v5464
    %v5903 = vunpack.c.h.b16 %v5464
    %v5904 = vunpack.c.l.b16 %v5465
    %v5905 = vunpack.c.h.b16 %v5465
    %v5906 = vunpack.c.l.b16 %v5466
    %v5907 = vunpack.c.l.b16 %v5467
    %v5908 = vunpack.c.h.b16 %v5467
    %v5909 = vunpack.c.l.b16 %v5468
    %v5910 = vunpack.c.h.b16 %v5468
    %v5911 = vunpack.c.l.b16 %v5469
    %v5912 = vunpack.c.l.b16 %v5470
    %v5913 = vunpack.c.h.b16 %v5470
    %v5914 = vunpack.c.l.b16 %v5471
    %v5915 = vunpack.c.h.b16 %v5471
    %v5916 = vunpack.c.l.b16 %v5472
    %v5917 = vunpack.c.l.b16 %v5473
    %v5918 = vunpack.c.h.b16 %v5473
    %v5919 = vunpack.c.l.b16 %v5474
    %v5920 = vunpack.c.h.b16 %v5474
    %v5921 = vunpack.c.l.b16 %v5475
    %v5922 = vunpack.c.l.b16 %v5476
    %v5923 = vunpack.c.h.b16 %v5476
    %v5924 = vunpack.c.l.b16 %v5477
    %v5925 = vunpack.c.h.b16 %v5477
    %v5926 = vunpack.c.l.b16 %v5478
    %v5927 = vunpack.c.l.b16 %v5479
    %v5928 = vunpack.c.h.b16 %v5479
    %v5929 = vunpack.c.l.b16 %v5480
    %v5930 = vunpack.c.h.b16 %v5480
    %v5931 = vunpack.c.l.b16 %v5481
    %v5932 = vunpack.c.l.b16 %v5482
    %v5933 = vunpack.c.h.b16 %v5482
    %v5934 = vunpack.c.l.b16 %v5483
    %v5935 = vunpack.c.h.b16 %v5483
    %v5936 = vunpack.c.l.b16 %v5484
    %v5937 = vunpack.c.l.b16 %v5485
    %v5938 = vunpack.c.h.b16 %v5485
    %v5939 = vunpack.c.l.b16 %v5486
    %v5940 = vunpack.c.h.b16 %v5486
    %v5941 = vunpack.c.l.b16 %v5487
    %v5942 = vunpack.c.l.b16 %v5488
    %v5943 = vunpack.c.h.b16 %v5488
    %v5944 = vunpack.c.l.b16 %v5489
    %v5945 = vunpack.c.h.b16 %v5489
    %v5946 = vunpack.c.l.b16 %v5490
    %v5947 = vunpack.c.l.b16 %v5491
    %v5948 = vunpack.c.h.b16 %v5491
    %v5949 = vunpack.c.l.b16 %v5492
    %v5950 = vunpack.c.h.b16 %v5492
    %v5951 = vunpack.c.l.b16 %v5493
    %v5952 = vunpack.c.l.b16 %v5494
    %v5953 = vunpack.c.h.b16 %v5494
    %v5954 = vunpack.c.l.b16 %v5495
    %v5955 = vunpack.c.h.b16 %v5495
    %v5956 = vunpack.c.l.b16 %v5496
    %v5957 = vunpack.c.l.b16 %v5497
    %v5958 = vunpack.c.h.b16 %v5497
    %v5959 = vunpack.c.l.b16 %v5498
    %v5960 = vunpack.c.h.b16 %v5498
    %v5961 = vunpack.c.l.b16 %v5499
    %v5962 = vunpack.c.l.b16 %v5500
    %v5963 = vunpack.c.h.b16 %v5500
    %v5964 = vunpack.c.l.b16 %v5501
    %v5965 = vunpack.c.h.b16 %v5501
    %v5966 = vunpack.c.l.b16 %v5502
    %v5967 = vunpack.c.l.b16 %v5503
    %v5968 = vunpack.c.h.b16 %v5503
    %v5969 = vunpack.c.l.b16 %v5504
    %v5970 = vunpack.c.h.b16 %v5504
    %v5971 = vunpack.c.l.b16 %v5505
    %v5972 = vunpack.c.l.b16 %v5506
    %v5973 = vunpack.c.h.b16 %v5506
    %v5974 = vunpack.c.l.b16 %v5507
    %v5975 = vunpack.c.h.b16 %v5507
    %v5976 = vunpack.c.l.b16 %v5508
    %v5977 = vunpack.c.l.b16 %v5509
    %v5978 = vunpack.c.h.b16 %v5509
    %v5979 = vunpack.c.l.b16 %v5510
    %v5980 = vunpack.c.h.b16 %v5510
    %v5981 = vunpack.c.l.b16 %v5511
    %v5982 = vunpack.c.l.b16 %v5512
    %v5983 = vunpack.c.h.b16 %v5512
    %v5984 = vunpack.c.l.b16 %v5513
    %v5985 = vunpack.c.h.b16 %v5513
    %v5986 = vunpack.c.l.b16 %v5514
    %v5987 = vunpack.c.l.b16 %v5515
    %v5988 = vunpack.c.h.b16 %v5515
    %v5989 = vunpack.c.l.b16 %v5516
    %v5990 = vunpack.c.h.b16 %v5516
    %v5991 = vunpack.c.l.b16 %v5517
    %v5992 = vunpack.c.l.b16 %v5518
    %v5993 = vunpack.c.h.b16 %v5518
    %v5994 = vunpack.c.l.b16 %v5519
    %v5995 = vunpack.c.h.b16 %v5519
    %v5996 = vunpack.c.l.b16 %v5520
    %v5997 = vunpack.c.l.b16 %v5521
    %v5998 = vunpack.c.h.b16 %v5521
    %v5999 = vunpack.c.l.b16 %v5522
    %v6000 = vunpack.c.h.b16 %v5522
    %v6001 = vunpack.c.l.b16 %v5523
    %v6002 = vunpack.c.l.b16 %v5524
    %v6003 = vunpack.c.h.b16 %v5524
    %v6004 = vunpack.c.l.b16 %v5525
    %v6005 = vunpack.c.h.b16 %v5525
    %v6006 = vunpack.c.l.b16 %v5526
    %v6007 = vunpack.c.l.b16 %v5527
    %v6008 = vunpack.c.h.b16 %v5527
    %v6009 = vunpack.c.l.b16 %v5528
    %v6010 = vunpack.c.h.b16 %v5528
    %v6011 = vunpack.c.l.b16 %v5529
    %v6012 = vunpack.c.l.b16 %v5530
    %v6013 = vunpack.c.h.b16 %v5530
    %v6014 = vunpack.c.l.b16 %v5531
    %v6015 = vunpack.c.h.b16 %v5531
    %v6016 = vunpack.c.l.b16 %v5532
    %v6017 = vunpack.c.l.b16 %v5533
    %v6018 = vunpack.c.h.b16 %v5533
    %v6019 = vunpack.c.l.b16 %v5534
    %v6020 = vunpack.c.h.b16 %v5534
    %v6021 = vunpack.c.l.b16 %v5535
    %v6022 = vunpack.c.l.b16 %v5536
    %v6023 = vunpack.c.h.b16 %v5536
    %v6024 = vunpack.c.l.b16 %v5537
    %v6025 = vunpack.c.h.b16 %v5537
    %v6026 = vunpack.c.l.b16 %v5538
    %v6027 = vunpack.c.l.b16 %v5539
    %v6028 = vunpack.c.h.b16 %v5539
    %v6029 = vunpack.c.l.b16 %v5540
    %v6030 = vunpack.c.h.b16 %v5540
    %v6031 = vunpack.c.l.b16 %v5541
    %v6032 = vunpack.c.l.b16 %v5542
    %v6033 = vunpack.c.h.b16 %v5542
    %v6034 = vunpack.c.l.b16 %v5543
    %v6035 = vunpack.c.h.b16 %v5543
    %v6036 = vunpack.c.l.b16 %v5544
    %v6037 = vunpack.c.l.b16 %v5545
    %v6038 = vunpack.c.h.b16 %v5545
    %v6039 = vunpack.c.l.b16 %v5546
    %v6040 = vunpack.c.h.b16 %v5546
    %v6041 = vunpack.c.l.b16 %v5547
    %v6042 = vunpack.c.l.b16 %v5548
    %v6043 = vunpack.c.h.b16 %v5548
    %v6044 = vunpack.c.l.b16 %v5549
    %v6045 = vunpack.c.h.b16 %v5549
    %v6046 = vunpack.c.l.b16 %v5550
    %v6047 = vunpack.c.l.b16 %v5551
    %v6048 = vunpack.c.h.b16 %v5551
    %v6049 = vunpack.c.l.b16 %v5552
    %v6050 = vunpack.c.h.b16 %v5552
    %v6051 = vunpack.c.l.b16 %v5553
    %v6052 = vunpack.c.l.b16 %v5554
    %v6053 = vunpack.c.h.b16 %v5554
    %v6054 = vunpack.c.l.b16 %v5555
    %v6055 = vunpack.c.h.b16 %v5555
    %v6056 = vunpack.c.l.b16 %v5556
    %v6057 = vunpack.c.l.b16 %v5557
    %v6058 = vunpack.c.h.b16 %v5557
    %v6059 = vunpack.c.l.b16 %v5558
    %v6060 = vunpack.c.h.b16 %v5558
    %v6061 = vunpack.c.l.b16 %v5559
    %v6062 = vunpack.c.l.b16 %v5560
    %v6063 = vunpack.c.h.b16 %v5560
    %v6064 = vunpack.c.l.b16 %v5561
    %v6065 = vunpack.c.h.b16 %v5561
    %v6066 = vunpack.c.l.b16 %v5562
    %v6067 = vunpack.c.l.b16 %v5563
    %v6068 = vunpack.c.h.b16 %v5563
    %v6069 = vunpack.c.l.b16 %v5564
    %v6070 = vunpack.c.h.b16 %v5564
    %v6071 = vunpack.c.l.b16 %v5565
    %v6072 = vunpack.c.l.b16 %v5566
    %v6073 = vunpack.c.h.b16 %v5566
    %v6074 = vunpack.c.l.b16 %v5567
    %v6075 = vunpack.c.h.b16 %v5567
    %v6076 = vunpack.c.l.b16 %v5568
    %v6077 = vunpack.c.l.b16 %v5569
    %v6078 = vunpack.c.h.b16 %v5569
    %v6079 = vunpack.c.l.b16 %v5570
    %v6080 = vunpack.c.h.b16 %v5570
    %v6081 = vunpack.c.l.b16 %v5571
    %v6082 = vunpack.c.l.b16 %v5572
    %v6083 = vunpack.c.h.b16 %v5572
    %v6084 = vunpack.c.l.b16 %v5573
    %v6085 = vunpack.c.h.b16 %v5573
    %v6086 = vunpack.c.l.b16 %v5574
    %v6087 = vunpack.c.l.b16 %v5575
    %v6088 = vunpack.c.h.b16 %v5575
    %v6089 = vunpack.c.l.b16 %v5576
    %v6090 = vunpack.c.h.b16 %v5576
    %v6091 = vunpack.c.l.b16 %v5577
    %v6092 = vunpack.c.l.b16 %v5578
    %v6093 = vunpack.c.h.b16 %v5578
    %v6094 = vunpack.c.l.b16 %v5579
    %v6095 = vunpack.c.h.b16 %v5579
    %v6096 = vunpack.c.l.b16 %v5580
    %v6097 = vunpack.c.l.b16 %v5581
    %v6098 = vunpack.c.h.b16 %v5581
    %v6099 = vunpack.c.l.b16 %v5582
    %v6100 = vunpack.c.h.b16 %v5582
    %v6101 = vunpack.c.l.b16 %v5583
    %v6102 = vunpack.c.l.b16 %v5584
    %v6103 = vunpack.c.h.b16 %v5584
    %v6104 = vunpack.c.l.b16 %v5585
    %v6105 = vunpack.c.h.b16 %v5585
    %v6106 = vunpack.c.l.b16 %v5586
    %v6107 = vunpack.c.l.b16 %v5587
    %v6108 = vunpack.c.h.b16 %v5587
    %v6109 = vunpack.c.l.b16 %v5588
    %v6110 = vunpack.c.h.b16 %v5588
    %v6111 = vunpack.c.l.b16 %v5589
    %v6112 = vunpack.c.l.b16 %v5590
    %v6113 = vunpack.c.h.b16 %v5590
    %v6114 = vunpack.c.l.b16 %v5591
    %v6115 = vunpack.c.h.b16 %v5591
    %v6116 = vunpack.c.l.b16 %v5592
    %v6117 = vunpack.c.l.b16 %v5593
    %v6118 = vunpack.c.h.b16 %v5593
    %v6119 = vunpack.c.l.b16 %v5594
    %v6120 = vunpack.c.h.b16 %v5594
    %v6121 = vunpack.c.l.b16 %v5595
    %v6122 = vunpack.c.l.b16 %v5596
    %v6123 = vunpack.c.h.b16 %v5596
    %v6124 = vunpack.c.l.b16 %v5597
    %v6125 = vunpack.c.h.b16 %v5597
    %v6126 = vunpack.c.l.b16 %v5598
    %v6127 = vunpack.c.l.b16 %v5599
    %v6128 = vunpack.c.h.b16 %v5599
    %v6129 = vunpack.c.l.b16 %v5600
    %v6130 = vunpack.c.h.b16 %v5600
    %v6131 = vunpack.c.l.b16 %v5601
    %v6132 = vunpack.c.l.b16 %v5602
    %v6133 = vunpack.c.h.b16 %v5602
    %v6134 = vunpack.c.l.b16 %v5603
    %v6135 = vunpack.c.h.b16 %v5603
    %v6136 = vunpack.c.l.b16 %v5604
    %v6137 = vunpack.c.l.b16 %v5605
    %v6138 = vunpack.c.h.b16 %v5605
    %v6139 = vunpack.c.l.b16 %v5606
    %v6140 = vunpack.c.h.b16 %v5606
    %v6141 = vunpack.c.l.b16 %v5607
    %v6142 = vunpack.c.l.b16 %v5608
    %v6143 = vunpack.c.h.b16 %v5608
    %v6144 = vunpack.c.l.b16 %v5609
    %v6145 = vunpack.c.h.b16 %v5609
    %v6146 = vunpack.c.l.b16 %v5610
    %v6147 = vunpack.c.l.b16 %v5611
    %v6148 = vunpack.c.h.b16 %v5611
    %v6149 = vunpack.c.l.b16 %v5612
    %v6150 = vunpack.c.h.b16 %v5612
    %v6151 = vunpack.c.l.b16 %v5613
    %v6152 = vunpack.c.l.b16 %v5614
    %v6153 = vunpack.c.h.b16 %v5614
    %v6154 = vunpack.c.l.b16 %v5615
    %v6155 = vunpack.c.h.b16 %v5615
    %v6156 = vunpack.c.l.b16 %v5616
    %v6157 = vunpack.c.l.b16 %v5617
    %v6158 = vunpack.c.h.b16 %v5617
    %v6159 = vunpack.c.l.b16 %v5618
    %v6160 = vunpack.c.h.b16 %v5618
    %v6161 = vunpack.c.l.b16 %v5619
    %v6162 = vunpack.c.l.b16 %v5620
    %v6163 = vunpack.c.h.b16 %v5620
    %v6164 = vunpack.c.l.b16 %v5621
    %v6165 = vunpack.c.h.b16 %v5621
    %v6166 = vunpack.c.l.b16 %v5622
    %v6167 = vunpack.c.l.b16 %v5623
    %v6168 = vunpack.c.h.b16 %v5623
    %v6169 = vunpack.c.l.b16 %v5624
    %v6170 = vunpack.c.h.b16 %v5624
    %v6171 = vunpack.c.l.b16 %v5625
    %v6172 = vunpack.c.l.b16 %v5626
    %v6173 = vunpack.c.h.b16 %v5626
    %v6174 = vunpack.c.l.b16 %v5627
    %v6175 = vunpack.c.h.b16 %v5627
    %v6176 = vunpack.c.l.b16 %v5628
    %v6177 = vpack.c.b16 %v5857, %v5852
    %v6178 = vpack.c.b16 %v5858, %v5853
    %v6179 = vpack.c.b16 %v5859, %v5854
    %v6180 = vpack.c.b16 %v5860, %v5855
    %v6181 = vpack.c.b16 %v5861, %v5856
    %v6182 = vpack.c.b16 %v5867, %v5862
    %v6183 = vpack.c.b16 %v5868, %v5863
    %v6184 = vpack.c.b16 %v5869, %v5864
    %v6185 = vpack.c.b16 %v5870, %v5865
    %v6186 = vpack.c.b16 %v5871, %v5866
    %v6187 = vpack.c.b16 %v5877, %v5872
    %v6188 = vpack.c.b16 %v5878, %v5873
    %v6189 = vpack.c.b16 %v5879, %v5874
    %v6190 = vpack.c.b16 %v5880, %v5875
    %v6191 = vpack.c.b16 %v5881, %v5876
    %v6192 = vpack.c.b16 %v5887, %v5882
    %v6193 = vpack.c.b16 %v5888, %v5883
    %v6194 = vpack.c.b16 %v5889, %v5884
    %v6195 = vpack.c.b16 %v5890, %v5885
    %v6196 = vpack.c.b16 %v5891, %v5886
    %v6197 = vpack.c.b16 %v5897, %v5892
    %v6198 = vpack.c.b16 %v5898, %v5893
    %v6199 = vpack.c.b16 %v5899, %v5894
    %v6200 = vpack.c.b16 %v5900, %v5895
    %v6201 = vpack.c.b16 %v5901, %v5896
    %v6202 = vpack.c.b16 %v5907, %v5902
    %v6203 = vpack.c.b16 %v5908, %v5903
    %v6204 = vpack.c.b16 %v5909, %v5904
    %v6205 = vpack.c.b16 %v5910, %v5905
    %v6206 = vpack.c.b16 %v5911, %v5906
    %v6207 = vpack.c.b16 %v5917, %v5912
    %v6208 = vpack.c.b16 %v5918, %v5913
    %v6209 = vpack.c.b16 %v5919, %v5914
    %v6210 = vpack.c.b16 %v5920, %v5915
    %v6211 = vpack.c.b16 %v5921, %v5916
    %v6212 = vpack.c.b16 %v5927, %v5922
    %v6213 = vpack.c.b16 %v5928, %v5923
    %v6214 = vpack.c.b16 %v5929, %v5924
    %v6215 = vpack.c.b16 %v5930, %v5925
    %v6216 = vpack.c.b16 %v5931, %v5926
    %v6217 = vpack.c.b16 %v5937, %v5932
    %v6218 = vpack.c.b16 %v5938, %v5933
    %v6219 = vpack.c.b16 %v5939, %v5934
    %v6220 = vpack.c.b16 %v5940, %v5935
    %v6221 = vpack.c.b16 %v5941, %v5936
    %v6222 = vpack.c.b16 %v5947, %v5942
    %v6223 = vpack.c.b16 %v5948, %v5943
    %v6224 = vpack.c.b16 %v5949, %v5944
    %v6225 = vpack.c.b16 %v5950, %v5945
    %v6226 = vpack.c.b16 %v5951, %v5946
    %v6227 = vpack.c.b16 %v5957, %v5952
    %v6228 = vpack.c.b16 %v5958, %v5953
    %v6229 = vpack.c.b16 %v5959, %v5954
    %v6230 = vpack.c.b16 %v5960, %v5955
    %v6231 = vpack.c.b16 %v5961, %v5956
    %v6232 = vpack.c.b16 %v5967, %v5962
    %v6233 = vpack.c.b16 %v5968, %v5963
    %v6234 = vpack.c.b16 %v5969, %v5964
    %v6235 = vpack.c.b16 %v5970, %v5965
    %v6236 = vpack.c.b16 %v5971, %v5966
    %v6237 = vpack.c.b16 %v5977, %v5972
    %v6238 = vpack.c.b16 %v5978, %v5973
    %v6239 = vpack.c.b16 %v5979, %v5974
    %v6240 = vpack.c.b16 %v5980, %v5975
    %v6241 = vpack.c.b16 %v5981, %v5976
    %v6242 = vpack.c.b16 %v5987, %v5982
    %v6243 = vpack.c.b16 %v5988, %v5983
    %v6244 = vpack.c.b16 %v5989, %v5984
    %v6245 = vpack.c.b16 %v5990, %v5985
    %v6246 = vpack.c.b16 %v5991, %v5986
    %v6247 = vpack.c.b16 %v5997, %v5992
    %v6248 = vpack.c.b16 %v5998, %v5993
    %v6249 = vpack.c.b16 %v5999, %v5994
    %v6250 = vpack.c.b16 %v6000, %v5995
    %v6251 = vpack.c.b16 %v6001, %v5996
    %v6252 = vpack.c.b16 %v6007, %v6002
    %v6253 = vpack.c.b16 %v6008, %v6003
    %v6254 = vpack.c.b16 %v6009, %v6004
    %v6255 = vpack.c.b16 %v6010, %v6005
    %v6256 = vpack.c.b16 %v6011, %v6006
    %v6257 = vpack.c.b16 %v6017, %v6012
    %v6258 = vpack.c.b16 %v6018, %v6013
    %v6259 = vpack.c.b16 %v6019, %v6014
    %v6260 = vpack.c.b16 %v6020, %v6015
    %v6261 = vpack.c.b16 %v6021, %v6016
    %v6262 = vpack.c.b16 %v6027, %v6022
    %v6263 = vpack.c.b16 %v6028, %v6023
    %v6264 = vpack.c.b16 %v6029, %v6024
    %v6265 = vpack.c.b16 %v6030, %v6025
    %v6266 = vpack.c.b16 %v6031, %v6026
    %v6267 = vpack.c.b16 %v6037, %v6032
    %v6268 = vpack.c.b16 %v6038, %v6033
    %v6269 = vpack.c.b16 %v6039, %v6034
    %v6270 = vpack.c.b16 %v6040, %v6035
    %v6271 = vpack.c.b16 %v6041, %v6036
    %v6272 = vpack.c.b16 %v6047, %v6042
    %v6273 = vpack.c.b16 %v6048, %v6043
    %v6274 = vpack.c.b16 %v6049, %v6044
    %v6275 = vpack.c.b16 %v6050, %v6045
    %v6276 = vpack.c.b16 %v6051, %v6046
    %v6277 = vpack.c.b16 %v6057, %v6052
    %v6278 = vpack.c.b16 %v6058, %v6053
    %v6279 = vpack.c.b16 %v6059, %v6054
    %v6280 = vpack.c.b16 %v6060, %v6055
    %v6281 = vpack.c.b16 %v6061, %v6056
    %v6282 = vpack.c.b16 %v6067, %v6062
    %v6283 = vpack.c.b16 %v6068, %v6063
    %v6284 = vpack.c.b16 %v6069, %v6064
    %v6285 = vpack.c.b16 %v6070, %v6065
    %v6286 = vpack.c.b16 %v6071, %v6066
    %v6287 = vpack.c.b16 %v6077, %v6072
    %v6288 = vpack.c.b16 %v6078, %v6073
    %v6289 = vpack.c.b16 %v6079, %v6074
    %v6290 = vpack.c.b16 %v6080, %v6075
    %v6291 = vpack.c.b16 %v6081, %v6076
    %v6292 = vpack.c.b16 %v6087, %v6082
    %v6293 = vpack.c.b16 %v6088, %v6083
    %v6294 = vpack.c.b16 %v6089, %v6084
    %v6295 = vpack.c.b16 %v6090, %v6085
    %v6296 = vpack.c.b16 %v6091, %v6086
    %v6297 = vpack.c.b16 %v6097, %v6092
    %v6298 = vpack.c.b16 %v6098, %v6093
    %v6299 = vpack.c.b16 %v6099, %v6094
    %v6300 = vpack.c.b16 %v6100, %v6095
    %v6301 = vpack.c.b16 %v6101, %v6096
    %v6302 = vpack.c.b16 %v6107, %v6102
    %v6303 = vpack.c.b16 %v6108, %v6103
    %v6304 = vpack.c.b16 %v6109, %v6104
    %v6305 = vpack.c.b16 %v6110, %v6105
    %v6306 = vpack.c.b16 %v6111, %v6106
    %v6307 = vpack.c.b16 %v6117, %v6112
    %v6308 = vpack.c.b16 %v6118, %v6113
    %v6309 = vpack.c.b16 %v6119, %v6114
    %v6310 = vpack.c.b16 %v6120, %v6115
    %v6311 = vpack.c.b16 %v6121, %v6116
    %v6312 = vpack.c.b16 %v6127, %v6122
    %v6313 = vpack.c.b16 %v6128, %v6123
    %v6314 = vpack.c.b16 %v6129, %v6124
    %v6315 = vpack.c.b16 %v6130, %v6125
    %v6316 = vpack.c.b16 %v6131, %v6126
    %v6317 = vpack.c.b16 %v6137, %v6132
    %v6318 = vpack.c.b16 %v6138, %v6133
    %v6319 = vpack.c.b16 %v6139, %v6134
    %v6320 = vpack.c.b16 %v6140, %v6135
    %v6321 = vpack.c.b16 %v6141, %v6136
    %v6322 = vpack.c.b16 %v6147, %v6142
    %v6323 = vpack.c.b16 %v6148, %v6143
    %v6324 = vpack.c.b16 %v6149, %v6144
    %v6325 = vpack.c.b16 %v6150, %v6145
    %v6326 = vpack.c.b16 %v6151, %v6146
    %v6327 = vpack.c.b16 %v6157, %v6152
    %v6328 = vpack.c.b16 %v6158, %v6153
    %v6329 = vpack.c.b16 %v6159, %v6154
    %v6330 = vpack.c.b16 %v6160, %v6155
    %v6331 = vpack.c.b16 %v6161, %v6156
    %v6332 = vpack.c.b16 %v6167, %v6162
    %v6333 = vpack.c.b16 %v6168, %v6163
    %v6334 = vpack.c.b16 %v6169, %v6164
    %v6335 = vpack.c.b16 %v6170, %v6165
    %v6336 = vpack.c.b16 %v6171, %v6166
    %v6337 = vpack.c.b16 %v6172, %v6172
    %v6338 = vpack.c.b16 %v6173, %v6173
    %v6339 = vpack.c.b16 %v6174, %v6174
    %v6340 = vpack.c.b16 %v6175, %v6175
    %v6341 = vpack.c.b16 %v6176, %v6176
    %v6503 = vsel %vm149, %v5432, 0
    %v6506 = vsel %vm1840, %v6337, 0
    %v6509 = vsel %vm1840, %v6338, 0
    %v6512 = vsel %vm1840, %v6339, 0
    %v6515 = vsel %vm1840, %v6340, 0
    %v6518 = vsel %vm1840, %v6341, 0
    %6520 = vmatprep.subr.bf16.mxu0 %v6178
    %6521 = vmatpush1.bf16.msra.mxu0 %v6177
    %6522 = vmatprep.subr.bf16.mxu0 %v6183
    %6523 = vmatpush1.bf16.msra.mxu0 %v6182
    %6524 = vmatprep.subr.bf16.mxu0 %v6188
    %6525 = vmatpush1.bf16.msra.mxu0 %v6187
    %6526 = vmatprep.subr.bf16.mxu0 %v6193
    %6527 = vmatpush1.bf16.msra.mxu0 %v6192
    %6528 = vmatprep.subr.bf16.mxu0 %v6198
    %6529 = vmatpush1.bf16.msra.mxu0 %v6197
    %6530 = vmatprep.subr.bf16.mxu0 %v6203
    %6531 = vmatpush1.bf16.msra.mxu0 %v6202
    %6532 = vmatprep.subr.bf16.mxu0 %v6208
    %6533 = vmatpush1.bf16.msra.mxu0 %v6207
    %6534 = vmatprep.subr.bf16.mxu0 %v6213
    %6535 = vmatpush1.bf16.msra.mxu0 %v6212
    %6536 = vmatprep.subr.bf16.mxu0 %v6218
    %6537 = vmatpush1.bf16.msra.mxu0 %v6217
    %6538 = vmatprep.subr.bf16.mxu0 %v6223
    %6539 = vmatpush1.bf16.msra.mxu0 %v6222
    %6540 = vmatprep.subr.bf16.mxu0 %v6228
    %6541 = vmatpush1.bf16.msra.mxu0 %v6227
    %6542 = vmatprep.subr.bf16.mxu0 %v6233
    %6543 = vmatpush1.bf16.msra.mxu0 %v6232
    %6544 = vmatprep.subr.bf16.mxu0 %v6238
    %6545 = vmatpush1.bf16.msra.mxu0 %v6237
    %6546 = vmatprep.subr.bf16.mxu0 %v6243
    %6547 = vmatpush1.bf16.msra.mxu0 %v6242
    %6548 = vmatprep.subr.bf16.mxu0 %v6248
    %6549 = vmatpush1.bf16.msra.mxu0 %v6247
    %6550 = vmatprep.subr.bf16.mxu0 %v6253
    %6551 = vmatpush1.bf16.msra.mxu0 %v6252
    %6552 = vmatprep.mubr.bf16.mxu0 %v5429
    %6553 = vmatmul.mubr.bf16.gmra.mrb[0].mxu0 %v5428
    %v6554 = vpop.f32.mrb[0].mxu0
    %v6555 = vadd.f32 %v5635, %v6554
    %v6556 = vpop.f32.mrb[0].mxu0
    %v6557 = vadd.f32 %v5639, %v6556
    %v6558 = vpop.f32.mrb[0].mxu0
    %v6559 = vadd.f32 %v5635, %v6558
    %v6560 = vpop.f32.mrb[0].mxu0
    %v6561 = vadd.f32 %v5639, %v6560
    %6562 = vdwg.mxu0
    %6563 = vmatprep.subr.bf16.mxu0 %v6258
    %6564 = vmatpush1.bf16.msra.mxu0 %v6257
    %6565 = vmatprep.subr.bf16.mxu0 %v6263
    %6566 = vmatpush1.bf16.msra.mxu0 %v6262
    %6567 = vmatprep.subr.bf16.mxu0 %v6268
    %6568 = vmatpush1.bf16.msra.mxu0 %v6267
    %6569 = vmatprep.subr.bf16.mxu0 %v6273
    %6570 = vmatpush1.bf16.msra.mxu0 %v6272
    %6571 = vmatprep.subr.bf16.mxu0 %v6278
    %6572 = vmatpush1.bf16.msra.mxu0 %v6277
    %6573 = vmatprep.subr.bf16.mxu0 %v6283
    %6574 = vmatpush1.bf16.msra.mxu0 %v6282
    %6575 = vmatprep.subr.bf16.mxu0 %v6288
    %6576 = vmatpush1.bf16.msra.mxu0 %v6287
    %6577 = vmatprep.subr.bf16.mxu0 %v6293
    %6578 = vmatpush1.bf16.msra.mxu0 %v6292
    %6579 = vmatprep.subr.bf16.mxu0 %v6298
    %6580 = vmatpush1.bf16.msra.mxu0 %v6297
    %6581 = vmatprep.subr.bf16.mxu0 %v6303
    %6582 = vmatpush1.bf16.msra.mxu0 %v6302
    %6583 = vmatprep.subr.bf16.mxu0 %v6308
    %6584 = vmatpush1.bf16.msra.mxu0 %v6307
    %6585 = vmatprep.subr.bf16.mxu0 %v6313
    %6586 = vmatpush1.bf16.msra.mxu0 %v6312
    %6587 = vmatprep.subr.bf16.mxu0 %v6318
    %6588 = vmatpush1.bf16.msra.mxu0 %v6317
    %6589 = vmatprep.subr.bf16.mxu0 %v6323
    %6590 = vmatpush1.bf16.msra.mxu0 %v6322
    %6591 = vmatprep.subr.bf16.mxu0 %v6328
    %6592 = vmatpush1.bf16.msra.mxu0 %v6327
    %6593 = vmatprep.subr.bf16.mxu0 %v6333
    %6594 = vmatpush1.bf16.msra.mxu0 %v6332
    %6595 = vmatprep.mubr.bf16.mxu0 %v5431
    %6596 = vmatmul.mubr.bf16.gmra.mrb[0].mxu0 %v5430
    %v6597 = vpop.f32.mrb[0].mxu0
    %v6598 = vadd.f32 %v6555, %v6597
    %v6599 = vpop.f32.mrb[0].mxu0
    %v6600 = vadd.f32 %v6557, %v6599
    %v6601 = vpop.f32.mrb[0].mxu0
    %v6602 = vadd.f32 %v6559, %v6601
    %v6603 = vpop.f32.mrb[0].mxu0
    %v6604 = vadd.f32 %v6561, %v6603
    %6605 = vdwg.mxu0
    %6606 = vmatprep.subr.bf16.mxu0 %v6509
    %6607 = vmatpush1.bf16.msra.mxu0 %v6506
    %6608 = vmatprep.subr.bf16.mxu0 0
    %6609 = vmatpush1.bf16.msra.mxu0 0
    %6610 = vmatprep.subr.bf16.mxu0 0
    %6611 = vmatpush1.bf16.msra.mxu0 0
    %6612 = vmatprep.subr.bf16.mxu0 0
    %6613 = vmatpush1.bf16.msra.mxu0 0
    %6614 = vmatprep.subr.bf16.mxu0 0
    %6615 = vmatpush1.bf16.msra.mxu0 0
    %6616 = vmatprep.subr.bf16.mxu0 0
    %6617 = vmatpush1.bf16.msra.mxu0 0
    %6618 = vmatprep.subr.bf16.mxu0 0
    %6619 = vmatpush1.bf16.msra.mxu0 0
    %6620 = vmatprep.subr.bf16.mxu0 0
    %6621 = vmatpush1.bf16.msra.mxu0 0
    %6622 = vmatprep.subr.bf16.mxu0 0
    %6623 = vmatpush1.bf16.msra.mxu0 0
    %6624 = vmatprep.subr.bf16.mxu0 0
    %6625 = vmatpush1.bf16.msra.mxu0 0
    %6626 = vmatprep.subr.bf16.mxu0 0
    %6627 = vmatpush1.bf16.msra.mxu0 0
    %6628 = vmatprep.subr.bf16.mxu0 0
    %6629 = vmatpush1.bf16.msra.mxu0 0
    %6630 = vmatprep.subr.bf16.mxu0 0
    %6631 = vmatpush1.bf16.msra.mxu0 0
    %6632 = vmatprep.subr.bf16.mxu0 0
    %6633 = vmatpush1.bf16.msra.mxu0 0
    %6634 = vmatprep.subr.bf16.mxu0 0
    %6635 = vmatpush1.bf16.msra.mxu0 0
    %6636 = vmatprep.subr.bf16.mxu0 0
    %6637 = vmatpush1.bf16.msra.mxu0 0
    %6638 = vmatprep.mubr.bf16.mxu0 0
    %6639 = vmatmul.mubr.bf16.gmra.mrb[0].mxu0 %v6503
    %v6640 = vpop.f32.mrb[0].mxu0
    %v6641 = vadd.f32 %v6598, %v6640
    %v6642 = vpop.f32.mrb[0].mxu0
    %v6643 = vadd.f32 %v6600, %v6642
    %v6644 = vpop.f32.mrb[0].mxu0
    %v6645 = vadd.f32 %v6602, %v6644
    %v6646 = vpop.f32.mrb[0].mxu0
    %v6647 = vadd.f32 %v6604, %v6646
    %6648 = vdwg.mxu0
    %6649 = vmatprep.subr.bf16.mxu0 %v6180
    %6650 = vmatpush1.bf16.msra.mxu0 %v6179
    %6651 = vmatprep.subr.bf16.mxu0 %v6185
    %6652 = vmatpush1.bf16.msra.mxu0 %v6184
    %6653 = vmatprep.subr.bf16.mxu0 %v6190
    %6654 = vmatpush1.bf16.msra.mxu0 %v6189
    %6655 = vmatprep.subr.bf16.mxu0 %v6195
    %6656 = vmatpush1.bf16.msra.mxu0 %v6194
    %6657 = vmatprep.subr.bf16.mxu0 %v6200
    %6658 = vmatpush1.bf16.msra.mxu0 %v6199
    %6659 = vmatprep.subr.bf16.mxu0 %v6205
    %6660 = vmatpush1.bf16.msra.mxu0 %v6204
    %6661 = vmatprep.subr.bf16.mxu0 %v6210
    %6662 = vmatpush1.bf16.msra.mxu0 %v6209
    %6663 = vmatprep.subr.bf16.mxu0 %v6215
    %6664 = vmatpush1.bf16.msra.mxu0 %v6214
    %6665 = vmatprep.subr.bf16.mxu0 %v6220
    %6666 = vmatpush1.bf16.msra.mxu0 %v6219
    %6667 = vmatprep.subr.bf16.mxu0 %v6225
    %6668 = vmatpush1.bf16.msra.mxu0 %v6224
    %6669 = vmatprep.subr.bf16.mxu0 %v6230
    %6670 = vmatpush1.bf16.msra.mxu0 %v6229
    %6671 = vmatprep.subr.bf16.mxu0 %v6235
    %6672 = vmatpush1.bf16.msra.mxu0 %v6234
    %6673 = vmatprep.subr.bf16.mxu0 %v6240
    %6674 = vmatpush1.bf16.msra.mxu0 %v6239
    %6675 = vmatprep.subr.bf16.mxu0 %v6245
    %6676 = vmatpush1.bf16.msra.mxu0 %v6244
    %6677 = vmatprep.subr.bf16.mxu0 %v6250
    %6678 = vmatpush1.bf16.msra.mxu0 %v6249
    %6679 = vmatprep.subr.bf16.mxu0 %v6255
    %6680 = vmatpush1.bf16.msra.mxu0 %v6254
    %6681 = vmatprep.mubr.bf16.mxu0 %v5429
    %6682 = vmatmul.mubr.bf16.gmra.mrb[0].mxu0 %v5428
    %v6683 = vpop.f32.mrb[0].mxu0
    %v6684 = vadd.f32 %v5643, %v6683
    %v6685 = vpop.f32.mrb[0].mxu0
    %v6686 = vadd.f32 %v5647, %v6685
    %v6687 = vpop.f32.mrb[0].mxu0
    %v6688 = vadd.f32 %v5643, %v6687
    %v6689 = vpop.f32.mrb[0].mxu0
    %v6690 = vadd.f32 %v5647, %v6689
    %6691 = vdwg.mxu0
    %6692 = vmatprep.subr.bf16.mxu0 %v6260
    %6693 = vmatpush1.bf16.msra.mxu0 %v6259
    %6694 = vmatprep.subr.bf16.mxu0 %v6265
    %6695 = vmatpush1.bf16.msra.mxu0 %v6264
    %6696 = vmatprep.subr.bf16.mxu0 %v6270
    %6697 = vmatpush1.bf16.msra.mxu0 %v6269
    %6698 = vmatprep.subr.bf16.mxu0 %v6275
    %6699 = vmatpush1.bf16.msra.mxu0 %v6274
    %6700 = vmatprep.subr.bf16.mxu0 %v6280
    %6701 = vmatpush1.bf16.msra.mxu0 %v6279
    %6702 = vmatprep.subr.bf16.mxu0 %v6285
    %6703 = vmatpush1.bf16.msra.mxu0 %v6284
    %6704 = vmatprep.subr.bf16.mxu0 %v6290
    %6705 = vmatpush1.bf16.msra.mxu0 %v6289
    %6706 = vmatprep.subr.bf16.mxu0 %v6295
    %6707 = vmatpush1.bf16.msra.mxu0 %v6294
    %6708 = vmatprep.subr.bf16.mxu0 %v6300
    %6709 = vmatpush1.bf16.msra.mxu0 %v6299
    %6710 = vmatprep.subr.bf16.mxu0 %v6305
    %6711 = vmatpush1.bf16.msra.mxu0 %v6304
    %6712 = vmatprep.subr.bf16.mxu0 %v6310
    %6713 = vmatpush1.bf16.msra.mxu0 %v6309
    %6714 = vmatprep.subr.bf16.mxu0 %v6315
    %6715 = vmatpush1.bf16.msra.mxu0 %v6314
    %6716 = vmatprep.subr.bf16.mxu0 %v6320
    %6717 = vmatpush1.bf16.msra.mxu0 %v6319
    %6718 = vmatprep.subr.bf16.mxu0 %v6325
    %6719 = vmatpush1.bf16.msra.mxu0 %v6324
    %6720 = vmatprep.subr.bf16.mxu0 %v6330
    %6721 = vmatpush1.bf16.msra.mxu0 %v6329
    %6722 = vmatprep.subr.bf16.mxu0 %v6335
    %6723 = vmatpush1.bf16.msra.mxu0 %v6334
    %6724 = vmatprep.mubr.bf16.mxu0 %v5431
    %6725 = vmatmul.mubr.bf16.gmra.mrb[0].mxu0 %v5430
    %v6726 = vpop.f32.mrb[0].mxu0
    %v6727 = vadd.f32 %v6684, %v6726
    %v6728 = vpop.f32.mrb[0].mxu0
    %v6729 = vadd.f32 %v6686, %v6728
    %v6730 = vpop.f32.mrb[0].mxu0
    %v6731 = vadd.f32 %v6688, %v6730
    %v6732 = vpop.f32.mrb[0].mxu0
    %v6733 = vadd.f32 %v6690, %v6732
    %6734 = vdwg.mxu0
    %6735 = vmatprep.subr.bf16.mxu0 %v6515
    %6736 = vmatpush1.bf16.msra.mxu0 %v6512
    %6737 = vmatprep.subr.bf16.mxu0 0
    %6738 = vmatpush1.bf16.msra.mxu0 0
    %6739 = vmatprep.subr.bf16.mxu0 0
    %6740 = vmatpush1.bf16.msra.mxu0 0
    %6741 = vmatprep.subr.bf16.mxu0 0
    %6742 = vmatpush1.bf16.msra.mxu0 0
    %6743 = vmatprep.subr.bf16.mxu0 0
    %6744 = vmatpush1.bf16.msra.mxu0 0
    %6745 = vmatprep.subr.bf16.mxu0 0
    %6746 = vmatpush1.bf16.msra.mxu0 0
    %6747 = vmatprep.subr.bf16.mxu0 0
    %6748 = vmatpush1.bf16.msra.mxu0 0
    %6749 = vmatprep.subr.bf16.mxu0 0
    %6750 = vmatpush1.bf16.msra.mxu0 0
    %6751 = vmatprep.subr.bf16.mxu0 0
    %6752 = vmatpush1.bf16.msra.mxu0 0
    %6753 = vmatprep.subr.bf16.mxu0 0
    %6754 = vmatpush1.bf16.msra.mxu0 0
    %6755 = vmatprep.subr.bf16.mxu0 0
    %6756 = vmatpush1.bf16.msra.mxu0 0
    %6757 = vmatprep.subr.bf16.mxu0 0
    %6758 = vmatpush1.bf16.msra.mxu0 0
    %6759 = vmatprep.subr.bf16.mxu0 0
    %6760 = vmatpush1.bf16.msra.mxu0 0
    %6761 = vmatprep.subr.bf16.mxu0 0
    %6762 = vmatpush1.bf16.msra.mxu0 0
    %6763 = vmatprep.subr.bf16.mxu0 0
    %6764 = vmatpush1.bf16.msra.mxu0 0
    %6765 = vmatprep.subr.bf16.mxu0 0
    %6766 = vmatpush1.bf16.msra.mxu0 0
    %6767 = vmatprep.mubr.bf16.mxu0 0
    %6768 = vmatmul.mubr.bf16.gmra.mrb[0].mxu0 %v6503
    %v6769 = vpop.f32.mrb[0].mxu0
    %v6770 = vadd.f32 %v6727, %v6769
    %v6771 = vpop.f32.mrb[0].mxu0
    %v6772 = vadd.f32 %v6729, %v6771
    %v6773 = vpop.f32.mrb[0].mxu0
    %v6774 = vadd.f32 %v6731, %v6773
    %v6775 = vpop.f32.mrb[0].mxu0
    %v6776 = vadd.f32 %v6733, %v6775
    %6777 = vdwg.mxu0
    %6778 = vmatprep.subr.bf16.mxu0 0
    %6779 = vmatpush1.bf16.msra.mxu0 %v6181
    %6780 = vmatprep.subr.bf16.mxu0 0
    %6781 = vmatpush1.bf16.msra.mxu0 %v6186
    %6782 = vmatprep.subr.bf16.mxu0 0
    %6783 = vmatpush1.bf16.msra.mxu0 %v6191
    %6784 = vmatprep.subr.bf16.mxu0 0
    %6785 = vmatpush1.bf16.msra.mxu0 %v6196
    %6786 = vmatprep.subr.bf16.mxu0 0
    %6787 = vmatpush1.bf16.msra.mxu0 %v6201
    %6788 = vmatprep.subr.bf16.mxu0 0
    %6789 = vmatpush1.bf16.msra.mxu0 %v6206
    %6790 = vmatprep.subr.bf16.mxu0 0
    %6791 = vmatpush1.bf16.msra.mxu0 %v6211
    %6792 = vmatprep.subr.bf16.mxu0 0
    %6793 = vmatpush1.bf16.msra.mxu0 %v6216
    %6794 = vmatprep.subr.bf16.mxu0 0
    %6795 = vmatpush1.bf16.msra.mxu0 %v6221
    %6796 = vmatprep.subr.bf16.mxu0 0
    %6797 = vmatpush1.bf16.msra.mxu0 %v6226
    %6798 = vmatprep.subr.bf16.mxu0 0
    %6799 = vmatpush1.bf16.msra.mxu0 %v6231
    %6800 = vmatprep.subr.bf16.mxu0 0
    %6801 = vmatpush1.bf16.msra.mxu0 %v6236
    %6802 = vmatprep.subr.bf16.mxu0 0
    %6803 = vmatpush1.bf16.msra.mxu0 %v6241
    %6804 = vmatprep.subr.bf16.mxu0 0
    %6805 = vmatpush1.bf16.msra.mxu0 %v6246
    %6806 = vmatprep.subr.bf16.mxu0 0
    %6807 = vmatpush1.bf16.msra.mxu0 %v6251
    %6808 = vmatprep.subr.bf16.mxu0 0
    %6809 = vmatpush1.bf16.msra.mxu0 %v6256
    %6810 = vmatprep.mubr.bf16.mxu0 %v5429
    %6811 = vmatmul.mubr.bf16.gmra.mrb[0].mxu0 %v5428
    %v6812 = vpop.f32.mrb[0].mxu0
    %v6813 = vadd.f32 %v5651, %v6812
    %v6814 = vpop.f32.mrb[0].mxu0
    %v6815 = vpop.f32.mrb[0].mxu0
    %v6816 = vadd.f32 %v5651, %v6815
    %v6817 = vpop.f32.mrb[0].mxu0
    %6818 = vdwg.mxu0
    %6819 = vmatprep.subr.bf16.mxu0 0
    %6820 = vmatpush1.bf16.msra.mxu0 %v6261
    %6821 = vmatprep.subr.bf16.mxu0 0
    %6822 = vmatpush1.bf16.msra.mxu0 %v6266
    %6823 = vmatprep.subr.bf16.mxu0 0
    %6824 = vmatpush1.bf16.msra.mxu0 %v6271
    %6825 = vmatprep.subr.bf16.mxu0 0
    %6826 = vmatpush1.bf16.msra.mxu0 %v6276
    %6827 = vmatprep.subr.bf16.mxu0 0
    %6828 = vmatpush1.bf16.msra.mxu0 %v6281
    %6829 = vmatprep.subr.bf16.mxu0 0
    %6830 = vmatpush1.bf16.msra.mxu0 %v6286
    %6831 = vmatprep.subr.bf16.mxu0 0
    %6832 = vmatpush1.bf16.msra.mxu0 %v6291
    %6833 = vmatprep.subr.bf16.mxu0 0
    %6834 = vmatpush1.bf16.msra.mxu0 %v6296
    %6835 = vmatprep.subr.bf16.mxu0 0
    %6836 = vmatpush1.bf16.msra.mxu0 %v6301
    %6837 = vmatprep.subr.bf16.mxu0 0
    %6838 = vmatpush1.bf16.msra.mxu0 %v6306
    %6839 = vmatprep.subr.bf16.mxu0 0
    %6840 = vmatpush1.bf16.msra.mxu0 %v6311
    %6841 = vmatprep.subr.bf16.mxu0 0
    %6842 = vmatpush1.bf16.msra.mxu0 %v6316
    %6843 = vmatprep.subr.bf16.mxu0 0
    %6844 = vmatpush1.bf16.msra.mxu0 %v6321
    %6845 = vmatprep.subr.bf16.mxu0 0
    %6846 = vmatpush1.bf16.msra.mxu0 %v6326
    %6847 = vmatprep.subr.bf16.mxu0 0
    %6848 = vmatpush1.bf16.msra.mxu0 %v6331
    %6849 = vmatprep.subr.bf16.mxu0 0
    %6850 = vmatpush1.bf16.msra.mxu0 %v6336
    %6851 = vmatprep.mubr.bf16.mxu0 %v5431
    %6852 = vmatmul.mubr.bf16.gmra.mrb[0].mxu0 %v5430
    %v6853 = vpop.f32.mrb[0].mxu0
    %v6854 = vadd.f32 %v6813, %v6853
    %v6855 = vpop.f32.mrb[0].mxu0
    %v6856 = vpop.f32.mrb[0].mxu0
    %v6857 = vadd.f32 %v6816, %v6856
    %v6858 = vpop.f32.mrb[0].mxu0
    %6859 = vdwg.mxu0
    %6860 = vmatprep.subr.bf16.mxu0 0
    %6861 = vmatpush1.bf16.msra.mxu0 %v6518
    %6862 = vmatprep.subr.bf16.mxu0 0
    %6863 = vmatpush1.bf16.msra.mxu0 0
    %6864 = vmatprep.subr.bf16.mxu0 0
    %6865 = vmatpush1.bf16.msra.mxu0 0
    %6866 = vmatprep.subr.bf16.mxu0 0
    %6867 = vmatpush1.bf16.msra.mxu0 0
    %6868 = vmatprep.subr.bf16.mxu0 0
    %6869 = vmatpush1.bf16.msra.mxu0 0
    %6870 = vmatprep.subr.bf16.mxu0 0
    %6871 = vmatpush1.bf16.msra.mxu0 0
    %6872 = vmatprep.subr.bf16.mxu0 0
    %6873 = vmatpush1.bf16.msra.mxu0 0
    %6874 = vmatprep.subr.bf16.mxu0 0
    %6875 = vmatpush1.bf16.msra.mxu0 0
    %6876 = vmatprep.subr.bf16.mxu0 0
    %6877 = vmatpush1.bf16.msra.mxu0 0
    %6878 = vmatprep.subr.bf16.mxu0 0
    %6879 = vmatpush1.bf16.msra.mxu0 0
    %6880 = vmatprep.subr.bf16.mxu0 0
    %6881 = vmatpush1.bf16.msra.mxu0 0
    %6882 = vmatprep.subr.bf16.mxu0 0
    %6883 = vmatpush1.bf16.msra.mxu0 0
    %6884 = vmatprep.subr.bf16.mxu0 0
    %6885 = vmatpush1.bf16.msra.mxu0 0
    %6886 = vmatprep.subr.bf16.mxu0 0
    %6887 = vmatpush1.bf16.msra.mxu0 0
    %6888 = vmatprep.subr.bf16.mxu0 0
    %6889 = vmatpush1.bf16.msra.mxu0 0
    %6890 = vmatprep.subr.bf16.mxu0 0
    %6891 = vmatpush1.bf16.msra.mxu0 0
    %6892 = vmatprep.mubr.bf16.mxu0 0
    %6893 = vmatmul.mubr.bf16.gmra.mrb[0].mxu0 %v6503
    %v6894 = vpop.f32.mrb[0].mxu0
    %v6895 = vadd.f32 %v6854, %v6894
    %v6896 = vpop.f32.mrb[0].mxu0
    %v6897 = vpop.f32.mrb[0].mxu0
    %v6898 = vadd.f32 %v6857, %v6897
    %v6899 = vpop.f32.mrb[0].mxu0
    %6900 = vdwg.mxu0
    %v6901 = vadd.f32 %v6641, %v6645
    %v6902 = vrot.slane %v6901, 4
    %v6903 = vadd.f32 %v6901, %v6902
    %v6904 = vrot.slane %v6903, 2
    %v6905 = vadd.f32 %v6903, %v6904
    %v6906 = vrot.slane %v6905, 1
    %v6907 = vadd.f32 %v6905, %v6906
    %v6908 = vadd.f32 %v6643, %v6647
    %v6909 = vrot.slane %v6908, 4
    %v6910 = vadd.f32 %v6908, %v6909
    %v6911 = vrot.slane %v6910, 2
    %v6912 = vadd.f32 %v6910, %v6911
    %v6913 = vrot.slane %v6912, 1
    %v6914 = vadd.f32 %v6912, %v6913
    %v6915 = vadd.f32 %v6770, %v6774
    %v6916 = vrot.slane %v6915, 4
    %v6917 = vadd.f32 %v6915, %v6916
    %v6918 = vrot.slane %v6917, 2
    %v6919 = vadd.f32 %v6917, %v6918
    %v6920 = vrot.slane %v6919, 1
    %v6921 = vadd.f32 %v6919, %v6920
    %v6922 = vadd.f32 %v6772, %v6776
    %v6923 = vrot.slane %v6922, 4
    %v6924 = vadd.f32 %v6922, %v6923
    %v6925 = vrot.slane %v6924, 2
    %v6926 = vadd.f32 %v6924, %v6925
    %v6927 = vrot.slane %v6926, 1
    %v6928 = vadd.f32 %v6926, %v6927
    %v6929 = vsel %vm149, %v6895, 0.0
    %v6930 = vsel %vm149, %v6898, 0.0
    %v6931 = vadd.f32 %v6929, %v6930
    %v6932 = vrot.slane %v6931, 4
    %v6933 = vadd.f32 %v6931, %v6932
    %v6934 = vrot.slane %v6933, 2
    %v6935 = vadd.f32 %v6933, %v6934
    %v6936 = vrot.slane %v6935, 1
    %v6937 = vadd.f32 %v6935, %v6936
    %v6938 = vmul.f32 %v6641, %v6641
    %v6939 = vmul.f32 %v6643, %v6643
    %v6940 = vmul.f32 %v6770, %v6770
    %v6941 = vmul.f32 %v6772, %v6772
    %v6942 = vmul.f32 %v6895, %v6895
    %v6943 = vmul.f32 %v6645, %v6645
    %v6944 = vmul.f32 %v6647, %v6647
    %v6945 = vmul.f32 %v6774, %v6774
    %v6946 = vmul.f32 %v6776, %v6776
    %v6947 = vmul.f32 %v6898, %v6898
    %v6948 = vadd.f32 %v6938, %v6943
    %v6949 = vrot.slane %v6948, 4
    %v6950 = vadd.f32 %v6948, %v6949
    %v6951 = vrot.slane %v6950, 2
    %v6952 = vadd.f32 %v6950, %v6951
    %v6953 = vrot.slane %v6952, 1
    %v6954 = vadd.f32 %v6952, %v6953
    %v6955 = vadd.f32 %v6939, %v6944
    %v6956 = vrot.slane %v6955, 4
    %v6957 = vadd.f32 %v6955, %v6956
    %v6958 = vrot.slane %v6957, 2
    %v6959 = vadd.f32 %v6957, %v6958
    %v6960 = vrot.slane %v6959, 1
    %v6961 = vadd.f32 %v6959, %v6960
    %v6962 = vadd.f32 %v6940, %v6945
    %v6963 = vrot.slane %v6962, 4
    %v6964 = vadd.f32 %v6962, %v6963
    %v6965 = vrot.slane %v6964, 2
    %v6966 = vadd.f32 %v6964, %v6965
    %v6967 = vrot.slane %v6966, 1
    %v6968 = vadd.f32 %v6966, %v6967
    %v6969 = vadd.f32 %v6941, %v6946
    %v6970 = vrot.slane %v6969, 4
    %v6971 = vadd.f32 %v6969, %v6970
    %v6972 = vrot.slane %v6971, 2
    %v6973 = vadd.f32 %v6971, %v6972
    %v6974 = vrot.slane %v6973, 1
    %v6975 = vadd.f32 %v6973, %v6974
    %v6976 = vsel %vm149, %v6942, 0.0
    %v6977 = vsel %vm149, %v6947, 0.0
    %v6978 = vadd.f32 %v6976, %v6977
    %v6979 = vrot.slane %v6978, 4
    %v6980 = vadd.f32 %v6978, %v6979
    %v6981 = vrot.slane %v6980, 2
    %v6982 = vadd.f32 %v6980, %v6981
    %v6983 = vrot.slane %v6982, 1
    %v6984 = vadd.f32 %v6982, %v6983
    %v6985 = vmul.f32 %v6907, 0.0625
    %v6986 = vmul.f32 %v6914, 0.0625
    %v6987 = vmul.f32 %v6921, 0.0625
    %v6988 = vmul.f32 %v6928, 0.0625
    %v6989 = vmul.f32 %v6937, 0.0625
    %v6990 = vmul.f32 %v6954, 0.0625
    %v6991 = vmul.f32 %v6961, 0.0625
    %v6992 = vmul.f32 %v6968, 0.0625
    %v6993 = vmul.f32 %v6975, 0.0625
    %v6994 = vmul.f32 %v6984, 0.0625
    %v6995 = vmul.f32 %v6985, %v6985
    %v6996 = vmul.f32 %v6986, %v6986
    %v6997 = vmul.f32 %v6987, %v6987
    %v6998 = vmul.f32 %v6988, %v6988
    %v6999 = vmul.f32 %v6989, %v6989
    %v7000 = vsub.f32 %v6990, %v6995
    %v7001 = vsub.f32 %v6991, %v6996
    %v7002 = vsub.f32 %v6992, %v6997
    %v7003 = vsub.f32 %v6993, %v6998
    %v7004 = vsub.f32 %v6994, %v6999
    %v7005 = vadd.f32 %v7000, 1e-05
    %v7006 = vadd.f32 %v7001, 1e-05
    %v7007 = vadd.f32 %v7002, 1e-05
    %v7008 = vadd.f32 %v7003, 1e-05
    %v7009 = vadd.f32 %v7004, 1e-05
    %v7010 = vrsqrt.pop %v7005
    %v7011 = vrsqrt.pop %v7006
    %v7012 = vrsqrt.pop %v7007
    %v7013 = vrsqrt.pop %v7008
    %v7014 = vrsqrt.pop %v7009
    %s7015 = scalar_lea.vmem [#allocation9], 10
    %v7016 = vld [vmem:[%s7015] sm:$0x1f]
    %v7018 = vlaneseq
    %v7019 = vshrl.u32 %v7018, 7
    %v7020 = vsub.s32 0, %v7019
    %v7021 = vrot.slane %v7016, %v7020
    %v7022 = vlaneseq
    %v7023 = vshrl.u32 %v7022, 7
    %v7024 = vsub.s32 1, %v7023
    %v7025 = vrot.slane %v7016, %v7024
    %v7026 = vlaneseq
    %v7027 = vshrl.u32 %v7026, 7
    %v7028 = vsub.s32 2, %v7027
    %v7029 = vrot.slane %v7016, %v7028
    %v7030 = vlaneseq
    %v7031 = vshrl.u32 %v7030, 7
    %v7032 = vsub.s32 3, %v7031
    %v7033 = vrot.slane %v7016, %v7032
    %v7034 = vlaneseq
    %v7035 = vshrl.u32 %v7034, 7
    %v7036 = vsub.s32 4, %v7035
    %v7037 = vrot.slane %v7016, %v7036
    %v7043 = vmul.f32 %v7010, %v7021
    %v7044 = vmul.f32 %v7011, %v7025
    %v7045 = vmul.f32 %v7012, %v7029
    %v7046 = vmul.f32 %v7013, %v7033
    %v7047 = vmul.f32 %v7014, %v7037
    %s7048 = scalar_lea.vmem [#allocation11], 10
    %v7049 = vld [vmem:[%s7048] sm:$0x1f]
    %v7050 = vmul.f32 %v6985, %v7043
    %v7051 = vmul.f32 %v6986, %v7044
    %v7052 = vmul.f32 %v6987, %v7045
    %v7053 = vmul.f32 %v6988, %v7046
    %v7054 = vmul.f32 %v6989, %v7047
    %v7060 = vcombine.low %v7050, %v7051
    %v7061 = vcombine.low %v7052, %v7053
    %v7063 = vunpack.c.l.s4 1966171168
    %v7064 = vunpack.c.0.s8 %v7063
    %v7065 = vlaneseq
    %v7066 = vshrl.u32 %v7065, 7
    %v7067 = vsub.s32 %v7064, %v7066
    %v7068 = vrot.slane %v7060, %v7067
    %v7070 = vunpack.c.l.s4 1966171168
    %v7071 = vunpack.c.0.s8 %v7070
    %v7072 = vlaneseq
    %v7073 = vshrl.u32 %v7072, 7
    %v7074 = vsub.s32 %v7071, %v7073
    %v7075 = vrot.slane %v7061, %v7074
    %v7077 = vunpack.c.l.s4 1966171168
    %v7078 = vunpack.c.0.s8 %v7077
    %v7079 = vlaneseq
    %v7080 = vshrl.u32 %v7079, 7
    %v7081 = vsub.s32 %v7078, %v7080
    %v7082 = vrot.slane %v7054, %v7081
    %v7083 = vcombine.low %v7068, %v7075
    %v7085 = vunpack.c.l.s4 1966171168
    %v7086 = vunpack.c.0.s8 %v7085
    %v7087 = vlaneseq
    %v7088 = vshrl.u32 %v7087, 7
    %v7089 = vsub.s32 %v7086, %v7088
    %v7090 = vrot.slane %v7083, %v7089
    %v7092 = vunpack.c.l.s4 1966171168
    %v7093 = vunpack.c.0.s8 %v7092
    %v7094 = vlaneseq
    %v7095 = vshrl.u32 %v7094, 7
    %v7096 = vsub.s32 %v7093, %v7095
    %v7097 = vrot.slane %v7082, %v7096
    %v7098 = vcombine.low %v7090, %v7097
    %v7100 = vsub.f32 %v7049, %v7098
    %v7101 = vlaneseq
    %v7102 = vshrl.u32 %v7101, 7
    %v7103 = vsub.s32 0, %v7102
    %v7104 = vrot.slane %v7043, %v7103
    %v7105 = vlaneseq
    %v7106 = vshrl.u32 %v7105, 7
    %v7107 = vsub.s32 0, %v7106
    %v7108 = vrot.slane %v7044, %v7107
    %v7109 = vlaneseq
    %v7110 = vshrl.u32 %v7109, 7
    %v7111 = vsub.s32 0, %v7110
    %v7112 = vrot.slane %v7045, %v7111
    %v7113 = vlaneseq
    %v7114 = vshrl.u32 %v7113, 7
    %v7115 = vsub.s32 0, %v7114
    %v7116 = vrot.slane %v7046, %v7115
    %v7117 = vlaneseq
    %v7118 = vshrl.u32 %v7117, 7
    %v7119 = vsub.s32 0, %v7118
    %v7120 = vrot.slane %v7047, %v7119
    %v7121 = vmul.f32 %v6641, %v7104
    %v7122 = vmul.f32 %v6643, %v7108
    %v7123 = vmul.f32 %v6770, %v7112
    %v7124 = vmul.f32 %v6772, %v7116
    %v7125 = vmul.f32 %v6895, %v7120
    %v7126 = vmul.f32 %v6645, %v7104
    %v7127 = vmul.f32 %v6647, %v7108
    %v7128 = vmul.f32 %v6774, %v7112
    %v7129 = vmul.f32 %v6776, %v7116
    %v7130 = vmul.f32 %v6898, %v7120
    %v7132 = vlaneseq
    %v7133 = vshrl.u32 %v7132, 7
    %v7134 = vsub.s32 0, %v7133
    %v7135 = vrot.slane %v7100, %v7134
    %v7136 = vlaneseq
    %v7137 = vshrl.u32 %v7136, 7
    %v7138 = vsub.s32 1, %v7137
    %v7139 = vrot.slane %v7100, %v7138
    %v7140 = vlaneseq
    %v7141 = vshrl.u32 %v7140, 7
    %v7142 = vsub.s32 2, %v7141
    %v7143 = vrot.slane %v7100, %v7142
    %v7144 = vlaneseq
    %v7145 = vshrl.u32 %v7144, 7
    %v7146 = vsub.s32 3, %v7145
    %v7147 = vrot.slane %v7100, %v7146
    %v7148 = vlaneseq
    %v7149 = vshrl.u32 %v7148, 7
    %v7150 = vsub.s32 4, %v7149
    %v7151 = vrot.slane %v7100, %v7150
    %v7157 = vadd.f32 %v7121, %v7135
    %v7158 = vadd.f32 %v7122, %v7139
    %v7159 = vadd.f32 %v7123, %v7143
    %v7160 = vadd.f32 %v7124, %v7147
    %v7161 = vadd.f32 %v7125, %v7151
    %v7162 = vadd.f32 %v7126, %v7135
    %v7163 = vadd.f32 %v7127, %v7139
    %v7164 = vadd.f32 %v7128, %v7143
    %v7165 = vadd.f32 %v7129, %v7147
    %v7166 = vadd.f32 %v7130, %v7151
    %v7167 = vmax.f32 %v7157, 0.0
    %v7168 = vmax.f32 %v7158, 0.0
    %v7169 = vmax.f32 %v7159, 0.0
    %v7170 = vmax.f32 %v7160, 0.0
    %v7171 = vmax.f32 %v7161, 0.0
    %v7172 = vmax.f32 %v7162, 0.0
    %v7173 = vmax.f32 %v7163, 0.0
    %v7174 = vmax.f32 %v7164, 0.0
    %v7175 = vmax.f32 %v7165, 0.0
    %v7176 = vmax.f32 %v7166, 0.0
    %v7177 = vpack.c.bf16 %v7172, %v7167
    %v7178 = vpack.c.bf16 %v7173, %v7168
    %v7179 = vpack.c.bf16 %v7174, %v7169
    %v7180 = vpack.c.bf16 %v7175, %v7170
    %v7181 = vpack.c.bf16 %v7176, %v7171
    %v7182 = vld [vmem:[#allocation12] sm:$0xff]
    %v7183 = vld [vmem:[#allocation12 + $0x8] sm:$0xff]
    %v7184 = vld [vmem:[#allocation12 + $0x10] sm:$0xff]
    %v7185 = vld [vmem:[#allocation12 + $0x18] sm:$0xff]
    %v7186 = vld [vmem:[#allocation12 + $0x20] sm:$0xff]
    %v7187 = vld [vmem:[#allocation12 + $0x28] sm:$0xff]
    %v7188 = vld [vmem:[#allocation12 + $0x30] sm:$0xff]
    %v7189 = vld [vmem:[#allocation12 + $0x38] sm:$0xff]
    %v7190 = vld [vmem:[#allocation12 + $0x40] sm:$0xff]
    %v7191 = vld [vmem:[#allocation12 + $0x48] sm:$0xff]
    %v7192 = vld [vmem:[#allocation12 + $0x50] sm:$0xff]
    %v7193 = vld [vmem:[#allocation12 + $0x58] sm:$0xff]
    %v7194 = vld [vmem:[#allocation12 + $0x60] sm:$0xff]
    %v7195 = vld [vmem:[#allocation12 + $0x68] sm:$0xff]
    %v7196 = vld [vmem:[#allocation12 + $0x70] sm:$0xff]
    %v7197 = vld [vmem:[#allocation12 + $0x78] sm:$0xff]
    %v7198 = vld [vmem:[#allocation12 + $0x80] sm:$0xff]
    %v7199 = vld [vmem:[#allocation12 + $0x88] sm:$0xff]
    %v7200 = vld [vmem:[#allocation12 + $0x90] sm:$0xff]
    %v7201 = vld [vmem:[#allocation12 + $0x98] sm:$0xff]
    %v7202 = vld [vmem:[#allocation12 + $0xa0] sm:$0xff]
    %v7203 = vld [vmem:[#allocation12 + $0xa8] sm:$0xff]
    %v7204 = vld [vmem:[#allocation12 + $0xb0] sm:$0xff]
    %v7205 = vld [vmem:[#allocation12 + $0xb8] sm:$0xff]
    %v7206 = vld [vmem:[#allocation12 + $0xc0] sm:$0xff]
    %v7207 = vld [vmem:[#allocation12 + $0xc8] sm:$0xff]
    %v7208 = vld [vmem:[#allocation12 + $0xd0] sm:$0xff]
    %v7209 = vld [vmem:[#allocation12 + $0xd8] sm:$0xff]
    %v7210 = vld [vmem:[#allocation12 + $0xe0] sm:$0xff]
    %v7211 = vld [vmem:[#allocation12 + $0xe8] sm:$0xff]
    %v7212 = vld [vmem:[#allocation12 + $0xf0] sm:$0xff]
    %v7213 = vld [vmem:[#allocation12 + $0xf8] sm:$0xff]
    %v7214 = vld [vmem:[#allocation12 + $0x100] sm:$0xff]
    %v7215 = vld [vmem:[#allocation12 + $0x108] sm:$0xff]
    %v7216 = vld [vmem:[#allocation12 + $0x110] sm:$0xff]
    %v7217 = vld [vmem:[#allocation12 + $0x118] sm:$0xff]
    %v7218 = vld [vmem:[#allocation12 + $0x120] sm:$0xff]
    %v7219 = vld [vmem:[#allocation12 + $0x128] sm:$0xff]
    %v7220 = vld [vmem:[#allocation12 + $0x130] sm:$0xff]
    %v7221 = vld [vmem:[#allocation12 + $0x138] sm:$0xff]
    %v7222 = vld [vmem:[#allocation12 + $0x140] sm:$0xff]
    %v7223 = vld [vmem:[#allocation12 + $0x148] sm:$0xff]
    %v7224 = vld [vmem:[#allocation12 + $0x150] sm:$0xff]
    %v7225 = vld [vmem:[#allocation12 + $0x158] sm:$0xff]
    %v7226 = vld [vmem:[#allocation12 + $0x160] sm:$0xff]
    %v7227 = vld [vmem:[#allocation12 + $0x168] sm:$0xff]
    %v7228 = vld [vmem:[#allocation12 + $0x170] sm:$0xff]
    %v7229 = vld [vmem:[#allocation12 + $0x178] sm:$0xff]
    %v7230 = vld [vmem:[#allocation12 + $0x180] sm:$0xff]
    %v7231 = vld [vmem:[#allocation12 + $0x188] sm:$0xff]
    %v7232 = vld [vmem:[#allocation12 + $0x190] sm:$0xff]
    %v7233 = vld [vmem:[#allocation12 + $0x198] sm:$0xff]
    %v7234 = vld [vmem:[#allocation12 + $0x1a0] sm:$0xff]
    %v7235 = vld [vmem:[#allocation12 + $0x1a8] sm:$0xff]
    %v7236 = vld [vmem:[#allocation12 + $0x1b0] sm:$0xff]
    %v7237 = vld [vmem:[#allocation12 + $0x1b8] sm:$0xff]
    %v7238 = vld [vmem:[#allocation12 + $0x1c0] sm:$0xff]
    %v7239 = vld [vmem:[#allocation12 + $0x1c8] sm:$0xff]
    %v7240 = vld [vmem:[#allocation12 + $0x1d0] sm:$0xff]
    %v7241 = vld [vmem:[#allocation12 + $0x1d8] sm:$0xff]
    %v7242 = vld [vmem:[#allocation12 + $0x1e0] sm:$0xff]
    %v7243 = vld [vmem:[#allocation12 + $0x1e8] sm:$0xff]
    %v7244 = vld [vmem:[#allocation12 + $0x1f0] sm:$0xff]
    %v7245 = vld [vmem:[#allocation12 + $0x1f8] sm:$0xff]
    %v7246 = vld [vmem:[#allocation12 + $0x200] sm:$0x11]
    %v7247 = vld [vmem:[#allocation14] sm:$0x3]
    %v7249 = vlaneseq
    %v7250 = vshrl.u32 %v7249, 7
    %v7251 = vsub.s32 0, %v7250
    %v7252 = vrot.slane %v7247, %v7251
    %v7253 = vlaneseq
    %v7254 = vshrl.u32 %v7253, 7
    %v7255 = vsub.s32 1, %v7254
    %v7256 = vrot.slane %v7247, %v7255
    %v7324 = vunpack.c.l.b16 %v7182
    %v7325 = vunpack.c.h.b16 %v7182
    %v7326 = vunpack.c.l.b16 %v7183
    %v7327 = vunpack.c.h.b16 %v7183
    %v7328 = vunpack.c.l.b16 %v7184
    %v7329 = vunpack.c.h.b16 %v7184
    %v7330 = vunpack.c.l.b16 %v7185
    %v7331 = vunpack.c.h.b16 %v7185
    %v7332 = vunpack.c.l.b16 %v7186
    %v7333 = vunpack.c.h.b16 %v7186
    %v7334 = vunpack.c.l.b16 %v7187
    %v7335 = vunpack.c.h.b16 %v7187
    %v7336 = vunpack.c.l.b16 %v7188
    %v7337 = vunpack.c.h.b16 %v7188
    %v7338 = vunpack.c.l.b16 %v7189
    %v7339 = vunpack.c.h.b16 %v7189
    %v7340 = vunpack.c.l.b16 %v7190
    %v7341 = vunpack.c.h.b16 %v7190
    %v7342 = vunpack.c.l.b16 %v7191
    %v7343 = vunpack.c.h.b16 %v7191
    %v7344 = vunpack.c.l.b16 %v7192
    %v7345 = vunpack.c.h.b16 %v7192
    %v7346 = vunpack.c.l.b16 %v7193
    %v7347 = vunpack.c.h.b16 %v7193
    %v7348 = vunpack.c.l.b16 %v7194
    %v7349 = vunpack.c.h.b16 %v7194
    %v7350 = vunpack.c.l.b16 %v7195
    %v7351 = vunpack.c.h.b16 %v7195
    %v7352 = vunpack.c.l.b16 %v7196
    %v7353 = vunpack.c.h.b16 %v7196
    %v7354 = vunpack.c.l.b16 %v7197
    %v7355 = vunpack.c.h.b16 %v7197
    %v7356 = vunpack.c.l.b16 %v7198
    %v7357 = vunpack.c.h.b16 %v7198
    %v7358 = vunpack.c.l.b16 %v7199
    %v7359 = vunpack.c.h.b16 %v7199
    %v7360 = vunpack.c.l.b16 %v7200
    %v7361 = vunpack.c.h.b16 %v7200
    %v7362 = vunpack.c.l.b16 %v7201
    %v7363 = vunpack.c.h.b16 %v7201
    %v7364 = vunpack.c.l.b16 %v7202
    %v7365 = vunpack.c.h.b16 %v7202
    %v7366 = vunpack.c.l.b16 %v7203
    %v7367 = vunpack.c.h.b16 %v7203
    %v7368 = vunpack.c.l.b16 %v7204
    %v7369 = vunpack.c.h.b16 %v7204
    %v7370 = vunpack.c.l.b16 %v7205
    %v7371 = vunpack.c.h.b16 %v7205
    %v7372 = vunpack.c.l.b16 %v7206
    %v7373 = vunpack.c.h.b16 %v7206
    %v7374 = vunpack.c.l.b16 %v7207
    %v7375 = vunpack.c.h.b16 %v7207
    %v7376 = vunpack.c.l.b16 %v7208
    %v7377 = vunpack.c.h.b16 %v7208
    %v7378 = vunpack.c.l.b16 %v7209
    %v7379 = vunpack.c.h.b16 %v7209
    %v7380 = vunpack.c.l.b16 %v7210
    %v7381 = vunpack.c.h.b16 %v7210
    %v7382 = vunpack.c.l.b16 %v7211
    %v7383 = vunpack.c.h.b16 %v7211
    %v7384 = vunpack.c.l.b16 %v7212
    %v7385 = vunpack.c.h.b16 %v7212
    %v7386 = vunpack.c.l.b16 %v7213
    %v7387 = vunpack.c.h.b16 %v7213
    %v7388 = vunpack.c.l.b16 %v7214
    %v7389 = vunpack.c.h.b16 %v7214
    %v7390 = vunpack.c.l.b16 %v7215
    %v7391 = vunpack.c.h.b16 %v7215
    %v7392 = vunpack.c.l.b16 %v7216
    %v7393 = vunpack.c.h.b16 %v7216
    %v7394 = vunpack.c.l.b16 %v7217
    %v7395 = vunpack.c.h.b16 %v7217
    %v7396 = vunpack.c.l.b16 %v7218
    %v7397 = vunpack.c.h.b16 %v7218
    %v7398 = vunpack.c.l.b16 %v7219
    %v7399 = vunpack.c.h.b16 %v7219
    %v7400 = vunpack.c.l.b16 %v7220
    %v7401 = vunpack.c.h.b16 %v7220
    %v7402 = vunpack.c.l.b16 %v7221
    %v7403 = vunpack.c.h.b16 %v7221
    %v7404 = vunpack.c.l.b16 %v7222
    %v7405 = vunpack.c.h.b16 %v7222
    %v7406 = vunpack.c.l.b16 %v7223
    %v7407 = vunpack.c.h.b16 %v7223
    %v7408 = vunpack.c.l.b16 %v7224
    %v7409 = vunpack.c.h.b16 %v7224
    %v7410 = vunpack.c.l.b16 %v7225
    %v7411 = vunpack.c.h.b16 %v7225
    %v7412 = vunpack.c.l.b16 %v7226
    %v7413 = vunpack.c.h.b16 %v7226
    %v7414 = vunpack.c.l.b16 %v7227
    %v7415 = vunpack.c.h.b16 %v7227
    %v7416 = vunpack.c.l.b16 %v7228
    %v7417 = vunpack.c.h.b16 %v7228
    %v7418 = vunpack.c.l.b16 %v7229
    %v7419 = vunpack.c.h.b16 %v7229
    %v7420 = vunpack.c.l.b16 %v7230
    %v7421 = vunpack.c.h.b16 %v7230
    %v7422 = vunpack.c.l.b16 %v7231
    %v7423 = vunpack.c.h.b16 %v7231
    %v7424 = vunpack.c.l.b16 %v7232
    %v7425 = vunpack.c.h.b16 %v7232
    %v7426 = vunpack.c.l.b16 %v7233
    %v7427 = vunpack.c.h.b16 %v7233
    %v7428 = vunpack.c.l.b16 %v7234
    %v7429 = vunpack.c.h.b16 %v7234
    %v7430 = vunpack.c.l.b16 %v7235
    %v7431 = vunpack.c.h.b16 %v7235
    %v7432 = vunpack.c.l.b16 %v7236
    %v7433 = vunpack.c.h.b16 %v7236
    %v7434 = vunpack.c.l.b16 %v7237
    %v7435 = vunpack.c.h.b16 %v7237
    %v7436 = vunpack.c.l.b16 %v7238
    %v7437 = vunpack.c.h.b16 %v7238
    %v7438 = vunpack.c.l.b16 %v7239
    %v7439 = vunpack.c.h.b16 %v7239
    %v7440 = vunpack.c.l.b16 %v7240
    %v7441 = vunpack.c.h.b16 %v7240
    %v7442 = vunpack.c.l.b16 %v7241
    %v7443 = vunpack.c.h.b16 %v7241
    %v7444 = vunpack.c.l.b16 %v7242
    %v7445 = vunpack.c.h.b16 %v7242
    %v7446 = vunpack.c.l.b16 %v7243
    %v7447 = vunpack.c.h.b16 %v7243
    %v7448 = vunpack.c.l.b16 %v7244
    %v7449 = vunpack.c.h.b16 %v7244
    %v7450 = vunpack.c.l.b16 %v7245
    %v7451 = vunpack.c.h.b16 %v7245
    %v7452 = vunpack.c.l.b16 %v7246
    %v7453 = vunpack.c.h.b16 %v7246
    %v7454 = vpack.c.b16 %v7326, %v7324
    %v7455 = vpack.c.b16 %v7327, %v7325
    %v7456 = vpack.c.b16 %v7330, %v7328
    %v7457 = vpack.c.b16 %v7331, %v7329
    %v7458 = vpack.c.b16 %v7334, %v7332
    %v7459 = vpack.c.b16 %v7335, %v7333
    %v7460 = vpack.c.b16 %v7338, %v7336
    %v7461 = vpack.c.b16 %v7339, %v7337
    %v7462 = vpack.c.b16 %v7342, %v7340
    %v7463 = vpack.c.b16 %v7343, %v7341
    %v7464 = vpack.c.b16 %v7346, %v7344
    %v7465 = vpack.c.b16 %v7347, %v7345
    %v7466 = vpack.c.b16 %v7350, %v7348
    %v7467 = vpack.c.b16 %v7351, %v7349
    %v7468 = vpack.c.b16 %v7354, %v7352
    %v7469 = vpack.c.b16 %v7355, %v7353
    %v7470 = vpack.c.b16 %v7358, %v7356
    %v7471 = vpack.c.b16 %v7359, %v7357
    %v7472 = vpack.c.b16 %v7362, %v7360
    %v7473 = vpack.c.b16 %v7363, %v7361
    %v7474 = vpack.c.b16 %v7366, %v7364
    %v7475 = vpack.c.b16 %v7367, %v7365
    %v7476 = vpack.c.b16 %v7370, %v7368
    %v7477 = vpack.c.b16 %v7371, %v7369
    %v7478 = vpack.c.b16 %v7374, %v7372
    %v7479 = vpack.c.b16 %v7375, %v7373
    %v7480 = vpack.c.b16 %v7378, %v7376
    %v7481 = vpack.c.b16 %v7379, %v7377
    %v7482 = vpack.c.b16 %v7382, %v7380
    %v7483 = vpack.c.b16 %v7383, %v7381
    %v7484 = vpack.c.b16 %v7386, %v7384
    %v7485 = vpack.c.b16 %v7387, %v7385
    %v7486 = vpack.c.b16 %v7390, %v7388
    %v7487 = vpack.c.b16 %v7391, %v7389
    %v7488 = vpack.c.b16 %v7394, %v7392
    %v7489 = vpack.c.b16 %v7395, %v7393
    %v7490 = vpack.c.b16 %v7398, %v7396
    %v7491 = vpack.c.b16 %v7399, %v7397
    %v7492 = vpack.c.b16 %v7402, %v7400
    %v7493 = vpack.c.b16 %v7403, %v7401
    %v7494 = vpack.c.b16 %v7406, %v7404
    %v7495 = vpack.c.b16 %v7407, %v7405
    %v7496 = vpack.c.b16 %v7410, %v7408
    %v7497 = vpack.c.b16 %v7411, %v7409
    %v7498 = vpack.c.b16 %v7414, %v7412
    %v7499 = vpack.c.b16 %v7415, %v7413
    %v7500 = vpack.c.b16 %v7418, %v7416
    %v7501 = vpack.c.b16 %v7419, %v7417
    %v7502 = vpack.c.b16 %v7422, %v7420
    %v7503 = vpack.c.b16 %v7423, %v7421
    %v7504 = vpack.c.b16 %v7426, %v7424
    %v7505 = vpack.c.b16 %v7427, %v7425
    %v7506 = vpack.c.b16 %v7430, %v7428
    %v7507 = vpack.c.b16 %v7431, %v7429
    %v7508 = vpack.c.b16 %v7434, %v7432
    %v7509 = vpack.c.b16 %v7435, %v7433
    %v7510 = vpack.c.b16 %v7438, %v7436
    %v7511 = vpack.c.b16 %v7439, %v7437
    %v7512 = vpack.c.b16 %v7442, %v7440
    %v7513 = vpack.c.b16 %v7443, %v7441
    %v7514 = vpack.c.b16 %v7446, %v7444
    %v7515 = vpack.c.b16 %v7447, %v7445
    %v7516 = vpack.c.b16 %v7450, %v7448
    %v7517 = vpack.c.b16 %v7451, %v7449
    %v7518 = vpack.c.b16 %v7452, %v7452
    %v7519 = vpack.c.b16 %v7453, %v7453
    %v7585 = vsel %vm149, %v7181, 0
    %v7588 = vsel %vm1840, %v7518, 0
    %v7591 = vsel %vm1840, %v7519, 0
    %7593 = vmatprep.subr.bf16.mxu0 %v7455
    %7594 = vmatpush1.bf16.msra.mxu0 %v7454
    %7595 = vmatprep.subr.bf16.mxu0 %v7457
    %7596 = vmatpush1.bf16.msra.mxu0 %v7456
    %7597 = vmatprep.subr.bf16.mxu0 %v7459
    %7598 = vmatpush1.bf16.msra.mxu0 %v7458
    %7599 = vmatprep.subr.bf16.mxu0 %v7461
    %7600 = vmatpush1.bf16.msra.mxu0 %v7460
    %7601 = vmatprep.subr.bf16.mxu0 %v7463
    %7602 = vmatpush1.bf16.msra.mxu0 %v7462
    %7603 = vmatprep.subr.bf16.mxu0 %v7465
    %7604 = vmatpush1.bf16.msra.mxu0 %v7464
    %7605 = vmatprep.subr.bf16.mxu0 %v7467
    %7606 = vmatpush1.bf16.msra.mxu0 %v7466
    %7607 = vmatprep.subr.bf16.mxu0 %v7469
    %7608 = vmatpush1.bf16.msra.mxu0 %v7468
    %7609 = vmatprep.subr.bf16.mxu0 %v7471
    %7610 = vmatpush1.bf16.msra.mxu0 %v7470
    %7611 = vmatprep.subr.bf16.mxu0 %v7473
    %7612 = vmatpush1.bf16.msra.mxu0 %v7472
    %7613 = vmatprep.subr.bf16.mxu0 %v7475
    %7614 = vmatpush1.bf16.msra.mxu0 %v7474
    %7615 = vmatprep.subr.bf16.mxu0 %v7477
    %7616 = vmatpush1.bf16.msra.mxu0 %v7476
    %7617 = vmatprep.subr.bf16.mxu0 %v7479
    %7618 = vmatpush1.bf16.msra.mxu0 %v7478
    %7619 = vmatprep.subr.bf16.mxu0 %v7481
    %7620 = vmatpush1.bf16.msra.mxu0 %v7480
    %7621 = vmatprep.subr.bf16.mxu0 %v7483
    %7622 = vmatpush1.bf16.msra.mxu0 %v7482
    %7623 = vmatprep.subr.bf16.mxu0 %v7485
    %7624 = vmatpush1.bf16.msra.mxu0 %v7484
    %7625 = vmatprep.mubr.bf16.mxu0 %v7178
    %7626 = vmatmul.mubr.bf16.gmra.mrb[0].mxu0 %v7177
    %v7627 = vpop.f32.mrb[0].mxu0
    %v7628 = vadd.f32 %v7252, %v7627
    %v7629 = vpop.f32.mrb[0].mxu0
    %v7630 = vadd.f32 %v7256, %v7629
    %v7631 = vpop.f32.mrb[0].mxu0
    %v7632 = vadd.f32 %v7252, %v7631
    %v7633 = vpop.f32.mrb[0].mxu0
    %v7634 = vadd.f32 %v7256, %v7633
    %7635 = vdwg.mxu0
    %7636 = vmatprep.subr.bf16.mxu0 %v7487
    %7637 = vmatpush1.bf16.msra.mxu0 %v7486
    %7638 = vmatprep.subr.bf16.mxu0 %v7489
    %7639 = vmatpush1.bf16.msra.mxu0 %v7488
    %7640 = vmatprep.subr.bf16.mxu0 %v7491
    %7641 = vmatpush1.bf16.msra.mxu0 %v7490
    %7642 = vmatprep.subr.bf16.mxu0 %v7493
    %7643 = vmatpush1.bf16.msra.mxu0 %v7492
    %7644 = vmatprep.subr.bf16.mxu0 %v7495
    %7645 = vmatpush1.bf16.msra.mxu0 %v7494
    %7646 = vmatprep.subr.bf16.mxu0 %v7497
    %7647 = vmatpush1.bf16.msra.mxu0 %v7496
    %7648 = vmatprep.subr.bf16.mxu0 %v7499
    %7649 = vmatpush1.bf16.msra.mxu0 %v7498
    %7650 = vmatprep.subr.bf16.mxu0 %v7501
    %7651 = vmatpush1.bf16.msra.mxu0 %v7500
    %7652 = vmatprep.subr.bf16.mxu0 %v7503
    %7653 = vmatpush1.bf16.msra.mxu0 %v7502
    %7654 = vmatprep.subr.bf16.mxu0 %v7505
    %7655 = vmatpush1.bf16.msra.mxu0 %v7504
    %7656 = vmatprep.subr.bf16.mxu0 %v7507
    %7657 = vmatpush1.bf16.msra.mxu0 %v7506
    %7658 = vmatprep.subr.bf16.mxu0 %v7509
    %7659 = vmatpush1.bf16.msra.mxu0 %v7508
    %7660 = vmatprep.subr.bf16.mxu0 %v7511
    %7661 = vmatpush1.bf16.msra.mxu0 %v7510
    %7662 = vmatprep.subr.bf16.mxu0 %v7513
    %7663 = vmatpush1.bf16.msra.mxu0 %v7512
    %7664 = vmatprep.subr.bf16.mxu0 %v7515
    %7665 = vmatpush1.bf16.msra.mxu0 %v7514
    %7666 = vmatprep.subr.bf16.mxu0 %v7517
    %7667 = vmatpush1.bf16.msra.mxu0 %v7516
    %7668 = vmatprep.mubr.bf16.mxu0 %v7180
    %7669 = vmatmul.mubr.bf16.gmra.mrb[0].mxu0 %v7179
    %v7670 = vpop.f32.mrb[0].mxu0
    %v7671 = vadd.f32 %v7628, %v7670
    %v7672 = vpop.f32.mrb[0].mxu0
    %v7673 = vadd.f32 %v7630, %v7672
    %v7674 = vpop.f32.mrb[0].mxu0
    %v7675 = vadd.f32 %v7632, %v7674
    %v7676 = vpop.f32.mrb[0].mxu0
    %v7677 = vadd.f32 %v7634, %v7676
    %7678 = vdwg.mxu0
    %7679 = vmatprep.subr.bf16.mxu0 %v7591
    %7680 = vmatpush1.bf16.msra.mxu0 %v7588
    %7681 = vmatprep.subr.bf16.mxu0 0
    %7682 = vmatpush1.bf16.msra.mxu0 0
    %7683 = vmatprep.subr.bf16.mxu0 0
    %7684 = vmatpush1.bf16.msra.mxu0 0
    %7685 = vmatprep.subr.bf16.mxu0 0
    %7686 = vmatpush1.bf16.msra.mxu0 0
    %7687 = vmatprep.subr.bf16.mxu0 0
    %7688 = vmatpush1.bf16.msra.mxu0 0
    %7689 = vmatprep.subr.bf16.mxu0 0
    %7690 = vmatpush1.bf16.msra.mxu0 0
    %7691 = vmatprep.subr.bf16.mxu0 0
    %7692 = vmatpush1.bf16.msra.mxu0 0
    %7693 = vmatprep.subr.bf16.mxu0 0
    %7694 = vmatpush1.bf16.msra.mxu0 0
    %7695 = vmatprep.subr.bf16.mxu0 0
    %7696 = vmatpush1.bf16.msra.mxu0 0
    %7697 = vmatprep.subr.bf16.mxu0 0
    %7698 = vmatpush1.bf16.msra.mxu0 0
    %7699 = vmatprep.subr.bf16.mxu0 0
    %7700 = vmatpush1.bf16.msra.mxu0 0
    %7701 = vmatprep.subr.bf16.mxu0 0
    %7702 = vmatpush1.bf16.msra.mxu0 0
    %7703 = vmatprep.subr.bf16.mxu0 0
    %7704 = vmatpush1.bf16.msra.mxu0 0
    %7705 = vmatprep.subr.bf16.mxu0 0
    %7706 = vmatpush1.bf16.msra.mxu0 0
    %7707 = vmatprep.subr.bf16.mxu0 0
    %7708 = vmatpush1.bf16.msra.mxu0 0
    %7709 = vmatprep.subr.bf16.mxu0 0
    %7710 = vmatpush1.bf16.msra.mxu0 0
    %7711 = vmatprep.mubr.bf16.mxu0 0
    %7712 = vmatmul.mubr.bf16.gmra.mrb[0].mxu0 %v7585
    %v7713 = vpop.f32.mrb[0].mxu0
    %v7714 = vadd.f32 %v7671, %v7713
    %v7715 = vpop.f32.mrb[0].mxu0
    %v7716 = vadd.f32 %v7673, %v7715
    %v7717 = vpop.f32.mrb[0].mxu0
    %v7718 = vadd.f32 %v7675, %v7717
    %v7719 = vpop.f32.mrb[0].mxu0
    %v7720 = vadd.f32 %v7677, %v7719
    %7721 = vdwg.mxu0
    %v7722 = vmax.f32 %v7714, 0.0
    %v7723 = vmax.f32 %v7716, 0.0
    %v7724 = vmax.f32 %v7718, 0.0
    %v7725 = vmax.f32 %v7720, 0.0
    %v7726 = vpack.c.bf16 %v7724, %v7722
    %v7727 = vpack.c.bf16 %v7725, %v7723
    %v7728 = vld [vmem:[%s9] sm:$0xf]
    %v7729 = vld [vmem:[%s9 + $0x4] sm:$0xf]
    %v7730 = vld [vmem:[%s9 + $0x8] sm:$0xf]
    %v7731 = vld [vmem:[%s9 + $0xc] sm:$0xf]
    %v7732 = vld [vmem:[%s9 + $0x10] sm:$0xf]
    %v7733 = vld [vmem:[%s9 + $0x14] sm:$0xf]
    %v7734 = vld [vmem:[%s9 + $0x18] sm:$0xf]
    %v7735 = vld [vmem:[%s9 + $0x1c] sm:$0xf]
    %v7736 = vld [vmem:[%s9 + $0x20] sm:$0xf]
    %v7737 = vld [vmem:[%s9 + $0x24] sm:$0xf]
    %v7738 = vld [vmem:[%s9 + $0x28] sm:$0xf]
    %v7739 = vld [vmem:[%s9 + $0x2c] sm:$0xf]
    %v7740 = vld [vmem:[%s9 + $0x30] sm:$0xf]
    %v7741 = vld [vmem:[%s9 + $0x34] sm:$0xf]
    %v7742 = vld [vmem:[%s9 + $0x38] sm:$0xf]
    %v7743 = vld [vmem:[%s9 + $0x3c] sm:$0xf]
    %v7744 = vld [vmem:[%s9 + $0x40] sm:$0xf]
    %v7745 = vld [vmem:[%s9 + $0x44] sm:$0xf]
    %v7746 = vld [vmem:[%s9 + $0x48] sm:$0xf]
    %v7747 = vld [vmem:[%s9 + $0x4c] sm:$0xf]
    %v7748 = vld [vmem:[%s9 + $0x50] sm:$0xf]
    %v7749 = vld [vmem:[%s9 + $0x54] sm:$0xf]
    %v7750 = vld [vmem:[%s9 + $0x58] sm:$0xf]
    %v7751 = vld [vmem:[%s9 + $0x5c] sm:$0xf]
    %v7752 = vld [vmem:[%s9 + $0x60] sm:$0xf]
    %v7753 = vld [vmem:[%s9 + $0x64] sm:$0xf]
    %v7754 = vld [vmem:[%s9 + $0x68] sm:$0xf]
    %v7755 = vld [vmem:[%s9 + $0x6c] sm:$0xf]
    %v7756 = vld [vmem:[%s9 + $0x70] sm:$0xf]
    %v7757 = vld [vmem:[%s9 + $0x74] sm:$0xf]
    %v7758 = vld [vmem:[%s9 + $0x78] sm:$0xf]
    %v7759 = vld [vmem:[%s9 + $0x7c] sm:$0xf]
    %v7760 = vld [vmem:[#allocation15] sm:$0x1]
    %v7762 = vlaneseq
    %v7763 = vshrl.u32 %v7762, 7
    %v7764 = vsub.s32 0, %v7763
    %v7765 = vrot.slane %v7760, %v7764
    %v7799 = vunpack.c.l.b16 %v7728
    %v7800 = vunpack.c.l.b16 %v7729
    %v7801 = vunpack.c.l.b16 %v7730
    %v7802 = vunpack.c.l.b16 %v7731
    %v7803 = vunpack.c.l.b16 %v7732
    %v7804 = vunpack.c.l.b16 %v7733
    %v7805 = vunpack.c.l.b16 %v7734
    %v7806 = vunpack.c.l.b16 %v7735
    %v7807 = vunpack.c.l.b16 %v7736
    %v7808 = vunpack.c.l.b16 %v7737
    %v7809 = vunpack.c.l.b16 %v7738
    %v7810 = vunpack.c.l.b16 %v7739
    %v7811 = vunpack.c.l.b16 %v7740
    %v7812 = vunpack.c.l.b16 %v7741
    %v7813 = vunpack.c.l.b16 %v7742
    %v7814 = vunpack.c.l.b16 %v7743
    %v7815 = vunpack.c.l.b16 %v7744
    %v7816 = vunpack.c.l.b16 %v7745
    %v7817 = vunpack.c.l.b16 %v7746
    %v7818 = vunpack.c.l.b16 %v7747
    %v7819 = vunpack.c.l.b16 %v7748
    %v7820 = vunpack.c.l.b16 %v7749
    %v7821 = vunpack.c.l.b16 %v7750
    %v7822 = vunpack.c.l.b16 %v7751
    %v7823 = vunpack.c.l.b16 %v7752
    %v7824 = vunpack.c.l.b16 %v7753
    %v7825 = vunpack.c.l.b16 %v7754
    %v7826 = vunpack.c.l.b16 %v7755
    %v7827 = vunpack.c.l.b16 %v7756
    %v7828 = vunpack.c.l.b16 %v7757
    %v7829 = vunpack.c.l.b16 %v7758
    %v7830 = vunpack.c.l.b16 %v7759
    %v7831 = vpack.c.b16 %v7800, %v7799
    %v7832 = vpack.c.b16 %v7802, %v7801
    %v7833 = vpack.c.b16 %v7804, %v7803
    %v7834 = vpack.c.b16 %v7806, %v7805
    %v7835 = vpack.c.b16 %v7808, %v7807
    %v7836 = vpack.c.b16 %v7810, %v7809
    %v7837 = vpack.c.b16 %v7812, %v7811
    %v7838 = vpack.c.b16 %v7814, %v7813
    %v7839 = vpack.c.b16 %v7816, %v7815
    %v7840 = vpack.c.b16 %v7818, %v7817
    %v7841 = vpack.c.b16 %v7820, %v7819
    %v7842 = vpack.c.b16 %v7822, %v7821
    %v7843 = vpack.c.b16 %v7824, %v7823
    %v7844 = vpack.c.b16 %v7826, %v7825
    %v7845 = vpack.c.b16 %v7828, %v7827
    %v7846 = vpack.c.b16 %v7830, %v7829
    %7863 = vmatprep.subr.bf16.mxu0 0
    %7864 = vmatpush1.bf16.msra.mxu0 %v7831
    %7865 = vmatprep.subr.bf16.mxu0 0
    %7866 = vmatpush1.bf16.msra.mxu0 %v7832
    %7867 = vmatprep.subr.bf16.mxu0 0
    %7868 = vmatpush1.bf16.msra.mxu0 %v7833
    %7869 = vmatprep.subr.bf16.mxu0 0
    %7870 = vmatpush1.bf16.msra.mxu0 %v7834
    %7871 = vmatprep.subr.bf16.mxu0 0
    %7872 = vmatpush1.bf16.msra.mxu0 %v7835
    %7873 = vmatprep.subr.bf16.mxu0 0
    %7874 = vmatpush1.bf16.msra.mxu0 %v7836
    %7875 = vmatprep.subr.bf16.mxu0 0
    %7876 = vmatpush1.bf16.msra.mxu0 %v7837
    %7877 = vmatprep.subr.bf16.mxu0 0
    %7878 = vmatpush1.bf16.msra.mxu0 %v7838
    %7879 = vmatprep.subr.bf16.mxu0 0
    %7880 = vmatpush1.bf16.msra.mxu0 %v7839
    %7881 = vmatprep.subr.bf16.mxu0 0
    %7882 = vmatpush1.bf16.msra.mxu0 %v7840
    %7883 = vmatprep.subr.bf16.mxu0 0
    %7884 = vmatpush1.bf16.msra.mxu0 %v7841
    %7885 = vmatprep.subr.bf16.mxu0 0
    %7886 = vmatpush1.bf16.msra.mxu0 %v7842
    %7887 = vmatprep.subr.bf16.mxu0 0
    %7888 = vmatpush1.bf16.msra.mxu0 %v7843
    %7889 = vmatprep.subr.bf16.mxu0 0
    %7890 = vmatpush1.bf16.msra.mxu0 %v7844
    %7891 = vmatprep.subr.bf16.mxu0 0
    %7892 = vmatpush1.bf16.msra.mxu0 %v7845
    %7893 = vmatprep.subr.bf16.mxu0 0
    %7894 = vmatpush1.bf16.msra.mxu0 %v7846
    %7895 = vmatprep.mubr.bf16.mxu0 %v7727
    %7896 = vmatmul.mubr.bf16.gmra.mrb[0].mxu0 %v7726
    %v7897 = vpop.f32.mrb[0].mxu0
    %v7898 = vadd.f32 %v7765, %v7897
    %v7899 = vpop.f32.mrb[0].mxu0
    %v7900 = vpop.f32.mrb[0].mxu0
    %v7901 = vadd.f32 %v7765, %v7900
    %v7902 = vpop.f32.mrb[0].mxu0
    %7903 = vdwg.mxu0
    %vm7904 = vcmask 80896
    %7905 = vst.msk [vmem:[#allocation17] sm:$0xff] %vm7904, %v7898
    %7906 = vst.msk [vmem:[#allocation17 + $0x8] sm:$0xff] %vm7904, %v7901
    // Predicated region
    $region78: #{jungmin3_forward.1} parent=1 // pred_check
      _
    $region79: #{jungmin3_forward.1} parent=1 // pred_check_branch
      %7908 = sbr.rel (0) target = $region81
    $region80: #{jungmin3_forward.1} parent=1 // pred_region
      %s7910 = ssub.s32 256, 256
      %7911 = vsyncadd [#allocation5], %s7910
      %s7912 = sshll.u32 [#allocation17], 4
      %s7913 = int_to_ptr.vmem [resolvable:$true] %s7912
      %7918 = dma.vmem_to_hbm [thread:$0]  %s7913, 256, %s11, [#allocation5], 128, 128, 8
    $region81: #{jungmin3_forward.1} parent=1 // pred_fallthru
      _
    // Predicated region
    $region82: #{jungmin3_forward.1} parent=1 // pred_check
      _
    $region83: #{jungmin3_forward.1} parent=1 // pred_check_branch
      %7920 = sbr.rel (0) target = $region85
    $region84: #{jungmin3_forward.1} parent=1 // pred_region
      %7921 = dma.done [#allocation5], 256
    $region85: #{jungmin3_forward.1} parent=1 // pred_fallthru
      _
    %7922 = vsyncpa [#allocation4], 1
    %7923 = vsyncpa [#allocation7], 1
    %7924 = vsyncpa [#allocation10], 1
    %7925 = vsyncpa [#allocation13], 1
    %7926 = vsyncpa [#allocation16], 1
    %7927 = vsyncpa [#allocation5], 1

</llo_original>
